<compile_context>
chip_gen: v7x
topology: tpu7x:2x2x1
jax: 0.10.0
libtpu: 0.0.40
codegen_flags: <defaults>
</compile_context>

<pallas_src>
import jax
import jax.numpy as jnp
import numpy as np
from jax.experimental import pallas as pl
from jax.experimental.pallas import tpu as pltpu


# ---------------------------------------------------------------------------
# Fused kernel (runs once per sample, grid over batch)
# ---------------------------------------------------------------------------

def _fused_kernel(x_ref, w1_ref, b1_ref, s1_ref, w2_ref, b2_ref, s2_ref,
                  wf1_ref, bf1_ref, wf2_ref, bf2_ref, o_ref):
    f32 = jnp.float32
    bf16 = jnp.bfloat16

    def shift_left(v, d):
        # shifted[p] = v[p + d]   (wrap-around only touches invalid positions)
        n = v.shape[-1]
        return v if d == 0 else pltpu.roll(v, n - d, axis=1)

    def conv_relu(x_f32, w_ref, b_ref, stride, cout, p):
        # x_f32: (cin, p) flattened with row-stride `stride`.
        # out[co, oh*stride+ow] = relu(b[co] + sum_{kh,kw,ci} w*x) -- valid
        # only where oh, ow are inside the conv output window (rest is junk
        # that the pooling selection matmul never reads).
        acc = jnp.zeros((cout, p), f32)
        for kh in range(5):
            for kw in range(5):
                tap = shift_left(x_f32, kh * stride + kw).astype(bf16)
                acc = acc + jnp.dot(w_ref[kh * 5 + kw], tap,
                                    preferred_element_type=f32)
        return jnp.maximum(acc + b_ref[...], 0.0)

    def maxpool2x2(z, stride, s_ref):
        # 2x2/2 max pool fused as: max over the 4 taps via lane rolls, then a
        # constant 0/1 selection matmul that compacts stride->next stride.
        m = z
        for d in (1, stride, stride + 1):
            m = jnp.maximum(m, shift_left(z, d))
        return jnp.dot(m.astype(bf16), s_ref[...], preferred_element_type=f32)

    # conv1 + ReLU + pool : (3, 32, 32) -> (6, 14, 14)   [flat 1024 -> 256]
    z1 = conv_relu(x_ref[...], w1_ref, b1_ref, stride=32, cout=6, p=1024)
    p1 = maxpool2x2(z1, 32, s1_ref)                        # (6, 256) f32

    # conv2 + ReLU + pool : (6, 14, 14) -> (16, 5, 5)     [flat 256 -> 25]
    z2 = conv_relu(p1, w2_ref, b2_ref, stride=16, cout=16, p=256)
    p2 = maxpool2x2(z2, 16, s2_ref)                        # (16, 25) f32

    # fc1 + ReLU  (feature order (c, i*5+j) == torch .view(-1, 16*5*5))
    y = bf1_ref[...]                                       # (1, H0) f32
    for c in range(16):
        y = y + jnp.dot(p2[c:c + 1, :].astype(bf16), wf1_ref[c],
                        preferred_element_type=f32)
    y = jnp.maximum(y, 0.0)

    # fc2 + ReLU
    y = jnp.dot(y.astype(bf16), wf2_ref[...], preferred_element_type=f32)
    o_ref[...] = jnp.maximum(y + bf2_ref[...], 0.0)


# ---------------------------------------------------------------------------
# One-time parameter packing (outside jit; everything here is <= ~0.5 MB)
# ---------------------------------------------------------------------------

def _pool_select_matrix(src_stride, src_size, dst_stride):
    """0/1 matrix selecting flat (2i*src_stride + 2j) -> flat (i*dst_stride + j)."""
    out_hw = src_size // 2
    m = np.zeros((src_stride * src_stride, dst_stride * dst_stride), np.float32)
    for i in range(out_hw):
        for j in range(out_hw):
            m[(2 * i) * src_stride + 2 * j, i * dst_stride + j] = 1.0
    return m


def pack_params(params):
    bf16, f32 = jnp.bfloat16, jnp.float32
    h0 = params["fc1_w"].shape[0]
    h1 = params["fc2_w"].shape[0]
    return {
        # conv weights as (kh*kw, cout, cin): one 2D tap matrix per shift.
        "w1": jnp.asarray(params["conv1_w"].transpose(2, 3, 0, 1).reshape(25, 6, 3), bf16),
        "b1": jnp.asarray(params["conv1_b"].reshape(6, 1), f32),
        "w2": jnp.asarray(params["conv2_w"].transpose(2, 3, 0, 1).reshape(25, 16, 6), bf16),
        "b2": jnp.asarray(params["conv2_b"].reshape(16, 1), f32),
        # fc1 weight as (cin=16, 25, h0): contraction accumulated per channel,
        # so no in-kernel flatten/reshape is needed.
        "wf1": jnp.asarray(params["fc1_w"].reshape(h0, 16, 25).transpose(1, 2, 0), bf16),
        "bf1": jnp.asarray(params["fc1_b"].reshape(1, h0), f32),
        "wf2": jnp.asarray(params["fc2_w"].T, bf16),                    # (h0, h1)
        "bf2": jnp.asarray(params["fc2_b"].reshape(1, h1), f32),
        # constant pooling/compaction selection matrices.
        "s1": jnp.asarray(_pool_select_matrix(32, 28, 16), bf16),       # (1024, 256)
        "s2": jnp.asarray(_pool_select_matrix(16, 10, 5), bf16),        # (256, 25)
    }


# ---------------------------------------------------------------------------
# Forward wrapper
# ---------------------------------------------------------------------------

def simple_cnn_header_forward(packed, x):
    n = x.shape[0]
    h0 = packed["bf1"].shape[1]
    h1 = packed["bf2"].shape[1]
    x_flat = x.reshape(n, 3, 32 * 32)          # free reshape, stays in HBM layout

    def const_spec(shape):
        return pl.BlockSpec(shape, lambda b, _z=(0,) * len(shape): _z)

    out = pl.pallas_call(
        _fused_kernel,
        out_shape=jax.ShapeDtypeStruct((n, 1, h1), jnp.float32),
        grid_spec=pltpu.PrefetchScalarGridSpec(
            num_scalar_prefetch=0,
            grid=(n,),
            in_specs=[
                pl.BlockSpec((None, 3, 1024), lambda b: (b, 0, 0)),   # per-sample image
                const_spec((25, 6, 3)),        # conv1 w
                const_spec((6, 1)),            # conv1 b
                const_spec((1024, 256)),       # pool1 selection
                const_spec((25, 16, 6)),       # conv2 w
                const_spec((16, 1)),           # conv2 b
                const_spec((256, 25)),         # pool2 selection
                const_spec((16, 25, h0)),      # fc1 w
                const_spec((1, h0)),           # fc1 b
                const_spec((h0, h1)),          # fc2 w
                const_spec((1, h1)),           # fc2 b
            ],
            out_specs=pl.BlockSpec((None, 1, h1), lambda b: (b, 0, 0)),
        ),
        compiler_params=pltpu.CompilerParams(
            dimension_semantics=("parallel",)),
    )(x_flat, packed["w1"], packed["b1"], packed["s1"],
      packed["w2"], packed["b2"], packed["s2"],
      packed["wf1"], packed["bf1"], packed["wf2"], packed["bf2"])
    return out.reshape(n, h1)


# ---------------------------------------------------------------------------
# Plain-JAX reference (for correctness check) and param init
# ---------------------------------------------------------------------------

def _ref_pool(x):
    return jnp.max(jnp.stack([x[:, :, 0::2, 0::2], x[:, :, 0::2, 1::2],
                              x[:, :, 1::2, 0::2], x[:, :, 1::2, 1::2]]), axis=0)


def _reference_forward(params, x):
    dn = ("NCHW", "OIHW", "NCHW")
    y = jax.lax.conv_general_dilated(x, params["conv1_w"], (1, 1), "VALID",
                                     dimension_numbers=dn)
    y = _ref_pool(jnp.maximum(y + params["conv1_b"][None, :, None, None], 0.0))
    y = jax.lax.conv_general_dilated(y, params["conv2_w"], (1, 1), "VALID",
                                     dimension_numbers=dn)
    y = _ref_pool(jnp.maximum(y + params["conv2_b"][None, :, None, None], 0.0))
    y = y.reshape(y.shape[0], -1)
    y = jnp.maximum(y @ params["fc1_w"].T + params["fc1_b"], 0.0)
    y = jnp.maximum(y @ params["fc2_w"].T + params["fc2_b"], 0.0)
    return y


def init_params(key, input_dim, hidden_dims):
    ks = jax.random.split(key, 8)
    scale = 0.1
    return {
        "conv1_w": scale * jax.random.normal(ks[0], (6, 3, 5, 5), jnp.float32),
        "conv1_b": scale * jax.random.normal(ks[1], (6,), jnp.float32),
        "conv2_w": scale * jax.random.normal(ks[2], (16, 6, 5, 5), jnp.float32),
        "conv2_b": scale * jax.random.normal(ks[3], (16,), jnp.float32),
        "fc1_w": scale * jax.random.normal(ks[4], (hidden_dims[0], input_dim), jnp.float32),
        "fc1_b": scale * jax.random.normal(ks[5], (hidden_dims[0],), jnp.float32),
        "fc2_w": scale * jax.random.normal(ks[6], (hidden_dims[1], hidden_dims[0]), jnp.float32),
        "fc2_b": scale * jax.random.normal(ks[7], (hidden_dims[1],), jnp.float32),
    }


if __name__ == "__main__":
    key = jax.random.PRNGKey(0)
    k_param, k_x = jax.random.split(key)

    input_dim = 16 * 5 * 5                 # implied by x.view(-1, 16*5*5)
    hidden_dims = (32, 16)
    params = init_params(k_param, input_dim, hidden_dims)

    # 32x32 spatial input is forced by the conv/pool arithmetic -> 16*5*5
    x = jax.random.normal(k_x, (2, 3, 32, 32), jnp.float32)

    packed = pack_params(params)           # one-time weight repacking (outside jit)
    fwd = jax.jit(simple_cnn_header_forward)
    out = fwd(packed, x)
    jax.block_until_ready(out)

    ref = _reference_forward(params, x)
    assert out.shape == (2, hidden_dims[1]), out.shape
    assert bool(jnp.all(out >= 0.0))       # final ReLU
    np.testing.assert_allclose(np.asarray(out), np.asarray(ref), rtol=5e-2, atol=5e-2)
    print("KERNEL_OK")
</pallas_src>

<mosaic_0001>
module attributes {stable_mosaic.version = 11 : i64} {
  func.func @_fused_kernel(%arg0: i32, %arg1: memref<1x3x1024xf32, #tpu.memory_space<vmem>>, %arg2: memref<25x6x3xbf16, #tpu.memory_space<vmem>>, %arg3: memref<6x1xf32, #tpu.memory_space<vmem>>, %arg4: memref<1024x256xbf16, #tpu.memory_space<vmem>>, %arg5: memref<25x16x6xbf16, #tpu.memory_space<vmem>>, %arg6: memref<16x1xf32, #tpu.memory_space<vmem>>, %arg7: memref<256x25xbf16, #tpu.memory_space<vmem>>, %arg8: memref<16x25x32xbf16, #tpu.memory_space<vmem>>, %arg9: memref<1x32xf32, #tpu.memory_space<vmem>>, %arg10: memref<32x16xbf16, #tpu.memory_space<vmem>>, %arg11: memref<1x16xf32, #tpu.memory_space<vmem>>, %arg12: memref<1x1x16xf32, #tpu.memory_space<vmem>>) attributes {dimension_semantics = [#tpu.dimension_semantics<parallel>], iteration_bounds = array<i64: 2>, scalar_prefetch = 0 : i64, scratch_operands = 0 : i64, tpu.core_type = #tpu.core_type<tc>, window_params = [{transform_indices = @transform_0, window_bounds = array<i64: 1, 3, 1024>}, {pipeline_mode = #tpu.pipeline_mode<synchronous>, transform_indices = @transform_1, window_bounds = array<i64: 25, 6, 3>}, {pipeline_mode = #tpu.pipeline_mode<synchronous>, transform_indices = @transform_2, window_bounds = array<i64: 6, 1>}, {pipeline_mode = #tpu.pipeline_mode<synchronous>, transform_indices = @transform_3, window_bounds = array<i64: 1024, 256>}, {pipeline_mode = #tpu.pipeline_mode<synchronous>, transform_indices = @transform_4, window_bounds = array<i64: 25, 16, 6>}, {pipeline_mode = #tpu.pipeline_mode<synchronous>, transform_indices = @transform_5, window_bounds = array<i64: 16, 1>}, {pipeline_mode = #tpu.pipeline_mode<synchronous>, transform_indices = @transform_6, window_bounds = array<i64: 256, 25>}, {pipeline_mode = #tpu.pipeline_mode<synchronous>, transform_indices = @transform_7, window_bounds = array<i64: 16, 25, 32>}, {pipeline_mode = #tpu.pipeline_mode<synchronous>, transform_indices = @transform_8, window_bounds = array<i64: 1, 32>}, {pipeline_mode = #tpu.pipeline_mode<synchronous>, transform_indices = @transform_9, window_bounds = array<i64: 32, 16>}, {pipeline_mode = #tpu.pipeline_mode<synchronous>, transform_indices = @transform_10, window_bounds = array<i64: 1, 16>}, {transform_indices = @transform_11, window_bounds = array<i64: 1, 1, 16>}]} {
    %c0 = arith.constant 0 : index
    %c0_0 = arith.constant 0 : index
    %c0_1 = arith.constant 0 : index
    %0 = vector.load %arg1[%c0, %c0_0, %c0_1] : memref<1x3x1024xf32, #tpu.memory_space<vmem>>, vector<1x3x1024xf32>
    %1 = vector.shape_cast %0 : vector<1x3x1024xf32> to vector<3x1024xf32>
    %cst = arith.constant 0.000000e+00 : f32
    %2 = vector.broadcast %cst : f32 to vector<6x1024xf32>
    %3 = arith.truncf %1 : vector<3x1024xf32> to vector<3x1024xbf16>
    %c0_2 = arith.constant 0 : index
    %c0_3 = arith.constant 0 : index
    %c0_4 = arith.constant 0 : index
    %4 = vector.load %arg2[%c0_2, %c0_3, %c0_4] : memref<25x6x3xbf16, #tpu.memory_space<vmem>>, vector<1x6x3xbf16>
    %5 = vector.shape_cast %4 : vector<1x6x3xbf16> to vector<6x3xbf16>
    %cst_5 = arith.constant dense<0.000000e+00> : vector<6x1024xf32>
    %6 = tpu.matmul %5, %3, %cst_5 {dimension_numbers = #tpu.dot_dimension_numbers<[1], [0], [0], [1], [0, 0, 1, 1], [], []>} : vector<6x3xbf16>, vector<3x1024xbf16>, vector<6x1024xf32> -> vector<6x1024xf32>
    %7 = arith.addf %2, %6 : vector<6x1024xf32>
    %c1023_i32 = arith.constant 1023 : i32
    %8 = tpu.dynamic_rotate %1 by %c1023_i32 dim 1 : vector<3x1024xf32>, i32 -> vector<3x1024xf32>
    %9 = arith.truncf %8 : vector<3x1024xf32> to vector<3x1024xbf16>
    %c1 = arith.constant 1 : index
    %c0_6 = arith.constant 0 : index
    %c0_7 = arith.constant 0 : index
    %10 = vector.load %arg2[%c1, %c0_6, %c0_7] : memref<25x6x3xbf16, #tpu.memory_space<vmem>>, vector<1x6x3xbf16>
    %11 = vector.shape_cast %10 : vector<1x6x3xbf16> to vector<6x3xbf16>
    %cst_8 = arith.constant dense<0.000000e+00> : vector<6x1024xf32>
    %12 = tpu.matmul %11, %9, %cst_8 {dimension_numbers = #tpu.dot_dimension_numbers<[1], [0], [0], [1], [0, 0, 1, 1], [], []>} : vector<6x3xbf16>, vector<3x1024xbf16>, vector<6x1024xf32> -> vector<6x1024xf32>
    %13 = arith.addf %7, %12 : vector<6x1024xf32>
    %c1022_i32 = arith.constant 1022 : i32
    %14 = tpu.dynamic_rotate %1 by %c1022_i32 dim 1 : vector<3x1024xf32>, i32 -> vector<3x1024xf32>
    %15 = arith.truncf %14 : vector<3x1024xf32> to vector<3x1024xbf16>
    %c2 = arith.constant 2 : index
    %c0_9 = arith.constant 0 : index
    %c0_10 = arith.constant 0 : index
    %16 = vector.load %arg2[%c2, %c0_9, %c0_10] : memref<25x6x3xbf16, #tpu.memory_space<vmem>>, vector<1x6x3xbf16>
    %17 = vector.shape_cast %16 : vector<1x6x3xbf16> to vector<6x3xbf16>
    %cst_11 = arith.constant dense<0.000000e+00> : vector<6x1024xf32>
    %18 = tpu.matmul %17, %15, %cst_11 {dimension_numbers = #tpu.dot_dimension_numbers<[1], [0], [0], [1], [0, 0, 1, 1], [], []>} : vector<6x3xbf16>, vector<3x1024xbf16>, vector<6x1024xf32> -> vector<6x1024xf32>
    %19 = arith.addf %13, %18 : vector<6x1024xf32>
    %c1021_i32 = arith.constant 1021 : i32
    %20 = tpu.dynamic_rotate %1 by %c1021_i32 dim 1 : vector<3x1024xf32>, i32 -> vector<3x1024xf32>
    %21 = arith.truncf %20 : vector<3x1024xf32> to vector<3x1024xbf16>
    %c3 = arith.constant 3 : index
    %c0_12 = arith.constant 0 : index
    %c0_13 = arith.constant 0 : index
    %22 = vector.load %arg2[%c3, %c0_12, %c0_13] : memref<25x6x3xbf16, #tpu.memory_space<vmem>>, vector<1x6x3xbf16>
    %23 = vector.shape_cast %22 : vector<1x6x3xbf16> to vector<6x3xbf16>
    %cst_14 = arith.constant dense<0.000000e+00> : vector<6x1024xf32>
    %24 = tpu.matmul %23, %21, %cst_14 {dimension_numbers = #tpu.dot_dimension_numbers<[1], [0], [0], [1], [0, 0, 1, 1], [], []>} : vector<6x3xbf16>, vector<3x1024xbf16>, vector<6x1024xf32> -> vector<6x1024xf32>
    %25 = arith.addf %19, %24 : vector<6x1024xf32>
    %c1020_i32 = arith.constant 1020 : i32
    %26 = tpu.dynamic_rotate %1 by %c1020_i32 dim 1 : vector<3x1024xf32>, i32 -> vector<3x1024xf32>
    %27 = arith.truncf %26 : vector<3x1024xf32> to vector<3x1024xbf16>
    %c4 = arith.constant 4 : index
    %c0_15 = arith.constant 0 : index
    %c0_16 = arith.constant 0 : index
    %28 = vector.load %arg2[%c4, %c0_15, %c0_16] : memref<25x6x3xbf16, #tpu.memory_space<vmem>>, vector<1x6x3xbf16>
    %29 = vector.shape_cast %28 : vector<1x6x3xbf16> to vector<6x3xbf16>
    %cst_17 = arith.constant dense<0.000000e+00> : vector<6x1024xf32>
    %30 = tpu.matmul %29, %27, %cst_17 {dimension_numbers = #tpu.dot_dimension_numbers<[1], [0], [0], [1], [0, 0, 1, 1], [], []>} : vector<6x3xbf16>, vector<3x1024xbf16>, vector<6x1024xf32> -> vector<6x1024xf32>
    %31 = arith.addf %25, %30 : vector<6x1024xf32>
    %c992_i32 = arith.constant 992 : i32
    %32 = tpu.dynamic_rotate %1 by %c992_i32 dim 1 : vector<3x1024xf32>, i32 -> vector<3x1024xf32>
    %33 = arith.truncf %32 : vector<3x1024xf32> to vector<3x1024xbf16>
    %c5 = arith.constant 5 : index
    %c0_18 = arith.constant 0 : index
    %c0_19 = arith.constant 0 : index
    %34 = vector.load %arg2[%c5, %c0_18, %c0_19] : memref<25x6x3xbf16, #tpu.memory_space<vmem>>, vector<1x6x3xbf16>
    %35 = vector.shape_cast %34 : vector<1x6x3xbf16> to vector<6x3xbf16>
    %cst_20 = arith.constant dense<0.000000e+00> : vector<6x1024xf32>
    %36 = tpu.matmul %35, %33, %cst_20 {dimension_numbers = #tpu.dot_dimension_numbers<[1], [0], [0], [1], [0, 0, 1, 1], [], []>} : vector<6x3xbf16>, vector<3x1024xbf16>, vector<6x1024xf32> -> vector<6x1024xf32>
    %37 = arith.addf %31, %36 : vector<6x1024xf32>
    %c991_i32 = arith.constant 991 : i32
    %38 = tpu.dynamic_rotate %1 by %c991_i32 dim 1 : vector<3x1024xf32>, i32 -> vector<3x1024xf32>
    %39 = arith.truncf %38 : vector<3x1024xf32> to vector<3x1024xbf16>
    %c6 = arith.constant 6 : index
    %c0_21 = arith.constant 0 : index
    %c0_22 = arith.constant 0 : index
    %40 = vector.load %arg2[%c6, %c0_21, %c0_22] : memref<25x6x3xbf16, #tpu.memory_space<vmem>>, vector<1x6x3xbf16>
    %41 = vector.shape_cast %40 : vector<1x6x3xbf16> to vector<6x3xbf16>
    %cst_23 = arith.constant dense<0.000000e+00> : vector<6x1024xf32>
    %42 = tpu.matmul %41, %39, %cst_23 {dimension_numbers = #tpu.dot_dimension_numbers<[1], [0], [0], [1], [0, 0, 1, 1], [], []>} : vector<6x3xbf16>, vector<3x1024xbf16>, vector<6x1024xf32> -> vector<6x1024xf32>
    %43 = arith.addf %37, %42 : vector<6x1024xf32>
    %c990_i32 = arith.constant 990 : i32
    %44 = tpu.dynamic_rotate %1 by %c990_i32 dim 1 : vector<3x1024xf32>, i32 -> vector<3x1024xf32>
    %45 = arith.truncf %44 : vector<3x1024xf32> to vector<3x1024xbf16>
    %c7 = arith.constant 7 : index
    %c0_24 = arith.constant 0 : index
    %c0_25 = arith.constant 0 : index
    %46 = vector.load %arg2[%c7, %c0_24, %c0_25] : memref<25x6x3xbf16, #tpu.memory_space<vmem>>, vector<1x6x3xbf16>
    %47 = vector.shape_cast %46 : vector<1x6x3xbf16> to vector<6x3xbf16>
    %cst_26 = arith.constant dense<0.000000e+00> : vector<6x1024xf32>
    %48 = tpu.matmul %47, %45, %cst_26 {dimension_numbers = #tpu.dot_dimension_numbers<[1], [0], [0], [1], [0, 0, 1, 1], [], []>} : vector<6x3xbf16>, vector<3x1024xbf16>, vector<6x1024xf32> -> vector<6x1024xf32>
    %49 = arith.addf %43, %48 : vector<6x1024xf32>
    %c989_i32 = arith.constant 989 : i32
    %50 = tpu.dynamic_rotate %1 by %c989_i32 dim 1 : vector<3x1024xf32>, i32 -> vector<3x1024xf32>
    %51 = arith.truncf %50 : vector<3x1024xf32> to vector<3x1024xbf16>
    %c8 = arith.constant 8 : index
    %c0_27 = arith.constant 0 : index
    %c0_28 = arith.constant 0 : index
    %52 = vector.load %arg2[%c8, %c0_27, %c0_28] : memref<25x6x3xbf16, #tpu.memory_space<vmem>>, vector<1x6x3xbf16>
    %53 = vector.shape_cast %52 : vector<1x6x3xbf16> to vector<6x3xbf16>
    %cst_29 = arith.constant dense<0.000000e+00> : vector<6x1024xf32>
    %54 = tpu.matmul %53, %51, %cst_29 {dimension_numbers = #tpu.dot_dimension_numbers<[1], [0], [0], [1], [0, 0, 1, 1], [], []>} : vector<6x3xbf16>, vector<3x1024xbf16>, vector<6x1024xf32> -> vector<6x1024xf32>
    %55 = arith.addf %49, %54 : vector<6x1024xf32>
    %c988_i32 = arith.constant 988 : i32
    %56 = tpu.dynamic_rotate %1 by %c988_i32 dim 1 : vector<3x1024xf32>, i32 -> vector<3x1024xf32>
    %57 = arith.truncf %56 : vector<3x1024xf32> to vector<3x1024xbf16>
    %c9 = arith.constant 9 : index
    %c0_30 = arith.constant 0 : index
    %c0_31 = arith.constant 0 : index
    %58 = vector.load %arg2[%c9, %c0_30, %c0_31] : memref<25x6x3xbf16, #tpu.memory_space<vmem>>, vector<1x6x3xbf16>
    %59 = vector.shape_cast %58 : vector<1x6x3xbf16> to vector<6x3xbf16>
    %cst_32 = arith.constant dense<0.000000e+00> : vector<6x1024xf32>
    %60 = tpu.matmul %59, %57, %cst_32 {dimension_numbers = #tpu.dot_dimension_numbers<[1], [0], [0], [1], [0, 0, 1, 1], [], []>} : vector<6x3xbf16>, vector<3x1024xbf16>, vector<6x1024xf32> -> vector<6x1024xf32>
    %61 = arith.addf %55, %60 : vector<6x1024xf32>
    %c960_i32 = arith.constant 960 : i32
    %62 = tpu.dynamic_rotate %1 by %c960_i32 dim 1 : vector<3x1024xf32>, i32 -> vector<3x1024xf32>
    %63 = arith.truncf %62 : vector<3x1024xf32> to vector<3x1024xbf16>
    %c10 = arith.constant 10 : index
    %c0_33 = arith.constant 0 : index
    %c0_34 = arith.constant 0 : index
    %64 = vector.load %arg2[%c10, %c0_33, %c0_34] : memref<25x6x3xbf16, #tpu.memory_space<vmem>>, vector<1x6x3xbf16>
    %65 = vector.shape_cast %64 : vector<1x6x3xbf16> to vector<6x3xbf16>
    %cst_35 = arith.constant dense<0.000000e+00> : vector<6x1024xf32>
    %66 = tpu.matmul %65, %63, %cst_35 {dimension_numbers = #tpu.dot_dimension_numbers<[1], [0], [0], [1], [0, 0, 1, 1], [], []>} : vector<6x3xbf16>, vector<3x1024xbf16>, vector<6x1024xf32> -> vector<6x1024xf32>
    %67 = arith.addf %61, %66 : vector<6x1024xf32>
    %c959_i32 = arith.constant 959 : i32
    %68 = tpu.dynamic_rotate %1 by %c959_i32 dim 1 : vector<3x1024xf32>, i32 -> vector<3x1024xf32>
    %69 = arith.truncf %68 : vector<3x1024xf32> to vector<3x1024xbf16>
    %c11 = arith.constant 11 : index
    %c0_36 = arith.constant 0 : index
    %c0_37 = arith.constant 0 : index
    %70 = vector.load %arg2[%c11, %c0_36, %c0_37] : memref<25x6x3xbf16, #tpu.memory_space<vmem>>, vector<1x6x3xbf16>
    %71 = vector.shape_cast %70 : vector<1x6x3xbf16> to vector<6x3xbf16>
    %cst_38 = arith.constant dense<0.000000e+00> : vector<6x1024xf32>
    %72 = tpu.matmul %71, %69, %cst_38 {dimension_numbers = #tpu.dot_dimension_numbers<[1], [0], [0], [1], [0, 0, 1, 1], [], []>} : vector<6x3xbf16>, vector<3x1024xbf16>, vector<6x1024xf32> -> vector<6x1024xf32>
    %73 = arith.addf %67, %72 : vector<6x1024xf32>
    %c958_i32 = arith.constant 958 : i32
    %74 = tpu.dynamic_rotate %1 by %c958_i32 dim 1 : vector<3x1024xf32>, i32 -> vector<3x1024xf32>
    %75 = arith.truncf %74 : vector<3x1024xf32> to vector<3x1024xbf16>
    %c12 = arith.constant 12 : index
    %c0_39 = arith.constant 0 : index
    %c0_40 = arith.constant 0 : index
    %76 = vector.load %arg2[%c12, %c0_39, %c0_40] : memref<25x6x3xbf16, #tpu.memory_space<vmem>>, vector<1x6x3xbf16>
    %77 = vector.shape_cast %76 : vector<1x6x3xbf16> to vector<6x3xbf16>
    %cst_41 = arith.constant dense<0.000000e+00> : vector<6x1024xf32>
    %78 = tpu.matmul %77, %75, %cst_41 {dimension_numbers = #tpu.dot_dimension_numbers<[1], [0], [0], [1], [0, 0, 1, 1], [], []>} : vector<6x3xbf16>, vector<3x1024xbf16>, vector<6x1024xf32> -> vector<6x1024xf32>
    %79 = arith.addf %73, %78 : vector<6x1024xf32>
    %c957_i32 = arith.constant 957 : i32
    %80 = tpu.dynamic_rotate %1 by %c957_i32 dim 1 : vector<3x1024xf32>, i32 -> vector<3x1024xf32>
    %81 = arith.truncf %80 : vector<3x1024xf32> to vector<3x1024xbf16>
    %c13 = arith.constant 13 : index
    %c0_42 = arith.constant 0 : index
    %c0_43 = arith.constant 0 : index
    %82 = vector.load %arg2[%c13, %c0_42, %c0_43] : memref<25x6x3xbf16, #tpu.memory_space<vmem>>, vector<1x6x3xbf16>
    %83 = vector.shape_cast %82 : vector<1x6x3xbf16> to vector<6x3xbf16>
    %cst_44 = arith.constant dense<0.000000e+00> : vector<6x1024xf32>
    %84 = tpu.matmul %83, %81, %cst_44 {dimension_numbers = #tpu.dot_dimension_numbers<[1], [0], [0], [1], [0, 0, 1, 1], [], []>} : vector<6x3xbf16>, vector<3x1024xbf16>, vector<6x1024xf32> -> vector<6x1024xf32>
    %85 = arith.addf %79, %84 : vector<6x1024xf32>
    %c956_i32 = arith.constant 956 : i32
    %86 = tpu.dynamic_rotate %1 by %c956_i32 dim 1 : vector<3x1024xf32>, i32 -> vector<3x1024xf32>
    %87 = arith.truncf %86 : vector<3x1024xf32> to vector<3x1024xbf16>
    %c14 = arith.constant 14 : index
    %c0_45 = arith.constant 0 : index
    %c0_46 = arith.constant 0 : index
    %88 = vector.load %arg2[%c14, %c0_45, %c0_46] : memref<25x6x3xbf16, #tpu.memory_space<vmem>>, vector<1x6x3xbf16>
    %89 = vector.shape_cast %88 : vector<1x6x3xbf16> to vector<6x3xbf16>
    %cst_47 = arith.constant dense<0.000000e+00> : vector<6x1024xf32>
    %90 = tpu.matmul %89, %87, %cst_47 {dimension_numbers = #tpu.dot_dimension_numbers<[1], [0], [0], [1], [0, 0, 1, 1], [], []>} : vector<6x3xbf16>, vector<3x1024xbf16>, vector<6x1024xf32> -> vector<6x1024xf32>
    %91 = arith.addf %85, %90 : vector<6x1024xf32>
    %c928_i32 = arith.constant 928 : i32
    %92 = tpu.dynamic_rotate %1 by %c928_i32 dim 1 : vector<3x1024xf32>, i32 -> vector<3x1024xf32>
    %93 = arith.truncf %92 : vector<3x1024xf32> to vector<3x1024xbf16>
    %c15 = arith.constant 15 : index
    %c0_48 = arith.constant 0 : index
    %c0_49 = arith.constant 0 : index
    %94 = vector.load %arg2[%c15, %c0_48, %c0_49] : memref<25x6x3xbf16, #tpu.memory_space<vmem>>, vector<1x6x3xbf16>
    %95 = vector.shape_cast %94 : vector<1x6x3xbf16> to vector<6x3xbf16>
    %cst_50 = arith.constant dense<0.000000e+00> : vector<6x1024xf32>
    %96 = tpu.matmul %95, %93, %cst_50 {dimension_numbers = #tpu.dot_dimension_numbers<[1], [0], [0], [1], [0, 0, 1, 1], [], []>} : vector<6x3xbf16>, vector<3x1024xbf16>, vector<6x1024xf32> -> vector<6x1024xf32>
    %97 = arith.addf %91, %96 : vector<6x1024xf32>
    %c927_i32 = arith.constant 927 : i32
    %98 = tpu.dynamic_rotate %1 by %c927_i32 dim 1 : vector<3x1024xf32>, i32 -> vector<3x1024xf32>
    %99 = arith.truncf %98 : vector<3x1024xf32> to vector<3x1024xbf16>
    %c16 = arith.constant 16 : index
    %c0_51 = arith.constant 0 : index
    %c0_52 = arith.constant 0 : index
    %100 = vector.load %arg2[%c16, %c0_51, %c0_52] : memref<25x6x3xbf16, #tpu.memory_space<vmem>>, vector<1x6x3xbf16>
    %101 = vector.shape_cast %100 : vector<1x6x3xbf16> to vector<6x3xbf16>
    %cst_53 = arith.constant dense<0.000000e+00> : vector<6x1024xf32>
    %102 = tpu.matmul %101, %99, %cst_53 {dimension_numbers = #tpu.dot_dimension_numbers<[1], [0], [0], [1], [0, 0, 1, 1], [], []>} : vector<6x3xbf16>, vector<3x1024xbf16>, vector<6x1024xf32> -> vector<6x1024xf32>
    %103 = arith.addf %97, %102 : vector<6x1024xf32>
    %c926_i32 = arith.constant 926 : i32
    %104 = tpu.dynamic_rotate %1 by %c926_i32 dim 1 : vector<3x1024xf32>, i32 -> vector<3x1024xf32>
    %105 = arith.truncf %104 : vector<3x1024xf32> to vector<3x1024xbf16>
    %c17 = arith.constant 17 : index
    %c0_54 = arith.constant 0 : index
    %c0_55 = arith.constant 0 : index
    %106 = vector.load %arg2[%c17, %c0_54, %c0_55] : memref<25x6x3xbf16, #tpu.memory_space<vmem>>, vector<1x6x3xbf16>
    %107 = vector.shape_cast %106 : vector<1x6x3xbf16> to vector<6x3xbf16>
    %cst_56 = arith.constant dense<0.000000e+00> : vector<6x1024xf32>
    %108 = tpu.matmul %107, %105, %cst_56 {dimension_numbers = #tpu.dot_dimension_numbers<[1], [0], [0], [1], [0, 0, 1, 1], [], []>} : vector<6x3xbf16>, vector<3x1024xbf16>, vector<6x1024xf32> -> vector<6x1024xf32>
    %109 = arith.addf %103, %108 : vector<6x1024xf32>
    %c925_i32 = arith.constant 925 : i32
    %110 = tpu.dynamic_rotate %1 by %c925_i32 dim 1 : vector<3x1024xf32>, i32 -> vector<3x1024xf32>
    %111 = arith.truncf %110 : vector<3x1024xf32> to vector<3x1024xbf16>
    %c18 = arith.constant 18 : index
    %c0_57 = arith.constant 0 : index
    %c0_58 = arith.constant 0 : index
    %112 = vector.load %arg2[%c18, %c0_57, %c0_58] : memref<25x6x3xbf16, #tpu.memory_space<vmem>>, vector<1x6x3xbf16>
    %113 = vector.shape_cast %112 : vector<1x6x3xbf16> to vector<6x3xbf16>
    %cst_59 = arith.constant dense<0.000000e+00> : vector<6x1024xf32>
    %114 = tpu.matmul %113, %111, %cst_59 {dimension_numbers = #tpu.dot_dimension_numbers<[1], [0], [0], [1], [0, 0, 1, 1], [], []>} : vector<6x3xbf16>, vector<3x1024xbf16>, vector<6x1024xf32> -> vector<6x1024xf32>
    %115 = arith.addf %109, %114 : vector<6x1024xf32>
    %c924_i32 = arith.constant 924 : i32
    %116 = tpu.dynamic_rotate %1 by %c924_i32 dim 1 : vector<3x1024xf32>, i32 -> vector<3x1024xf32>
    %117 = arith.truncf %116 : vector<3x1024xf32> to vector<3x1024xbf16>
    %c19 = arith.constant 19 : index
    %c0_60 = arith.constant 0 : index
    %c0_61 = arith.constant 0 : index
    %118 = vector.load %arg2[%c19, %c0_60, %c0_61] : memref<25x6x3xbf16, #tpu.memory_space<vmem>>, vector<1x6x3xbf16>
    %119 = vector.shape_cast %118 : vector<1x6x3xbf16> to vector<6x3xbf16>
    %cst_62 = arith.constant dense<0.000000e+00> : vector<6x1024xf32>
    %120 = tpu.matmul %119, %117, %cst_62 {dimension_numbers = #tpu.dot_dimension_numbers<[1], [0], [0], [1], [0, 0, 1, 1], [], []>} : vector<6x3xbf16>, vector<3x1024xbf16>, vector<6x1024xf32> -> vector<6x1024xf32>
    %121 = arith.addf %115, %120 : vector<6x1024xf32>
    %c896_i32 = arith.constant 896 : i32
    %122 = tpu.dynamic_rotate %1 by %c896_i32 dim 1 : vector<3x1024xf32>, i32 -> vector<3x1024xf32>
    %123 = arith.truncf %122 : vector<3x1024xf32> to vector<3x1024xbf16>
    %c20 = arith.constant 20 : index
    %c0_63 = arith.constant 0 : index
    %c0_64 = arith.constant 0 : index
    %124 = vector.load %arg2[%c20, %c0_63, %c0_64] : memref<25x6x3xbf16, #tpu.memory_space<vmem>>, vector<1x6x3xbf16>
    %125 = vector.shape_cast %124 : vector<1x6x3xbf16> to vector<6x3xbf16>
    %cst_65 = arith.constant dense<0.000000e+00> : vector<6x1024xf32>
    %126 = tpu.matmul %125, %123, %cst_65 {dimension_numbers = #tpu.dot_dimension_numbers<[1], [0], [0], [1], [0, 0, 1, 1], [], []>} : vector<6x3xbf16>, vector<3x1024xbf16>, vector<6x1024xf32> -> vector<6x1024xf32>
    %127 = arith.addf %121, %126 : vector<6x1024xf32>
    %c895_i32 = arith.constant 895 : i32
    %128 = tpu.dynamic_rotate %1 by %c895_i32 dim 1 : vector<3x1024xf32>, i32 -> vector<3x1024xf32>
    %129 = arith.truncf %128 : vector<3x1024xf32> to vector<3x1024xbf16>
    %c21 = arith.constant 21 : index
    %c0_66 = arith.constant 0 : index
    %c0_67 = arith.constant 0 : index
    %130 = vector.load %arg2[%c21, %c0_66, %c0_67] : memref<25x6x3xbf16, #tpu.memory_space<vmem>>, vector<1x6x3xbf16>
    %131 = vector.shape_cast %130 : vector<1x6x3xbf16> to vector<6x3xbf16>
    %cst_68 = arith.constant dense<0.000000e+00> : vector<6x1024xf32>
    %132 = tpu.matmul %131, %129, %cst_68 {dimension_numbers = #tpu.dot_dimension_numbers<[1], [0], [0], [1], [0, 0, 1, 1], [], []>} : vector<6x3xbf16>, vector<3x1024xbf16>, vector<6x1024xf32> -> vector<6x1024xf32>
    %133 = arith.addf %127, %132 : vector<6x1024xf32>
    %c894_i32 = arith.constant 894 : i32
    %134 = tpu.dynamic_rotate %1 by %c894_i32 dim 1 : vector<3x1024xf32>, i32 -> vector<3x1024xf32>
    %135 = arith.truncf %134 : vector<3x1024xf32> to vector<3x1024xbf16>
    %c22 = arith.constant 22 : index
    %c0_69 = arith.constant 0 : index
    %c0_70 = arith.constant 0 : index
    %136 = vector.load %arg2[%c22, %c0_69, %c0_70] : memref<25x6x3xbf16, #tpu.memory_space<vmem>>, vector<1x6x3xbf16>
    %137 = vector.shape_cast %136 : vector<1x6x3xbf16> to vector<6x3xbf16>
    %cst_71 = arith.constant dense<0.000000e+00> : vector<6x1024xf32>
    %138 = tpu.matmul %137, %135, %cst_71 {dimension_numbers = #tpu.dot_dimension_numbers<[1], [0], [0], [1], [0, 0, 1, 1], [], []>} : vector<6x3xbf16>, vector<3x1024xbf16>, vector<6x1024xf32> -> vector<6x1024xf32>
    %139 = arith.addf %133, %138 : vector<6x1024xf32>
    %c893_i32 = arith.constant 893 : i32
    %140 = tpu.dynamic_rotate %1 by %c893_i32 dim 1 : vector<3x1024xf32>, i32 -> vector<3x1024xf32>
    %141 = arith.truncf %140 : vector<3x1024xf32> to vector<3x1024xbf16>
    %c23 = arith.constant 23 : index
    %c0_72 = arith.constant 0 : index
    %c0_73 = arith.constant 0 : index
    %142 = vector.load %arg2[%c23, %c0_72, %c0_73] : memref<25x6x3xbf16, #tpu.memory_space<vmem>>, vector<1x6x3xbf16>
    %143 = vector.shape_cast %142 : vector<1x6x3xbf16> to vector<6x3xbf16>
    %cst_74 = arith.constant dense<0.000000e+00> : vector<6x1024xf32>
    %144 = tpu.matmul %143, %141, %cst_74 {dimension_numbers = #tpu.dot_dimension_numbers<[1], [0], [0], [1], [0, 0, 1, 1], [], []>} : vector<6x3xbf16>, vector<3x1024xbf16>, vector<6x1024xf32> -> vector<6x1024xf32>
    %145 = arith.addf %139, %144 : vector<6x1024xf32>
    %c892_i32 = arith.constant 892 : i32
    %146 = tpu.dynamic_rotate %1 by %c892_i32 dim 1 : vector<3x1024xf32>, i32 -> vector<3x1024xf32>
    %147 = arith.truncf %146 : vector<3x1024xf32> to vector<3x1024xbf16>
    %c24 = arith.constant 24 : index
    %c0_75 = arith.constant 0 : index
    %c0_76 = arith.constant 0 : index
    %148 = vector.load %arg2[%c24, %c0_75, %c0_76] : memref<25x6x3xbf16, #tpu.memory_space<vmem>>, vector<1x6x3xbf16>
    %149 = vector.shape_cast %148 : vector<1x6x3xbf16> to vector<6x3xbf16>
    %cst_77 = arith.constant dense<0.000000e+00> : vector<6x1024xf32>
    %150 = tpu.matmul %149, %147, %cst_77 {dimension_numbers = #tpu.dot_dimension_numbers<[1], [0], [0], [1], [0, 0, 1, 1], [], []>} : vector<6x3xbf16>, vector<3x1024xbf16>, vector<6x1024xf32> -> vector<6x1024xf32>
    %151 = arith.addf %145, %150 : vector<6x1024xf32>
    %c0_78 = arith.constant 0 : index
    %c0_79 = arith.constant 0 : index
    %152 = vector.load %arg3[%c0_78, %c0_79] : memref<6x1xf32, #tpu.memory_space<vmem>>, vector<6x1xf32>
    %153 = vector.broadcast %152 : vector<6x1xf32> to vector<6x1024xf32>
    %154 = arith.addf %151, %153 : vector<6x1024xf32>
    %cst_80 = arith.constant 0.000000e+00 : f32
    %155 = vector.broadcast %cst_80 : f32 to vector<6x1024xf32>
    %156 = arith.maximumf %154, %155 : vector<6x1024xf32>
    %c1023_i32_81 = arith.constant 1023 : i32
    %157 = tpu.dynamic_rotate %156 by %c1023_i32_81 dim 1 : vector<6x1024xf32>, i32 -> vector<6x1024xf32>
    %158 = arith.maximumf %156, %157 : vector<6x1024xf32>
    %c992_i32_82 = arith.constant 992 : i32
    %159 = tpu.dynamic_rotate %156 by %c992_i32_82 dim 1 : vector<6x1024xf32>, i32 -> vector<6x1024xf32>
    %160 = arith.maximumf %158, %159 : vector<6x1024xf32>
    %c991_i32_83 = arith.constant 991 : i32
    %161 = tpu.dynamic_rotate %156 by %c991_i32_83 dim 1 : vector<6x1024xf32>, i32 -> vector<6x1024xf32>
    %162 = arith.maximumf %160, %161 : vector<6x1024xf32>
    %163 = arith.truncf %162 : vector<6x1024xf32> to vector<6x1024xbf16>
    %c0_84 = arith.constant 0 : index
    %c0_85 = arith.constant 0 : index
    %164 = vector.load %arg4[%c0_84, %c0_85] : memref<1024x256xbf16, #tpu.memory_space<vmem>>, vector<1024x256xbf16>
    %cst_86 = arith.constant dense<0.000000e+00> : vector<6x256xf32>
    %165 = tpu.matmul %163, %164, %cst_86 {dimension_numbers = #tpu.dot_dimension_numbers<[1], [0], [0], [1], [0, 0, 1, 1], [], []>} : vector<6x1024xbf16>, vector<1024x256xbf16>, vector<6x256xf32> -> vector<6x256xf32>
    %cst_87 = arith.constant 0.000000e+00 : f32
    %166 = vector.broadcast %cst_87 : f32 to vector<16x256xf32>
    %167 = arith.truncf %165 : vector<6x256xf32> to vector<6x256xbf16>
    %c0_88 = arith.constant 0 : index
    %c0_89 = arith.constant 0 : index
    %c0_90 = arith.constant 0 : index
    %168 = vector.load %arg5[%c0_88, %c0_89, %c0_90] : memref<25x16x6xbf16, #tpu.memory_space<vmem>>, vector<1x16x6xbf16>
    %169 = vector.shape_cast %168 : vector<1x16x6xbf16> to vector<16x6xbf16>
    %cst_91 = arith.constant dense<0.000000e+00> : vector<16x256xf32>
    %170 = tpu.matmul %169, %167, %cst_91 {dimension_numbers = #tpu.dot_dimension_numbers<[1], [0], [0], [1], [0, 0, 1, 1], [], []>} : vector<16x6xbf16>, vector<6x256xbf16>, vector<16x256xf32> -> vector<16x256xf32>
    %171 = arith.addf %166, %170 : vector<16x256xf32>
    %c255_i32 = arith.constant 255 : i32
    %172 = tpu.dynamic_rotate %165 by %c255_i32 dim 1 : vector<6x256xf32>, i32 -> vector<6x256xf32>
    %173 = arith.truncf %172 : vector<6x256xf32> to vector<6x256xbf16>
    %c1_92 = arith.constant 1 : index
    %c0_93 = arith.constant 0 : index
    %c0_94 = arith.constant 0 : index
    %174 = vector.load %arg5[%c1_92, %c0_93, %c0_94] : memref<25x16x6xbf16, #tpu.memory_space<vmem>>, vector<1x16x6xbf16>
    %175 = vector.shape_cast %174 : vector<1x16x6xbf16> to vector<16x6xbf16>
    %cst_95 = arith.constant dense<0.000000e+00> : vector<16x256xf32>
    %176 = tpu.matmul %175, %173, %cst_95 {dimension_numbers = #tpu.dot_dimension_numbers<[1], [0], [0], [1], [0, 0, 1, 1], [], []>} : vector<16x6xbf16>, vector<6x256xbf16>, vector<16x256xf32> -> vector<16x256xf32>
    %177 = arith.addf %171, %176 : vector<16x256xf32>
    %c254_i32 = arith.constant 254 : i32
    %178 = tpu.dynamic_rotate %165 by %c254_i32 dim 1 : vector<6x256xf32>, i32 -> vector<6x256xf32>
    %179 = arith.truncf %178 : vector<6x256xf32> to vector<6x256xbf16>
    %c2_96 = arith.constant 2 : index
    %c0_97 = arith.constant 0 : index
    %c0_98 = arith.constant 0 : index
    %180 = vector.load %arg5[%c2_96, %c0_97, %c0_98] : memref<25x16x6xbf16, #tpu.memory_space<vmem>>, vector<1x16x6xbf16>
    %181 = vector.shape_cast %180 : vector<1x16x6xbf16> to vector<16x6xbf16>
    %cst_99 = arith.constant dense<0.000000e+00> : vector<16x256xf32>
    %182 = tpu.matmul %181, %179, %cst_99 {dimension_numbers = #tpu.dot_dimension_numbers<[1], [0], [0], [1], [0, 0, 1, 1], [], []>} : vector<16x6xbf16>, vector<6x256xbf16>, vector<16x256xf32> -> vector<16x256xf32>
    %183 = arith.addf %177, %182 : vector<16x256xf32>
    %c253_i32 = arith.constant 253 : i32
    %184 = tpu.dynamic_rotate %165 by %c253_i32 dim 1 : vector<6x256xf32>, i32 -> vector<6x256xf32>
    %185 = arith.truncf %184 : vector<6x256xf32> to vector<6x256xbf16>
    %c3_100 = arith.constant 3 : index
    %c0_101 = arith.constant 0 : index
    %c0_102 = arith.constant 0 : index
    %186 = vector.load %arg5[%c3_100, %c0_101, %c0_102] : memref<25x16x6xbf16, #tpu.memory_space<vmem>>, vector<1x16x6xbf16>
    %187 = vector.shape_cast %186 : vector<1x16x6xbf16> to vector<16x6xbf16>
    %cst_103 = arith.constant dense<0.000000e+00> : vector<16x256xf32>
    %188 = tpu.matmul %187, %185, %cst_103 {dimension_numbers = #tpu.dot_dimension_numbers<[1], [0], [0], [1], [0, 0, 1, 1], [], []>} : vector<16x6xbf16>, vector<6x256xbf16>, vector<16x256xf32> -> vector<16x256xf32>
    %189 = arith.addf %183, %188 : vector<16x256xf32>
    %c252_i32 = arith.constant 252 : i32
    %190 = tpu.dynamic_rotate %165 by %c252_i32 dim 1 : vector<6x256xf32>, i32 -> vector<6x256xf32>
    %191 = arith.truncf %190 : vector<6x256xf32> to vector<6x256xbf16>
    %c4_104 = arith.constant 4 : index
    %c0_105 = arith.constant 0 : index
    %c0_106 = arith.constant 0 : index
    %192 = vector.load %arg5[%c4_104, %c0_105, %c0_106] : memref<25x16x6xbf16, #tpu.memory_space<vmem>>, vector<1x16x6xbf16>
    %193 = vector.shape_cast %192 : vector<1x16x6xbf16> to vector<16x6xbf16>
    %cst_107 = arith.constant dense<0.000000e+00> : vector<16x256xf32>
    %194 = tpu.matmul %193, %191, %cst_107 {dimension_numbers = #tpu.dot_dimension_numbers<[1], [0], [0], [1], [0, 0, 1, 1], [], []>} : vector<16x6xbf16>, vector<6x256xbf16>, vector<16x256xf32> -> vector<16x256xf32>
    %195 = arith.addf %189, %194 : vector<16x256xf32>
    %c240_i32 = arith.constant 240 : i32
    %196 = tpu.dynamic_rotate %165 by %c240_i32 dim 1 : vector<6x256xf32>, i32 -> vector<6x256xf32>
    %197 = arith.truncf %196 : vector<6x256xf32> to vector<6x256xbf16>
    %c5_108 = arith.constant 5 : index
    %c0_109 = arith.constant 0 : index
    %c0_110 = arith.constant 0 : index
    %198 = vector.load %arg5[%c5_108, %c0_109, %c0_110] : memref<25x16x6xbf16, #tpu.memory_space<vmem>>, vector<1x16x6xbf16>
    %199 = vector.shape_cast %198 : vector<1x16x6xbf16> to vector<16x6xbf16>
    %cst_111 = arith.constant dense<0.000000e+00> : vector<16x256xf32>
    %200 = tpu.matmul %199, %197, %cst_111 {dimension_numbers = #tpu.dot_dimension_numbers<[1], [0], [0], [1], [0, 0, 1, 1], [], []>} : vector<16x6xbf16>, vector<6x256xbf16>, vector<16x256xf32> -> vector<16x256xf32>
    %201 = arith.addf %195, %200 : vector<16x256xf32>
    %c239_i32 = arith.constant 239 : i32
    %202 = tpu.dynamic_rotate %165 by %c239_i32 dim 1 : vector<6x256xf32>, i32 -> vector<6x256xf32>
    %203 = arith.truncf %202 : vector<6x256xf32> to vector<6x256xbf16>
    %c6_112 = arith.constant 6 : index
    %c0_113 = arith.constant 0 : index
    %c0_114 = arith.constant 0 : index
    %204 = vector.load %arg5[%c6_112, %c0_113, %c0_114] : memref<25x16x6xbf16, #tpu.memory_space<vmem>>, vector<1x16x6xbf16>
    %205 = vector.shape_cast %204 : vector<1x16x6xbf16> to vector<16x6xbf16>
    %cst_115 = arith.constant dense<0.000000e+00> : vector<16x256xf32>
    %206 = tpu.matmul %205, %203, %cst_115 {dimension_numbers = #tpu.dot_dimension_numbers<[1], [0], [0], [1], [0, 0, 1, 1], [], []>} : vector<16x6xbf16>, vector<6x256xbf16>, vector<16x256xf32> -> vector<16x256xf32>
    %207 = arith.addf %201, %206 : vector<16x256xf32>
    %c238_i32 = arith.constant 238 : i32
    %208 = tpu.dynamic_rotate %165 by %c238_i32 dim 1 : vector<6x256xf32>, i32 -> vector<6x256xf32>
    %209 = arith.truncf %208 : vector<6x256xf32> to vector<6x256xbf16>
    %c7_116 = arith.constant 7 : index
    %c0_117 = arith.constant 0 : index
    %c0_118 = arith.constant 0 : index
    %210 = vector.load %arg5[%c7_116, %c0_117, %c0_118] : memref<25x16x6xbf16, #tpu.memory_space<vmem>>, vector<1x16x6xbf16>
    %211 = vector.shape_cast %210 : vector<1x16x6xbf16> to vector<16x6xbf16>
    %cst_119 = arith.constant dense<0.000000e+00> : vector<16x256xf32>
    %212 = tpu.matmul %211, %209, %cst_119 {dimension_numbers = #tpu.dot_dimension_numbers<[1], [0], [0], [1], [0, 0, 1, 1], [], []>} : vector<16x6xbf16>, vector<6x256xbf16>, vector<16x256xf32> -> vector<16x256xf32>
    %213 = arith.addf %207, %212 : vector<16x256xf32>
    %c237_i32 = arith.constant 237 : i32
    %214 = tpu.dynamic_rotate %165 by %c237_i32 dim 1 : vector<6x256xf32>, i32 -> vector<6x256xf32>
    %215 = arith.truncf %214 : vector<6x256xf32> to vector<6x256xbf16>
    %c8_120 = arith.constant 8 : index
    %c0_121 = arith.constant 0 : index
    %c0_122 = arith.constant 0 : index
    %216 = vector.load %arg5[%c8_120, %c0_121, %c0_122] : memref<25x16x6xbf16, #tpu.memory_space<vmem>>, vector<1x16x6xbf16>
    %217 = vector.shape_cast %216 : vector<1x16x6xbf16> to vector<16x6xbf16>
    %cst_123 = arith.constant dense<0.000000e+00> : vector<16x256xf32>
    %218 = tpu.matmul %217, %215, %cst_123 {dimension_numbers = #tpu.dot_dimension_numbers<[1], [0], [0], [1], [0, 0, 1, 1], [], []>} : vector<16x6xbf16>, vector<6x256xbf16>, vector<16x256xf32> -> vector<16x256xf32>
    %219 = arith.addf %213, %218 : vector<16x256xf32>
    %c236_i32 = arith.constant 236 : i32
    %220 = tpu.dynamic_rotate %165 by %c236_i32 dim 1 : vector<6x256xf32>, i32 -> vector<6x256xf32>
    %221 = arith.truncf %220 : vector<6x256xf32> to vector<6x256xbf16>
    %c9_124 = arith.constant 9 : index
    %c0_125 = arith.constant 0 : index
    %c0_126 = arith.constant 0 : index
    %222 = vector.load %arg5[%c9_124, %c0_125, %c0_126] : memref<25x16x6xbf16, #tpu.memory_space<vmem>>, vector<1x16x6xbf16>
    %223 = vector.shape_cast %222 : vector<1x16x6xbf16> to vector<16x6xbf16>
    %cst_127 = arith.constant dense<0.000000e+00> : vector<16x256xf32>
    %224 = tpu.matmul %223, %221, %cst_127 {dimension_numbers = #tpu.dot_dimension_numbers<[1], [0], [0], [1], [0, 0, 1, 1], [], []>} : vector<16x6xbf16>, vector<6x256xbf16>, vector<16x256xf32> -> vector<16x256xf32>
    %225 = arith.addf %219, %224 : vector<16x256xf32>
    %c224_i32 = arith.constant 224 : i32
    %226 = tpu.dynamic_rotate %165 by %c224_i32 dim 1 : vector<6x256xf32>, i32 -> vector<6x256xf32>
    %227 = arith.truncf %226 : vector<6x256xf32> to vector<6x256xbf16>
    %c10_128 = arith.constant 10 : index
    %c0_129 = arith.constant 0 : index
    %c0_130 = arith.constant 0 : index
    %228 = vector.load %arg5[%c10_128, %c0_129, %c0_130] : memref<25x16x6xbf16, #tpu.memory_space<vmem>>, vector<1x16x6xbf16>
    %229 = vector.shape_cast %228 : vector<1x16x6xbf16> to vector<16x6xbf16>
    %cst_131 = arith.constant dense<0.000000e+00> : vector<16x256xf32>
    %230 = tpu.matmul %229, %227, %cst_131 {dimension_numbers = #tpu.dot_dimension_numbers<[1], [0], [0], [1], [0, 0, 1, 1], [], []>} : vector<16x6xbf16>, vector<6x256xbf16>, vector<16x256xf32> -> vector<16x256xf32>
    %231 = arith.addf %225, %230 : vector<16x256xf32>
    %c223_i32 = arith.constant 223 : i32
    %232 = tpu.dynamic_rotate %165 by %c223_i32 dim 1 : vector<6x256xf32>, i32 -> vector<6x256xf32>
    %233 = arith.truncf %232 : vector<6x256xf32> to vector<6x256xbf16>
    %c11_132 = arith.constant 11 : index
    %c0_133 = arith.constant 0 : index
    %c0_134 = arith.constant 0 : index
    %234 = vector.load %arg5[%c11_132, %c0_133, %c0_134] : memref<25x16x6xbf16, #tpu.memory_space<vmem>>, vector<1x16x6xbf16>
    %235 = vector.shape_cast %234 : vector<1x16x6xbf16> to vector<16x6xbf16>
    %cst_135 = arith.constant dense<0.000000e+00> : vector<16x256xf32>
    %236 = tpu.matmul %235, %233, %cst_135 {dimension_numbers = #tpu.dot_dimension_numbers<[1], [0], [0], [1], [0, 0, 1, 1], [], []>} : vector<16x6xbf16>, vector<6x256xbf16>, vector<16x256xf32> -> vector<16x256xf32>
    %237 = arith.addf %231, %236 : vector<16x256xf32>
    %c222_i32 = arith.constant 222 : i32
    %238 = tpu.dynamic_rotate %165 by %c222_i32 dim 1 : vector<6x256xf32>, i32 -> vector<6x256xf32>
    %239 = arith.truncf %238 : vector<6x256xf32> to vector<6x256xbf16>
    %c12_136 = arith.constant 12 : index
    %c0_137 = arith.constant 0 : index
    %c0_138 = arith.constant 0 : index
    %240 = vector.load %arg5[%c12_136, %c0_137, %c0_138] : memref<25x16x6xbf16, #tpu.memory_space<vmem>>, vector<1x16x6xbf16>
    %241 = vector.shape_cast %240 : vector<1x16x6xbf16> to vector<16x6xbf16>
    %cst_139 = arith.constant dense<0.000000e+00> : vector<16x256xf32>
    %242 = tpu.matmul %241, %239, %cst_139 {dimension_numbers = #tpu.dot_dimension_numbers<[1], [0], [0], [1], [0, 0, 1, 1], [], []>} : vector<16x6xbf16>, vector<6x256xbf16>, vector<16x256xf32> -> vector<16x256xf32>
    %243 = arith.addf %237, %242 : vector<16x256xf32>
    %c221_i32 = arith.constant 221 : i32
    %244 = tpu.dynamic_rotate %165 by %c221_i32 dim 1 : vector<6x256xf32>, i32 -> vector<6x256xf32>
    %245 = arith.truncf %244 : vector<6x256xf32> to vector<6x256xbf16>
    %c13_140 = arith.constant 13 : index
    %c0_141 = arith.constant 0 : index
    %c0_142 = arith.constant 0 : index
    %246 = vector.load %arg5[%c13_140, %c0_141, %c0_142] : memref<25x16x6xbf16, #tpu.memory_space<vmem>>, vector<1x16x6xbf16>
    %247 = vector.shape_cast %246 : vector<1x16x6xbf16> to vector<16x6xbf16>
    %cst_143 = arith.constant dense<0.000000e+00> : vector<16x256xf32>
    %248 = tpu.matmul %247, %245, %cst_143 {dimension_numbers = #tpu.dot_dimension_numbers<[1], [0], [0], [1], [0, 0, 1, 1], [], []>} : vector<16x6xbf16>, vector<6x256xbf16>, vector<16x256xf32> -> vector<16x256xf32>
    %249 = arith.addf %243, %248 : vector<16x256xf32>
    %c220_i32 = arith.constant 220 : i32
    %250 = tpu.dynamic_rotate %165 by %c220_i32 dim 1 : vector<6x256xf32>, i32 -> vector<6x256xf32>
    %251 = arith.truncf %250 : vector<6x256xf32> to vector<6x256xbf16>
    %c14_144 = arith.constant 14 : index
    %c0_145 = arith.constant 0 : index
    %c0_146 = arith.constant 0 : index
    %252 = vector.load %arg5[%c14_144, %c0_145, %c0_146] : memref<25x16x6xbf16, #tpu.memory_space<vmem>>, vector<1x16x6xbf16>
    %253 = vector.shape_cast %252 : vector<1x16x6xbf16> to vector<16x6xbf16>
    %cst_147 = arith.constant dense<0.000000e+00> : vector<16x256xf32>
    %254 = tpu.matmul %253, %251, %cst_147 {dimension_numbers = #tpu.dot_dimension_numbers<[1], [0], [0], [1], [0, 0, 1, 1], [], []>} : vector<16x6xbf16>, vector<6x256xbf16>, vector<16x256xf32> -> vector<16x256xf32>
    %255 = arith.addf %249, %254 : vector<16x256xf32>
    %c208_i32 = arith.constant 208 : i32
    %256 = tpu.dynamic_rotate %165 by %c208_i32 dim 1 : vector<6x256xf32>, i32 -> vector<6x256xf32>
    %257 = arith.truncf %256 : vector<6x256xf32> to vector<6x256xbf16>
    %c15_148 = arith.constant 15 : index
    %c0_149 = arith.constant 0 : index
    %c0_150 = arith.constant 0 : index
    %258 = vector.load %arg5[%c15_148, %c0_149, %c0_150] : memref<25x16x6xbf16, #tpu.memory_space<vmem>>, vector<1x16x6xbf16>
    %259 = vector.shape_cast %258 : vector<1x16x6xbf16> to vector<16x6xbf16>
    %cst_151 = arith.constant dense<0.000000e+00> : vector<16x256xf32>
    %260 = tpu.matmul %259, %257, %cst_151 {dimension_numbers = #tpu.dot_dimension_numbers<[1], [0], [0], [1], [0, 0, 1, 1], [], []>} : vector<16x6xbf16>, vector<6x256xbf16>, vector<16x256xf32> -> vector<16x256xf32>
    %261 = arith.addf %255, %260 : vector<16x256xf32>
    %c207_i32 = arith.constant 207 : i32
    %262 = tpu.dynamic_rotate %165 by %c207_i32 dim 1 : vector<6x256xf32>, i32 -> vector<6x256xf32>
    %263 = arith.truncf %262 : vector<6x256xf32> to vector<6x256xbf16>
    %c16_152 = arith.constant 16 : index
    %c0_153 = arith.constant 0 : index
    %c0_154 = arith.constant 0 : index
    %264 = vector.load %arg5[%c16_152, %c0_153, %c0_154] : memref<25x16x6xbf16, #tpu.memory_space<vmem>>, vector<1x16x6xbf16>
    %265 = vector.shape_cast %264 : vector<1x16x6xbf16> to vector<16x6xbf16>
    %cst_155 = arith.constant dense<0.000000e+00> : vector<16x256xf32>
    %266 = tpu.matmul %265, %263, %cst_155 {dimension_numbers = #tpu.dot_dimension_numbers<[1], [0], [0], [1], [0, 0, 1, 1], [], []>} : vector<16x6xbf16>, vector<6x256xbf16>, vector<16x256xf32> -> vector<16x256xf32>
    %267 = arith.addf %261, %266 : vector<16x256xf32>
    %c206_i32 = arith.constant 206 : i32
    %268 = tpu.dynamic_rotate %165 by %c206_i32 dim 1 : vector<6x256xf32>, i32 -> vector<6x256xf32>
    %269 = arith.truncf %268 : vector<6x256xf32> to vector<6x256xbf16>
    %c17_156 = arith.constant 17 : index
    %c0_157 = arith.constant 0 : index
    %c0_158 = arith.constant 0 : index
    %270 = vector.load %arg5[%c17_156, %c0_157, %c0_158] : memref<25x16x6xbf16, #tpu.memory_space<vmem>>, vector<1x16x6xbf16>
    %271 = vector.shape_cast %270 : vector<1x16x6xbf16> to vector<16x6xbf16>
    %cst_159 = arith.constant dense<0.000000e+00> : vector<16x256xf32>
    %272 = tpu.matmul %271, %269, %cst_159 {dimension_numbers = #tpu.dot_dimension_numbers<[1], [0], [0], [1], [0, 0, 1, 1], [], []>} : vector<16x6xbf16>, vector<6x256xbf16>, vector<16x256xf32> -> vector<16x256xf32>
    %273 = arith.addf %267, %272 : vector<16x256xf32>
    %c205_i32 = arith.constant 205 : i32
    %274 = tpu.dynamic_rotate %165 by %c205_i32 dim 1 : vector<6x256xf32>, i32 -> vector<6x256xf32>
    %275 = arith.truncf %274 : vector<6x256xf32> to vector<6x256xbf16>
    %c18_160 = arith.constant 18 : index
    %c0_161 = arith.constant 0 : index
    %c0_162 = arith.constant 0 : index
    %276 = vector.load %arg5[%c18_160, %c0_161, %c0_162] : memref<25x16x6xbf16, #tpu.memory_space<vmem>>, vector<1x16x6xbf16>
    %277 = vector.shape_cast %276 : vector<1x16x6xbf16> to vector<16x6xbf16>
    %cst_163 = arith.constant dense<0.000000e+00> : vector<16x256xf32>
    %278 = tpu.matmul %277, %275, %cst_163 {dimension_numbers = #tpu.dot_dimension_numbers<[1], [0], [0], [1], [0, 0, 1, 1], [], []>} : vector<16x6xbf16>, vector<6x256xbf16>, vector<16x256xf32> -> vector<16x256xf32>
    %279 = arith.addf %273, %278 : vector<16x256xf32>
    %c204_i32 = arith.constant 204 : i32
    %280 = tpu.dynamic_rotate %165 by %c204_i32 dim 1 : vector<6x256xf32>, i32 -> vector<6x256xf32>
    %281 = arith.truncf %280 : vector<6x256xf32> to vector<6x256xbf16>
    %c19_164 = arith.constant 19 : index
    %c0_165 = arith.constant 0 : index
    %c0_166 = arith.constant 0 : index
    %282 = vector.load %arg5[%c19_164, %c0_165, %c0_166] : memref<25x16x6xbf16, #tpu.memory_space<vmem>>, vector<1x16x6xbf16>
    %283 = vector.shape_cast %282 : vector<1x16x6xbf16> to vector<16x6xbf16>
    %cst_167 = arith.constant dense<0.000000e+00> : vector<16x256xf32>
    %284 = tpu.matmul %283, %281, %cst_167 {dimension_numbers = #tpu.dot_dimension_numbers<[1], [0], [0], [1], [0, 0, 1, 1], [], []>} : vector<16x6xbf16>, vector<6x256xbf16>, vector<16x256xf32> -> vector<16x256xf32>
    %285 = arith.addf %279, %284 : vector<16x256xf32>
    %c192_i32 = arith.constant 192 : i32
    %286 = tpu.dynamic_rotate %165 by %c192_i32 dim 1 : vector<6x256xf32>, i32 -> vector<6x256xf32>
    %287 = arith.truncf %286 : vector<6x256xf32> to vector<6x256xbf16>
    %c20_168 = arith.constant 20 : index
    %c0_169 = arith.constant 0 : index
    %c0_170 = arith.constant 0 : index
    %288 = vector.load %arg5[%c20_168, %c0_169, %c0_170] : memref<25x16x6xbf16, #tpu.memory_space<vmem>>, vector<1x16x6xbf16>
    %289 = vector.shape_cast %288 : vector<1x16x6xbf16> to vector<16x6xbf16>
    %cst_171 = arith.constant dense<0.000000e+00> : vector<16x256xf32>
    %290 = tpu.matmul %289, %287, %cst_171 {dimension_numbers = #tpu.dot_dimension_numbers<[1], [0], [0], [1], [0, 0, 1, 1], [], []>} : vector<16x6xbf16>, vector<6x256xbf16>, vector<16x256xf32> -> vector<16x256xf32>
    %291 = arith.addf %285, %290 : vector<16x256xf32>
    %c191_i32 = arith.constant 191 : i32
    %292 = tpu.dynamic_rotate %165 by %c191_i32 dim 1 : vector<6x256xf32>, i32 -> vector<6x256xf32>
    %293 = arith.truncf %292 : vector<6x256xf32> to vector<6x256xbf16>
    %c21_172 = arith.constant 21 : index
    %c0_173 = arith.constant 0 : index
    %c0_174 = arith.constant 0 : index
    %294 = vector.load %arg5[%c21_172, %c0_173, %c0_174] : memref<25x16x6xbf16, #tpu.memory_space<vmem>>, vector<1x16x6xbf16>
    %295 = vector.shape_cast %294 : vector<1x16x6xbf16> to vector<16x6xbf16>
    %cst_175 = arith.constant dense<0.000000e+00> : vector<16x256xf32>
    %296 = tpu.matmul %295, %293, %cst_175 {dimension_numbers = #tpu.dot_dimension_numbers<[1], [0], [0], [1], [0, 0, 1, 1], [], []>} : vector<16x6xbf16>, vector<6x256xbf16>, vector<16x256xf32> -> vector<16x256xf32>
    %297 = arith.addf %291, %296 : vector<16x256xf32>
    %c190_i32 = arith.constant 190 : i32
    %298 = tpu.dynamic_rotate %165 by %c190_i32 dim 1 : vector<6x256xf32>, i32 -> vector<6x256xf32>
    %299 = arith.truncf %298 : vector<6x256xf32> to vector<6x256xbf16>
    %c22_176 = arith.constant 22 : index
    %c0_177 = arith.constant 0 : index
    %c0_178 = arith.constant 0 : index
    %300 = vector.load %arg5[%c22_176, %c0_177, %c0_178] : memref<25x16x6xbf16, #tpu.memory_space<vmem>>, vector<1x16x6xbf16>
    %301 = vector.shape_cast %300 : vector<1x16x6xbf16> to vector<16x6xbf16>
    %cst_179 = arith.constant dense<0.000000e+00> : vector<16x256xf32>
    %302 = tpu.matmul %301, %299, %cst_179 {dimension_numbers = #tpu.dot_dimension_numbers<[1], [0], [0], [1], [0, 0, 1, 1], [], []>} : vector<16x6xbf16>, vector<6x256xbf16>, vector<16x256xf32> -> vector<16x256xf32>
    %303 = arith.addf %297, %302 : vector<16x256xf32>
    %c189_i32 = arith.constant 189 : i32
    %304 = tpu.dynamic_rotate %165 by %c189_i32 dim 1 : vector<6x256xf32>, i32 -> vector<6x256xf32>
    %305 = arith.truncf %304 : vector<6x256xf32> to vector<6x256xbf16>
    %c23_180 = arith.constant 23 : index
    %c0_181 = arith.constant 0 : index
    %c0_182 = arith.constant 0 : index
    %306 = vector.load %arg5[%c23_180, %c0_181, %c0_182] : memref<25x16x6xbf16, #tpu.memory_space<vmem>>, vector<1x16x6xbf16>
    %307 = vector.shape_cast %306 : vector<1x16x6xbf16> to vector<16x6xbf16>
    %cst_183 = arith.constant dense<0.000000e+00> : vector<16x256xf32>
    %308 = tpu.matmul %307, %305, %cst_183 {dimension_numbers = #tpu.dot_dimension_numbers<[1], [0], [0], [1], [0, 0, 1, 1], [], []>} : vector<16x6xbf16>, vector<6x256xbf16>, vector<16x256xf32> -> vector<16x256xf32>
    %309 = arith.addf %303, %308 : vector<16x256xf32>
    %c188_i32 = arith.constant 188 : i32
    %310 = tpu.dynamic_rotate %165 by %c188_i32 dim 1 : vector<6x256xf32>, i32 -> vector<6x256xf32>
    %311 = arith.truncf %310 : vector<6x256xf32> to vector<6x256xbf16>
    %c24_184 = arith.constant 24 : index
    %c0_185 = arith.constant 0 : index
    %c0_186 = arith.constant 0 : index
    %312 = vector.load %arg5[%c24_184, %c0_185, %c0_186] : memref<25x16x6xbf16, #tpu.memory_space<vmem>>, vector<1x16x6xbf16>
    %313 = vector.shape_cast %312 : vector<1x16x6xbf16> to vector<16x6xbf16>
    %cst_187 = arith.constant dense<0.000000e+00> : vector<16x256xf32>
    %314 = tpu.matmul %313, %311, %cst_187 {dimension_numbers = #tpu.dot_dimension_numbers<[1], [0], [0], [1], [0, 0, 1, 1], [], []>} : vector<16x6xbf16>, vector<6x256xbf16>, vector<16x256xf32> -> vector<16x256xf32>
    %315 = arith.addf %309, %314 : vector<16x256xf32>
    %c0_188 = arith.constant 0 : index
    %c0_189 = arith.constant 0 : index
    %316 = vector.load %arg6[%c0_188, %c0_189] : memref<16x1xf32, #tpu.memory_space<vmem>>, vector<16x1xf32>
    %317 = vector.broadcast %316 : vector<16x1xf32> to vector<16x256xf32>
    %318 = arith.addf %315, %317 : vector<16x256xf32>
    %cst_190 = arith.constant 0.000000e+00 : f32
    %319 = vector.broadcast %cst_190 : f32 to vector<16x256xf32>
    %320 = arith.maximumf %318, %319 : vector<16x256xf32>
    %c255_i32_191 = arith.constant 255 : i32
    %321 = tpu.dynamic_rotate %320 by %c255_i32_191 dim 1 : vector<16x256xf32>, i32 -> vector<16x256xf32>
    %322 = arith.maximumf %320, %321 : vector<16x256xf32>
    %c240_i32_192 = arith.constant 240 : i32
    %323 = tpu.dynamic_rotate %320 by %c240_i32_192 dim 1 : vector<16x256xf32>, i32 -> vector<16x256xf32>
    %324 = arith.maximumf %322, %323 : vector<16x256xf32>
    %c239_i32_193 = arith.constant 239 : i32
    %325 = tpu.dynamic_rotate %320 by %c239_i32_193 dim 1 : vector<16x256xf32>, i32 -> vector<16x256xf32>
    %326 = arith.maximumf %324, %325 : vector<16x256xf32>
    %327 = arith.truncf %326 : vector<16x256xf32> to vector<16x256xbf16>
    %c0_194 = arith.constant 0 : index
    %c0_195 = arith.constant 0 : index
    %328 = vector.load %arg7[%c0_194, %c0_195] : memref<256x25xbf16, #tpu.memory_space<vmem>>, vector<256x25xbf16>
    %cst_196 = arith.constant dense<0.000000e+00> : vector<16x25xf32>
    %329 = tpu.matmul %327, %328, %cst_196 {dimension_numbers = #tpu.dot_dimension_numbers<[1], [0], [0], [1], [0, 0, 1, 1], [], []>} : vector<16x256xbf16>, vector<256x25xbf16>, vector<16x25xf32> -> vector<16x25xf32>
    %c0_197 = arith.constant 0 : index
    %c0_198 = arith.constant 0 : index
    %330 = vector.load %arg9[%c0_197, %c0_198] : memref<1x32xf32, #tpu.memory_space<vmem>>, vector<1x32xf32>
    %331 = vector.extract_strided_slice %329 {offsets = [0, 0], sizes = [1, 25], strides = [1, 1]} : vector<16x25xf32> to vector<1x25xf32>
    %332 = arith.truncf %331 : vector<1x25xf32> to vector<1x25xbf16>
    %c0_199 = arith.constant 0 : index
    %c0_200 = arith.constant 0 : index
    %c0_201 = arith.constant 0 : index
    %333 = vector.load %arg8[%c0_199, %c0_200, %c0_201] : memref<16x25x32xbf16, #tpu.memory_space<vmem>>, vector<1x25x32xbf16>
    %334 = vector.shape_cast %333 : vector<1x25x32xbf16> to vector<25x32xbf16>
    %cst_202 = arith.constant dense<0.000000e+00> : vector<1x32xf32>
    %335 = tpu.matmul %332, %334, %cst_202 {dimension_numbers = #tpu.dot_dimension_numbers<[1], [0], [0], [1], [0, 0, 1, 1], [], []>} : vector<1x25xbf16>, vector<25x32xbf16>, vector<1x32xf32> -> vector<1x32xf32>
    %336 = arith.addf %330, %335 : vector<1x32xf32>
    %337 = vector.extract_strided_slice %329 {offsets = [1, 0], sizes = [1, 25], strides = [1, 1]} : vector<16x25xf32> to vector<1x25xf32>
    %338 = arith.truncf %337 : vector<1x25xf32> to vector<1x25xbf16>
    %c1_203 = arith.constant 1 : index
    %c0_204 = arith.constant 0 : index
    %c0_205 = arith.constant 0 : index
    %339 = vector.load %arg8[%c1_203, %c0_204, %c0_205] : memref<16x25x32xbf16, #tpu.memory_space<vmem>>, vector<1x25x32xbf16>
    %340 = vector.shape_cast %339 : vector<1x25x32xbf16> to vector<25x32xbf16>
    %cst_206 = arith.constant dense<0.000000e+00> : vector<1x32xf32>
    %341 = tpu.matmul %338, %340, %cst_206 {dimension_numbers = #tpu.dot_dimension_numbers<[1], [0], [0], [1], [0, 0, 1, 1], [], []>} : vector<1x25xbf16>, vector<25x32xbf16>, vector<1x32xf32> -> vector<1x32xf32>
    %342 = arith.addf %336, %341 : vector<1x32xf32>
    %343 = vector.extract_strided_slice %329 {offsets = [2, 0], sizes = [1, 25], strides = [1, 1]} : vector<16x25xf32> to vector<1x25xf32>
    %344 = arith.truncf %343 : vector<1x25xf32> to vector<1x25xbf16>
    %c2_207 = arith.constant 2 : index
    %c0_208 = arith.constant 0 : index
    %c0_209 = arith.constant 0 : index
    %345 = vector.load %arg8[%c2_207, %c0_208, %c0_209] : memref<16x25x32xbf16, #tpu.memory_space<vmem>>, vector<1x25x32xbf16>
    %346 = vector.shape_cast %345 : vector<1x25x32xbf16> to vector<25x32xbf16>
    %cst_210 = arith.constant dense<0.000000e+00> : vector<1x32xf32>
    %347 = tpu.matmul %344, %346, %cst_210 {dimension_numbers = #tpu.dot_dimension_numbers<[1], [0], [0], [1], [0, 0, 1, 1], [], []>} : vector<1x25xbf16>, vector<25x32xbf16>, vector<1x32xf32> -> vector<1x32xf32>
    %348 = arith.addf %342, %347 : vector<1x32xf32>
    %349 = vector.extract_strided_slice %329 {offsets = [3, 0], sizes = [1, 25], strides = [1, 1]} : vector<16x25xf32> to vector<1x25xf32>
    %350 = arith.truncf %349 : vector<1x25xf32> to vector<1x25xbf16>
    %c3_211 = arith.constant 3 : index
    %c0_212 = arith.constant 0 : index
    %c0_213 = arith.constant 0 : index
    %351 = vector.load %arg8[%c3_211, %c0_212, %c0_213] : memref<16x25x32xbf16, #tpu.memory_space<vmem>>, vector<1x25x32xbf16>
    %352 = vector.shape_cast %351 : vector<1x25x32xbf16> to vector<25x32xbf16>
    %cst_214 = arith.constant dense<0.000000e+00> : vector<1x32xf32>
    %353 = tpu.matmul %350, %352, %cst_214 {dimension_numbers = #tpu.dot_dimension_numbers<[1], [0], [0], [1], [0, 0, 1, 1], [], []>} : vector<1x25xbf16>, vector<25x32xbf16>, vector<1x32xf32> -> vector<1x32xf32>
    %354 = arith.addf %348, %353 : vector<1x32xf32>
    %355 = vector.extract_strided_slice %329 {offsets = [4, 0], sizes = [1, 25], strides = [1, 1]} : vector<16x25xf32> to vector<1x25xf32>
    %356 = arith.truncf %355 : vector<1x25xf32> to vector<1x25xbf16>
    %c4_215 = arith.constant 4 : index
    %c0_216 = arith.constant 0 : index
    %c0_217 = arith.constant 0 : index
    %357 = vector.load %arg8[%c4_215, %c0_216, %c0_217] : memref<16x25x32xbf16, #tpu.memory_space<vmem>>, vector<1x25x32xbf16>
    %358 = vector.shape_cast %357 : vector<1x25x32xbf16> to vector<25x32xbf16>
    %cst_218 = arith.constant dense<0.000000e+00> : vector<1x32xf32>
    %359 = tpu.matmul %356, %358, %cst_218 {dimension_numbers = #tpu.dot_dimension_numbers<[1], [0], [0], [1], [0, 0, 1, 1], [], []>} : vector<1x25xbf16>, vector<25x32xbf16>, vector<1x32xf32> -> vector<1x32xf32>
    %360 = arith.addf %354, %359 : vector<1x32xf32>
    %361 = vector.extract_strided_slice %329 {offsets = [5, 0], sizes = [1, 25], strides = [1, 1]} : vector<16x25xf32> to vector<1x25xf32>
    %362 = arith.truncf %361 : vector<1x25xf32> to vector<1x25xbf16>
    %c5_219 = arith.constant 5 : index
    %c0_220 = arith.constant 0 : index
    %c0_221 = arith.constant 0 : index
    %363 = vector.load %arg8[%c5_219, %c0_220, %c0_221] : memref<16x25x32xbf16, #tpu.memory_space<vmem>>, vector<1x25x32xbf16>
    %364 = vector.shape_cast %363 : vector<1x25x32xbf16> to vector<25x32xbf16>
    %cst_222 = arith.constant dense<0.000000e+00> : vector<1x32xf32>
    %365 = tpu.matmul %362, %364, %cst_222 {dimension_numbers = #tpu.dot_dimension_numbers<[1], [0], [0], [1], [0, 0, 1, 1], [], []>} : vector<1x25xbf16>, vector<25x32xbf16>, vector<1x32xf32> -> vector<1x32xf32>
    %366 = arith.addf %360, %365 : vector<1x32xf32>
    %367 = vector.extract_strided_slice %329 {offsets = [6, 0], sizes = [1, 25], strides = [1, 1]} : vector<16x25xf32> to vector<1x25xf32>
    %368 = arith.truncf %367 : vector<1x25xf32> to vector<1x25xbf16>
    %c6_223 = arith.constant 6 : index
    %c0_224 = arith.constant 0 : index
    %c0_225 = arith.constant 0 : index
    %369 = vector.load %arg8[%c6_223, %c0_224, %c0_225] : memref<16x25x32xbf16, #tpu.memory_space<vmem>>, vector<1x25x32xbf16>
    %370 = vector.shape_cast %369 : vector<1x25x32xbf16> to vector<25x32xbf16>
    %cst_226 = arith.constant dense<0.000000e+00> : vector<1x32xf32>
    %371 = tpu.matmul %368, %370, %cst_226 {dimension_numbers = #tpu.dot_dimension_numbers<[1], [0], [0], [1], [0, 0, 1, 1], [], []>} : vector<1x25xbf16>, vector<25x32xbf16>, vector<1x32xf32> -> vector<1x32xf32>
    %372 = arith.addf %366, %371 : vector<1x32xf32>
    %373 = vector.extract_strided_slice %329 {offsets = [7, 0], sizes = [1, 25], strides = [1, 1]} : vector<16x25xf32> to vector<1x25xf32>
    %374 = arith.truncf %373 : vector<1x25xf32> to vector<1x25xbf16>
    %c7_227 = arith.constant 7 : index
    %c0_228 = arith.constant 0 : index
    %c0_229 = arith.constant 0 : index
    %375 = vector.load %arg8[%c7_227, %c0_228, %c0_229] : memref<16x25x32xbf16, #tpu.memory_space<vmem>>, vector<1x25x32xbf16>
    %376 = vector.shape_cast %375 : vector<1x25x32xbf16> to vector<25x32xbf16>
    %cst_230 = arith.constant dense<0.000000e+00> : vector<1x32xf32>
    %377 = tpu.matmul %374, %376, %cst_230 {dimension_numbers = #tpu.dot_dimension_numbers<[1], [0], [0], [1], [0, 0, 1, 1], [], []>} : vector<1x25xbf16>, vector<25x32xbf16>, vector<1x32xf32> -> vector<1x32xf32>
    %378 = arith.addf %372, %377 : vector<1x32xf32>
    %379 = vector.extract_strided_slice %329 {offsets = [8, 0], sizes = [1, 25], strides = [1, 1]} : vector<16x25xf32> to vector<1x25xf32>
    %380 = arith.truncf %379 : vector<1x25xf32> to vector<1x25xbf16>
    %c8_231 = arith.constant 8 : index
    %c0_232 = arith.constant 0 : index
    %c0_233 = arith.constant 0 : index
    %381 = vector.load %arg8[%c8_231, %c0_232, %c0_233] : memref<16x25x32xbf16, #tpu.memory_space<vmem>>, vector<1x25x32xbf16>
    %382 = vector.shape_cast %381 : vector<1x25x32xbf16> to vector<25x32xbf16>
    %cst_234 = arith.constant dense<0.000000e+00> : vector<1x32xf32>
    %383 = tpu.matmul %380, %382, %cst_234 {dimension_numbers = #tpu.dot_dimension_numbers<[1], [0], [0], [1], [0, 0, 1, 1], [], []>} : vector<1x25xbf16>, vector<25x32xbf16>, vector<1x32xf32> -> vector<1x32xf32>
    %384 = arith.addf %378, %383 : vector<1x32xf32>
    %385 = vector.extract_strided_slice %329 {offsets = [9, 0], sizes = [1, 25], strides = [1, 1]} : vector<16x25xf32> to vector<1x25xf32>
    %386 = arith.truncf %385 : vector<1x25xf32> to vector<1x25xbf16>
    %c9_235 = arith.constant 9 : index
    %c0_236 = arith.constant 0 : index
    %c0_237 = arith.constant 0 : index
    %387 = vector.load %arg8[%c9_235, %c0_236, %c0_237] : memref<16x25x32xbf16, #tpu.memory_space<vmem>>, vector<1x25x32xbf16>
    %388 = vector.shape_cast %387 : vector<1x25x32xbf16> to vector<25x32xbf16>
    %cst_238 = arith.constant dense<0.000000e+00> : vector<1x32xf32>
    %389 = tpu.matmul %386, %388, %cst_238 {dimension_numbers = #tpu.dot_dimension_numbers<[1], [0], [0], [1], [0, 0, 1, 1], [], []>} : vector<1x25xbf16>, vector<25x32xbf16>, vector<1x32xf32> -> vector<1x32xf32>
    %390 = arith.addf %384, %389 : vector<1x32xf32>
    %391 = vector.extract_strided_slice %329 {offsets = [10, 0], sizes = [1, 25], strides = [1, 1]} : vector<16x25xf32> to vector<1x25xf32>
    %392 = arith.truncf %391 : vector<1x25xf32> to vector<1x25xbf16>
    %c10_239 = arith.constant 10 : index
    %c0_240 = arith.constant 0 : index
    %c0_241 = arith.constant 0 : index
    %393 = vector.load %arg8[%c10_239, %c0_240, %c0_241] : memref<16x25x32xbf16, #tpu.memory_space<vmem>>, vector<1x25x32xbf16>
    %394 = vector.shape_cast %393 : vector<1x25x32xbf16> to vector<25x32xbf16>
    %cst_242 = arith.constant dense<0.000000e+00> : vector<1x32xf32>
    %395 = tpu.matmul %392, %394, %cst_242 {dimension_numbers = #tpu.dot_dimension_numbers<[1], [0], [0], [1], [0, 0, 1, 1], [], []>} : vector<1x25xbf16>, vector<25x32xbf16>, vector<1x32xf32> -> vector<1x32xf32>
    %396 = arith.addf %390, %395 : vector<1x32xf32>
    %397 = vector.extract_strided_slice %329 {offsets = [11, 0], sizes = [1, 25], strides = [1, 1]} : vector<16x25xf32> to vector<1x25xf32>
    %398 = arith.truncf %397 : vector<1x25xf32> to vector<1x25xbf16>
    %c11_243 = arith.constant 11 : index
    %c0_244 = arith.constant 0 : index
    %c0_245 = arith.constant 0 : index
    %399 = vector.load %arg8[%c11_243, %c0_244, %c0_245] : memref<16x25x32xbf16, #tpu.memory_space<vmem>>, vector<1x25x32xbf16>
    %400 = vector.shape_cast %399 : vector<1x25x32xbf16> to vector<25x32xbf16>
    %cst_246 = arith.constant dense<0.000000e+00> : vector<1x32xf32>
    %401 = tpu.matmul %398, %400, %cst_246 {dimension_numbers = #tpu.dot_dimension_numbers<[1], [0], [0], [1], [0, 0, 1, 1], [], []>} : vector<1x25xbf16>, vector<25x32xbf16>, vector<1x32xf32> -> vector<1x32xf32>
    %402 = arith.addf %396, %401 : vector<1x32xf32>
    %403 = vector.extract_strided_slice %329 {offsets = [12, 0], sizes = [1, 25], strides = [1, 1]} : vector<16x25xf32> to vector<1x25xf32>
    %404 = arith.truncf %403 : vector<1x25xf32> to vector<1x25xbf16>
    %c12_247 = arith.constant 12 : index
    %c0_248 = arith.constant 0 : index
    %c0_249 = arith.constant 0 : index
    %405 = vector.load %arg8[%c12_247, %c0_248, %c0_249] : memref<16x25x32xbf16, #tpu.memory_space<vmem>>, vector<1x25x32xbf16>
    %406 = vector.shape_cast %405 : vector<1x25x32xbf16> to vector<25x32xbf16>
    %cst_250 = arith.constant dense<0.000000e+00> : vector<1x32xf32>
    %407 = tpu.matmul %404, %406, %cst_250 {dimension_numbers = #tpu.dot_dimension_numbers<[1], [0], [0], [1], [0, 0, 1, 1], [], []>} : vector<1x25xbf16>, vector<25x32xbf16>, vector<1x32xf32> -> vector<1x32xf32>
    %408 = arith.addf %402, %407 : vector<1x32xf32>
    %409 = vector.extract_strided_slice %329 {offsets = [13, 0], sizes = [1, 25], strides = [1, 1]} : vector<16x25xf32> to vector<1x25xf32>
    %410 = arith.truncf %409 : vector<1x25xf32> to vector<1x25xbf16>
    %c13_251 = arith.constant 13 : index
    %c0_252 = arith.constant 0 : index
    %c0_253 = arith.constant 0 : index
    %411 = vector.load %arg8[%c13_251, %c0_252, %c0_253] : memref<16x25x32xbf16, #tpu.memory_space<vmem>>, vector<1x25x32xbf16>
    %412 = vector.shape_cast %411 : vector<1x25x32xbf16> to vector<25x32xbf16>
    %cst_254 = arith.constant dense<0.000000e+00> : vector<1x32xf32>
    %413 = tpu.matmul %410, %412, %cst_254 {dimension_numbers = #tpu.dot_dimension_numbers<[1], [0], [0], [1], [0, 0, 1, 1], [], []>} : vector<1x25xbf16>, vector<25x32xbf16>, vector<1x32xf32> -> vector<1x32xf32>
    %414 = arith.addf %408, %413 : vector<1x32xf32>
    %415 = vector.extract_strided_slice %329 {offsets = [14, 0], sizes = [1, 25], strides = [1, 1]} : vector<16x25xf32> to vector<1x25xf32>
    %416 = arith.truncf %415 : vector<1x25xf32> to vector<1x25xbf16>
    %c14_255 = arith.constant 14 : index
    %c0_256 = arith.constant 0 : index
    %c0_257 = arith.constant 0 : index
    %417 = vector.load %arg8[%c14_255, %c0_256, %c0_257] : memref<16x25x32xbf16, #tpu.memory_space<vmem>>, vector<1x25x32xbf16>
    %418 = vector.shape_cast %417 : vector<1x25x32xbf16> to vector<25x32xbf16>
    %cst_258 = arith.constant dense<0.000000e+00> : vector<1x32xf32>
    %419 = tpu.matmul %416, %418, %cst_258 {dimension_numbers = #tpu.dot_dimension_numbers<[1], [0], [0], [1], [0, 0, 1, 1], [], []>} : vector<1x25xbf16>, vector<25x32xbf16>, vector<1x32xf32> -> vector<1x32xf32>
    %420 = arith.addf %414, %419 : vector<1x32xf32>
    %421 = vector.extract_strided_slice %329 {offsets = [15, 0], sizes = [1, 25], strides = [1, 1]} : vector<16x25xf32> to vector<1x25xf32>
    %422 = arith.truncf %421 : vector<1x25xf32> to vector<1x25xbf16>
    %c15_259 = arith.constant 15 : index
    %c0_260 = arith.constant 0 : index
    %c0_261 = arith.constant 0 : index
    %423 = vector.load %arg8[%c15_259, %c0_260, %c0_261] : memref<16x25x32xbf16, #tpu.memory_space<vmem>>, vector<1x25x32xbf16>
    %424 = vector.shape_cast %423 : vector<1x25x32xbf16> to vector<25x32xbf16>
    %cst_262 = arith.constant dense<0.000000e+00> : vector<1x32xf32>
    %425 = tpu.matmul %422, %424, %cst_262 {dimension_numbers = #tpu.dot_dimension_numbers<[1], [0], [0], [1], [0, 0, 1, 1], [], []>} : vector<1x25xbf16>, vector<25x32xbf16>, vector<1x32xf32> -> vector<1x32xf32>
    %426 = arith.addf %420, %425 : vector<1x32xf32>
    %cst_263 = arith.constant 0.000000e+00 : f32
    %427 = vector.broadcast %cst_263 : f32 to vector<1x32xf32>
    %428 = arith.maximumf %426, %427 : vector<1x32xf32>
    %429 = arith.truncf %428 : vector<1x32xf32> to vector<1x32xbf16>
    %c0_264 = arith.constant 0 : index
    %c0_265 = arith.constant 0 : index
    %430 = vector.load %arg10[%c0_264, %c0_265] : memref<32x16xbf16, #tpu.memory_space<vmem>>, vector<32x16xbf16>
    %cst_266 = arith.constant dense<0.000000e+00> : vector<1x16xf32>
    %431 = tpu.matmul %429, %430, %cst_266 {dimension_numbers = #tpu.dot_dimension_numbers<[1], [0], [0], [1], [0, 0, 1, 1], [], []>} : vector<1x32xbf16>, vector<32x16xbf16>, vector<1x16xf32> -> vector<1x16xf32>
    %c0_267 = arith.constant 0 : index
    %c0_268 = arith.constant 0 : index
    %432 = vector.load %arg11[%c0_267, %c0_268] : memref<1x16xf32, #tpu.memory_space<vmem>>, vector<1x16xf32>
    %433 = arith.addf %431, %432 : vector<1x16xf32>
    %cst_269 = arith.constant 0.000000e+00 : f32
    %434 = vector.broadcast %cst_269 : f32 to vector<1x16xf32>
    %435 = arith.maximumf %433, %434 : vector<1x16xf32>
    %c0_270 = arith.constant 0 : index
    %c0_271 = arith.constant 0 : index
    %c0_272 = arith.constant 0 : index
    %436 = vector.load %arg12[%c0_270, %c0_271, %c0_272] : memref<1x1x16xf32, #tpu.memory_space<vmem>>, vector<1x1x16xf32>
    %437 = vector.shape_cast %436 : vector<1x1x16xf32> to vector<1x16xf32>
    %438 = vector.shape_cast %435 : vector<1x16xf32> to vector<1x1x16xf32>
    tpu.vector_store %arg12[%c0_270, %c0_271, %c0_272], %438 {strides = array<i32>} : memref<1x1x16xf32, #tpu.memory_space<vmem>>, vector<1x1x16xf32>,
    return
  }
  func.func @transform_0(%arg0: i32) -> (i32, i32, i32) {
    %c0_i32 = arith.constant 0 : i32
    %c0_i32_0 = arith.constant 0 : i32
    %c0_i32_1 = arith.constant 0 : i32
    return %arg0, %c0_i32, %c0_i32_0 : i32, i32, i32
  }
  func.func @transform_1(%arg0: i32) -> (i32, i32, i32) {
    %c0_i32 = arith.constant 0 : i32
    %c0_i32_0 = arith.constant 0 : i32
    %c0_i32_1 = arith.constant 0 : i32
    %c0_i32_2 = arith.constant 0 : i32
    return %c0_i32, %c0_i32_0, %c0_i32_1 : i32, i32, i32
  }
  func.func @transform_2(%arg0: i32) -> (i32, i32) {
    %c0_i32 = arith.constant 0 : i32
    %c0_i32_0 = arith.constant 0 : i32
    %c0_i32_1 = arith.constant 0 : i32
    return %c0_i32, %c0_i32_0 : i32, i32
  }
  func.func @transform_3(%arg0: i32) -> (i32, i32) {
    %c0_i32 = arith.constant 0 : i32
    %c0_i32_0 = arith.constant 0 : i32
    %c0_i32_1 = arith.constant 0 : i32
    return %c0_i32, %c0_i32_0 : i32, i32
  }
  func.func @transform_4(%arg0: i32) -> (i32, i32, i32) {
    %c0_i32 = arith.constant 0 : i32
    %c0_i32_0 = arith.constant 0 : i32
    %c0_i32_1 = arith.constant 0 : i32
    %c0_i32_2 = arith.constant 0 : i32
    return %c0_i32, %c0_i32_0, %c0_i32_1 : i32, i32, i32
  }
  func.func @transform_5(%arg0: i32) -> (i32, i32) {
    %c0_i32 = arith.constant 0 : i32
    %c0_i32_0 = arith.constant 0 : i32
    %c0_i32_1 = arith.constant 0 : i32
    return %c0_i32, %c0_i32_0 : i32, i32
  }
  func.func @transform_6(%arg0: i32) -> (i32, i32) {
    %c0_i32 = arith.constant 0 : i32
    %c0_i32_0 = arith.constant 0 : i32
    %c0_i32_1 = arith.constant 0 : i32
    return %c0_i32, %c0_i32_0 : i32, i32
  }
  func.func @transform_7(%arg0: i32) -> (i32, i32, i32) {
    %c0_i32 = arith.constant 0 : i32
    %c0_i32_0 = arith.constant 0 : i32
    %c0_i32_1 = arith.constant 0 : i32
    %c0_i32_2 = arith.constant 0 : i32
    return %c0_i32, %c0_i32_0, %c0_i32_1 : i32, i32, i32
  }
  func.func @transform_8(%arg0: i32) -> (i32, i32) {
    %c0_i32 = arith.constant 0 : i32
    %c0_i32_0 = arith.constant 0 : i32
    %c0_i32_1 = arith.constant 0 : i32
    return %c0_i32, %c0_i32_0 : i32, i32
  }
  func.func @transform_9(%arg0: i32) -> (i32, i32) {
    %c0_i32 = arith.constant 0 : i32
    %c0_i32_0 = arith.constant 0 : i32
    %c0_i32_1 = arith.constant 0 : i32
    return %c0_i32, %c0_i32_0 : i32, i32
  }
  func.func @transform_10(%arg0: i32) -> (i32, i32) {
    %c0_i32 = arith.constant 0 : i32
    %c0_i32_0 = arith.constant 0 : i32
    %c0_i32_1 = arith.constant 0 : i32
    return %c0_i32, %c0_i32_0 : i32, i32
  }
  func.func @transform_11(%arg0: i32) -> (i32, i32, i32) {
    %c0_i32 = arith.constant 0 : i32
    %c0_i32_0 = arith.constant 0 : i32
    %c0_i32_1 = arith.constant 0 : i32
    return %arg0, %c0_i32, %c0_i32_0 : i32, i32, i32
  }
}

</mosaic_0001>

<llo_original>
// kernel: simple_cnn_header_forward.1
$region0: #{simple_cnn_header_forward.1}
  #allocation0 [shape = 'u32[]', space=smem, size = 0x4, offset = 0x4, fixed_abs, tag = 'smem constant byte address 0x4 - core index']
  #allocation1 [shape = 'u32[144,128]{1,0:T(1,128)}', space=vmem, size = 0x12000, scoped, tag = 'internal scratch']
  %s0 = inlined_call_operand.vmem [shape: f32[2,3,1024], index: 0, kind: input, shape index: {}]
  %s1 = inlined_call_operand.vmem [shape: bf16[25,6,3], index: 1, kind: input, shape index: {}]
  %s2 = inlined_call_operand.vmem [shape: f32[6,1], index: 2, kind: input, shape index: {}]
  %s3 = inlined_call_operand.vmem [shape: bf16[1024,256], index: 3, kind: input, shape index: {}]
  %s4 = inlined_call_operand.vmem [shape: bf16[25,16,6], index: 4, kind: input, shape index: {}]
  %s5 = inlined_call_operand.vmem [shape: f32[16,1], index: 5, kind: input, shape index: {}]
  %s6 = inlined_call_operand.vmem [shape: bf16[256,25], index: 6, kind: input, shape index: {}]
  %s7 = inlined_call_operand.vmem [shape: bf16[16,25,32], index: 7, kind: input, shape index: {}]
  %s8 = inlined_call_operand.vmem [shape: f32[1,32], index: 8, kind: input, shape index: {}]
  %s9 = inlined_call_operand.vmem [shape: bf16[32,16], index: 9, kind: input, shape index: {}]
  %s10 = inlined_call_operand.vmem [shape: f32[1,16], index: 10, kind: input, shape index: {}]
  %s11 = inlined_call_operand.hbm [shape: f32[2,1,16], index: 11, kind: output, shape index: {}]
  %s12 = sld [smem:[#allocation0]]
  $region77: #{simple_cnn_header_forward.1} parent=0
    _
  %s14 = ssub.s32 1, %s12
  %s15 = scalar_select 0, %s14, %s12
  $region1: #{simple_cnn_header_forward.1} parent=0
    #allocation2 [shape = 'u8[1024]{0}', space=vmem, size = 0x400, scoped, tag = 'output window, operand 0']
    #allocation3 [shape = 's32[2]{0}', space=sflag, size = 0x8, scoped, tag = 'scoped memory for simple_cnn_header_forward.1']
    %16 = vsyncpa [#allocation3], 0
    %s17 = scalar_lea.sflag [#allocation3], 1
    %18 = vsyncpa %s17, 0
    loop: start=0, step=1, limit=4
    $region2: #{simple_cnn_header_forward.1} parent=1 // loop_pre_header
      _
    $region3: #{simple_cnn_header_forward.1} parent=1 // loop_header
      %s20 = sphi 0, %s24
      %p21 = scmp.ge.s32.totalorder %s20, 4
      %s30 = sphi 0, %s32
      %s33 = sphi 0, %s30
      %s34 = sphi 0, %s33
      %s50 = sphi 0, %s34
      %s54 = sphi 0, %s54
      %s56 = sphi 0, %s54
      %s57 = sphi 0, %s56
      %s71 = sphi 0, %s57
      %s75 = sphi 0, %s75
      %s77 = sphi 0, %s75
      %s78 = sphi 0, %s77
      %s92 = sphi 0, %s78
      %s96 = sphi 0, %s96
      %s98 = sphi 0, %s96
      %s99 = sphi 0, %s98
      %s113 = sphi 0, %s99
      %s117 = sphi 0, %s117
      %s119 = sphi 0, %s117
      %s120 = sphi 0, %s119
      %s134 = sphi 0, %s120
      %s138 = sphi 0, %s138
      %s140 = sphi 0, %s138
      %s141 = sphi 0, %s140
      %s155 = sphi 0, %s141
      %s159 = sphi 0, %s159
      %s161 = sphi 0, %s159
      %s162 = sphi 0, %s161
      %s176 = sphi 0, %s162
      %s180 = sphi 0, %s180
      %s182 = sphi 0, %s180
      %s183 = sphi 0, %s182
      %s197 = sphi 0, %s183
      %s201 = sphi 0, %s201
      %s203 = sphi 0, %s201
      %s204 = sphi 0, %s203
      %s218 = sphi 0, %s204
      %s222 = sphi 0, %s222
      %s224 = sphi 0, %s222
      %s225 = sphi 0, %s224
      %s239 = sphi 0, %s225
      %s243 = sphi 0, %s243
      %s245 = sphi 0, %s243
      %s246 = sphi 0, %s245
      %s260 = sphi 0, %s246
      %s266 = sphi 0, %s268
      %s269 = sphi 0, %s266
      %s270 = sphi 0, %s269
      %s286 = sphi 0, %s270
    $region4: #{simple_cnn_header_forward.1} parent=1 // loop_header_branch
      %23 = sbr.rel (%p21) target = $region8
    $region5: #{simple_cnn_header_forward.1} parent=1 // loop_body
      %s25 = ssub.s32 %s20, 1
      %s26 = ssub.s32 %s20, 2
      %s27 = sadd.s32 %s20, 1
      %s28 = ssub.s32 %s20, %s27
      %p29 = scmp.eq.s32.totalorder %s28, 0
      %s31 = sadd.s32 %s30, 1
      %s32 = scalar_select %p29, %s30, %s31
      %p35 = pneg %p29
      %p36 = scmp.eq.s32.totalorder %s20, 1
      %p37 = por %p35, %p36
      %p38 = scmp.ne.s32.totalorder %s30, %s33
      %p39 = scmp.eq.s32.totalorder %s20, 0
      %p40 = por %p38, %p39
      %p41 = scmp.ne.s32.totalorder %s30, %s33
      %p42 = scmp.eq.s32.totalorder %s25, 1
      %p43 = por %p41, %p42
      %p44 = scmp.ne.s32.totalorder %s33, %s34
      %p45 = scmp.eq.s32.totalorder %s25, 0
      %p46 = por %p44, %p45
      %p47 = scmp.ne.s32.totalorder %s33, %s34
      %p48 = scmp.eq.s32.totalorder %s26, 1
      %p49 = por %p47, %p48
      %p51 = scmp.ne.s32.totalorder %s34, %s50
      %p52 = scmp.eq.s32.totalorder %s26, 0
      %p53 = por %p51, %p52
      %s55 = sadd.s32 %s54, 1
      %p58 = scmp.eq.s32.totalorder %s20, 1
      %p59 = scmp.ne.s32.totalorder %s54, %s56
      %p60 = scmp.eq.s32.totalorder %s20, 0
      %p61 = por %p59, %p60
      %p62 = scmp.ne.s32.totalorder %s54, %s56
      %p63 = scmp.eq.s32.totalorder %s25, 1
      %p64 = por %p62, %p63
      %p65 = scmp.ne.s32.totalorder %s56, %s57
      %p66 = scmp.eq.s32.totalorder %s25, 0
      %p67 = por %p65, %p66
      %p68 = scmp.ne.s32.totalorder %s56, %s57
      %p69 = scmp.eq.s32.totalorder %s26, 1
      %p70 = por %p68, %p69
      %p72 = scmp.ne.s32.totalorder %s57, %s71
      %p73 = scmp.eq.s32.totalorder %s26, 0
      %p74 = por %p72, %p73
      %s76 = sadd.s32 %s75, 1
      %p79 = scmp.eq.s32.totalorder %s20, 1
      %p80 = scmp.ne.s32.totalorder %s75, %s77
      %p81 = scmp.eq.s32.totalorder %s20, 0
      %p82 = por %p80, %p81
      %p83 = scmp.ne.s32.totalorder %s75, %s77
      %p84 = scmp.eq.s32.totalorder %s25, 1
      %p85 = por %p83, %p84
      %p86 = scmp.ne.s32.totalorder %s77, %s78
      %p87 = scmp.eq.s32.totalorder %s25, 0
      %p88 = por %p86, %p87
      %p89 = scmp.ne.s32.totalorder %s77, %s78
      %p90 = scmp.eq.s32.totalorder %s26, 1
      %p91 = por %p89, %p90
      %p93 = scmp.ne.s32.totalorder %s78, %s92
      %p94 = scmp.eq.s32.totalorder %s26, 0
      %p95 = por %p93, %p94
      %s97 = sadd.s32 %s96, 1
      %p100 = scmp.eq.s32.totalorder %s20, 1
      %p101 = scmp.ne.s32.totalorder %s96, %s98
      %p102 = scmp.eq.s32.totalorder %s20, 0
      %p103 = por %p101, %p102
      %p104 = scmp.ne.s32.totalorder %s96, %s98
      %p105 = scmp.eq.s32.totalorder %s25, 1
      %p106 = por %p104, %p105
      %p107 = scmp.ne.s32.totalorder %s98, %s99
      %p108 = scmp.eq.s32.totalorder %s25, 0
      %p109 = por %p107, %p108
      %p110 = scmp.ne.s32.totalorder %s98, %s99
      %p111 = scmp.eq.s32.totalorder %s26, 1
      %p112 = por %p110, %p111
      %p114 = scmp.ne.s32.totalorder %s99, %s113
      %p115 = scmp.eq.s32.totalorder %s26, 0
      %p116 = por %p114, %p115
      %s118 = sadd.s32 %s117, 1
      %p121 = scmp.eq.s32.totalorder %s20, 1
      %p122 = scmp.ne.s32.totalorder %s117, %s119
      %p123 = scmp.eq.s32.totalorder %s20, 0
      %p124 = por %p122, %p123
      %p125 = scmp.ne.s32.totalorder %s117, %s119
      %p126 = scmp.eq.s32.totalorder %s25, 1
      %p127 = por %p125, %p126
      %p128 = scmp.ne.s32.totalorder %s119, %s120
      %p129 = scmp.eq.s32.totalorder %s25, 0
      %p130 = por %p128, %p129
      %p131 = scmp.ne.s32.totalorder %s119, %s120
      %p132 = scmp.eq.s32.totalorder %s26, 1
      %p133 = por %p131, %p132
      %p135 = scmp.ne.s32.totalorder %s120, %s134
      %p136 = scmp.eq.s32.totalorder %s26, 0
      %p137 = por %p135, %p136
      %s139 = sadd.s32 %s138, 1
      %p142 = scmp.eq.s32.totalorder %s20, 1
      %p143 = scmp.ne.s32.totalorder %s138, %s140
      %p144 = scmp.eq.s32.totalorder %s20, 0
      %p145 = por %p143, %p144
      %p146 = scmp.ne.s32.totalorder %s138, %s140
      %p147 = scmp.eq.s32.totalorder %s25, 1
      %p148 = por %p146, %p147
      %p149 = scmp.ne.s32.totalorder %s140, %s141
      %p150 = scmp.eq.s32.totalorder %s25, 0
      %p151 = por %p149, %p150
      %p152 = scmp.ne.s32.totalorder %s140, %s141
      %p153 = scmp.eq.s32.totalorder %s26, 1
      %p154 = por %p152, %p153
      %p156 = scmp.ne.s32.totalorder %s141, %s155
      %p157 = scmp.eq.s32.totalorder %s26, 0
      %p158 = por %p156, %p157
      %s160 = sadd.s32 %s159, 1
      %p163 = scmp.eq.s32.totalorder %s20, 1
      %p164 = scmp.ne.s32.totalorder %s159, %s161
      %p165 = scmp.eq.s32.totalorder %s20, 0
      %p166 = por %p164, %p165
      %p167 = scmp.ne.s32.totalorder %s159, %s161
      %p168 = scmp.eq.s32.totalorder %s25, 1
      %p169 = por %p167, %p168
      %p170 = scmp.ne.s32.totalorder %s161, %s162
      %p171 = scmp.eq.s32.totalorder %s25, 0
      %p172 = por %p170, %p171
      %p173 = scmp.ne.s32.totalorder %s161, %s162
      %p174 = scmp.eq.s32.totalorder %s26, 1
      %p175 = por %p173, %p174
      %p177 = scmp.ne.s32.totalorder %s162, %s176
      %p178 = scmp.eq.s32.totalorder %s26, 0
      %p179 = por %p177, %p178
      %s181 = sadd.s32 %s180, 1
      %p184 = scmp.eq.s32.totalorder %s20, 1
      %p185 = scmp.ne.s32.totalorder %s180, %s182
      %p186 = scmp.eq.s32.totalorder %s20, 0
      %p187 = por %p185, %p186
      %p188 = scmp.ne.s32.totalorder %s180, %s182
      %p189 = scmp.eq.s32.totalorder %s25, 1
      %p190 = por %p188, %p189
      %p191 = scmp.ne.s32.totalorder %s182, %s183
      %p192 = scmp.eq.s32.totalorder %s25, 0
      %p193 = por %p191, %p192
      %p194 = scmp.ne.s32.totalorder %s182, %s183
      %p195 = scmp.eq.s32.totalorder %s26, 1
      %p196 = por %p194, %p195
      %p198 = scmp.ne.s32.totalorder %s183, %s197
      %p199 = scmp.eq.s32.totalorder %s26, 0
      %p200 = por %p198, %p199
      %s202 = sadd.s32 %s201, 1
      %p205 = scmp.eq.s32.totalorder %s20, 1
      %p206 = scmp.ne.s32.totalorder %s201, %s203
      %p207 = scmp.eq.s32.totalorder %s20, 0
      %p208 = por %p206, %p207
      %p209 = scmp.ne.s32.totalorder %s201, %s203
      %p210 = scmp.eq.s32.totalorder %s25, 1
      %p211 = por %p209, %p210
      %p212 = scmp.ne.s32.totalorder %s203, %s204
      %p213 = scmp.eq.s32.totalorder %s25, 0
      %p214 = por %p212, %p213
      %p215 = scmp.ne.s32.totalorder %s203, %s204
      %p216 = scmp.eq.s32.totalorder %s26, 1
      %p217 = por %p215, %p216
      %p219 = scmp.ne.s32.totalorder %s204, %s218
      %p220 = scmp.eq.s32.totalorder %s26, 0
      %p221 = por %p219, %p220
      %s223 = sadd.s32 %s222, 1
      %p226 = scmp.eq.s32.totalorder %s20, 1
      %p227 = scmp.ne.s32.totalorder %s222, %s224
      %p228 = scmp.eq.s32.totalorder %s20, 0
      %p229 = por %p227, %p228
      %p230 = scmp.ne.s32.totalorder %s222, %s224
      %p231 = scmp.eq.s32.totalorder %s25, 1
      %p232 = por %p230, %p231
      %p233 = scmp.ne.s32.totalorder %s224, %s225
      %p234 = scmp.eq.s32.totalorder %s25, 0
      %p235 = por %p233, %p234
      %p236 = scmp.ne.s32.totalorder %s224, %s225
      %p237 = scmp.eq.s32.totalorder %s26, 1
      %p238 = por %p236, %p237
      %p240 = scmp.ne.s32.totalorder %s225, %s239
      %p241 = scmp.eq.s32.totalorder %s26, 0
      %p242 = por %p240, %p241
      %s244 = sadd.s32 %s243, 1
      %p247 = scmp.eq.s32.totalorder %s20, 1
      %p248 = scmp.ne.s32.totalorder %s243, %s245
      %p249 = scmp.eq.s32.totalorder %s20, 0
      %p250 = por %p248, %p249
      %p251 = scmp.ne.s32.totalorder %s243, %s245
      %p252 = scmp.eq.s32.totalorder %s25, 1
      %p253 = por %p251, %p252
      %p254 = scmp.ne.s32.totalorder %s245, %s246
      %p255 = scmp.eq.s32.totalorder %s25, 0
      %p256 = por %p254, %p255
      %p257 = scmp.ne.s32.totalorder %s245, %s246
      %p258 = scmp.eq.s32.totalorder %s26, 1
      %p259 = por %p257, %p258
      %p261 = scmp.ne.s32.totalorder %s246, %s260
      %p262 = scmp.eq.s32.totalorder %s26, 0
      %p263 = por %p261, %p262
      %s264 = ssub.s32 %s20, %s27
      %p265 = scmp.eq.s32.totalorder %s264, 0
      %s267 = sadd.s32 %s266, 1
      %s268 = scalar_select %p265, %s266, %s267
      %p271 = pneg %p265
      %p272 = scmp.eq.s32.totalorder %s20, 1
      %p273 = por %p271, %p272
      %p274 = scmp.ne.s32.totalorder %s266, %s269
      %p275 = scmp.eq.s32.totalorder %s20, 0
      %p276 = por %p274, %p275
      %p277 = scmp.ne.s32.totalorder %s266, %s269
      %p278 = scmp.eq.s32.totalorder %s25, 1
      %p279 = por %p277, %p278
      %p280 = scmp.ne.s32.totalorder %s269, %s270
      %p281 = scmp.eq.s32.totalorder %s25, 0
      %p282 = por %p280, %p281
      %p283 = scmp.ne.s32.totalorder %s269, %s270
      %p284 = scmp.eq.s32.totalorder %s26, 1
      %p285 = por %p283, %p284
      %p287 = scmp.ne.s32.totalorder %s270, %s286
      %p288 = scmp.eq.s32.totalorder %s26, 0
      %p289 = por %p287, %p288
      %p290 = scmp.le.s32.totalorder 1, %s20
      %p291 = scmp.lt.s32.totalorder %s20, 3
      %p292 = pnand %p290, %p291
      %p293 = pneg %p292
      // Predicated region
      $region9: #{simple_cnn_header_forward.1} parent=5 // pred_check
        _
      $region10: #{simple_cnn_header_forward.1} parent=5 // pred_check_branch
        %295 = sbr.rel (%p292) target = $region12
      $region11: #{simple_cnn_header_forward.1} parent=5 // pred_region
        %s296 = ssub.s32 %s20, 1
        // Predicated region
        $region13: #{simple_cnn_header_forward.1} parent=11 // pred_check
          %p297 = pneg %p67
        $region14: #{simple_cnn_header_forward.1} parent=11 // pred_check_branch
          %299 = sbr.rel (%p297) target = $region16
        $region15: #{simple_cnn_header_forward.1} parent=11 // pred_region
          _
        $region16: #{simple_cnn_header_forward.1} parent=11 // pred_fallthru
          _
        // Predicated region
        $region17: #{simple_cnn_header_forward.1} parent=11 // pred_check
          %p300 = pneg %p88
        $region18: #{simple_cnn_header_forward.1} parent=11 // pred_check_branch
          %302 = sbr.rel (%p300) target = $region20
        $region19: #{simple_cnn_header_forward.1} parent=11 // pred_region
          _
        $region20: #{simple_cnn_header_forward.1} parent=11 // pred_fallthru
          _
        // Predicated region
        $region21: #{simple_cnn_header_forward.1} parent=11 // pred_check
          %p303 = pneg %p109
        $region22: #{simple_cnn_header_forward.1} parent=11 // pred_check_branch
          %305 = sbr.rel (%p303) target = $region24
        $region23: #{simple_cnn_header_forward.1} parent=11 // pred_region
          _
        $region24: #{simple_cnn_header_forward.1} parent=11 // pred_fallthru
          _
        // Predicated region
        $region25: #{simple_cnn_header_forward.1} parent=11 // pred_check
          %p306 = pneg %p130
        $region26: #{simple_cnn_header_forward.1} parent=11 // pred_check_branch
          %308 = sbr.rel (%p306) target = $region28
        $region27: #{simple_cnn_header_forward.1} parent=11 // pred_region
          _
        $region28: #{simple_cnn_header_forward.1} parent=11 // pred_fallthru
          _
        // Predicated region
        $region29: #{simple_cnn_header_forward.1} parent=11 // pred_check
          %p309 = pneg %p151
        $region30: #{simple_cnn_header_forward.1} parent=11 // pred_check_branch
          %311 = sbr.rel (%p309) target = $region32
        $region31: #{simple_cnn_header_forward.1} parent=11 // pred_region
          _
        $region32: #{simple_cnn_header_forward.1} parent=11 // pred_fallthru
          _
        // Predicated region
        $region33: #{simple_cnn_header_forward.1} parent=11 // pred_check
          %p312 = pneg %p172
        $region34: #{simple_cnn_header_forward.1} parent=11 // pred_check_branch
          %314 = sbr.rel (%p312) target = $region36
        $region35: #{simple_cnn_header_forward.1} parent=11 // pred_region
          _
        $region36: #{simple_cnn_header_forward.1} parent=11 // pred_fallthru
          _
        // Predicated region
        $region37: #{simple_cnn_header_forward.1} parent=11 // pred_check
          %p315 = pneg %p193
        $region38: #{simple_cnn_header_forward.1} parent=11 // pred_check_branch
          %317 = sbr.rel (%p315) target = $region40
        $region39: #{simple_cnn_header_forward.1} parent=11 // pred_region
          _
        $region40: #{simple_cnn_header_forward.1} parent=11 // pred_fallthru
          _
        // Predicated region
        $region41: #{simple_cnn_header_forward.1} parent=11 // pred_check
          %p318 = pneg %p214
        $region42: #{simple_cnn_header_forward.1} parent=11 // pred_check_branch
          %320 = sbr.rel (%p318) target = $region44
        $region43: #{simple_cnn_header_forward.1} parent=11 // pred_region
          _
        $region44: #{simple_cnn_header_forward.1} parent=11 // pred_fallthru
          _
        // Predicated region
        $region45: #{simple_cnn_header_forward.1} parent=11 // pred_check
          %p321 = pneg %p235
        $region46: #{simple_cnn_header_forward.1} parent=11 // pred_check_branch
          %323 = sbr.rel (%p321) target = $region48
        $region47: #{simple_cnn_header_forward.1} parent=11 // pred_region
          _
        $region48: #{simple_cnn_header_forward.1} parent=11 // pred_fallthru
          _
        // Predicated region
        $region49: #{simple_cnn_header_forward.1} parent=11 // pred_check
          %p324 = pneg %p256
        $region50: #{simple_cnn_header_forward.1} parent=11 // pred_check_branch
          %326 = sbr.rel (%p324) target = $region52
        $region51: #{simple_cnn_header_forward.1} parent=11 // pred_region
          _
        $region52: #{simple_cnn_header_forward.1} parent=11 // pred_fallthru
          _
      $region12: #{simple_cnn_header_forward.1} parent=5 // pred_fallthru
        _
      %p327 = scmp.lt.s32.totalorder %s20, 2
      // Predicated region
      $region53: #{simple_cnn_header_forward.1} parent=5 // pred_check
        %p328 = pneg %p327
      $region54: #{simple_cnn_header_forward.1} parent=5 // pred_check_branch
        %330 = sbr.rel (%p328) target = $region56
      $region55: #{simple_cnn_header_forward.1} parent=5 // pred_region
        // Predicated region
        $region57: #{simple_cnn_header_forward.1} parent=55 // pred_check
          %p331 = pneg %p40
        $region58: #{simple_cnn_header_forward.1} parent=55 // pred_check_branch
          %333 = sbr.rel (%p331) target = $region60
        $region59: #{simple_cnn_header_forward.1} parent=55 // pred_region
          %p334 = scmp.lt.s32.totalorder %s20, 1
          %s335 = scalar_select %p334, %s20, 1
          %s336 = smul.addr %s335, 8
          %s337 = smul.addr %s336, 4
          %s338 = scalar_lea.vmem %s0, %s337
        $region60: #{simple_cnn_header_forward.1} parent=55 // pred_fallthru
          _
      $region56: #{simple_cnn_header_forward.1} parent=5 // pred_fallthru
        _
      %p339 = scmp.le.s32.totalorder 1, %s20
      %p340 = scmp.lt.s32.totalorder %s20, 3
      %p341 = pnand %p339, %p340
      %p342 = pneg %p341
      // Predicated region
      $region61: #{simple_cnn_header_forward.1} parent=5 // pred_check
        _
      $region62: #{simple_cnn_header_forward.1} parent=5 // pred_check_branch
        %344 = sbr.rel (%p341) target = $region64
      $region63: #{simple_cnn_header_forward.1} parent=5 // pred_region
        %s345 = ssub.s32 %s20, 1
        %p346 = scmp.lt.s32.totalorder %s25, 1
        %s347 = scalar_select %p346, %s25, 1
        %s348 = smul.addr %s347, 8
        %s349 = smul.addr %s348, 4
        %s350 = scalar_lea.vmem %s0, %s349
        %p351 = pneg %p46
        %p352 = pneg %p43
        %p353 = pneg %p67
        %p354 = pneg %p64
        %p355 = pneg %p88
        %p356 = pneg %p85
        %p357 = pneg %p109
        %p358 = pneg %p106
        %p359 = pneg %p130
        %p360 = pneg %p127
        %p361 = pneg %p151
        %p362 = pneg %p148
        %p363 = pneg %p172
        %p364 = pneg %p169
        %p365 = pneg %p193
        %p366 = pneg %p190
        %p367 = pneg %p214
        %p368 = pneg %p211
        %p369 = pneg %p235
        %p370 = pneg %p232
        %p371 = pneg %p256
        %p372 = pneg %p253
        %p373 = pneg %p282
        %p374 = pneg %p279
        %s375 = sand.u32 %s269, 1
        %s376 = scalar_lea.sflag [#allocation3], %s375
        %s377 = sand.u32 %s269, 1
        %s378 = scalar_lea.vmem [#allocation2], %s377
        %p379 = scmp.lt.s32.totalorder %s25, 1
        %s380 = scalar_select %p379, %s25, 1
        %s381 = smul.addr %s380, 8
        %s382 = smul.addr %s381, 4
        %s383 = scalar_lea.vmem %s0, %s382
        %v385 = vld [vmem:[%s383] sm:$0x77]
        %v386 = vld [vmem:[%s383 + $0x8] sm:$0x77]
        %v387 = vld [vmem:[%s383 + $0x10] sm:$0x77]
        %v388 = vld [vmem:[%s383 + $0x18] sm:$0x77]
        %v393 = vcombine.high %v385, %v385
        %v394 = vcombine.high %v386, %v386
        %v395 = vcombine.high %v387, %v387
        %v396 = vcombine.high %v388, %v388
        %v401 = vpack.c.bf16 %v385, %v385
        %v402 = vpack.c.bf16 %v393, %v393
        %v403 = vpack.c.bf16 %v386, %v386
        %v404 = vpack.c.bf16 %v394, %v394
        %v405 = vpack.c.bf16 %v387, %v387
        %v406 = vpack.c.bf16 %v395, %v395
        %v407 = vpack.c.bf16 %v388, %v388
        %v408 = vpack.c.bf16 %v396, %v396
        %v409 = vld [vmem:[%s1] sm:$0x7]
        %410 = vrot.lane.b32.xlu0 %v385, 127
        %v411 = vpop.permute.xlu0 %410
        %412 = vrot.lane.b32.xlu0 %v393, 127
        %v413 = vpop.permute.xlu0 %412
        %414 = vrot.lane.b32.xlu0 %v386, 127
        %v415 = vpop.permute.xlu0 %414
        %416 = vrot.lane.b32.xlu0 %v394, 127
        %v417 = vpop.permute.xlu0 %416
        %418 = vrot.lane.b32.xlu0 %v387, 127
        %v419 = vpop.permute.xlu0 %418
        %420 = vrot.lane.b32.xlu0 %v395, 127
        %v421 = vpop.permute.xlu0 %420
        %422 = vrot.lane.b32.xlu0 %v388, 127
        %v423 = vpop.permute.xlu0 %422
        %424 = vrot.lane.b32.xlu0 %v396, 127
        %v425 = vpop.permute.xlu0 %424
        %v426 = vlaneseq
        %v427 = vand.u32 %v426, 127
        %vm428 = vcmp.lt.s32.totalorder %v427, 127
        %v429 = vsel %vm428, %v423, %v425
        %v430 = vsel %vm428, %v421, %v423
        %v431 = vsel %vm428, %v419, %v421
        %v432 = vsel %vm428, %v417, %v419
        %v433 = vsel %vm428, %v415, %v417
        %v434 = vsel %vm428, %v413, %v415
        %v435 = vsel %vm428, %v411, %v413
        %v436 = vsel %vm428, %v425, %v411
        %v437 = vpack.c.bf16 %v435, %v435
        %v438 = vpack.c.bf16 %v434, %v434
        %v439 = vpack.c.bf16 %v433, %v433
        %v440 = vpack.c.bf16 %v432, %v432
        %v441 = vpack.c.bf16 %v431, %v431
        %v442 = vpack.c.bf16 %v430, %v430
        %v443 = vpack.c.bf16 %v429, %v429
        %v444 = vpack.c.bf16 %v436, %v436
        %s445 = scalar_lea.vmem %s1, 4
        %v446 = vld [vmem:[%s445] sm:$0x7]
        %vm447 = vcmask 23552
        %v449 = vsel %vm447, %v446, 0
        %vm451 = vcmask 1040384
        %vm452 = vcmask 1041408
        %v453 = vsel %vm451, 4294967295, 65535
        %v454 = vsel %vm452, %v453, 0
        %v456 = vand.u32 %v437, %v454
        %v459 = vand.u32 %v438, %v454
        %v462 = vand.u32 %v439, %v454
        %v465 = vand.u32 %v440, %v454
        %v468 = vand.u32 %v441, %v454
        %v471 = vand.u32 %v442, %v454
        %v474 = vand.u32 %v443, %v454
        %v477 = vand.u32 %v444, %v454
        %479 = vmatprep.subr.bf16.mxu0 %v459
        %480 = vmatpush1.bf16.msra.mxu0 %v456
        %481 = vmatprep.subr.bf16.mxu0 0
        %482 = vmatpush1.bf16.msra.mxu0 0
        %483 = vmatprep.subr.bf16.mxu0 0
        %484 = vmatpush1.bf16.msra.mxu0 0
        %485 = vmatprep.subr.bf16.mxu0 0
        %486 = vmatpush1.bf16.msra.mxu0 0
        %487 = vmatprep.subr.bf16.mxu0 0
        %488 = vmatpush1.bf16.msra.mxu0 0
        %489 = vmatprep.subr.bf16.mxu0 0
        %490 = vmatpush1.bf16.msra.mxu0 0
        %491 = vmatprep.subr.bf16.mxu0 0
        %492 = vmatpush1.bf16.msra.mxu0 0
        %493 = vmatprep.subr.bf16.mxu0 0
        %494 = vmatpush1.bf16.msra.mxu0 0
        %495 = vmatprep.subr.bf16.mxu0 0
        %496 = vmatpush1.bf16.msra.mxu0 0
        %497 = vmatprep.subr.bf16.mxu0 0
        %498 = vmatpush1.bf16.msra.mxu0 0
        %499 = vmatprep.subr.bf16.mxu0 0
        %500 = vmatpush1.bf16.msra.mxu0 0
        %501 = vmatprep.subr.bf16.mxu0 0
        %502 = vmatpush1.bf16.msra.mxu0 0
        %503 = vmatprep.subr.bf16.mxu0 0
        %504 = vmatpush1.bf16.msra.mxu0 0
        %505 = vmatprep.subr.bf16.mxu0 0
        %506 = vmatpush1.bf16.msra.mxu0 0
        %507 = vmatprep.subr.bf16.mxu0 0
        %508 = vmatpush1.bf16.msra.mxu0 0
        %509 = vmatprep.subr.bf16.mxu0 0
        %510 = vmatpush1.bf16.msra.mxu0 0
        %511 = vmatprep.mubr.bf16.mxu0 0
        %512 = vmatmul.mubr.bf16.gmra.mrb[0].mxu0 %v449
        %v513 = vpop.f32.mrb[0].mxu0
        %v514 = vadd.f32 0.0, %v513
        %v515 = vpop.f32.mrb[0].mxu0
        %v516 = vadd.f32 0.0, %v515
        %v517 = vpop.f32.mrb[0].mxu0
        %v518 = vpop.f32.mrb[0].mxu0
        %519 = vdwg.mxu0
        %520 = vmatprep.subr.bf16.mxu0 %v465
        %521 = vmatpush1.bf16.msra.mxu0 %v462
        %522 = vmatprep.subr.bf16.mxu0 0
        %523 = vmatpush1.bf16.msra.mxu0 0
        %524 = vmatprep.subr.bf16.mxu0 0
        %525 = vmatpush1.bf16.msra.mxu0 0
        %526 = vmatprep.subr.bf16.mxu0 0
        %527 = vmatpush1.bf16.msra.mxu0 0
        %528 = vmatprep.subr.bf16.mxu0 0
        %529 = vmatpush1.bf16.msra.mxu0 0
        %530 = vmatprep.subr.bf16.mxu0 0
        %531 = vmatpush1.bf16.msra.mxu0 0
        %532 = vmatprep.subr.bf16.mxu0 0
        %533 = vmatpush1.bf16.msra.mxu0 0
        %534 = vmatprep.subr.bf16.mxu0 0
        %535 = vmatpush1.bf16.msra.mxu0 0
        %536 = vmatprep.subr.bf16.mxu0 0
        %537 = vmatpush1.bf16.msra.mxu0 0
        %538 = vmatprep.subr.bf16.mxu0 0
        %539 = vmatpush1.bf16.msra.mxu0 0
        %540 = vmatprep.subr.bf16.mxu0 0
        %541 = vmatpush1.bf16.msra.mxu0 0
        %542 = vmatprep.subr.bf16.mxu0 0
        %543 = vmatpush1.bf16.msra.mxu0 0
        %544 = vmatprep.subr.bf16.mxu0 0
        %545 = vmatpush1.bf16.msra.mxu0 0
        %546 = vmatprep.subr.bf16.mxu0 0
        %547 = vmatpush1.bf16.msra.mxu0 0
        %548 = vmatprep.subr.bf16.mxu0 0
        %549 = vmatpush1.bf16.msra.mxu0 0
        %550 = vmatprep.subr.bf16.mxu0 0
        %551 = vmatpush1.bf16.msra.mxu0 0
        %552 = vmatprep.mubr.bf16.mxu0 0
        %553 = vmatmul.mubr.bf16.gmra.mrb[0].mxu0 %v449
        %v554 = vpop.f32.mrb[0].mxu0
        %v555 = vadd.f32 0.0, %v554
        %v556 = vpop.f32.mrb[0].mxu0
        %v557 = vadd.f32 0.0, %v556
        %v558 = vpop.f32.mrb[0].mxu0
        %v559 = vpop.f32.mrb[0].mxu0
        %560 = vdwg.mxu0
        %561 = vmatprep.subr.bf16.mxu0 %v471
        %562 = vmatpush1.bf16.msra.mxu0 %v468
        %563 = vmatprep.subr.bf16.mxu0 0
        %564 = vmatpush1.bf16.msra.mxu0 0
        %565 = vmatprep.subr.bf16.mxu0 0
        %566 = vmatpush1.bf16.msra.mxu0 0
        %567 = vmatprep.subr.bf16.mxu0 0
        %568 = vmatpush1.bf16.msra.mxu0 0
        %569 = vmatprep.subr.bf16.mxu0 0
        %570 = vmatpush1.bf16.msra.mxu0 0
        %571 = vmatprep.subr.bf16.mxu0 0
        %572 = vmatpush1.bf16.msra.mxu0 0
        %573 = vmatprep.subr.bf16.mxu0 0
        %574 = vmatpush1.bf16.msra.mxu0 0
        %575 = vmatprep.subr.bf16.mxu0 0
        %576 = vmatpush1.bf16.msra.mxu0 0
        %577 = vmatprep.subr.bf16.mxu0 0
        %578 = vmatpush1.bf16.msra.mxu0 0
        %579 = vmatprep.subr.bf16.mxu0 0
        %580 = vmatpush1.bf16.msra.mxu0 0
        %581 = vmatprep.subr.bf16.mxu0 0
        %582 = vmatpush1.bf16.msra.mxu0 0
        %583 = vmatprep.subr.bf16.mxu0 0
        %584 = vmatpush1.bf16.msra.mxu0 0
        %585 = vmatprep.subr.bf16.mxu0 0
        %586 = vmatpush1.bf16.msra.mxu0 0
        %587 = vmatprep.subr.bf16.mxu0 0
        %588 = vmatpush1.bf16.msra.mxu0 0
        %589 = vmatprep.subr.bf16.mxu0 0
        %590 = vmatpush1.bf16.msra.mxu0 0
        %591 = vmatprep.subr.bf16.mxu0 0
        %592 = vmatpush1.bf16.msra.mxu0 0
        %593 = vmatprep.mubr.bf16.mxu0 0
        %594 = vmatmul.mubr.bf16.gmra.mrb[0].mxu0 %v449
        %v595 = vpop.f32.mrb[0].mxu0
        %v596 = vadd.f32 0.0, %v595
        %v597 = vpop.f32.mrb[0].mxu0
        %v598 = vadd.f32 0.0, %v597
        %v599 = vpop.f32.mrb[0].mxu0
        %v600 = vpop.f32.mrb[0].mxu0
        %601 = vdwg.mxu0
        %602 = vmatprep.subr.bf16.mxu0 %v477
        %603 = vmatpush1.bf16.msra.mxu0 %v474
        %604 = vmatprep.subr.bf16.mxu0 0
        %605 = vmatpush1.bf16.msra.mxu0 0
        %606 = vmatprep.subr.bf16.mxu0 0
        %607 = vmatpush1.bf16.msra.mxu0 0
        %608 = vmatprep.subr.bf16.mxu0 0
        %609 = vmatpush1.bf16.msra.mxu0 0
        %610 = vmatprep.subr.bf16.mxu0 0
        %611 = vmatpush1.bf16.msra.mxu0 0
        %612 = vmatprep.subr.bf16.mxu0 0
        %613 = vmatpush1.bf16.msra.mxu0 0
        %614 = vmatprep.subr.bf16.mxu0 0
        %615 = vmatpush1.bf16.msra.mxu0 0
        %616 = vmatprep.subr.bf16.mxu0 0
        %617 = vmatpush1.bf16.msra.mxu0 0
        %618 = vmatprep.subr.bf16.mxu0 0
        %619 = vmatpush1.bf16.msra.mxu0 0
        %620 = vmatprep.subr.bf16.mxu0 0
        %621 = vmatpush1.bf16.msra.mxu0 0
        %622 = vmatprep.subr.bf16.mxu0 0
        %623 = vmatpush1.bf16.msra.mxu0 0
        %624 = vmatprep.subr.bf16.mxu0 0
        %625 = vmatpush1.bf16.msra.mxu0 0
        %626 = vmatprep.subr.bf16.mxu0 0
        %627 = vmatpush1.bf16.msra.mxu0 0
        %628 = vmatprep.subr.bf16.mxu0 0
        %629 = vmatpush1.bf16.msra.mxu0 0
        %630 = vmatprep.subr.bf16.mxu0 0
        %631 = vmatpush1.bf16.msra.mxu0 0
        %632 = vmatprep.subr.bf16.mxu0 0
        %633 = vmatpush1.bf16.msra.mxu0 0
        %634 = vmatprep.mubr.bf16.mxu0 0
        %635 = vmatmul.mubr.bf16.gmra.mrb[0].mxu0 %v449
        %v636 = vpop.f32.mrb[0].mxu0
        %v637 = vadd.f32 0.0, %v636
        %v638 = vpop.f32.mrb[0].mxu0
        %v639 = vadd.f32 0.0, %v638
        %v640 = vpop.f32.mrb[0].mxu0
        %v641 = vpop.f32.mrb[0].mxu0
        %642 = vdwg.mxu0
        %v644 = vsel %vm447, %v409, 0
        %v647 = vand.u32 %v401, %v454
        %v650 = vand.u32 %v402, %v454
        %v653 = vand.u32 %v403, %v454
        %v656 = vand.u32 %v404, %v454
        %v659 = vand.u32 %v405, %v454
        %v662 = vand.u32 %v406, %v454
        %v665 = vand.u32 %v407, %v454
        %v668 = vand.u32 %v408, %v454
        %670 = vmatprep.subr.bf16.mxu0 %v650
        %671 = vmatpush1.bf16.msra.mxu0 %v647
        %672 = vmatprep.subr.bf16.mxu0 0
        %673 = vmatpush1.bf16.msra.mxu0 0
        %674 = vmatprep.subr.bf16.mxu0 0
        %675 = vmatpush1.bf16.msra.mxu0 0
        %676 = vmatprep.subr.bf16.mxu0 0
        %677 = vmatpush1.bf16.msra.mxu0 0
        %678 = vmatprep.subr.bf16.mxu0 0
        %679 = vmatpush1.bf16.msra.mxu0 0
        %680 = vmatprep.subr.bf16.mxu0 0
        %681 = vmatpush1.bf16.msra.mxu0 0
        %682 = vmatprep.subr.bf16.mxu0 0
        %683 = vmatpush1.bf16.msra.mxu0 0
        %684 = vmatprep.subr.bf16.mxu0 0
        %685 = vmatpush1.bf16.msra.mxu0 0
        %686 = vmatprep.subr.bf16.mxu0 0
        %687 = vmatpush1.bf16.msra.mxu0 0
        %688 = vmatprep.subr.bf16.mxu0 0
        %689 = vmatpush1.bf16.msra.mxu0 0
        %690 = vmatprep.subr.bf16.mxu0 0
        %691 = vmatpush1.bf16.msra.mxu0 0
        %692 = vmatprep.subr.bf16.mxu0 0
        %693 = vmatpush1.bf16.msra.mxu0 0
        %694 = vmatprep.subr.bf16.mxu0 0
        %695 = vmatpush1.bf16.msra.mxu0 0
        %696 = vmatprep.subr.bf16.mxu0 0
        %697 = vmatpush1.bf16.msra.mxu0 0
        %698 = vmatprep.subr.bf16.mxu0 0
        %699 = vmatpush1.bf16.msra.mxu0 0
        %700 = vmatprep.subr.bf16.mxu0 0
        %701 = vmatpush1.bf16.msra.mxu0 0
        %702 = vmatprep.mubr.bf16.mxu0 0
        %703 = vmatmul.mubr.bf16.gmra.mrb[0].mxu0 %v644
        %v704 = vpop.f32.mrb[0].mxu0
        %v705 = vadd.f32 %v514, %v704
        %v706 = vpop.f32.mrb[0].mxu0
        %v707 = vadd.f32 %v516, %v706
        %v708 = vpop.f32.mrb[0].mxu0
        %v709 = vpop.f32.mrb[0].mxu0
        %710 = vdwg.mxu0
        %711 = vmatprep.subr.bf16.mxu0 %v656
        %712 = vmatpush1.bf16.msra.mxu0 %v653
        %713 = vmatprep.subr.bf16.mxu0 0
        %714 = vmatpush1.bf16.msra.mxu0 0
        %715 = vmatprep.subr.bf16.mxu0 0
        %716 = vmatpush1.bf16.msra.mxu0 0
        %717 = vmatprep.subr.bf16.mxu0 0
        %718 = vmatpush1.bf16.msra.mxu0 0
        %719 = vmatprep.subr.bf16.mxu0 0
        %720 = vmatpush1.bf16.msra.mxu0 0
        %721 = vmatprep.subr.bf16.mxu0 0
        %722 = vmatpush1.bf16.msra.mxu0 0
        %723 = vmatprep.subr.bf16.mxu0 0
        %724 = vmatpush1.bf16.msra.mxu0 0
        %725 = vmatprep.subr.bf16.mxu0 0
        %726 = vmatpush1.bf16.msra.mxu0 0
        %727 = vmatprep.subr.bf16.mxu0 0
        %728 = vmatpush1.bf16.msra.mxu0 0
        %729 = vmatprep.subr.bf16.mxu0 0
        %730 = vmatpush1.bf16.msra.mxu0 0
        %731 = vmatprep.subr.bf16.mxu0 0
        %732 = vmatpush1.bf16.msra.mxu0 0
        %733 = vmatprep.subr.bf16.mxu0 0
        %734 = vmatpush1.bf16.msra.mxu0 0
        %735 = vmatprep.subr.bf16.mxu0 0
        %736 = vmatpush1.bf16.msra.mxu0 0
        %737 = vmatprep.subr.bf16.mxu0 0
        %738 = vmatpush1.bf16.msra.mxu0 0
        %739 = vmatprep.subr.bf16.mxu0 0
        %740 = vmatpush1.bf16.msra.mxu0 0
        %741 = vmatprep.subr.bf16.mxu0 0
        %742 = vmatpush1.bf16.msra.mxu0 0
        %743 = vmatprep.mubr.bf16.mxu0 0
        %744 = vmatmul.mubr.bf16.gmra.mrb[0].mxu0 %v644
        %v745 = vpop.f32.mrb[0].mxu0
        %v746 = vadd.f32 %v555, %v745
        %v747 = vpop.f32.mrb[0].mxu0
        %v748 = vadd.f32 %v557, %v747
        %v749 = vpop.f32.mrb[0].mxu0
        %v750 = vpop.f32.mrb[0].mxu0
        %751 = vdwg.mxu0
        %752 = vmatprep.subr.bf16.mxu0 %v662
        %753 = vmatpush1.bf16.msra.mxu0 %v659
        %754 = vmatprep.subr.bf16.mxu0 0
        %755 = vmatpush1.bf16.msra.mxu0 0
        %756 = vmatprep.subr.bf16.mxu0 0
        %757 = vmatpush1.bf16.msra.mxu0 0
        %758 = vmatprep.subr.bf16.mxu0 0
        %759 = vmatpush1.bf16.msra.mxu0 0
        %760 = vmatprep.subr.bf16.mxu0 0
        %761 = vmatpush1.bf16.msra.mxu0 0
        %762 = vmatprep.subr.bf16.mxu0 0
        %763 = vmatpush1.bf16.msra.mxu0 0
        %764 = vmatprep.subr.bf16.mxu0 0
        %765 = vmatpush1.bf16.msra.mxu0 0
        %766 = vmatprep.subr.bf16.mxu0 0
        %767 = vmatpush1.bf16.msra.mxu0 0
        %768 = vmatprep.subr.bf16.mxu0 0
        %769 = vmatpush1.bf16.msra.mxu0 0
        %770 = vmatprep.subr.bf16.mxu0 0
        %771 = vmatpush1.bf16.msra.mxu0 0
        %772 = vmatprep.subr.bf16.mxu0 0
        %773 = vmatpush1.bf16.msra.mxu0 0
        %774 = vmatprep.subr.bf16.mxu0 0
        %775 = vmatpush1.bf16.msra.mxu0 0
        %776 = vmatprep.subr.bf16.mxu0 0
        %777 = vmatpush1.bf16.msra.mxu0 0
        %778 = vmatprep.subr.bf16.mxu0 0
        %779 = vmatpush1.bf16.msra.mxu0 0
        %780 = vmatprep.subr.bf16.mxu0 0
        %781 = vmatpush1.bf16.msra.mxu0 0
        %782 = vmatprep.subr.bf16.mxu0 0
        %783 = vmatpush1.bf16.msra.mxu0 0
        %784 = vmatprep.mubr.bf16.mxu0 0
        %785 = vmatmul.mubr.bf16.gmra.mrb[0].mxu0 %v644
        %v786 = vpop.f32.mrb[0].mxu0
        %v787 = vadd.f32 %v596, %v786
        %v788 = vpop.f32.mrb[0].mxu0
        %v789 = vadd.f32 %v598, %v788
        %v790 = vpop.f32.mrb[0].mxu0
        %v791 = vpop.f32.mrb[0].mxu0
        %792 = vdwg.mxu0
        %793 = vmatprep.subr.bf16.mxu0 %v668
        %794 = vmatpush1.bf16.msra.mxu0 %v665
        %795 = vmatprep.subr.bf16.mxu0 0
        %796 = vmatpush1.bf16.msra.mxu0 0
        %797 = vmatprep.subr.bf16.mxu0 0
        %798 = vmatpush1.bf16.msra.mxu0 0
        %799 = vmatprep.subr.bf16.mxu0 0
        %800 = vmatpush1.bf16.msra.mxu0 0
        %801 = vmatprep.subr.bf16.mxu0 0
        %802 = vmatpush1.bf16.msra.mxu0 0
        %803 = vmatprep.subr.bf16.mxu0 0
        %804 = vmatpush1.bf16.msra.mxu0 0
        %805 = vmatprep.subr.bf16.mxu0 0
        %806 = vmatpush1.bf16.msra.mxu0 0
        %807 = vmatprep.subr.bf16.mxu0 0
        %808 = vmatpush1.bf16.msra.mxu0 0
        %809 = vmatprep.subr.bf16.mxu0 0
        %810 = vmatpush1.bf16.msra.mxu0 0
        %811 = vmatprep.subr.bf16.mxu0 0
        %812 = vmatpush1.bf16.msra.mxu0 0
        %813 = vmatprep.subr.bf16.mxu0 0
        %814 = vmatpush1.bf16.msra.mxu0 0
        %815 = vmatprep.subr.bf16.mxu0 0
        %816 = vmatpush1.bf16.msra.mxu0 0
        %817 = vmatprep.subr.bf16.mxu0 0
        %818 = vmatpush1.bf16.msra.mxu0 0
        %819 = vmatprep.subr.bf16.mxu0 0
        %820 = vmatpush1.bf16.msra.mxu0 0
        %821 = vmatprep.subr.bf16.mxu0 0
        %822 = vmatpush1.bf16.msra.mxu0 0
        %823 = vmatprep.subr.bf16.mxu0 0
        %824 = vmatpush1.bf16.msra.mxu0 0
        %825 = vmatprep.mubr.bf16.mxu0 0
        %826 = vmatmul.mubr.bf16.gmra.mrb[0].mxu0 %v644
        %v827 = vpop.f32.mrb[0].mxu0
        %v828 = vadd.f32 %v637, %v827
        %v829 = vpop.f32.mrb[0].mxu0
        %v830 = vadd.f32 %v639, %v829
        %v831 = vpop.f32.mrb[0].mxu0
        %v832 = vpop.f32.mrb[0].mxu0
        %833 = vdwg.mxu0
        %834 = vrot.lane.b32.xlu0 %v385, 126
        %v835 = vpop.permute.xlu0 %834
        %836 = vrot.lane.b32.xlu0 %v393, 126
        %v837 = vpop.permute.xlu0 %836
        %838 = vrot.lane.b32.xlu0 %v386, 126
        %v839 = vpop.permute.xlu0 %838
        %840 = vrot.lane.b32.xlu0 %v394, 126
        %v841 = vpop.permute.xlu0 %840
        %842 = vrot.lane.b32.xlu0 %v387, 126
        %v843 = vpop.permute.xlu0 %842
        %844 = vrot.lane.b32.xlu0 %v395, 126
        %v845 = vpop.permute.xlu0 %844
        %846 = vrot.lane.b32.xlu0 %v388, 126
        %v847 = vpop.permute.xlu0 %846
        %848 = vrot.lane.b32.xlu0 %v396, 126
        %v849 = vpop.permute.xlu0 %848
        %vm850 = vcmp.lt.s32.totalorder %v427, 126
        %v851 = vsel %vm850, %v847, %v849
        %v852 = vsel %vm850, %v845, %v847
        %v853 = vsel %vm850, %v843, %v845
        %v854 = vsel %vm850, %v841, %v843
        %v855 = vsel %vm850, %v839, %v841
        %v856 = vsel %vm850, %v837, %v839
        %v857 = vsel %vm850, %v835, %v837
        %v858 = vsel %vm850, %v849, %v835
        %v859 = vpack.c.bf16 %v857, %v857
        %v860 = vpack.c.bf16 %v856, %v856
        %v861 = vpack.c.bf16 %v855, %v855
        %v862 = vpack.c.bf16 %v854, %v854
        %v863 = vpack.c.bf16 %v853, %v853
        %v864 = vpack.c.bf16 %v852, %v852
        %v865 = vpack.c.bf16 %v851, %v851
        %v866 = vpack.c.bf16 %v858, %v858
        %s867 = scalar_lea.vmem %s1, 8
        %v868 = vld [vmem:[%s867] sm:$0x7]
        %v870 = vsel %vm447, %v868, 0
        %v873 = vand.u32 %v859, %v454
        %v876 = vand.u32 %v860, %v454
        %v879 = vand.u32 %v861, %v454
        %v882 = vand.u32 %v862, %v454
        %v885 = vand.u32 %v863, %v454
        %v888 = vand.u32 %v864, %v454
        %v891 = vand.u32 %v865, %v454
        %v894 = vand.u32 %v866, %v454
        %896 = vmatprep.subr.bf16.mxu0 %v876
        %897 = vmatpush1.bf16.msra.mxu0 %v873
        %898 = vmatprep.subr.bf16.mxu0 0
        %899 = vmatpush1.bf16.msra.mxu0 0
        %900 = vmatprep.subr.bf16.mxu0 0
        %901 = vmatpush1.bf16.msra.mxu0 0
        %902 = vmatprep.subr.bf16.mxu0 0
        %903 = vmatpush1.bf16.msra.mxu0 0
        %904 = vmatprep.subr.bf16.mxu0 0
        %905 = vmatpush1.bf16.msra.mxu0 0
        %906 = vmatprep.subr.bf16.mxu0 0
        %907 = vmatpush1.bf16.msra.mxu0 0
        %908 = vmatprep.subr.bf16.mxu0 0
        %909 = vmatpush1.bf16.msra.mxu0 0
        %910 = vmatprep.subr.bf16.mxu0 0
        %911 = vmatpush1.bf16.msra.mxu0 0
        %912 = vmatprep.subr.bf16.mxu0 0
        %913 = vmatpush1.bf16.msra.mxu0 0
        %914 = vmatprep.subr.bf16.mxu0 0
        %915 = vmatpush1.bf16.msra.mxu0 0
        %916 = vmatprep.subr.bf16.mxu0 0
        %917 = vmatpush1.bf16.msra.mxu0 0
        %918 = vmatprep.subr.bf16.mxu0 0
        %919 = vmatpush1.bf16.msra.mxu0 0
        %920 = vmatprep.subr.bf16.mxu0 0
        %921 = vmatpush1.bf16.msra.mxu0 0
        %922 = vmatprep.subr.bf16.mxu0 0
        %923 = vmatpush1.bf16.msra.mxu0 0
        %924 = vmatprep.subr.bf16.mxu0 0
        %925 = vmatpush1.bf16.msra.mxu0 0
        %926 = vmatprep.subr.bf16.mxu0 0
        %927 = vmatpush1.bf16.msra.mxu0 0
        %928 = vmatprep.mubr.bf16.mxu0 0
        %929 = vmatmul.mubr.bf16.gmra.mrb[0].mxu0 %v870
        %v930 = vpop.f32.mrb[0].mxu0
        %v931 = vadd.f32 0.0, %v930
        %v932 = vpop.f32.mrb[0].mxu0
        %v933 = vadd.f32 0.0, %v932
        %v934 = vpop.f32.mrb[0].mxu0
        %v935 = vpop.f32.mrb[0].mxu0
        %936 = vdwg.mxu0
        %937 = vmatprep.subr.bf16.mxu0 %v882
        %938 = vmatpush1.bf16.msra.mxu0 %v879
        %939 = vmatprep.subr.bf16.mxu0 0
        %940 = vmatpush1.bf16.msra.mxu0 0
        %941 = vmatprep.subr.bf16.mxu0 0
        %942 = vmatpush1.bf16.msra.mxu0 0
        %943 = vmatprep.subr.bf16.mxu0 0
        %944 = vmatpush1.bf16.msra.mxu0 0
        %945 = vmatprep.subr.bf16.mxu0 0
        %946 = vmatpush1.bf16.msra.mxu0 0
        %947 = vmatprep.subr.bf16.mxu0 0
        %948 = vmatpush1.bf16.msra.mxu0 0
        %949 = vmatprep.subr.bf16.mxu0 0
        %950 = vmatpush1.bf16.msra.mxu0 0
        %951 = vmatprep.subr.bf16.mxu0 0
        %952 = vmatpush1.bf16.msra.mxu0 0
        %953 = vmatprep.subr.bf16.mxu0 0
        %954 = vmatpush1.bf16.msra.mxu0 0
        %955 = vmatprep.subr.bf16.mxu0 0
        %956 = vmatpush1.bf16.msra.mxu0 0
        %957 = vmatprep.subr.bf16.mxu0 0
        %958 = vmatpush1.bf16.msra.mxu0 0
        %959 = vmatprep.subr.bf16.mxu0 0
        %960 = vmatpush1.bf16.msra.mxu0 0
        %961 = vmatprep.subr.bf16.mxu0 0
        %962 = vmatpush1.bf16.msra.mxu0 0
        %963 = vmatprep.subr.bf16.mxu0 0
        %964 = vmatpush1.bf16.msra.mxu0 0
        %965 = vmatprep.subr.bf16.mxu0 0
        %966 = vmatpush1.bf16.msra.mxu0 0
        %967 = vmatprep.subr.bf16.mxu0 0
        %968 = vmatpush1.bf16.msra.mxu0 0
        %969 = vmatprep.mubr.bf16.mxu0 0
        %970 = vmatmul.mubr.bf16.gmra.mrb[0].mxu0 %v870
        %v971 = vpop.f32.mrb[0].mxu0
        %v972 = vadd.f32 0.0, %v971
        %v973 = vpop.f32.mrb[0].mxu0
        %v974 = vadd.f32 0.0, %v973
        %v975 = vpop.f32.mrb[0].mxu0
        %v976 = vpop.f32.mrb[0].mxu0
        %977 = vdwg.mxu0
        %978 = vmatprep.subr.bf16.mxu0 %v888
        %979 = vmatpush1.bf16.msra.mxu0 %v885
        %980 = vmatprep.subr.bf16.mxu0 0
        %981 = vmatpush1.bf16.msra.mxu0 0
        %982 = vmatprep.subr.bf16.mxu0 0
        %983 = vmatpush1.bf16.msra.mxu0 0
        %984 = vmatprep.subr.bf16.mxu0 0
        %985 = vmatpush1.bf16.msra.mxu0 0
        %986 = vmatprep.subr.bf16.mxu0 0
        %987 = vmatpush1.bf16.msra.mxu0 0
        %988 = vmatprep.subr.bf16.mxu0 0
        %989 = vmatpush1.bf16.msra.mxu0 0
        %990 = vmatprep.subr.bf16.mxu0 0
        %991 = vmatpush1.bf16.msra.mxu0 0
        %992 = vmatprep.subr.bf16.mxu0 0
        %993 = vmatpush1.bf16.msra.mxu0 0
        %994 = vmatprep.subr.bf16.mxu0 0
        %995 = vmatpush1.bf16.msra.mxu0 0
        %996 = vmatprep.subr.bf16.mxu0 0
        %997 = vmatpush1.bf16.msra.mxu0 0
        %998 = vmatprep.subr.bf16.mxu0 0
        %999 = vmatpush1.bf16.msra.mxu0 0
        %1000 = vmatprep.subr.bf16.mxu0 0
        %1001 = vmatpush1.bf16.msra.mxu0 0
        %1002 = vmatprep.subr.bf16.mxu0 0
        %1003 = vmatpush1.bf16.msra.mxu0 0
        %1004 = vmatprep.subr.bf16.mxu0 0
        %1005 = vmatpush1.bf16.msra.mxu0 0
        %1006 = vmatprep.subr.bf16.mxu0 0
        %1007 = vmatpush1.bf16.msra.mxu0 0
        %1008 = vmatprep.subr.bf16.mxu0 0
        %1009 = vmatpush1.bf16.msra.mxu0 0
        %1010 = vmatprep.mubr.bf16.mxu0 0
        %1011 = vmatmul.mubr.bf16.gmra.mrb[0].mxu0 %v870
        %v1012 = vpop.f32.mrb[0].mxu0
        %v1013 = vadd.f32 0.0, %v1012
        %v1014 = vpop.f32.mrb[0].mxu0
        %v1015 = vadd.f32 0.0, %v1014
        %v1016 = vpop.f32.mrb[0].mxu0
        %v1017 = vpop.f32.mrb[0].mxu0
        %1018 = vdwg.mxu0
        %1019 = vmatprep.subr.bf16.mxu0 %v894
        %1020 = vmatpush1.bf16.msra.mxu0 %v891
        %1021 = vmatprep.subr.bf16.mxu0 0
        %1022 = vmatpush1.bf16.msra.mxu0 0
        %1023 = vmatprep.subr.bf16.mxu0 0
        %1024 = vmatpush1.bf16.msra.mxu0 0
        %1025 = vmatprep.subr.bf16.mxu0 0
        %1026 = vmatpush1.bf16.msra.mxu0 0
        %1027 = vmatprep.subr.bf16.mxu0 0
        %1028 = vmatpush1.bf16.msra.mxu0 0
        %1029 = vmatprep.subr.bf16.mxu0 0
        %1030 = vmatpush1.bf16.msra.mxu0 0
        %1031 = vmatprep.subr.bf16.mxu0 0
        %1032 = vmatpush1.bf16.msra.mxu0 0
        %1033 = vmatprep.subr.bf16.mxu0 0
        %1034 = vmatpush1.bf16.msra.mxu0 0
        %1035 = vmatprep.subr.bf16.mxu0 0
        %1036 = vmatpush1.bf16.msra.mxu0 0
        %1037 = vmatprep.subr.bf16.mxu0 0
        %1038 = vmatpush1.bf16.msra.mxu0 0
        %1039 = vmatprep.subr.bf16.mxu0 0
        %1040 = vmatpush1.bf16.msra.mxu0 0
        %1041 = vmatprep.subr.bf16.mxu0 0
        %1042 = vmatpush1.bf16.msra.mxu0 0
        %1043 = vmatprep.subr.bf16.mxu0 0
        %1044 = vmatpush1.bf16.msra.mxu0 0
        %1045 = vmatprep.subr.bf16.mxu0 0
        %1046 = vmatpush1.bf16.msra.mxu0 0
        %1047 = vmatprep.subr.bf16.mxu0 0
        %1048 = vmatpush1.bf16.msra.mxu0 0
        %1049 = vmatprep.subr.bf16.mxu0 0
        %1050 = vmatpush1.bf16.msra.mxu0 0
        %1051 = vmatprep.mubr.bf16.mxu0 0
        %1052 = vmatmul.mubr.bf16.gmra.mrb[0].mxu0 %v870
        %v1053 = vpop.f32.mrb[0].mxu0
        %v1054 = vadd.f32 0.0, %v1053
        %v1055 = vpop.f32.mrb[0].mxu0
        %v1056 = vadd.f32 0.0, %v1055
        %v1057 = vpop.f32.mrb[0].mxu0
        %v1058 = vpop.f32.mrb[0].mxu0
        %1059 = vdwg.mxu0
        %v1060 = vadd.f32 %v705, %v931
        %v1061 = vadd.f32 %v707, %v933
        %v1062 = vadd.f32 %v746, %v972
        %v1063 = vadd.f32 %v748, %v974
        %v1064 = vadd.f32 %v787, %v1013
        %v1065 = vadd.f32 %v789, %v1015
        %v1066 = vadd.f32 %v828, %v1054
        %v1067 = vadd.f32 %v830, %v1056
        %1068 = vrot.lane.b32.xlu0 %v385, 125
        %v1069 = vpop.permute.xlu0 %1068
        %1070 = vrot.lane.b32.xlu0 %v393, 125
        %v1071 = vpop.permute.xlu0 %1070
        %1072 = vrot.lane.b32.xlu0 %v386, 125
        %v1073 = vpop.permute.xlu0 %1072
        %1074 = vrot.lane.b32.xlu0 %v394, 125
        %v1075 = vpop.permute.xlu0 %1074
        %1076 = vrot.lane.b32.xlu0 %v387, 125
        %v1077 = vpop.permute.xlu0 %1076
        %1078 = vrot.lane.b32.xlu0 %v395, 125
        %v1079 = vpop.permute.xlu0 %1078
        %1080 = vrot.lane.b32.xlu0 %v388, 125
        %v1081 = vpop.permute.xlu0 %1080
        %1082 = vrot.lane.b32.xlu0 %v396, 125
        %v1083 = vpop.permute.xlu0 %1082
        %vm1084 = vcmp.lt.s32.totalorder %v427, 125
        %v1085 = vsel %vm1084, %v1081, %v1083
        %v1086 = vsel %vm1084, %v1079, %v1081
        %v1087 = vsel %vm1084, %v1077, %v1079
        %v1088 = vsel %vm1084, %v1075, %v1077
        %v1089 = vsel %vm1084, %v1073, %v1075
        %v1090 = vsel %vm1084, %v1071, %v1073
        %v1091 = vsel %vm1084, %v1069, %v1071
        %v1092 = vsel %vm1084, %v1083, %v1069
        %v1093 = vpack.c.bf16 %v1091, %v1091
        %v1094 = vpack.c.bf16 %v1090, %v1090
        %v1095 = vpack.c.bf16 %v1089, %v1089
        %v1096 = vpack.c.bf16 %v1088, %v1088
        %v1097 = vpack.c.bf16 %v1087, %v1087
        %v1098 = vpack.c.bf16 %v1086, %v1086
        %v1099 = vpack.c.bf16 %v1085, %v1085
        %v1100 = vpack.c.bf16 %v1092, %v1092
        %s1101 = scalar_lea.vmem %s1, 12
        %v1102 = vld [vmem:[%s1101] sm:$0x7]
        %v1104 = vsel %vm447, %v1102, 0
        %v1107 = vand.u32 %v1093, %v454
        %v1110 = vand.u32 %v1094, %v454
        %v1113 = vand.u32 %v1095, %v454
        %v1116 = vand.u32 %v1096, %v454
        %v1119 = vand.u32 %v1097, %v454
        %v1122 = vand.u32 %v1098, %v454
        %v1125 = vand.u32 %v1099, %v454
        %v1128 = vand.u32 %v1100, %v454
        %1130 = vmatprep.subr.bf16.mxu0 %v1110
        %1131 = vmatpush1.bf16.msra.mxu0 %v1107
        %1132 = vmatprep.subr.bf16.mxu0 0
        %1133 = vmatpush1.bf16.msra.mxu0 0
        %1134 = vmatprep.subr.bf16.mxu0 0
        %1135 = vmatpush1.bf16.msra.mxu0 0
        %1136 = vmatprep.subr.bf16.mxu0 0
        %1137 = vmatpush1.bf16.msra.mxu0 0
        %1138 = vmatprep.subr.bf16.mxu0 0
        %1139 = vmatpush1.bf16.msra.mxu0 0
        %1140 = vmatprep.subr.bf16.mxu0 0
        %1141 = vmatpush1.bf16.msra.mxu0 0
        %1142 = vmatprep.subr.bf16.mxu0 0
        %1143 = vmatpush1.bf16.msra.mxu0 0
        %1144 = vmatprep.subr.bf16.mxu0 0
        %1145 = vmatpush1.bf16.msra.mxu0 0
        %1146 = vmatprep.subr.bf16.mxu0 0
        %1147 = vmatpush1.bf16.msra.mxu0 0
        %1148 = vmatprep.subr.bf16.mxu0 0
        %1149 = vmatpush1.bf16.msra.mxu0 0
        %1150 = vmatprep.subr.bf16.mxu0 0
        %1151 = vmatpush1.bf16.msra.mxu0 0
        %1152 = vmatprep.subr.bf16.mxu0 0
        %1153 = vmatpush1.bf16.msra.mxu0 0
        %1154 = vmatprep.subr.bf16.mxu0 0
        %1155 = vmatpush1.bf16.msra.mxu0 0
        %1156 = vmatprep.subr.bf16.mxu0 0
        %1157 = vmatpush1.bf16.msra.mxu0 0
        %1158 = vmatprep.subr.bf16.mxu0 0
        %1159 = vmatpush1.bf16.msra.mxu0 0
        %1160 = vmatprep.subr.bf16.mxu0 0
        %1161 = vmatpush1.bf16.msra.mxu0 0
        %1162 = vmatprep.mubr.bf16.mxu0 0
        %1163 = vmatmul.mubr.bf16.gmra.mrb[0].mxu0 %v1104
        %v1164 = vpop.f32.mrb[0].mxu0
        %v1165 = vadd.f32 0.0, %v1164
        %v1166 = vpop.f32.mrb[0].mxu0
        %v1167 = vadd.f32 0.0, %v1166
        %v1168 = vpop.f32.mrb[0].mxu0
        %v1169 = vpop.f32.mrb[0].mxu0
        %1170 = vdwg.mxu0
        %1171 = vmatprep.subr.bf16.mxu0 %v1116
        %1172 = vmatpush1.bf16.msra.mxu0 %v1113
        %1173 = vmatprep.subr.bf16.mxu0 0
        %1174 = vmatpush1.bf16.msra.mxu0 0
        %1175 = vmatprep.subr.bf16.mxu0 0
        %1176 = vmatpush1.bf16.msra.mxu0 0
        %1177 = vmatprep.subr.bf16.mxu0 0
        %1178 = vmatpush1.bf16.msra.mxu0 0
        %1179 = vmatprep.subr.bf16.mxu0 0
        %1180 = vmatpush1.bf16.msra.mxu0 0
        %1181 = vmatprep.subr.bf16.mxu0 0
        %1182 = vmatpush1.bf16.msra.mxu0 0
        %1183 = vmatprep.subr.bf16.mxu0 0
        %1184 = vmatpush1.bf16.msra.mxu0 0
        %1185 = vmatprep.subr.bf16.mxu0 0
        %1186 = vmatpush1.bf16.msra.mxu0 0
        %1187 = vmatprep.subr.bf16.mxu0 0
        %1188 = vmatpush1.bf16.msra.mxu0 0
        %1189 = vmatprep.subr.bf16.mxu0 0
        %1190 = vmatpush1.bf16.msra.mxu0 0
        %1191 = vmatprep.subr.bf16.mxu0 0
        %1192 = vmatpush1.bf16.msra.mxu0 0
        %1193 = vmatprep.subr.bf16.mxu0 0
        %1194 = vmatpush1.bf16.msra.mxu0 0
        %1195 = vmatprep.subr.bf16.mxu0 0
        %1196 = vmatpush1.bf16.msra.mxu0 0
        %1197 = vmatprep.subr.bf16.mxu0 0
        %1198 = vmatpush1.bf16.msra.mxu0 0
        %1199 = vmatprep.subr.bf16.mxu0 0
        %1200 = vmatpush1.bf16.msra.mxu0 0
        %1201 = vmatprep.subr.bf16.mxu0 0
        %1202 = vmatpush1.bf16.msra.mxu0 0
        %1203 = vmatprep.mubr.bf16.mxu0 0
        %1204 = vmatmul.mubr.bf16.gmra.mrb[0].mxu0 %v1104
        %v1205 = vpop.f32.mrb[0].mxu0
        %v1206 = vadd.f32 0.0, %v1205
        %v1207 = vpop.f32.mrb[0].mxu0
        %v1208 = vadd.f32 0.0, %v1207
        %v1209 = vpop.f32.mrb[0].mxu0
        %v1210 = vpop.f32.mrb[0].mxu0
        %1211 = vdwg.mxu0
        %1212 = vmatprep.subr.bf16.mxu0 %v1122
        %1213 = vmatpush1.bf16.msra.mxu0 %v1119
        %1214 = vmatprep.subr.bf16.mxu0 0
        %1215 = vmatpush1.bf16.msra.mxu0 0
        %1216 = vmatprep.subr.bf16.mxu0 0
        %1217 = vmatpush1.bf16.msra.mxu0 0
        %1218 = vmatprep.subr.bf16.mxu0 0
        %1219 = vmatpush1.bf16.msra.mxu0 0
        %1220 = vmatprep.subr.bf16.mxu0 0
        %1221 = vmatpush1.bf16.msra.mxu0 0
        %1222 = vmatprep.subr.bf16.mxu0 0
        %1223 = vmatpush1.bf16.msra.mxu0 0
        %1224 = vmatprep.subr.bf16.mxu0 0
        %1225 = vmatpush1.bf16.msra.mxu0 0
        %1226 = vmatprep.subr.bf16.mxu0 0
        %1227 = vmatpush1.bf16.msra.mxu0 0
        %1228 = vmatprep.subr.bf16.mxu0 0
        %1229 = vmatpush1.bf16.msra.mxu0 0
        %1230 = vmatprep.subr.bf16.mxu0 0
        %1231 = vmatpush1.bf16.msra.mxu0 0
        %1232 = vmatprep.subr.bf16.mxu0 0
        %1233 = vmatpush1.bf16.msra.mxu0 0
        %1234 = vmatprep.subr.bf16.mxu0 0
        %1235 = vmatpush1.bf16.msra.mxu0 0
        %1236 = vmatprep.subr.bf16.mxu0 0
        %1237 = vmatpush1.bf16.msra.mxu0 0
        %1238 = vmatprep.subr.bf16.mxu0 0
        %1239 = vmatpush1.bf16.msra.mxu0 0
        %1240 = vmatprep.subr.bf16.mxu0 0
        %1241 = vmatpush1.bf16.msra.mxu0 0
        %1242 = vmatprep.subr.bf16.mxu0 0
        %1243 = vmatpush1.bf16.msra.mxu0 0
        %1244 = vmatprep.mubr.bf16.mxu0 0
        %1245 = vmatmul.mubr.bf16.gmra.mrb[0].mxu0 %v1104
        %v1246 = vpop.f32.mrb[0].mxu0
        %v1247 = vadd.f32 0.0, %v1246
        %v1248 = vpop.f32.mrb[0].mxu0
        %v1249 = vadd.f32 0.0, %v1248
        %v1250 = vpop.f32.mrb[0].mxu0
        %v1251 = vpop.f32.mrb[0].mxu0
        %1252 = vdwg.mxu0
        %1253 = vmatprep.subr.bf16.mxu0 %v1128
        %1254 = vmatpush1.bf16.msra.mxu0 %v1125
        %1255 = vmatprep.subr.bf16.mxu0 0
        %1256 = vmatpush1.bf16.msra.mxu0 0
        %1257 = vmatprep.subr.bf16.mxu0 0
        %1258 = vmatpush1.bf16.msra.mxu0 0
        %1259 = vmatprep.subr.bf16.mxu0 0
        %1260 = vmatpush1.bf16.msra.mxu0 0
        %1261 = vmatprep.subr.bf16.mxu0 0
        %1262 = vmatpush1.bf16.msra.mxu0 0
        %1263 = vmatprep.subr.bf16.mxu0 0
        %1264 = vmatpush1.bf16.msra.mxu0 0
        %1265 = vmatprep.subr.bf16.mxu0 0
        %1266 = vmatpush1.bf16.msra.mxu0 0
        %1267 = vmatprep.subr.bf16.mxu0 0
        %1268 = vmatpush1.bf16.msra.mxu0 0
        %1269 = vmatprep.subr.bf16.mxu0 0
        %1270 = vmatpush1.bf16.msra.mxu0 0
        %1271 = vmatprep.subr.bf16.mxu0 0
        %1272 = vmatpush1.bf16.msra.mxu0 0
        %1273 = vmatprep.subr.bf16.mxu0 0
        %1274 = vmatpush1.bf16.msra.mxu0 0
        %1275 = vmatprep.subr.bf16.mxu0 0
        %1276 = vmatpush1.bf16.msra.mxu0 0
        %1277 = vmatprep.subr.bf16.mxu0 0
        %1278 = vmatpush1.bf16.msra.mxu0 0
        %1279 = vmatprep.subr.bf16.mxu0 0
        %1280 = vmatpush1.bf16.msra.mxu0 0
        %1281 = vmatprep.subr.bf16.mxu0 0
        %1282 = vmatpush1.bf16.msra.mxu0 0
        %1283 = vmatprep.subr.bf16.mxu0 0
        %1284 = vmatpush1.bf16.msra.mxu0 0
        %1285 = vmatprep.mubr.bf16.mxu0 0
        %1286 = vmatmul.mubr.bf16.gmra.mrb[0].mxu0 %v1104
        %v1287 = vpop.f32.mrb[0].mxu0
        %v1288 = vadd.f32 0.0, %v1287
        %v1289 = vpop.f32.mrb[0].mxu0
        %v1290 = vadd.f32 0.0, %v1289
        %v1291 = vpop.f32.mrb[0].mxu0
        %v1292 = vpop.f32.mrb[0].mxu0
        %1293 = vdwg.mxu0
        %v1294 = vadd.f32 %v1060, %v1165
        %v1295 = vadd.f32 %v1061, %v1167
        %v1296 = vadd.f32 %v1062, %v1206
        %v1297 = vadd.f32 %v1063, %v1208
        %v1298 = vadd.f32 %v1064, %v1247
        %v1299 = vadd.f32 %v1065, %v1249
        %v1300 = vadd.f32 %v1066, %v1288
        %v1301 = vadd.f32 %v1067, %v1290
        %1302 = vrot.lane.b32.xlu0 %v385, 124
        %v1303 = vpop.permute.xlu0 %1302
        %1304 = vrot.lane.b32.xlu0 %v393, 124
        %v1305 = vpop.permute.xlu0 %1304
        %1306 = vrot.lane.b32.xlu0 %v386, 124
        %v1307 = vpop.permute.xlu0 %1306
        %1308 = vrot.lane.b32.xlu0 %v394, 124
        %v1309 = vpop.permute.xlu0 %1308
        %1310 = vrot.lane.b32.xlu0 %v387, 124
        %v1311 = vpop.permute.xlu0 %1310
        %1312 = vrot.lane.b32.xlu0 %v395, 124
        %v1313 = vpop.permute.xlu0 %1312
        %1314 = vrot.lane.b32.xlu0 %v388, 124
        %v1315 = vpop.permute.xlu0 %1314
        %1316 = vrot.lane.b32.xlu0 %v396, 124
        %v1317 = vpop.permute.xlu0 %1316
        %vm1318 = vcmp.lt.s32.totalorder %v427, 124
        %v1319 = vsel %vm1318, %v1315, %v1317
        %v1320 = vsel %vm1318, %v1313, %v1315
        %v1321 = vsel %vm1318, %v1311, %v1313
        %v1322 = vsel %vm1318, %v1309, %v1311
        %v1323 = vsel %vm1318, %v1307, %v1309
        %v1324 = vsel %vm1318, %v1305, %v1307
        %v1325 = vsel %vm1318, %v1303, %v1305
        %v1326 = vsel %vm1318, %v1317, %v1303
        %v1327 = vpack.c.bf16 %v1325, %v1325
        %v1328 = vpack.c.bf16 %v1324, %v1324
        %v1329 = vpack.c.bf16 %v1323, %v1323
        %v1330 = vpack.c.bf16 %v1322, %v1322
        %v1331 = vpack.c.bf16 %v1321, %v1321
        %v1332 = vpack.c.bf16 %v1320, %v1320
        %v1333 = vpack.c.bf16 %v1319, %v1319
        %v1334 = vpack.c.bf16 %v1326, %v1326
        %s1335 = scalar_lea.vmem %s1, 16
        %v1336 = vld [vmem:[%s1335] sm:$0x7]
        %v1338 = vsel %vm447, %v1336, 0
        %v1341 = vand.u32 %v1327, %v454
        %v1344 = vand.u32 %v1328, %v454
        %v1347 = vand.u32 %v1329, %v454
        %v1350 = vand.u32 %v1330, %v454
        %v1353 = vand.u32 %v1331, %v454
        %v1356 = vand.u32 %v1332, %v454
        %v1359 = vand.u32 %v1333, %v454
        %v1362 = vand.u32 %v1334, %v454
        %1364 = vmatprep.subr.bf16.mxu0 %v1344
        %1365 = vmatpush1.bf16.msra.mxu0 %v1341
        %1366 = vmatprep.subr.bf16.mxu0 0
        %1367 = vmatpush1.bf16.msra.mxu0 0
        %1368 = vmatprep.subr.bf16.mxu0 0
        %1369 = vmatpush1.bf16.msra.mxu0 0
        %1370 = vmatprep.subr.bf16.mxu0 0
        %1371 = vmatpush1.bf16.msra.mxu0 0
        %1372 = vmatprep.subr.bf16.mxu0 0
        %1373 = vmatpush1.bf16.msra.mxu0 0
        %1374 = vmatprep.subr.bf16.mxu0 0
        %1375 = vmatpush1.bf16.msra.mxu0 0
        %1376 = vmatprep.subr.bf16.mxu0 0
        %1377 = vmatpush1.bf16.msra.mxu0 0
        %1378 = vmatprep.subr.bf16.mxu0 0
        %1379 = vmatpush1.bf16.msra.mxu0 0
        %1380 = vmatprep.subr.bf16.mxu0 0
        %1381 = vmatpush1.bf16.msra.mxu0 0
        %1382 = vmatprep.subr.bf16.mxu0 0
        %1383 = vmatpush1.bf16.msra.mxu0 0
        %1384 = vmatprep.subr.bf16.mxu0 0
        %1385 = vmatpush1.bf16.msra.mxu0 0
        %1386 = vmatprep.subr.bf16.mxu0 0
        %1387 = vmatpush1.bf16.msra.mxu0 0
        %1388 = vmatprep.subr.bf16.mxu0 0
        %1389 = vmatpush1.bf16.msra.mxu0 0
        %1390 = vmatprep.subr.bf16.mxu0 0
        %1391 = vmatpush1.bf16.msra.mxu0 0
        %1392 = vmatprep.subr.bf16.mxu0 0
        %1393 = vmatpush1.bf16.msra.mxu0 0
        %1394 = vmatprep.subr.bf16.mxu0 0
        %1395 = vmatpush1.bf16.msra.mxu0 0
        %1396 = vmatprep.mubr.bf16.mxu0 0
        %1397 = vmatmul.mubr.bf16.gmra.mrb[0].mxu0 %v1338
        %v1398 = vpop.f32.mrb[0].mxu0
        %v1399 = vadd.f32 0.0, %v1398
        %v1400 = vpop.f32.mrb[0].mxu0
        %v1401 = vadd.f32 0.0, %v1400
        %v1402 = vpop.f32.mrb[0].mxu0
        %v1403 = vpop.f32.mrb[0].mxu0
        %1404 = vdwg.mxu0
        %1405 = vmatprep.subr.bf16.mxu0 %v1350
        %1406 = vmatpush1.bf16.msra.mxu0 %v1347
        %1407 = vmatprep.subr.bf16.mxu0 0
        %1408 = vmatpush1.bf16.msra.mxu0 0
        %1409 = vmatprep.subr.bf16.mxu0 0
        %1410 = vmatpush1.bf16.msra.mxu0 0
        %1411 = vmatprep.subr.bf16.mxu0 0
        %1412 = vmatpush1.bf16.msra.mxu0 0
        %1413 = vmatprep.subr.bf16.mxu0 0
        %1414 = vmatpush1.bf16.msra.mxu0 0
        %1415 = vmatprep.subr.bf16.mxu0 0
        %1416 = vmatpush1.bf16.msra.mxu0 0
        %1417 = vmatprep.subr.bf16.mxu0 0
        %1418 = vmatpush1.bf16.msra.mxu0 0
        %1419 = vmatprep.subr.bf16.mxu0 0
        %1420 = vmatpush1.bf16.msra.mxu0 0
        %1421 = vmatprep.subr.bf16.mxu0 0
        %1422 = vmatpush1.bf16.msra.mxu0 0
        %1423 = vmatprep.subr.bf16.mxu0 0
        %1424 = vmatpush1.bf16.msra.mxu0 0
        %1425 = vmatprep.subr.bf16.mxu0 0
        %1426 = vmatpush1.bf16.msra.mxu0 0
        %1427 = vmatprep.subr.bf16.mxu0 0
        %1428 = vmatpush1.bf16.msra.mxu0 0
        %1429 = vmatprep.subr.bf16.mxu0 0
        %1430 = vmatpush1.bf16.msra.mxu0 0
        %1431 = vmatprep.subr.bf16.mxu0 0
        %1432 = vmatpush1.bf16.msra.mxu0 0
        %1433 = vmatprep.subr.bf16.mxu0 0
        %1434 = vmatpush1.bf16.msra.mxu0 0
        %1435 = vmatprep.subr.bf16.mxu0 0
        %1436 = vmatpush1.bf16.msra.mxu0 0
        %1437 = vmatprep.mubr.bf16.mxu0 0
        %1438 = vmatmul.mubr.bf16.gmra.mrb[0].mxu0 %v1338
        %v1439 = vpop.f32.mrb[0].mxu0
        %v1440 = vadd.f32 0.0, %v1439
        %v1441 = vpop.f32.mrb[0].mxu0
        %v1442 = vadd.f32 0.0, %v1441
        %v1443 = vpop.f32.mrb[0].mxu0
        %v1444 = vpop.f32.mrb[0].mxu0
        %1445 = vdwg.mxu0
        %1446 = vmatprep.subr.bf16.mxu0 %v1356
        %1447 = vmatpush1.bf16.msra.mxu0 %v1353
        %1448 = vmatprep.subr.bf16.mxu0 0
        %1449 = vmatpush1.bf16.msra.mxu0 0
        %1450 = vmatprep.subr.bf16.mxu0 0
        %1451 = vmatpush1.bf16.msra.mxu0 0
        %1452 = vmatprep.subr.bf16.mxu0 0
        %1453 = vmatpush1.bf16.msra.mxu0 0
        %1454 = vmatprep.subr.bf16.mxu0 0
        %1455 = vmatpush1.bf16.msra.mxu0 0
        %1456 = vmatprep.subr.bf16.mxu0 0
        %1457 = vmatpush1.bf16.msra.mxu0 0
        %1458 = vmatprep.subr.bf16.mxu0 0
        %1459 = vmatpush1.bf16.msra.mxu0 0
        %1460 = vmatprep.subr.bf16.mxu0 0
        %1461 = vmatpush1.bf16.msra.mxu0 0
        %1462 = vmatprep.subr.bf16.mxu0 0
        %1463 = vmatpush1.bf16.msra.mxu0 0
        %1464 = vmatprep.subr.bf16.mxu0 0
        %1465 = vmatpush1.bf16.msra.mxu0 0
        %1466 = vmatprep.subr.bf16.mxu0 0
        %1467 = vmatpush1.bf16.msra.mxu0 0
        %1468 = vmatprep.subr.bf16.mxu0 0
        %1469 = vmatpush1.bf16.msra.mxu0 0
        %1470 = vmatprep.subr.bf16.mxu0 0
        %1471 = vmatpush1.bf16.msra.mxu0 0
        %1472 = vmatprep.subr.bf16.mxu0 0
        %1473 = vmatpush1.bf16.msra.mxu0 0
        %1474 = vmatprep.subr.bf16.mxu0 0
        %1475 = vmatpush1.bf16.msra.mxu0 0
        %1476 = vmatprep.subr.bf16.mxu0 0
        %1477 = vmatpush1.bf16.msra.mxu0 0
        %1478 = vmatprep.mubr.bf16.mxu0 0
        %1479 = vmatmul.mubr.bf16.gmra.mrb[0].mxu0 %v1338
        %v1480 = vpop.f32.mrb[0].mxu0
        %v1481 = vadd.f32 0.0, %v1480
        %v1482 = vpop.f32.mrb[0].mxu0
        %v1483 = vadd.f32 0.0, %v1482
        %v1484 = vpop.f32.mrb[0].mxu0
        %v1485 = vpop.f32.mrb[0].mxu0
        %1486 = vdwg.mxu0
        %1487 = vmatprep.subr.bf16.mxu0 %v1362
        %1488 = vmatpush1.bf16.msra.mxu0 %v1359
        %1489 = vmatprep.subr.bf16.mxu0 0
        %1490 = vmatpush1.bf16.msra.mxu0 0
        %1491 = vmatprep.subr.bf16.mxu0 0
        %1492 = vmatpush1.bf16.msra.mxu0 0
        %1493 = vmatprep.subr.bf16.mxu0 0
        %1494 = vmatpush1.bf16.msra.mxu0 0
        %1495 = vmatprep.subr.bf16.mxu0 0
        %1496 = vmatpush1.bf16.msra.mxu0 0
        %1497 = vmatprep.subr.bf16.mxu0 0
        %1498 = vmatpush1.bf16.msra.mxu0 0
        %1499 = vmatprep.subr.bf16.mxu0 0
        %1500 = vmatpush1.bf16.msra.mxu0 0
        %1501 = vmatprep.subr.bf16.mxu0 0
        %1502 = vmatpush1.bf16.msra.mxu0 0
        %1503 = vmatprep.subr.bf16.mxu0 0
        %1504 = vmatpush1.bf16.msra.mxu0 0
        %1505 = vmatprep.subr.bf16.mxu0 0
        %1506 = vmatpush1.bf16.msra.mxu0 0
        %1507 = vmatprep.subr.bf16.mxu0 0
        %1508 = vmatpush1.bf16.msra.mxu0 0
        %1509 = vmatprep.subr.bf16.mxu0 0
        %1510 = vmatpush1.bf16.msra.mxu0 0
        %1511 = vmatprep.subr.bf16.mxu0 0
        %1512 = vmatpush1.bf16.msra.mxu0 0
        %1513 = vmatprep.subr.bf16.mxu0 0
        %1514 = vmatpush1.bf16.msra.mxu0 0
        %1515 = vmatprep.subr.bf16.mxu0 0
        %1516 = vmatpush1.bf16.msra.mxu0 0
        %1517 = vmatprep.subr.bf16.mxu0 0
        %1518 = vmatpush1.bf16.msra.mxu0 0
        %1519 = vmatprep.mubr.bf16.mxu0 0
        %1520 = vmatmul.mubr.bf16.gmra.mrb[0].mxu0 %v1338
        %v1521 = vpop.f32.mrb[0].mxu0
        %v1522 = vadd.f32 0.0, %v1521
        %v1523 = vpop.f32.mrb[0].mxu0
        %v1524 = vadd.f32 0.0, %v1523
        %v1525 = vpop.f32.mrb[0].mxu0
        %v1526 = vpop.f32.mrb[0].mxu0
        %1527 = vdwg.mxu0
        %v1528 = vadd.f32 %v1294, %v1399
        %v1529 = vadd.f32 %v1295, %v1401
        %v1530 = vadd.f32 %v1296, %v1440
        %v1531 = vadd.f32 %v1297, %v1442
        %v1532 = vadd.f32 %v1298, %v1481
        %v1533 = vadd.f32 %v1299, %v1483
        %v1534 = vadd.f32 %v1300, %v1522
        %v1535 = vadd.f32 %v1301, %v1524
        %1536 = vrot.lane.b32.xlu0 %v385, 96
        %v1537 = vpop.permute.xlu0 %1536
        %1538 = vrot.lane.b32.xlu0 %v393, 96
        %v1539 = vpop.permute.xlu0 %1538
        %1540 = vrot.lane.b32.xlu0 %v386, 96
        %v1541 = vpop.permute.xlu0 %1540
        %1542 = vrot.lane.b32.xlu0 %v394, 96
        %v1543 = vpop.permute.xlu0 %1542
        %1544 = vrot.lane.b32.xlu0 %v387, 96
        %v1545 = vpop.permute.xlu0 %1544
        %1546 = vrot.lane.b32.xlu0 %v395, 96
        %v1547 = vpop.permute.xlu0 %1546
        %1548 = vrot.lane.b32.xlu0 %v388, 96
        %v1549 = vpop.permute.xlu0 %1548
        %1550 = vrot.lane.b32.xlu0 %v396, 96
        %v1551 = vpop.permute.xlu0 %1550
        %vm1552 = vcmp.lt.s32.totalorder %v427, 96
        %v1553 = vsel %vm1552, %v1549, %v1551
        %v1554 = vsel %vm1552, %v1547, %v1549
        %v1555 = vsel %vm1552, %v1545, %v1547
        %v1556 = vsel %vm1552, %v1543, %v1545
        %v1557 = vsel %vm1552, %v1541, %v1543
        %v1558 = vsel %vm1552, %v1539, %v1541
        %v1559 = vsel %vm1552, %v1537, %v1539
        %v1560 = vsel %vm1552, %v1551, %v1537
        %v1561 = vpack.c.bf16 %v1559, %v1559
        %v1562 = vpack.c.bf16 %v1558, %v1558
        %v1563 = vpack.c.bf16 %v1557, %v1557
        %v1564 = vpack.c.bf16 %v1556, %v1556
        %v1565 = vpack.c.bf16 %v1555, %v1555
        %v1566 = vpack.c.bf16 %v1554, %v1554
        %v1567 = vpack.c.bf16 %v1553, %v1553
        %v1568 = vpack.c.bf16 %v1560, %v1560
        %s1569 = scalar_lea.vmem %s1, 20
        %v1570 = vld [vmem:[%s1569] sm:$0x7]
        %v1572 = vsel %vm447, %v1570, 0
        %v1575 = vand.u32 %v1561, %v454
        %v1578 = vand.u32 %v1562, %v454
        %v1581 = vand.u32 %v1563, %v454
        %v1584 = vand.u32 %v1564, %v454
        %v1587 = vand.u32 %v1565, %v454
        %v1590 = vand.u32 %v1566, %v454
        %v1593 = vand.u32 %v1567, %v454
        %v1596 = vand.u32 %v1568, %v454
        %1598 = vmatprep.subr.bf16.mxu0 %v1578
        %1599 = vmatpush1.bf16.msra.mxu0 %v1575
        %1600 = vmatprep.subr.bf16.mxu0 0
        %1601 = vmatpush1.bf16.msra.mxu0 0
        %1602 = vmatprep.subr.bf16.mxu0 0
        %1603 = vmatpush1.bf16.msra.mxu0 0
        %1604 = vmatprep.subr.bf16.mxu0 0
        %1605 = vmatpush1.bf16.msra.mxu0 0
        %1606 = vmatprep.subr.bf16.mxu0 0
        %1607 = vmatpush1.bf16.msra.mxu0 0
        %1608 = vmatprep.subr.bf16.mxu0 0
        %1609 = vmatpush1.bf16.msra.mxu0 0
        %1610 = vmatprep.subr.bf16.mxu0 0
        %1611 = vmatpush1.bf16.msra.mxu0 0
        %1612 = vmatprep.subr.bf16.mxu0 0
        %1613 = vmatpush1.bf16.msra.mxu0 0
        %1614 = vmatprep.subr.bf16.mxu0 0
        %1615 = vmatpush1.bf16.msra.mxu0 0
        %1616 = vmatprep.subr.bf16.mxu0 0
        %1617 = vmatpush1.bf16.msra.mxu0 0
        %1618 = vmatprep.subr.bf16.mxu0 0
        %1619 = vmatpush1.bf16.msra.mxu0 0
        %1620 = vmatprep.subr.bf16.mxu0 0
        %1621 = vmatpush1.bf16.msra.mxu0 0
        %1622 = vmatprep.subr.bf16.mxu0 0
        %1623 = vmatpush1.bf16.msra.mxu0 0
        %1624 = vmatprep.subr.bf16.mxu0 0
        %1625 = vmatpush1.bf16.msra.mxu0 0
        %1626 = vmatprep.subr.bf16.mxu0 0
        %1627 = vmatpush1.bf16.msra.mxu0 0
        %1628 = vmatprep.subr.bf16.mxu0 0
        %1629 = vmatpush1.bf16.msra.mxu0 0
        %1630 = vmatprep.mubr.bf16.mxu0 0
        %1631 = vmatmul.mubr.bf16.gmra.mrb[0].mxu0 %v1572
        %v1632 = vpop.f32.mrb[0].mxu0
        %v1633 = vadd.f32 0.0, %v1632
        %v1634 = vpop.f32.mrb[0].mxu0
        %v1635 = vadd.f32 0.0, %v1634
        %v1636 = vpop.f32.mrb[0].mxu0
        %v1637 = vpop.f32.mrb[0].mxu0
        %1638 = vdwg.mxu0
        %1639 = vmatprep.subr.bf16.mxu0 %v1584
        %1640 = vmatpush1.bf16.msra.mxu0 %v1581
        %1641 = vmatprep.subr.bf16.mxu0 0
        %1642 = vmatpush1.bf16.msra.mxu0 0
        %1643 = vmatprep.subr.bf16.mxu0 0
        %1644 = vmatpush1.bf16.msra.mxu0 0
        %1645 = vmatprep.subr.bf16.mxu0 0
        %1646 = vmatpush1.bf16.msra.mxu0 0
        %1647 = vmatprep.subr.bf16.mxu0 0
        %1648 = vmatpush1.bf16.msra.mxu0 0
        %1649 = vmatprep.subr.bf16.mxu0 0
        %1650 = vmatpush1.bf16.msra.mxu0 0
        %1651 = vmatprep.subr.bf16.mxu0 0
        %1652 = vmatpush1.bf16.msra.mxu0 0
        %1653 = vmatprep.subr.bf16.mxu0 0
        %1654 = vmatpush1.bf16.msra.mxu0 0
        %1655 = vmatprep.subr.bf16.mxu0 0
        %1656 = vmatpush1.bf16.msra.mxu0 0
        %1657 = vmatprep.subr.bf16.mxu0 0
        %1658 = vmatpush1.bf16.msra.mxu0 0
        %1659 = vmatprep.subr.bf16.mxu0 0
        %1660 = vmatpush1.bf16.msra.mxu0 0
        %1661 = vmatprep.subr.bf16.mxu0 0
        %1662 = vmatpush1.bf16.msra.mxu0 0
        %1663 = vmatprep.subr.bf16.mxu0 0
        %1664 = vmatpush1.bf16.msra.mxu0 0
        %1665 = vmatprep.subr.bf16.mxu0 0
        %1666 = vmatpush1.bf16.msra.mxu0 0
        %1667 = vmatprep.subr.bf16.mxu0 0
        %1668 = vmatpush1.bf16.msra.mxu0 0
        %1669 = vmatprep.subr.bf16.mxu0 0
        %1670 = vmatpush1.bf16.msra.mxu0 0
        %1671 = vmatprep.mubr.bf16.mxu0 0
        %1672 = vmatmul.mubr.bf16.gmra.mrb[0].mxu0 %v1572
        %v1673 = vpop.f32.mrb[0].mxu0
        %v1674 = vadd.f32 0.0, %v1673
        %v1675 = vpop.f32.mrb[0].mxu0
        %v1676 = vadd.f32 0.0, %v1675
        %v1677 = vpop.f32.mrb[0].mxu0
        %v1678 = vpop.f32.mrb[0].mxu0
        %1679 = vdwg.mxu0
        %1680 = vmatprep.subr.bf16.mxu0 %v1590
        %1681 = vmatpush1.bf16.msra.mxu0 %v1587
        %1682 = vmatprep.subr.bf16.mxu0 0
        %1683 = vmatpush1.bf16.msra.mxu0 0
        %1684 = vmatprep.subr.bf16.mxu0 0
        %1685 = vmatpush1.bf16.msra.mxu0 0
        %1686 = vmatprep.subr.bf16.mxu0 0
        %1687 = vmatpush1.bf16.msra.mxu0 0
        %1688 = vmatprep.subr.bf16.mxu0 0
        %1689 = vmatpush1.bf16.msra.mxu0 0
        %1690 = vmatprep.subr.bf16.mxu0 0
        %1691 = vmatpush1.bf16.msra.mxu0 0
        %1692 = vmatprep.subr.bf16.mxu0 0
        %1693 = vmatpush1.bf16.msra.mxu0 0
        %1694 = vmatprep.subr.bf16.mxu0 0
        %1695 = vmatpush1.bf16.msra.mxu0 0
        %1696 = vmatprep.subr.bf16.mxu0 0
        %1697 = vmatpush1.bf16.msra.mxu0 0
        %1698 = vmatprep.subr.bf16.mxu0 0
        %1699 = vmatpush1.bf16.msra.mxu0 0
        %1700 = vmatprep.subr.bf16.mxu0 0
        %1701 = vmatpush1.bf16.msra.mxu0 0
        %1702 = vmatprep.subr.bf16.mxu0 0
        %1703 = vmatpush1.bf16.msra.mxu0 0
        %1704 = vmatprep.subr.bf16.mxu0 0
        %1705 = vmatpush1.bf16.msra.mxu0 0
        %1706 = vmatprep.subr.bf16.mxu0 0
        %1707 = vmatpush1.bf16.msra.mxu0 0
        %1708 = vmatprep.subr.bf16.mxu0 0
        %1709 = vmatpush1.bf16.msra.mxu0 0
        %1710 = vmatprep.subr.bf16.mxu0 0
        %1711 = vmatpush1.bf16.msra.mxu0 0
        %1712 = vmatprep.mubr.bf16.mxu0 0
        %1713 = vmatmul.mubr.bf16.gmra.mrb[0].mxu0 %v1572
        %v1714 = vpop.f32.mrb[0].mxu0
        %v1715 = vadd.f32 0.0, %v1714
        %v1716 = vpop.f32.mrb[0].mxu0
        %v1717 = vadd.f32 0.0, %v1716
        %v1718 = vpop.f32.mrb[0].mxu0
        %v1719 = vpop.f32.mrb[0].mxu0
        %1720 = vdwg.mxu0
        %1721 = vmatprep.subr.bf16.mxu0 %v1596
        %1722 = vmatpush1.bf16.msra.mxu0 %v1593
        %1723 = vmatprep.subr.bf16.mxu0 0
        %1724 = vmatpush1.bf16.msra.mxu0 0
        %1725 = vmatprep.subr.bf16.mxu0 0
        %1726 = vmatpush1.bf16.msra.mxu0 0
        %1727 = vmatprep.subr.bf16.mxu0 0
        %1728 = vmatpush1.bf16.msra.mxu0 0
        %1729 = vmatprep.subr.bf16.mxu0 0
        %1730 = vmatpush1.bf16.msra.mxu0 0
        %1731 = vmatprep.subr.bf16.mxu0 0
        %1732 = vmatpush1.bf16.msra.mxu0 0
        %1733 = vmatprep.subr.bf16.mxu0 0
        %1734 = vmatpush1.bf16.msra.mxu0 0
        %1735 = vmatprep.subr.bf16.mxu0 0
        %1736 = vmatpush1.bf16.msra.mxu0 0
        %1737 = vmatprep.subr.bf16.mxu0 0
        %1738 = vmatpush1.bf16.msra.mxu0 0
        %1739 = vmatprep.subr.bf16.mxu0 0
        %1740 = vmatpush1.bf16.msra.mxu0 0
        %1741 = vmatprep.subr.bf16.mxu0 0
        %1742 = vmatpush1.bf16.msra.mxu0 0
        %1743 = vmatprep.subr.bf16.mxu0 0
        %1744 = vmatpush1.bf16.msra.mxu0 0
        %1745 = vmatprep.subr.bf16.mxu0 0
        %1746 = vmatpush1.bf16.msra.mxu0 0
        %1747 = vmatprep.subr.bf16.mxu0 0
        %1748 = vmatpush1.bf16.msra.mxu0 0
        %1749 = vmatprep.subr.bf16.mxu0 0
        %1750 = vmatpush1.bf16.msra.mxu0 0
        %1751 = vmatprep.subr.bf16.mxu0 0
        %1752 = vmatpush1.bf16.msra.mxu0 0
        %1753 = vmatprep.mubr.bf16.mxu0 0
        %1754 = vmatmul.mubr.bf16.gmra.mrb[0].mxu0 %v1572
        %v1755 = vpop.f32.mrb[0].mxu0
        %v1756 = vadd.f32 0.0, %v1755
        %v1757 = vpop.f32.mrb[0].mxu0
        %v1758 = vadd.f32 0.0, %v1757
        %v1759 = vpop.f32.mrb[0].mxu0
        %v1760 = vpop.f32.mrb[0].mxu0
        %1761 = vdwg.mxu0
        %v1762 = vadd.f32 %v1528, %v1633
        %v1763 = vadd.f32 %v1529, %v1635
        %v1764 = vadd.f32 %v1530, %v1674
        %v1765 = vadd.f32 %v1531, %v1676
        %v1766 = vadd.f32 %v1532, %v1715
        %v1767 = vadd.f32 %v1533, %v1717
        %v1768 = vadd.f32 %v1534, %v1756
        %v1769 = vadd.f32 %v1535, %v1758
        %1770 = vrot.lane.b32.xlu0 %v385, 95
        %v1771 = vpop.permute.xlu0 %1770
        %1772 = vrot.lane.b32.xlu0 %v393, 95
        %v1773 = vpop.permute.xlu0 %1772
        %1774 = vrot.lane.b32.xlu0 %v386, 95
        %v1775 = vpop.permute.xlu0 %1774
        %1776 = vrot.lane.b32.xlu0 %v394, 95
        %v1777 = vpop.permute.xlu0 %1776
        %1778 = vrot.lane.b32.xlu0 %v387, 95
        %v1779 = vpop.permute.xlu0 %1778
        %1780 = vrot.lane.b32.xlu0 %v395, 95
        %v1781 = vpop.permute.xlu0 %1780
        %1782 = vrot.lane.b32.xlu0 %v388, 95
        %v1783 = vpop.permute.xlu0 %1782
        %1784 = vrot.lane.b32.xlu0 %v396, 95
        %v1785 = vpop.permute.xlu0 %1784
        %vm1786 = vcmp.lt.s32.totalorder %v427, 95
        %v1787 = vsel %vm1786, %v1783, %v1785
        %v1788 = vsel %vm1786, %v1781, %v1783
        %v1789 = vsel %vm1786, %v1779, %v1781
        %v1790 = vsel %vm1786, %v1777, %v1779
        %v1791 = vsel %vm1786, %v1775, %v1777
        %v1792 = vsel %vm1786, %v1773, %v1775
        %v1793 = vsel %vm1786, %v1771, %v1773
        %v1794 = vsel %vm1786, %v1785, %v1771
        %v1795 = vpack.c.bf16 %v1793, %v1793
        %v1796 = vpack.c.bf16 %v1792, %v1792
        %v1797 = vpack.c.bf16 %v1791, %v1791
        %v1798 = vpack.c.bf16 %v1790, %v1790
        %v1799 = vpack.c.bf16 %v1789, %v1789
        %v1800 = vpack.c.bf16 %v1788, %v1788
        %v1801 = vpack.c.bf16 %v1787, %v1787
        %v1802 = vpack.c.bf16 %v1794, %v1794
        %s1803 = scalar_lea.vmem %s1, 24
        %v1804 = vld [vmem:[%s1803] sm:$0x7]
        %v1806 = vsel %vm447, %v1804, 0
        %v1809 = vand.u32 %v1795, %v454
        %v1812 = vand.u32 %v1796, %v454
        %v1815 = vand.u32 %v1797, %v454
        %v1818 = vand.u32 %v1798, %v454
        %v1821 = vand.u32 %v1799, %v454
        %v1824 = vand.u32 %v1800, %v454
        %v1827 = vand.u32 %v1801, %v454
        %v1830 = vand.u32 %v1802, %v454
        %1832 = vmatprep.subr.bf16.mxu0 %v1812
        %1833 = vmatpush1.bf16.msra.mxu0 %v1809
        %1834 = vmatprep.subr.bf16.mxu0 0
        %1835 = vmatpush1.bf16.msra.mxu0 0
        %1836 = vmatprep.subr.bf16.mxu0 0
        %1837 = vmatpush1.bf16.msra.mxu0 0
        %1838 = vmatprep.subr.bf16.mxu0 0
        %1839 = vmatpush1.bf16.msra.mxu0 0
        %1840 = vmatprep.subr.bf16.mxu0 0
        %1841 = vmatpush1.bf16.msra.mxu0 0
        %1842 = vmatprep.subr.bf16.mxu0 0
        %1843 = vmatpush1.bf16.msra.mxu0 0
        %1844 = vmatprep.subr.bf16.mxu0 0
        %1845 = vmatpush1.bf16.msra.mxu0 0
        %1846 = vmatprep.subr.bf16.mxu0 0
        %1847 = vmatpush1.bf16.msra.mxu0 0
        %1848 = vmatprep.subr.bf16.mxu0 0
        %1849 = vmatpush1.bf16.msra.mxu0 0
        %1850 = vmatprep.subr.bf16.mxu0 0
        %1851 = vmatpush1.bf16.msra.mxu0 0
        %1852 = vmatprep.subr.bf16.mxu0 0
        %1853 = vmatpush1.bf16.msra.mxu0 0
        %1854 = vmatprep.subr.bf16.mxu0 0
        %1855 = vmatpush1.bf16.msra.mxu0 0
        %1856 = vmatprep.subr.bf16.mxu0 0
        %1857 = vmatpush1.bf16.msra.mxu0 0
        %1858 = vmatprep.subr.bf16.mxu0 0
        %1859 = vmatpush1.bf16.msra.mxu0 0
        %1860 = vmatprep.subr.bf16.mxu0 0
        %1861 = vmatpush1.bf16.msra.mxu0 0
        %1862 = vmatprep.subr.bf16.mxu0 0
        %1863 = vmatpush1.bf16.msra.mxu0 0
        %1864 = vmatprep.mubr.bf16.mxu0 0
        %1865 = vmatmul.mubr.bf16.gmra.mrb[0].mxu0 %v1806
        %v1866 = vpop.f32.mrb[0].mxu0
        %v1867 = vadd.f32 0.0, %v1866
        %v1868 = vpop.f32.mrb[0].mxu0
        %v1869 = vadd.f32 0.0, %v1868
        %v1870 = vpop.f32.mrb[0].mxu0
        %v1871 = vpop.f32.mrb[0].mxu0
        %1872 = vdwg.mxu0
        %1873 = vmatprep.subr.bf16.mxu0 %v1818
        %1874 = vmatpush1.bf16.msra.mxu0 %v1815
        %1875 = vmatprep.subr.bf16.mxu0 0
        %1876 = vmatpush1.bf16.msra.mxu0 0
        %1877 = vmatprep.subr.bf16.mxu0 0
        %1878 = vmatpush1.bf16.msra.mxu0 0
        %1879 = vmatprep.subr.bf16.mxu0 0
        %1880 = vmatpush1.bf16.msra.mxu0 0
        %1881 = vmatprep.subr.bf16.mxu0 0
        %1882 = vmatpush1.bf16.msra.mxu0 0
        %1883 = vmatprep.subr.bf16.mxu0 0
        %1884 = vmatpush1.bf16.msra.mxu0 0
        %1885 = vmatprep.subr.bf16.mxu0 0
        %1886 = vmatpush1.bf16.msra.mxu0 0
        %1887 = vmatprep.subr.bf16.mxu0 0
        %1888 = vmatpush1.bf16.msra.mxu0 0
        %1889 = vmatprep.subr.bf16.mxu0 0
        %1890 = vmatpush1.bf16.msra.mxu0 0
        %1891 = vmatprep.subr.bf16.mxu0 0
        %1892 = vmatpush1.bf16.msra.mxu0 0
        %1893 = vmatprep.subr.bf16.mxu0 0
        %1894 = vmatpush1.bf16.msra.mxu0 0
        %1895 = vmatprep.subr.bf16.mxu0 0
        %1896 = vmatpush1.bf16.msra.mxu0 0
        %1897 = vmatprep.subr.bf16.mxu0 0
        %1898 = vmatpush1.bf16.msra.mxu0 0
        %1899 = vmatprep.subr.bf16.mxu0 0
        %1900 = vmatpush1.bf16.msra.mxu0 0
        %1901 = vmatprep.subr.bf16.mxu0 0
        %1902 = vmatpush1.bf16.msra.mxu0 0
        %1903 = vmatprep.subr.bf16.mxu0 0
        %1904 = vmatpush1.bf16.msra.mxu0 0
        %1905 = vmatprep.mubr.bf16.mxu0 0
        %1906 = vmatmul.mubr.bf16.gmra.mrb[0].mxu0 %v1806
        %v1907 = vpop.f32.mrb[0].mxu0
        %v1908 = vadd.f32 0.0, %v1907
        %v1909 = vpop.f32.mrb[0].mxu0
        %v1910 = vadd.f32 0.0, %v1909
        %v1911 = vpop.f32.mrb[0].mxu0
        %v1912 = vpop.f32.mrb[0].mxu0
        %1913 = vdwg.mxu0
        %1914 = vmatprep.subr.bf16.mxu0 %v1824
        %1915 = vmatpush1.bf16.msra.mxu0 %v1821
        %1916 = vmatprep.subr.bf16.mxu0 0
        %1917 = vmatpush1.bf16.msra.mxu0 0
        %1918 = vmatprep.subr.bf16.mxu0 0
        %1919 = vmatpush1.bf16.msra.mxu0 0
        %1920 = vmatprep.subr.bf16.mxu0 0
        %1921 = vmatpush1.bf16.msra.mxu0 0
        %1922 = vmatprep.subr.bf16.mxu0 0
        %1923 = vmatpush1.bf16.msra.mxu0 0
        %1924 = vmatprep.subr.bf16.mxu0 0
        %1925 = vmatpush1.bf16.msra.mxu0 0
        %1926 = vmatprep.subr.bf16.mxu0 0
        %1927 = vmatpush1.bf16.msra.mxu0 0
        %1928 = vmatprep.subr.bf16.mxu0 0
        %1929 = vmatpush1.bf16.msra.mxu0 0
        %1930 = vmatprep.subr.bf16.mxu0 0
        %1931 = vmatpush1.bf16.msra.mxu0 0
        %1932 = vmatprep.subr.bf16.mxu0 0
        %1933 = vmatpush1.bf16.msra.mxu0 0
        %1934 = vmatprep.subr.bf16.mxu0 0
        %1935 = vmatpush1.bf16.msra.mxu0 0
        %1936 = vmatprep.subr.bf16.mxu0 0
        %1937 = vmatpush1.bf16.msra.mxu0 0
        %1938 = vmatprep.subr.bf16.mxu0 0
        %1939 = vmatpush1.bf16.msra.mxu0 0
        %1940 = vmatprep.subr.bf16.mxu0 0
        %1941 = vmatpush1.bf16.msra.mxu0 0
        %1942 = vmatprep.subr.bf16.mxu0 0
        %1943 = vmatpush1.bf16.msra.mxu0 0
        %1944 = vmatprep.subr.bf16.mxu0 0
        %1945 = vmatpush1.bf16.msra.mxu0 0
        %1946 = vmatprep.mubr.bf16.mxu0 0
        %1947 = vmatmul.mubr.bf16.gmra.mrb[0].mxu0 %v1806
        %v1948 = vpop.f32.mrb[0].mxu0
        %v1949 = vadd.f32 0.0, %v1948
        %v1950 = vpop.f32.mrb[0].mxu0
        %v1951 = vadd.f32 0.0, %v1950
        %v1952 = vpop.f32.mrb[0].mxu0
        %v1953 = vpop.f32.mrb[0].mxu0
        %1954 = vdwg.mxu0
        %1955 = vmatprep.subr.bf16.mxu0 %v1830
        %1956 = vmatpush1.bf16.msra.mxu0 %v1827
        %1957 = vmatprep.subr.bf16.mxu0 0
        %1958 = vmatpush1.bf16.msra.mxu0 0
        %1959 = vmatprep.subr.bf16.mxu0 0
        %1960 = vmatpush1.bf16.msra.mxu0 0
        %1961 = vmatprep.subr.bf16.mxu0 0
        %1962 = vmatpush1.bf16.msra.mxu0 0
        %1963 = vmatprep.subr.bf16.mxu0 0
        %1964 = vmatpush1.bf16.msra.mxu0 0
        %1965 = vmatprep.subr.bf16.mxu0 0
        %1966 = vmatpush1.bf16.msra.mxu0 0
        %1967 = vmatprep.subr.bf16.mxu0 0
        %1968 = vmatpush1.bf16.msra.mxu0 0
        %1969 = vmatprep.subr.bf16.mxu0 0
        %1970 = vmatpush1.bf16.msra.mxu0 0
        %1971 = vmatprep.subr.bf16.mxu0 0
        %1972 = vmatpush1.bf16.msra.mxu0 0
        %1973 = vmatprep.subr.bf16.mxu0 0
        %1974 = vmatpush1.bf16.msra.mxu0 0
        %1975 = vmatprep.subr.bf16.mxu0 0
        %1976 = vmatpush1.bf16.msra.mxu0 0
        %1977 = vmatprep.subr.bf16.mxu0 0
        %1978 = vmatpush1.bf16.msra.mxu0 0
        %1979 = vmatprep.subr.bf16.mxu0 0
        %1980 = vmatpush1.bf16.msra.mxu0 0
        %1981 = vmatprep.subr.bf16.mxu0 0
        %1982 = vmatpush1.bf16.msra.mxu0 0
        %1983 = vmatprep.subr.bf16.mxu0 0
        %1984 = vmatpush1.bf16.msra.mxu0 0
        %1985 = vmatprep.subr.bf16.mxu0 0
        %1986 = vmatpush1.bf16.msra.mxu0 0
        %1987 = vmatprep.mubr.bf16.mxu0 0
        %1988 = vmatmul.mubr.bf16.gmra.mrb[0].mxu0 %v1806
        %v1989 = vpop.f32.mrb[0].mxu0
        %v1990 = vadd.f32 0.0, %v1989
        %v1991 = vpop.f32.mrb[0].mxu0
        %v1992 = vadd.f32 0.0, %v1991
        %v1993 = vpop.f32.mrb[0].mxu0
        %v1994 = vpop.f32.mrb[0].mxu0
        %1995 = vdwg.mxu0
        %v1996 = vadd.f32 %v1762, %v1867
        %v1997 = vadd.f32 %v1763, %v1869
        %v1998 = vadd.f32 %v1764, %v1908
        %v1999 = vadd.f32 %v1765, %v1910
        %v2000 = vadd.f32 %v1766, %v1949
        %v2001 = vadd.f32 %v1767, %v1951
        %v2002 = vadd.f32 %v1768, %v1990
        %v2003 = vadd.f32 %v1769, %v1992
        %2004 = vrot.lane.b32.xlu0 %v385, 94
        %v2005 = vpop.permute.xlu0 %2004
        %2006 = vrot.lane.b32.xlu0 %v393, 94
        %v2007 = vpop.permute.xlu0 %2006
        %2008 = vrot.lane.b32.xlu0 %v386, 94
        %v2009 = vpop.permute.xlu0 %2008
        %2010 = vrot.lane.b32.xlu0 %v394, 94
        %v2011 = vpop.permute.xlu0 %2010
        %2012 = vrot.lane.b32.xlu0 %v387, 94
        %v2013 = vpop.permute.xlu0 %2012
        %2014 = vrot.lane.b32.xlu0 %v395, 94
        %v2015 = vpop.permute.xlu0 %2014
        %2016 = vrot.lane.b32.xlu0 %v388, 94
        %v2017 = vpop.permute.xlu0 %2016
        %2018 = vrot.lane.b32.xlu0 %v396, 94
        %v2019 = vpop.permute.xlu0 %2018
        %vm2020 = vcmp.lt.s32.totalorder %v427, 94
        %v2021 = vsel %vm2020, %v2017, %v2019
        %v2022 = vsel %vm2020, %v2015, %v2017
        %v2023 = vsel %vm2020, %v2013, %v2015
        %v2024 = vsel %vm2020, %v2011, %v2013
        %v2025 = vsel %vm2020, %v2009, %v2011
        %v2026 = vsel %vm2020, %v2007, %v2009
        %v2027 = vsel %vm2020, %v2005, %v2007
        %v2028 = vsel %vm2020, %v2019, %v2005
        %v2029 = vpack.c.bf16 %v2027, %v2027
        %v2030 = vpack.c.bf16 %v2026, %v2026
        %v2031 = vpack.c.bf16 %v2025, %v2025
        %v2032 = vpack.c.bf16 %v2024, %v2024
        %v2033 = vpack.c.bf16 %v2023, %v2023
        %v2034 = vpack.c.bf16 %v2022, %v2022
        %v2035 = vpack.c.bf16 %v2021, %v2021
        %v2036 = vpack.c.bf16 %v2028, %v2028
        %s2037 = scalar_lea.vmem %s1, 28
        %v2038 = vld [vmem:[%s2037] sm:$0x7]
        %v2040 = vsel %vm447, %v2038, 0
        %v2043 = vand.u32 %v2029, %v454
        %v2046 = vand.u32 %v2030, %v454
        %v2049 = vand.u32 %v2031, %v454
        %v2052 = vand.u32 %v2032, %v454
        %v2055 = vand.u32 %v2033, %v454
        %v2058 = vand.u32 %v2034, %v454
        %v2061 = vand.u32 %v2035, %v454
        %v2064 = vand.u32 %v2036, %v454
        %2066 = vmatprep.subr.bf16.mxu0 %v2046
        %2067 = vmatpush1.bf16.msra.mxu0 %v2043
        %2068 = vmatprep.subr.bf16.mxu0 0
        %2069 = vmatpush1.bf16.msra.mxu0 0
        %2070 = vmatprep.subr.bf16.mxu0 0
        %2071 = vmatpush1.bf16.msra.mxu0 0
        %2072 = vmatprep.subr.bf16.mxu0 0
        %2073 = vmatpush1.bf16.msra.mxu0 0
        %2074 = vmatprep.subr.bf16.mxu0 0
        %2075 = vmatpush1.bf16.msra.mxu0 0
        %2076 = vmatprep.subr.bf16.mxu0 0
        %2077 = vmatpush1.bf16.msra.mxu0 0
        %2078 = vmatprep.subr.bf16.mxu0 0
        %2079 = vmatpush1.bf16.msra.mxu0 0
        %2080 = vmatprep.subr.bf16.mxu0 0
        %2081 = vmatpush1.bf16.msra.mxu0 0
        %2082 = vmatprep.subr.bf16.mxu0 0
        %2083 = vmatpush1.bf16.msra.mxu0 0
        %2084 = vmatprep.subr.bf16.mxu0 0
        %2085 = vmatpush1.bf16.msra.mxu0 0
        %2086 = vmatprep.subr.bf16.mxu0 0
        %2087 = vmatpush1.bf16.msra.mxu0 0
        %2088 = vmatprep.subr.bf16.mxu0 0
        %2089 = vmatpush1.bf16.msra.mxu0 0
        %2090 = vmatprep.subr.bf16.mxu0 0
        %2091 = vmatpush1.bf16.msra.mxu0 0
        %2092 = vmatprep.subr.bf16.mxu0 0
        %2093 = vmatpush1.bf16.msra.mxu0 0
        %2094 = vmatprep.subr.bf16.mxu0 0
        %2095 = vmatpush1.bf16.msra.mxu0 0
        %2096 = vmatprep.subr.bf16.mxu0 0
        %2097 = vmatpush1.bf16.msra.mxu0 0
        %2098 = vmatprep.mubr.bf16.mxu0 0
        %2099 = vmatmul.mubr.bf16.gmra.mrb[0].mxu0 %v2040
        %v2100 = vpop.f32.mrb[0].mxu0
        %v2101 = vadd.f32 0.0, %v2100
        %v2102 = vpop.f32.mrb[0].mxu0
        %v2103 = vadd.f32 0.0, %v2102
        %v2104 = vpop.f32.mrb[0].mxu0
        %v2105 = vpop.f32.mrb[0].mxu0
        %2106 = vdwg.mxu0
        %2107 = vmatprep.subr.bf16.mxu0 %v2052
        %2108 = vmatpush1.bf16.msra.mxu0 %v2049
        %2109 = vmatprep.subr.bf16.mxu0 0
        %2110 = vmatpush1.bf16.msra.mxu0 0
        %2111 = vmatprep.subr.bf16.mxu0 0
        %2112 = vmatpush1.bf16.msra.mxu0 0
        %2113 = vmatprep.subr.bf16.mxu0 0
        %2114 = vmatpush1.bf16.msra.mxu0 0
        %2115 = vmatprep.subr.bf16.mxu0 0
        %2116 = vmatpush1.bf16.msra.mxu0 0
        %2117 = vmatprep.subr.bf16.mxu0 0
        %2118 = vmatpush1.bf16.msra.mxu0 0
        %2119 = vmatprep.subr.bf16.mxu0 0
        %2120 = vmatpush1.bf16.msra.mxu0 0
        %2121 = vmatprep.subr.bf16.mxu0 0
        %2122 = vmatpush1.bf16.msra.mxu0 0
        %2123 = vmatprep.subr.bf16.mxu0 0
        %2124 = vmatpush1.bf16.msra.mxu0 0
        %2125 = vmatprep.subr.bf16.mxu0 0
        %2126 = vmatpush1.bf16.msra.mxu0 0
        %2127 = vmatprep.subr.bf16.mxu0 0
        %2128 = vmatpush1.bf16.msra.mxu0 0
        %2129 = vmatprep.subr.bf16.mxu0 0
        %2130 = vmatpush1.bf16.msra.mxu0 0
        %2131 = vmatprep.subr.bf16.mxu0 0
        %2132 = vmatpush1.bf16.msra.mxu0 0
        %2133 = vmatprep.subr.bf16.mxu0 0
        %2134 = vmatpush1.bf16.msra.mxu0 0
        %2135 = vmatprep.subr.bf16.mxu0 0
        %2136 = vmatpush1.bf16.msra.mxu0 0
        %2137 = vmatprep.subr.bf16.mxu0 0
        %2138 = vmatpush1.bf16.msra.mxu0 0
        %2139 = vmatprep.mubr.bf16.mxu0 0
        %2140 = vmatmul.mubr.bf16.gmra.mrb[0].mxu0 %v2040
        %v2141 = vpop.f32.mrb[0].mxu0
        %v2142 = vadd.f32 0.0, %v2141
        %v2143 = vpop.f32.mrb[0].mxu0
        %v2144 = vadd.f32 0.0, %v2143
        %v2145 = vpop.f32.mrb[0].mxu0
        %v2146 = vpop.f32.mrb[0].mxu0
        %2147 = vdwg.mxu0
        %2148 = vmatprep.subr.bf16.mxu0 %v2058
        %2149 = vmatpush1.bf16.msra.mxu0 %v2055
        %2150 = vmatprep.subr.bf16.mxu0 0
        %2151 = vmatpush1.bf16.msra.mxu0 0
        %2152 = vmatprep.subr.bf16.mxu0 0
        %2153 = vmatpush1.bf16.msra.mxu0 0
        %2154 = vmatprep.subr.bf16.mxu0 0
        %2155 = vmatpush1.bf16.msra.mxu0 0
        %2156 = vmatprep.subr.bf16.mxu0 0
        %2157 = vmatpush1.bf16.msra.mxu0 0
        %2158 = vmatprep.subr.bf16.mxu0 0
        %2159 = vmatpush1.bf16.msra.mxu0 0
        %2160 = vmatprep.subr.bf16.mxu0 0
        %2161 = vmatpush1.bf16.msra.mxu0 0
        %2162 = vmatprep.subr.bf16.mxu0 0
        %2163 = vmatpush1.bf16.msra.mxu0 0
        %2164 = vmatprep.subr.bf16.mxu0 0
        %2165 = vmatpush1.bf16.msra.mxu0 0
        %2166 = vmatprep.subr.bf16.mxu0 0
        %2167 = vmatpush1.bf16.msra.mxu0 0
        %2168 = vmatprep.subr.bf16.mxu0 0
        %2169 = vmatpush1.bf16.msra.mxu0 0
        %2170 = vmatprep.subr.bf16.mxu0 0
        %2171 = vmatpush1.bf16.msra.mxu0 0
        %2172 = vmatprep.subr.bf16.mxu0 0
        %2173 = vmatpush1.bf16.msra.mxu0 0
        %2174 = vmatprep.subr.bf16.mxu0 0
        %2175 = vmatpush1.bf16.msra.mxu0 0
        %2176 = vmatprep.subr.bf16.mxu0 0
        %2177 = vmatpush1.bf16.msra.mxu0 0
        %2178 = vmatprep.subr.bf16.mxu0 0
        %2179 = vmatpush1.bf16.msra.mxu0 0
        %2180 = vmatprep.mubr.bf16.mxu0 0
        %2181 = vmatmul.mubr.bf16.gmra.mrb[0].mxu0 %v2040
        %v2182 = vpop.f32.mrb[0].mxu0
        %v2183 = vadd.f32 0.0, %v2182
        %v2184 = vpop.f32.mrb[0].mxu0
        %v2185 = vadd.f32 0.0, %v2184
        %v2186 = vpop.f32.mrb[0].mxu0
        %v2187 = vpop.f32.mrb[0].mxu0
        %2188 = vdwg.mxu0
        %2189 = vmatprep.subr.bf16.mxu0 %v2064
        %2190 = vmatpush1.bf16.msra.mxu0 %v2061
        %2191 = vmatprep.subr.bf16.mxu0 0
        %2192 = vmatpush1.bf16.msra.mxu0 0
        %2193 = vmatprep.subr.bf16.mxu0 0
        %2194 = vmatpush1.bf16.msra.mxu0 0
        %2195 = vmatprep.subr.bf16.mxu0 0
        %2196 = vmatpush1.bf16.msra.mxu0 0
        %2197 = vmatprep.subr.bf16.mxu0 0
        %2198 = vmatpush1.bf16.msra.mxu0 0
        %2199 = vmatprep.subr.bf16.mxu0 0
        %2200 = vmatpush1.bf16.msra.mxu0 0
        %2201 = vmatprep.subr.bf16.mxu0 0
        %2202 = vmatpush1.bf16.msra.mxu0 0
        %2203 = vmatprep.subr.bf16.mxu0 0
        %2204 = vmatpush1.bf16.msra.mxu0 0
        %2205 = vmatprep.subr.bf16.mxu0 0
        %2206 = vmatpush1.bf16.msra.mxu0 0
        %2207 = vmatprep.subr.bf16.mxu0 0
        %2208 = vmatpush1.bf16.msra.mxu0 0
        %2209 = vmatprep.subr.bf16.mxu0 0
        %2210 = vmatpush1.bf16.msra.mxu0 0
        %2211 = vmatprep.subr.bf16.mxu0 0
        %2212 = vmatpush1.bf16.msra.mxu0 0
        %2213 = vmatprep.subr.bf16.mxu0 0
        %2214 = vmatpush1.bf16.msra.mxu0 0
        %2215 = vmatprep.subr.bf16.mxu0 0
        %2216 = vmatpush1.bf16.msra.mxu0 0
        %2217 = vmatprep.subr.bf16.mxu0 0
        %2218 = vmatpush1.bf16.msra.mxu0 0
        %2219 = vmatprep.subr.bf16.mxu0 0
        %2220 = vmatpush1.bf16.msra.mxu0 0
        %2221 = vmatprep.mubr.bf16.mxu0 0
        %2222 = vmatmul.mubr.bf16.gmra.mrb[0].mxu0 %v2040
        %v2223 = vpop.f32.mrb[0].mxu0
        %v2224 = vadd.f32 0.0, %v2223
        %v2225 = vpop.f32.mrb[0].mxu0
        %v2226 = vadd.f32 0.0, %v2225
        %v2227 = vpop.f32.mrb[0].mxu0
        %v2228 = vpop.f32.mrb[0].mxu0
        %2229 = vdwg.mxu0
        %v2230 = vadd.f32 %v1996, %v2101
        %v2231 = vadd.f32 %v1997, %v2103
        %v2232 = vadd.f32 %v1998, %v2142
        %v2233 = vadd.f32 %v1999, %v2144
        %v2234 = vadd.f32 %v2000, %v2183
        %v2235 = vadd.f32 %v2001, %v2185
        %v2236 = vadd.f32 %v2002, %v2224
        %v2237 = vadd.f32 %v2003, %v2226
        %2238 = vrot.lane.b32.xlu0 %v385, 93
        %v2239 = vpop.permute.xlu0 %2238
        %2240 = vrot.lane.b32.xlu0 %v393, 93
        %v2241 = vpop.permute.xlu0 %2240
        %2242 = vrot.lane.b32.xlu0 %v386, 93
        %v2243 = vpop.permute.xlu0 %2242
        %2244 = vrot.lane.b32.xlu0 %v394, 93
        %v2245 = vpop.permute.xlu0 %2244
        %2246 = vrot.lane.b32.xlu0 %v387, 93
        %v2247 = vpop.permute.xlu0 %2246
        %2248 = vrot.lane.b32.xlu0 %v395, 93
        %v2249 = vpop.permute.xlu0 %2248
        %2250 = vrot.lane.b32.xlu0 %v388, 93
        %v2251 = vpop.permute.xlu0 %2250
        %2252 = vrot.lane.b32.xlu0 %v396, 93
        %v2253 = vpop.permute.xlu0 %2252
        %vm2254 = vcmp.lt.s32.totalorder %v427, 93
        %v2255 = vsel %vm2254, %v2251, %v2253
        %v2256 = vsel %vm2254, %v2249, %v2251
        %v2257 = vsel %vm2254, %v2247, %v2249
        %v2258 = vsel %vm2254, %v2245, %v2247
        %v2259 = vsel %vm2254, %v2243, %v2245
        %v2260 = vsel %vm2254, %v2241, %v2243
        %v2261 = vsel %vm2254, %v2239, %v2241
        %v2262 = vsel %vm2254, %v2253, %v2239
        %v2263 = vpack.c.bf16 %v2261, %v2261
        %v2264 = vpack.c.bf16 %v2260, %v2260
        %v2265 = vpack.c.bf16 %v2259, %v2259
        %v2266 = vpack.c.bf16 %v2258, %v2258
        %v2267 = vpack.c.bf16 %v2257, %v2257
        %v2268 = vpack.c.bf16 %v2256, %v2256
        %v2269 = vpack.c.bf16 %v2255, %v2255
        %v2270 = vpack.c.bf16 %v2262, %v2262
        %s2271 = scalar_lea.vmem %s1, 32
        %v2272 = vld [vmem:[%s2271] sm:$0x7]
        %v2274 = vsel %vm447, %v2272, 0
        %v2277 = vand.u32 %v2263, %v454
        %v2280 = vand.u32 %v2264, %v454
        %v2283 = vand.u32 %v2265, %v454
        %v2286 = vand.u32 %v2266, %v454
        %v2289 = vand.u32 %v2267, %v454
        %v2292 = vand.u32 %v2268, %v454
        %v2295 = vand.u32 %v2269, %v454
        %v2298 = vand.u32 %v2270, %v454
        %2300 = vmatprep.subr.bf16.mxu0 %v2280
        %2301 = vmatpush1.bf16.msra.mxu0 %v2277
        %2302 = vmatprep.subr.bf16.mxu0 0
        %2303 = vmatpush1.bf16.msra.mxu0 0
        %2304 = vmatprep.subr.bf16.mxu0 0
        %2305 = vmatpush1.bf16.msra.mxu0 0
        %2306 = vmatprep.subr.bf16.mxu0 0
        %2307 = vmatpush1.bf16.msra.mxu0 0
        %2308 = vmatprep.subr.bf16.mxu0 0
        %2309 = vmatpush1.bf16.msra.mxu0 0
        %2310 = vmatprep.subr.bf16.mxu0 0
        %2311 = vmatpush1.bf16.msra.mxu0 0
        %2312 = vmatprep.subr.bf16.mxu0 0
        %2313 = vmatpush1.bf16.msra.mxu0 0
        %2314 = vmatprep.subr.bf16.mxu0 0
        %2315 = vmatpush1.bf16.msra.mxu0 0
        %2316 = vmatprep.subr.bf16.mxu0 0
        %2317 = vmatpush1.bf16.msra.mxu0 0
        %2318 = vmatprep.subr.bf16.mxu0 0
        %2319 = vmatpush1.bf16.msra.mxu0 0
        %2320 = vmatprep.subr.bf16.mxu0 0
        %2321 = vmatpush1.bf16.msra.mxu0 0
        %2322 = vmatprep.subr.bf16.mxu0 0
        %2323 = vmatpush1.bf16.msra.mxu0 0
        %2324 = vmatprep.subr.bf16.mxu0 0
        %2325 = vmatpush1.bf16.msra.mxu0 0
        %2326 = vmatprep.subr.bf16.mxu0 0
        %2327 = vmatpush1.bf16.msra.mxu0 0
        %2328 = vmatprep.subr.bf16.mxu0 0
        %2329 = vmatpush1.bf16.msra.mxu0 0
        %2330 = vmatprep.subr.bf16.mxu0 0
        %2331 = vmatpush1.bf16.msra.mxu0 0
        %2332 = vmatprep.mubr.bf16.mxu0 0
        %2333 = vmatmul.mubr.bf16.gmra.mrb[0].mxu0 %v2274
        %v2334 = vpop.f32.mrb[0].mxu0
        %v2335 = vadd.f32 0.0, %v2334
        %v2336 = vpop.f32.mrb[0].mxu0
        %v2337 = vadd.f32 0.0, %v2336
        %v2338 = vpop.f32.mrb[0].mxu0
        %v2339 = vpop.f32.mrb[0].mxu0
        %2340 = vdwg.mxu0
        %2341 = vmatprep.subr.bf16.mxu0 %v2286
        %2342 = vmatpush1.bf16.msra.mxu0 %v2283
        %2343 = vmatprep.subr.bf16.mxu0 0
        %2344 = vmatpush1.bf16.msra.mxu0 0
        %2345 = vmatprep.subr.bf16.mxu0 0
        %2346 = vmatpush1.bf16.msra.mxu0 0
        %2347 = vmatprep.subr.bf16.mxu0 0
        %2348 = vmatpush1.bf16.msra.mxu0 0
        %2349 = vmatprep.subr.bf16.mxu0 0
        %2350 = vmatpush1.bf16.msra.mxu0 0
        %2351 = vmatprep.subr.bf16.mxu0 0
        %2352 = vmatpush1.bf16.msra.mxu0 0
        %2353 = vmatprep.subr.bf16.mxu0 0
        %2354 = vmatpush1.bf16.msra.mxu0 0
        %2355 = vmatprep.subr.bf16.mxu0 0
        %2356 = vmatpush1.bf16.msra.mxu0 0
        %2357 = vmatprep.subr.bf16.mxu0 0
        %2358 = vmatpush1.bf16.msra.mxu0 0
        %2359 = vmatprep.subr.bf16.mxu0 0
        %2360 = vmatpush1.bf16.msra.mxu0 0
        %2361 = vmatprep.subr.bf16.mxu0 0
        %2362 = vmatpush1.bf16.msra.mxu0 0
        %2363 = vmatprep.subr.bf16.mxu0 0
        %2364 = vmatpush1.bf16.msra.mxu0 0
        %2365 = vmatprep.subr.bf16.mxu0 0
        %2366 = vmatpush1.bf16.msra.mxu0 0
        %2367 = vmatprep.subr.bf16.mxu0 0
        %2368 = vmatpush1.bf16.msra.mxu0 0
        %2369 = vmatprep.subr.bf16.mxu0 0
        %2370 = vmatpush1.bf16.msra.mxu0 0
        %2371 = vmatprep.subr.bf16.mxu0 0
        %2372 = vmatpush1.bf16.msra.mxu0 0
        %2373 = vmatprep.mubr.bf16.mxu0 0
        %2374 = vmatmul.mubr.bf16.gmra.mrb[0].mxu0 %v2274
        %v2375 = vpop.f32.mrb[0].mxu0
        %v2376 = vadd.f32 0.0, %v2375
        %v2377 = vpop.f32.mrb[0].mxu0
        %v2378 = vadd.f32 0.0, %v2377
        %v2379 = vpop.f32.mrb[0].mxu0
        %v2380 = vpop.f32.mrb[0].mxu0
        %2381 = vdwg.mxu0
        %2382 = vmatprep.subr.bf16.mxu0 %v2292
        %2383 = vmatpush1.bf16.msra.mxu0 %v2289
        %2384 = vmatprep.subr.bf16.mxu0 0
        %2385 = vmatpush1.bf16.msra.mxu0 0
        %2386 = vmatprep.subr.bf16.mxu0 0
        %2387 = vmatpush1.bf16.msra.mxu0 0
        %2388 = vmatprep.subr.bf16.mxu0 0
        %2389 = vmatpush1.bf16.msra.mxu0 0
        %2390 = vmatprep.subr.bf16.mxu0 0
        %2391 = vmatpush1.bf16.msra.mxu0 0
        %2392 = vmatprep.subr.bf16.mxu0 0
        %2393 = vmatpush1.bf16.msra.mxu0 0
        %2394 = vmatprep.subr.bf16.mxu0 0
        %2395 = vmatpush1.bf16.msra.mxu0 0
        %2396 = vmatprep.subr.bf16.mxu0 0
        %2397 = vmatpush1.bf16.msra.mxu0 0
        %2398 = vmatprep.subr.bf16.mxu0 0
        %2399 = vmatpush1.bf16.msra.mxu0 0
        %2400 = vmatprep.subr.bf16.mxu0 0
        %2401 = vmatpush1.bf16.msra.mxu0 0
        %2402 = vmatprep.subr.bf16.mxu0 0
        %2403 = vmatpush1.bf16.msra.mxu0 0
        %2404 = vmatprep.subr.bf16.mxu0 0
        %2405 = vmatpush1.bf16.msra.mxu0 0
        %2406 = vmatprep.subr.bf16.mxu0 0
        %2407 = vmatpush1.bf16.msra.mxu0 0
        %2408 = vmatprep.subr.bf16.mxu0 0
        %2409 = vmatpush1.bf16.msra.mxu0 0
        %2410 = vmatprep.subr.bf16.mxu0 0
        %2411 = vmatpush1.bf16.msra.mxu0 0
        %2412 = vmatprep.subr.bf16.mxu0 0
        %2413 = vmatpush1.bf16.msra.mxu0 0
        %2414 = vmatprep.mubr.bf16.mxu0 0
        %2415 = vmatmul.mubr.bf16.gmra.mrb[0].mxu0 %v2274
        %v2416 = vpop.f32.mrb[0].mxu0
        %v2417 = vadd.f32 0.0, %v2416
        %v2418 = vpop.f32.mrb[0].mxu0
        %v2419 = vadd.f32 0.0, %v2418
        %v2420 = vpop.f32.mrb[0].mxu0
        %v2421 = vpop.f32.mrb[0].mxu0
        %2422 = vdwg.mxu0
        %2423 = vmatprep.subr.bf16.mxu0 %v2298
        %2424 = vmatpush1.bf16.msra.mxu0 %v2295
        %2425 = vmatprep.subr.bf16.mxu0 0
        %2426 = vmatpush1.bf16.msra.mxu0 0
        %2427 = vmatprep.subr.bf16.mxu0 0
        %2428 = vmatpush1.bf16.msra.mxu0 0
        %2429 = vmatprep.subr.bf16.mxu0 0
        %2430 = vmatpush1.bf16.msra.mxu0 0
        %2431 = vmatprep.subr.bf16.mxu0 0
        %2432 = vmatpush1.bf16.msra.mxu0 0
        %2433 = vmatprep.subr.bf16.mxu0 0
        %2434 = vmatpush1.bf16.msra.mxu0 0
        %2435 = vmatprep.subr.bf16.mxu0 0
        %2436 = vmatpush1.bf16.msra.mxu0 0
        %2437 = vmatprep.subr.bf16.mxu0 0
        %2438 = vmatpush1.bf16.msra.mxu0 0
        %2439 = vmatprep.subr.bf16.mxu0 0
        %2440 = vmatpush1.bf16.msra.mxu0 0
        %2441 = vmatprep.subr.bf16.mxu0 0
        %2442 = vmatpush1.bf16.msra.mxu0 0
        %2443 = vmatprep.subr.bf16.mxu0 0
        %2444 = vmatpush1.bf16.msra.mxu0 0
        %2445 = vmatprep.subr.bf16.mxu0 0
        %2446 = vmatpush1.bf16.msra.mxu0 0
        %2447 = vmatprep.subr.bf16.mxu0 0
        %2448 = vmatpush1.bf16.msra.mxu0 0
        %2449 = vmatprep.subr.bf16.mxu0 0
        %2450 = vmatpush1.bf16.msra.mxu0 0
        %2451 = vmatprep.subr.bf16.mxu0 0
        %2452 = vmatpush1.bf16.msra.mxu0 0
        %2453 = vmatprep.subr.bf16.mxu0 0
        %2454 = vmatpush1.bf16.msra.mxu0 0
        %2455 = vmatprep.mubr.bf16.mxu0 0
        %2456 = vmatmul.mubr.bf16.gmra.mrb[0].mxu0 %v2274
        %v2457 = vpop.f32.mrb[0].mxu0
        %v2458 = vadd.f32 0.0, %v2457
        %v2459 = vpop.f32.mrb[0].mxu0
        %v2460 = vadd.f32 0.0, %v2459
        %v2461 = vpop.f32.mrb[0].mxu0
        %v2462 = vpop.f32.mrb[0].mxu0
        %2463 = vdwg.mxu0
        %v2464 = vadd.f32 %v2230, %v2335
        %v2465 = vadd.f32 %v2231, %v2337
        %v2466 = vadd.f32 %v2232, %v2376
        %v2467 = vadd.f32 %v2233, %v2378
        %v2468 = vadd.f32 %v2234, %v2417
        %v2469 = vadd.f32 %v2235, %v2419
        %v2470 = vadd.f32 %v2236, %v2458
        %v2471 = vadd.f32 %v2237, %v2460
        %2472 = vrot.lane.b32.xlu0 %v385, 92
        %v2473 = vpop.permute.xlu0 %2472
        %2474 = vrot.lane.b32.xlu0 %v393, 92
        %v2475 = vpop.permute.xlu0 %2474
        %2476 = vrot.lane.b32.xlu0 %v386, 92
        %v2477 = vpop.permute.xlu0 %2476
        %2478 = vrot.lane.b32.xlu0 %v394, 92
        %v2479 = vpop.permute.xlu0 %2478
        %2480 = vrot.lane.b32.xlu0 %v387, 92
        %v2481 = vpop.permute.xlu0 %2480
        %2482 = vrot.lane.b32.xlu0 %v395, 92
        %v2483 = vpop.permute.xlu0 %2482
        %2484 = vrot.lane.b32.xlu0 %v388, 92
        %v2485 = vpop.permute.xlu0 %2484
        %2486 = vrot.lane.b32.xlu0 %v396, 92
        %v2487 = vpop.permute.xlu0 %2486
        %vm2488 = vcmp.lt.s32.totalorder %v427, 92
        %v2489 = vsel %vm2488, %v2485, %v2487
        %v2490 = vsel %vm2488, %v2483, %v2485
        %v2491 = vsel %vm2488, %v2481, %v2483
        %v2492 = vsel %vm2488, %v2479, %v2481
        %v2493 = vsel %vm2488, %v2477, %v2479
        %v2494 = vsel %vm2488, %v2475, %v2477
        %v2495 = vsel %vm2488, %v2473, %v2475
        %v2496 = vsel %vm2488, %v2487, %v2473
        %v2497 = vpack.c.bf16 %v2495, %v2495
        %v2498 = vpack.c.bf16 %v2494, %v2494
        %v2499 = vpack.c.bf16 %v2493, %v2493
        %v2500 = vpack.c.bf16 %v2492, %v2492
        %v2501 = vpack.c.bf16 %v2491, %v2491
        %v2502 = vpack.c.bf16 %v2490, %v2490
        %v2503 = vpack.c.bf16 %v2489, %v2489
        %v2504 = vpack.c.bf16 %v2496, %v2496
        %s2505 = scalar_lea.vmem %s1, 36
        %v2506 = vld [vmem:[%s2505] sm:$0x7]
        %v2508 = vsel %vm447, %v2506, 0
        %v2511 = vand.u32 %v2497, %v454
        %v2514 = vand.u32 %v2498, %v454
        %v2517 = vand.u32 %v2499, %v454
        %v2520 = vand.u32 %v2500, %v454
        %v2523 = vand.u32 %v2501, %v454
        %v2526 = vand.u32 %v2502, %v454
        %v2529 = vand.u32 %v2503, %v454
        %v2532 = vand.u32 %v2504, %v454
        %2534 = vmatprep.subr.bf16.mxu0 %v2514
        %2535 = vmatpush1.bf16.msra.mxu0 %v2511
        %2536 = vmatprep.subr.bf16.mxu0 0
        %2537 = vmatpush1.bf16.msra.mxu0 0
        %2538 = vmatprep.subr.bf16.mxu0 0
        %2539 = vmatpush1.bf16.msra.mxu0 0
        %2540 = vmatprep.subr.bf16.mxu0 0
        %2541 = vmatpush1.bf16.msra.mxu0 0
        %2542 = vmatprep.subr.bf16.mxu0 0
        %2543 = vmatpush1.bf16.msra.mxu0 0
        %2544 = vmatprep.subr.bf16.mxu0 0
        %2545 = vmatpush1.bf16.msra.mxu0 0
        %2546 = vmatprep.subr.bf16.mxu0 0
        %2547 = vmatpush1.bf16.msra.mxu0 0
        %2548 = vmatprep.subr.bf16.mxu0 0
        %2549 = vmatpush1.bf16.msra.mxu0 0
        %2550 = vmatprep.subr.bf16.mxu0 0
        %2551 = vmatpush1.bf16.msra.mxu0 0
        %2552 = vmatprep.subr.bf16.mxu0 0
        %2553 = vmatpush1.bf16.msra.mxu0 0
        %2554 = vmatprep.subr.bf16.mxu0 0
        %2555 = vmatpush1.bf16.msra.mxu0 0
        %2556 = vmatprep.subr.bf16.mxu0 0
        %2557 = vmatpush1.bf16.msra.mxu0 0
        %2558 = vmatprep.subr.bf16.mxu0 0
        %2559 = vmatpush1.bf16.msra.mxu0 0
        %2560 = vmatprep.subr.bf16.mxu0 0
        %2561 = vmatpush1.bf16.msra.mxu0 0
        %2562 = vmatprep.subr.bf16.mxu0 0
        %2563 = vmatpush1.bf16.msra.mxu0 0
        %2564 = vmatprep.subr.bf16.mxu0 0
        %2565 = vmatpush1.bf16.msra.mxu0 0
        %2566 = vmatprep.mubr.bf16.mxu0 0
        %2567 = vmatmul.mubr.bf16.gmra.mrb[0].mxu0 %v2508
        %v2568 = vpop.f32.mrb[0].mxu0
        %v2569 = vadd.f32 0.0, %v2568
        %v2570 = vpop.f32.mrb[0].mxu0
        %v2571 = vadd.f32 0.0, %v2570
        %v2572 = vpop.f32.mrb[0].mxu0
        %v2573 = vpop.f32.mrb[0].mxu0
        %2574 = vdwg.mxu0
        %2575 = vmatprep.subr.bf16.mxu0 %v2520
        %2576 = vmatpush1.bf16.msra.mxu0 %v2517
        %2577 = vmatprep.subr.bf16.mxu0 0
        %2578 = vmatpush1.bf16.msra.mxu0 0
        %2579 = vmatprep.subr.bf16.mxu0 0
        %2580 = vmatpush1.bf16.msra.mxu0 0
        %2581 = vmatprep.subr.bf16.mxu0 0
        %2582 = vmatpush1.bf16.msra.mxu0 0
        %2583 = vmatprep.subr.bf16.mxu0 0
        %2584 = vmatpush1.bf16.msra.mxu0 0
        %2585 = vmatprep.subr.bf16.mxu0 0
        %2586 = vmatpush1.bf16.msra.mxu0 0
        %2587 = vmatprep.subr.bf16.mxu0 0
        %2588 = vmatpush1.bf16.msra.mxu0 0
        %2589 = vmatprep.subr.bf16.mxu0 0
        %2590 = vmatpush1.bf16.msra.mxu0 0
        %2591 = vmatprep.subr.bf16.mxu0 0
        %2592 = vmatpush1.bf16.msra.mxu0 0
        %2593 = vmatprep.subr.bf16.mxu0 0
        %2594 = vmatpush1.bf16.msra.mxu0 0
        %2595 = vmatprep.subr.bf16.mxu0 0
        %2596 = vmatpush1.bf16.msra.mxu0 0
        %2597 = vmatprep.subr.bf16.mxu0 0
        %2598 = vmatpush1.bf16.msra.mxu0 0
        %2599 = vmatprep.subr.bf16.mxu0 0
        %2600 = vmatpush1.bf16.msra.mxu0 0
        %2601 = vmatprep.subr.bf16.mxu0 0
        %2602 = vmatpush1.bf16.msra.mxu0 0
        %2603 = vmatprep.subr.bf16.mxu0 0
        %2604 = vmatpush1.bf16.msra.mxu0 0
        %2605 = vmatprep.subr.bf16.mxu0 0
        %2606 = vmatpush1.bf16.msra.mxu0 0
        %2607 = vmatprep.mubr.bf16.mxu0 0
        %2608 = vmatmul.mubr.bf16.gmra.mrb[0].mxu0 %v2508
        %v2609 = vpop.f32.mrb[0].mxu0
        %v2610 = vadd.f32 0.0, %v2609
        %v2611 = vpop.f32.mrb[0].mxu0
        %v2612 = vadd.f32 0.0, %v2611
        %v2613 = vpop.f32.mrb[0].mxu0
        %v2614 = vpop.f32.mrb[0].mxu0
        %2615 = vdwg.mxu0
        %2616 = vmatprep.subr.bf16.mxu0 %v2526
        %2617 = vmatpush1.bf16.msra.mxu0 %v2523
        %2618 = vmatprep.subr.bf16.mxu0 0
        %2619 = vmatpush1.bf16.msra.mxu0 0
        %2620 = vmatprep.subr.bf16.mxu0 0
        %2621 = vmatpush1.bf16.msra.mxu0 0
        %2622 = vmatprep.subr.bf16.mxu0 0
        %2623 = vmatpush1.bf16.msra.mxu0 0
        %2624 = vmatprep.subr.bf16.mxu0 0
        %2625 = vmatpush1.bf16.msra.mxu0 0
        %2626 = vmatprep.subr.bf16.mxu0 0
        %2627 = vmatpush1.bf16.msra.mxu0 0
        %2628 = vmatprep.subr.bf16.mxu0 0
        %2629 = vmatpush1.bf16.msra.mxu0 0
        %2630 = vmatprep.subr.bf16.mxu0 0
        %2631 = vmatpush1.bf16.msra.mxu0 0
        %2632 = vmatprep.subr.bf16.mxu0 0
        %2633 = vmatpush1.bf16.msra.mxu0 0
        %2634 = vmatprep.subr.bf16.mxu0 0
        %2635 = vmatpush1.bf16.msra.mxu0 0
        %2636 = vmatprep.subr.bf16.mxu0 0
        %2637 = vmatpush1.bf16.msra.mxu0 0
        %2638 = vmatprep.subr.bf16.mxu0 0
        %2639 = vmatpush1.bf16.msra.mxu0 0
        %2640 = vmatprep.subr.bf16.mxu0 0
        %2641 = vmatpush1.bf16.msra.mxu0 0
        %2642 = vmatprep.subr.bf16.mxu0 0
        %2643 = vmatpush1.bf16.msra.mxu0 0
        %2644 = vmatprep.subr.bf16.mxu0 0
        %2645 = vmatpush1.bf16.msra.mxu0 0
        %2646 = vmatprep.subr.bf16.mxu0 0
        %2647 = vmatpush1.bf16.msra.mxu0 0
        %2648 = vmatprep.mubr.bf16.mxu0 0
        %2649 = vmatmul.mubr.bf16.gmra.mrb[0].mxu0 %v2508
        %v2650 = vpop.f32.mrb[0].mxu0
        %v2651 = vadd.f32 0.0, %v2650
        %v2652 = vpop.f32.mrb[0].mxu0
        %v2653 = vadd.f32 0.0, %v2652
        %v2654 = vpop.f32.mrb[0].mxu0
        %v2655 = vpop.f32.mrb[0].mxu0
        %2656 = vdwg.mxu0
        %2657 = vmatprep.subr.bf16.mxu0 %v2532
        %2658 = vmatpush1.bf16.msra.mxu0 %v2529
        %2659 = vmatprep.subr.bf16.mxu0 0
        %2660 = vmatpush1.bf16.msra.mxu0 0
        %2661 = vmatprep.subr.bf16.mxu0 0
        %2662 = vmatpush1.bf16.msra.mxu0 0
        %2663 = vmatprep.subr.bf16.mxu0 0
        %2664 = vmatpush1.bf16.msra.mxu0 0
        %2665 = vmatprep.subr.bf16.mxu0 0
        %2666 = vmatpush1.bf16.msra.mxu0 0
        %2667 = vmatprep.subr.bf16.mxu0 0
        %2668 = vmatpush1.bf16.msra.mxu0 0
        %2669 = vmatprep.subr.bf16.mxu0 0
        %2670 = vmatpush1.bf16.msra.mxu0 0
        %2671 = vmatprep.subr.bf16.mxu0 0
        %2672 = vmatpush1.bf16.msra.mxu0 0
        %2673 = vmatprep.subr.bf16.mxu0 0
        %2674 = vmatpush1.bf16.msra.mxu0 0
        %2675 = vmatprep.subr.bf16.mxu0 0
        %2676 = vmatpush1.bf16.msra.mxu0 0
        %2677 = vmatprep.subr.bf16.mxu0 0
        %2678 = vmatpush1.bf16.msra.mxu0 0
        %2679 = vmatprep.subr.bf16.mxu0 0
        %2680 = vmatpush1.bf16.msra.mxu0 0
        %2681 = vmatprep.subr.bf16.mxu0 0
        %2682 = vmatpush1.bf16.msra.mxu0 0
        %2683 = vmatprep.subr.bf16.mxu0 0
        %2684 = vmatpush1.bf16.msra.mxu0 0
        %2685 = vmatprep.subr.bf16.mxu0 0
        %2686 = vmatpush1.bf16.msra.mxu0 0
        %2687 = vmatprep.subr.bf16.mxu0 0
        %2688 = vmatpush1.bf16.msra.mxu0 0
        %2689 = vmatprep.mubr.bf16.mxu0 0
        %2690 = vmatmul.mubr.bf16.gmra.mrb[0].mxu0 %v2508
        %v2691 = vpop.f32.mrb[0].mxu0
        %v2692 = vadd.f32 0.0, %v2691
        %v2693 = vpop.f32.mrb[0].mxu0
        %v2694 = vadd.f32 0.0, %v2693
        %v2695 = vpop.f32.mrb[0].mxu0
        %v2696 = vpop.f32.mrb[0].mxu0
        %2697 = vdwg.mxu0
        %v2698 = vadd.f32 %v2464, %v2569
        %v2699 = vadd.f32 %v2465, %v2571
        %v2700 = vadd.f32 %v2466, %v2610
        %v2701 = vadd.f32 %v2467, %v2612
        %v2702 = vadd.f32 %v2468, %v2651
        %v2703 = vadd.f32 %v2469, %v2653
        %v2704 = vadd.f32 %v2470, %v2692
        %v2705 = vadd.f32 %v2471, %v2694
        %2706 = vrot.lane.b32.xlu0 %v385, 64
        %v2707 = vpop.permute.xlu0 %2706
        %2708 = vrot.lane.b32.xlu0 %v393, 64
        %v2709 = vpop.permute.xlu0 %2708
        %2710 = vrot.lane.b32.xlu0 %v386, 64
        %v2711 = vpop.permute.xlu0 %2710
        %2712 = vrot.lane.b32.xlu0 %v394, 64
        %v2713 = vpop.permute.xlu0 %2712
        %2714 = vrot.lane.b32.xlu0 %v387, 64
        %v2715 = vpop.permute.xlu0 %2714
        %2716 = vrot.lane.b32.xlu0 %v395, 64
        %v2717 = vpop.permute.xlu0 %2716
        %2718 = vrot.lane.b32.xlu0 %v388, 64
        %v2719 = vpop.permute.xlu0 %2718
        %2720 = vrot.lane.b32.xlu0 %v396, 64
        %v2721 = vpop.permute.xlu0 %2720
        %vm2722 = vcmp.lt.s32.totalorder %v427, 64
        %v2723 = vsel %vm2722, %v2719, %v2721
        %v2724 = vsel %vm2722, %v2717, %v2719
        %v2725 = vsel %vm2722, %v2715, %v2717
        %v2726 = vsel %vm2722, %v2713, %v2715
        %v2727 = vsel %vm2722, %v2711, %v2713
        %v2728 = vsel %vm2722, %v2709, %v2711
        %v2729 = vsel %vm2722, %v2707, %v2709
        %v2730 = vsel %vm2722, %v2721, %v2707
        %v2731 = vpack.c.bf16 %v2729, %v2729
        %v2732 = vpack.c.bf16 %v2728, %v2728
        %v2733 = vpack.c.bf16 %v2727, %v2727
        %v2734 = vpack.c.bf16 %v2726, %v2726
        %v2735 = vpack.c.bf16 %v2725, %v2725
        %v2736 = vpack.c.bf16 %v2724, %v2724
        %v2737 = vpack.c.bf16 %v2723, %v2723
        %v2738 = vpack.c.bf16 %v2730, %v2730
        %s2739 = scalar_lea.vmem %s1, 40
        %v2740 = vld [vmem:[%s2739] sm:$0x7]
        %v2742 = vsel %vm447, %v2740, 0
        %v2745 = vand.u32 %v2731, %v454
        %v2748 = vand.u32 %v2732, %v454
        %v2751 = vand.u32 %v2733, %v454
        %v2754 = vand.u32 %v2734, %v454
        %v2757 = vand.u32 %v2735, %v454
        %v2760 = vand.u32 %v2736, %v454
        %v2763 = vand.u32 %v2737, %v454
        %v2766 = vand.u32 %v2738, %v454
        %2768 = vmatprep.subr.bf16.mxu0 %v2748
        %2769 = vmatpush1.bf16.msra.mxu0 %v2745
        %2770 = vmatprep.subr.bf16.mxu0 0
        %2771 = vmatpush1.bf16.msra.mxu0 0
        %2772 = vmatprep.subr.bf16.mxu0 0
        %2773 = vmatpush1.bf16.msra.mxu0 0
        %2774 = vmatprep.subr.bf16.mxu0 0
        %2775 = vmatpush1.bf16.msra.mxu0 0
        %2776 = vmatprep.subr.bf16.mxu0 0
        %2777 = vmatpush1.bf16.msra.mxu0 0
        %2778 = vmatprep.subr.bf16.mxu0 0
        %2779 = vmatpush1.bf16.msra.mxu0 0
        %2780 = vmatprep.subr.bf16.mxu0 0
        %2781 = vmatpush1.bf16.msra.mxu0 0
        %2782 = vmatprep.subr.bf16.mxu0 0
        %2783 = vmatpush1.bf16.msra.mxu0 0
        %2784 = vmatprep.subr.bf16.mxu0 0
        %2785 = vmatpush1.bf16.msra.mxu0 0
        %2786 = vmatprep.subr.bf16.mxu0 0
        %2787 = vmatpush1.bf16.msra.mxu0 0
        %2788 = vmatprep.subr.bf16.mxu0 0
        %2789 = vmatpush1.bf16.msra.mxu0 0
        %2790 = vmatprep.subr.bf16.mxu0 0
        %2791 = vmatpush1.bf16.msra.mxu0 0
        %2792 = vmatprep.subr.bf16.mxu0 0
        %2793 = vmatpush1.bf16.msra.mxu0 0
        %2794 = vmatprep.subr.bf16.mxu0 0
        %2795 = vmatpush1.bf16.msra.mxu0 0
        %2796 = vmatprep.subr.bf16.mxu0 0
        %2797 = vmatpush1.bf16.msra.mxu0 0
        %2798 = vmatprep.subr.bf16.mxu0 0
        %2799 = vmatpush1.bf16.msra.mxu0 0
        %2800 = vmatprep.mubr.bf16.mxu0 0
        %2801 = vmatmul.mubr.bf16.gmra.mrb[0].mxu0 %v2742
        %v2802 = vpop.f32.mrb[0].mxu0
        %v2803 = vadd.f32 0.0, %v2802
        %v2804 = vpop.f32.mrb[0].mxu0
        %v2805 = vadd.f32 0.0, %v2804
        %v2806 = vpop.f32.mrb[0].mxu0
        %v2807 = vpop.f32.mrb[0].mxu0
        %2808 = vdwg.mxu0
        %2809 = vmatprep.subr.bf16.mxu0 %v2754
        %2810 = vmatpush1.bf16.msra.mxu0 %v2751
        %2811 = vmatprep.subr.bf16.mxu0 0
        %2812 = vmatpush1.bf16.msra.mxu0 0
        %2813 = vmatprep.subr.bf16.mxu0 0
        %2814 = vmatpush1.bf16.msra.mxu0 0
        %2815 = vmatprep.subr.bf16.mxu0 0
        %2816 = vmatpush1.bf16.msra.mxu0 0
        %2817 = vmatprep.subr.bf16.mxu0 0
        %2818 = vmatpush1.bf16.msra.mxu0 0
        %2819 = vmatprep.subr.bf16.mxu0 0
        %2820 = vmatpush1.bf16.msra.mxu0 0
        %2821 = vmatprep.subr.bf16.mxu0 0
        %2822 = vmatpush1.bf16.msra.mxu0 0
        %2823 = vmatprep.subr.bf16.mxu0 0
        %2824 = vmatpush1.bf16.msra.mxu0 0
        %2825 = vmatprep.subr.bf16.mxu0 0
        %2826 = vmatpush1.bf16.msra.mxu0 0
        %2827 = vmatprep.subr.bf16.mxu0 0
        %2828 = vmatpush1.bf16.msra.mxu0 0
        %2829 = vmatprep.subr.bf16.mxu0 0
        %2830 = vmatpush1.bf16.msra.mxu0 0
        %2831 = vmatprep.subr.bf16.mxu0 0
        %2832 = vmatpush1.bf16.msra.mxu0 0
        %2833 = vmatprep.subr.bf16.mxu0 0
        %2834 = vmatpush1.bf16.msra.mxu0 0
        %2835 = vmatprep.subr.bf16.mxu0 0
        %2836 = vmatpush1.bf16.msra.mxu0 0
        %2837 = vmatprep.subr.bf16.mxu0 0
        %2838 = vmatpush1.bf16.msra.mxu0 0
        %2839 = vmatprep.subr.bf16.mxu0 0
        %2840 = vmatpush1.bf16.msra.mxu0 0
        %2841 = vmatprep.mubr.bf16.mxu0 0
        %2842 = vmatmul.mubr.bf16.gmra.mrb[0].mxu0 %v2742
        %v2843 = vpop.f32.mrb[0].mxu0
        %v2844 = vadd.f32 0.0, %v2843
        %v2845 = vpop.f32.mrb[0].mxu0
        %v2846 = vadd.f32 0.0, %v2845
        %v2847 = vpop.f32.mrb[0].mxu0
        %v2848 = vpop.f32.mrb[0].mxu0
        %2849 = vdwg.mxu0
        %2850 = vmatprep.subr.bf16.mxu0 %v2760
        %2851 = vmatpush1.bf16.msra.mxu0 %v2757
        %2852 = vmatprep.subr.bf16.mxu0 0
        %2853 = vmatpush1.bf16.msra.mxu0 0
        %2854 = vmatprep.subr.bf16.mxu0 0
        %2855 = vmatpush1.bf16.msra.mxu0 0
        %2856 = vmatprep.subr.bf16.mxu0 0
        %2857 = vmatpush1.bf16.msra.mxu0 0
        %2858 = vmatprep.subr.bf16.mxu0 0
        %2859 = vmatpush1.bf16.msra.mxu0 0
        %2860 = vmatprep.subr.bf16.mxu0 0
        %2861 = vmatpush1.bf16.msra.mxu0 0
        %2862 = vmatprep.subr.bf16.mxu0 0
        %2863 = vmatpush1.bf16.msra.mxu0 0
        %2864 = vmatprep.subr.bf16.mxu0 0
        %2865 = vmatpush1.bf16.msra.mxu0 0
        %2866 = vmatprep.subr.bf16.mxu0 0
        %2867 = vmatpush1.bf16.msra.mxu0 0
        %2868 = vmatprep.subr.bf16.mxu0 0
        %2869 = vmatpush1.bf16.msra.mxu0 0
        %2870 = vmatprep.subr.bf16.mxu0 0
        %2871 = vmatpush1.bf16.msra.mxu0 0
        %2872 = vmatprep.subr.bf16.mxu0 0
        %2873 = vmatpush1.bf16.msra.mxu0 0
        %2874 = vmatprep.subr.bf16.mxu0 0
        %2875 = vmatpush1.bf16.msra.mxu0 0
        %2876 = vmatprep.subr.bf16.mxu0 0
        %2877 = vmatpush1.bf16.msra.mxu0 0
        %2878 = vmatprep.subr.bf16.mxu0 0
        %2879 = vmatpush1.bf16.msra.mxu0 0
        %2880 = vmatprep.subr.bf16.mxu0 0
        %2881 = vmatpush1.bf16.msra.mxu0 0
        %2882 = vmatprep.mubr.bf16.mxu0 0
        %2883 = vmatmul.mubr.bf16.gmra.mrb[0].mxu0 %v2742
        %v2884 = vpop.f32.mrb[0].mxu0
        %v2885 = vadd.f32 0.0, %v2884
        %v2886 = vpop.f32.mrb[0].mxu0
        %v2887 = vadd.f32 0.0, %v2886
        %v2888 = vpop.f32.mrb[0].mxu0
        %v2889 = vpop.f32.mrb[0].mxu0
        %2890 = vdwg.mxu0
        %2891 = vmatprep.subr.bf16.mxu0 %v2766
        %2892 = vmatpush1.bf16.msra.mxu0 %v2763
        %2893 = vmatprep.subr.bf16.mxu0 0
        %2894 = vmatpush1.bf16.msra.mxu0 0
        %2895 = vmatprep.subr.bf16.mxu0 0
        %2896 = vmatpush1.bf16.msra.mxu0 0
        %2897 = vmatprep.subr.bf16.mxu0 0
        %2898 = vmatpush1.bf16.msra.mxu0 0
        %2899 = vmatprep.subr.bf16.mxu0 0
        %2900 = vmatpush1.bf16.msra.mxu0 0
        %2901 = vmatprep.subr.bf16.mxu0 0
        %2902 = vmatpush1.bf16.msra.mxu0 0
        %2903 = vmatprep.subr.bf16.mxu0 0
        %2904 = vmatpush1.bf16.msra.mxu0 0
        %2905 = vmatprep.subr.bf16.mxu0 0
        %2906 = vmatpush1.bf16.msra.mxu0 0
        %2907 = vmatprep.subr.bf16.mxu0 0
        %2908 = vmatpush1.bf16.msra.mxu0 0
        %2909 = vmatprep.subr.bf16.mxu0 0
        %2910 = vmatpush1.bf16.msra.mxu0 0
        %2911 = vmatprep.subr.bf16.mxu0 0
        %2912 = vmatpush1.bf16.msra.mxu0 0
        %2913 = vmatprep.subr.bf16.mxu0 0
        %2914 = vmatpush1.bf16.msra.mxu0 0
        %2915 = vmatprep.subr.bf16.mxu0 0
        %2916 = vmatpush1.bf16.msra.mxu0 0
        %2917 = vmatprep.subr.bf16.mxu0 0
        %2918 = vmatpush1.bf16.msra.mxu0 0
        %2919 = vmatprep.subr.bf16.mxu0 0
        %2920 = vmatpush1.bf16.msra.mxu0 0
        %2921 = vmatprep.subr.bf16.mxu0 0
        %2922 = vmatpush1.bf16.msra.mxu0 0
        %2923 = vmatprep.mubr.bf16.mxu0 0
        %2924 = vmatmul.mubr.bf16.gmra.mrb[0].mxu0 %v2742
        %v2925 = vpop.f32.mrb[0].mxu0
        %v2926 = vadd.f32 0.0, %v2925
        %v2927 = vpop.f32.mrb[0].mxu0
        %v2928 = vadd.f32 0.0, %v2927
        %v2929 = vpop.f32.mrb[0].mxu0
        %v2930 = vpop.f32.mrb[0].mxu0
        %2931 = vdwg.mxu0
        %v2932 = vadd.f32 %v2698, %v2803
        %v2933 = vadd.f32 %v2699, %v2805
        %v2934 = vadd.f32 %v2700, %v2844
        %v2935 = vadd.f32 %v2701, %v2846
        %v2936 = vadd.f32 %v2702, %v2885
        %v2937 = vadd.f32 %v2703, %v2887
        %v2938 = vadd.f32 %v2704, %v2926
        %v2939 = vadd.f32 %v2705, %v2928
        %2940 = vrot.lane.b32.xlu0 %v385, 63
        %v2941 = vpop.permute.xlu0 %2940
        %2942 = vrot.lane.b32.xlu0 %v393, 63
        %v2943 = vpop.permute.xlu0 %2942
        %2944 = vrot.lane.b32.xlu0 %v386, 63
        %v2945 = vpop.permute.xlu0 %2944
        %2946 = vrot.lane.b32.xlu0 %v394, 63
        %v2947 = vpop.permute.xlu0 %2946
        %2948 = vrot.lane.b32.xlu0 %v387, 63
        %v2949 = vpop.permute.xlu0 %2948
        %2950 = vrot.lane.b32.xlu0 %v395, 63
        %v2951 = vpop.permute.xlu0 %2950
        %2952 = vrot.lane.b32.xlu0 %v388, 63
        %v2953 = vpop.permute.xlu0 %2952
        %2954 = vrot.lane.b32.xlu0 %v396, 63
        %v2955 = vpop.permute.xlu0 %2954
        %vm2956 = vcmp.lt.s32.totalorder %v427, 63
        %v2957 = vsel %vm2956, %v2953, %v2955
        %v2958 = vsel %vm2956, %v2951, %v2953
        %v2959 = vsel %vm2956, %v2949, %v2951
        %v2960 = vsel %vm2956, %v2947, %v2949
        %v2961 = vsel %vm2956, %v2945, %v2947
        %v2962 = vsel %vm2956, %v2943, %v2945
        %v2963 = vsel %vm2956, %v2941, %v2943
        %v2964 = vsel %vm2956, %v2955, %v2941
        %v2965 = vpack.c.bf16 %v2963, %v2963
        %v2966 = vpack.c.bf16 %v2962, %v2962
        %v2967 = vpack.c.bf16 %v2961, %v2961
        %v2968 = vpack.c.bf16 %v2960, %v2960
        %v2969 = vpack.c.bf16 %v2959, %v2959
        %v2970 = vpack.c.bf16 %v2958, %v2958
        %v2971 = vpack.c.bf16 %v2957, %v2957
        %v2972 = vpack.c.bf16 %v2964, %v2964
        %s2973 = scalar_lea.vmem %s1, 44
        %v2974 = vld [vmem:[%s2973] sm:$0x7]
        %v2976 = vsel %vm447, %v2974, 0
        %v2979 = vand.u32 %v2965, %v454
        %v2982 = vand.u32 %v2966, %v454
        %v2985 = vand.u32 %v2967, %v454
        %v2988 = vand.u32 %v2968, %v454
        %v2991 = vand.u32 %v2969, %v454
        %v2994 = vand.u32 %v2970, %v454
        %v2997 = vand.u32 %v2971, %v454
        %v3000 = vand.u32 %v2972, %v454
        %3002 = vmatprep.subr.bf16.mxu0 %v2982
        %3003 = vmatpush1.bf16.msra.mxu0 %v2979
        %3004 = vmatprep.subr.bf16.mxu0 0
        %3005 = vmatpush1.bf16.msra.mxu0 0
        %3006 = vmatprep.subr.bf16.mxu0 0
        %3007 = vmatpush1.bf16.msra.mxu0 0
        %3008 = vmatprep.subr.bf16.mxu0 0
        %3009 = vmatpush1.bf16.msra.mxu0 0
        %3010 = vmatprep.subr.bf16.mxu0 0
        %3011 = vmatpush1.bf16.msra.mxu0 0
        %3012 = vmatprep.subr.bf16.mxu0 0
        %3013 = vmatpush1.bf16.msra.mxu0 0
        %3014 = vmatprep.subr.bf16.mxu0 0
        %3015 = vmatpush1.bf16.msra.mxu0 0
        %3016 = vmatprep.subr.bf16.mxu0 0
        %3017 = vmatpush1.bf16.msra.mxu0 0
        %3018 = vmatprep.subr.bf16.mxu0 0
        %3019 = vmatpush1.bf16.msra.mxu0 0
        %3020 = vmatprep.subr.bf16.mxu0 0
        %3021 = vmatpush1.bf16.msra.mxu0 0
        %3022 = vmatprep.subr.bf16.mxu0 0
        %3023 = vmatpush1.bf16.msra.mxu0 0
        %3024 = vmatprep.subr.bf16.mxu0 0
        %3025 = vmatpush1.bf16.msra.mxu0 0
        %3026 = vmatprep.subr.bf16.mxu0 0
        %3027 = vmatpush1.bf16.msra.mxu0 0
        %3028 = vmatprep.subr.bf16.mxu0 0
        %3029 = vmatpush1.bf16.msra.mxu0 0
        %3030 = vmatprep.subr.bf16.mxu0 0
        %3031 = vmatpush1.bf16.msra.mxu0 0
        %3032 = vmatprep.subr.bf16.mxu0 0
        %3033 = vmatpush1.bf16.msra.mxu0 0
        %3034 = vmatprep.mubr.bf16.mxu0 0
        %3035 = vmatmul.mubr.bf16.gmra.mrb[0].mxu0 %v2976
        %v3036 = vpop.f32.mrb[0].mxu0
        %v3037 = vadd.f32 0.0, %v3036
        %v3038 = vpop.f32.mrb[0].mxu0
        %v3039 = vadd.f32 0.0, %v3038
        %v3040 = vpop.f32.mrb[0].mxu0
        %v3041 = vpop.f32.mrb[0].mxu0
        %3042 = vdwg.mxu0
        %3043 = vmatprep.subr.bf16.mxu0 %v2988
        %3044 = vmatpush1.bf16.msra.mxu0 %v2985
        %3045 = vmatprep.subr.bf16.mxu0 0
        %3046 = vmatpush1.bf16.msra.mxu0 0
        %3047 = vmatprep.subr.bf16.mxu0 0
        %3048 = vmatpush1.bf16.msra.mxu0 0
        %3049 = vmatprep.subr.bf16.mxu0 0
        %3050 = vmatpush1.bf16.msra.mxu0 0
        %3051 = vmatprep.subr.bf16.mxu0 0
        %3052 = vmatpush1.bf16.msra.mxu0 0
        %3053 = vmatprep.subr.bf16.mxu0 0
        %3054 = vmatpush1.bf16.msra.mxu0 0
        %3055 = vmatprep.subr.bf16.mxu0 0
        %3056 = vmatpush1.bf16.msra.mxu0 0
        %3057 = vmatprep.subr.bf16.mxu0 0
        %3058 = vmatpush1.bf16.msra.mxu0 0
        %3059 = vmatprep.subr.bf16.mxu0 0
        %3060 = vmatpush1.bf16.msra.mxu0 0
        %3061 = vmatprep.subr.bf16.mxu0 0
        %3062 = vmatpush1.bf16.msra.mxu0 0
        %3063 = vmatprep.subr.bf16.mxu0 0
        %3064 = vmatpush1.bf16.msra.mxu0 0
        %3065 = vmatprep.subr.bf16.mxu0 0
        %3066 = vmatpush1.bf16.msra.mxu0 0
        %3067 = vmatprep.subr.bf16.mxu0 0
        %3068 = vmatpush1.bf16.msra.mxu0 0
        %3069 = vmatprep.subr.bf16.mxu0 0
        %3070 = vmatpush1.bf16.msra.mxu0 0
        %3071 = vmatprep.subr.bf16.mxu0 0
        %3072 = vmatpush1.bf16.msra.mxu0 0
        %3073 = vmatprep.subr.bf16.mxu0 0
        %3074 = vmatpush1.bf16.msra.mxu0 0
        %3075 = vmatprep.mubr.bf16.mxu0 0
        %3076 = vmatmul.mubr.bf16.gmra.mrb[0].mxu0 %v2976
        %v3077 = vpop.f32.mrb[0].mxu0
        %v3078 = vadd.f32 0.0, %v3077
        %v3079 = vpop.f32.mrb[0].mxu0
        %v3080 = vadd.f32 0.0, %v3079
        %v3081 = vpop.f32.mrb[0].mxu0
        %v3082 = vpop.f32.mrb[0].mxu0
        %3083 = vdwg.mxu0
        %3084 = vmatprep.subr.bf16.mxu0 %v2994
        %3085 = vmatpush1.bf16.msra.mxu0 %v2991
        %3086 = vmatprep.subr.bf16.mxu0 0
        %3087 = vmatpush1.bf16.msra.mxu0 0
        %3088 = vmatprep.subr.bf16.mxu0 0
        %3089 = vmatpush1.bf16.msra.mxu0 0
        %3090 = vmatprep.subr.bf16.mxu0 0
        %3091 = vmatpush1.bf16.msra.mxu0 0
        %3092 = vmatprep.subr.bf16.mxu0 0
        %3093 = vmatpush1.bf16.msra.mxu0 0
        %3094 = vmatprep.subr.bf16.mxu0 0
        %3095 = vmatpush1.bf16.msra.mxu0 0
        %3096 = vmatprep.subr.bf16.mxu0 0
        %3097 = vmatpush1.bf16.msra.mxu0 0
        %3098 = vmatprep.subr.bf16.mxu0 0
        %3099 = vmatpush1.bf16.msra.mxu0 0
        %3100 = vmatprep.subr.bf16.mxu0 0
        %3101 = vmatpush1.bf16.msra.mxu0 0
        %3102 = vmatprep.subr.bf16.mxu0 0
        %3103 = vmatpush1.bf16.msra.mxu0 0
        %3104 = vmatprep.subr.bf16.mxu0 0
        %3105 = vmatpush1.bf16.msra.mxu0 0
        %3106 = vmatprep.subr.bf16.mxu0 0
        %3107 = vmatpush1.bf16.msra.mxu0 0
        %3108 = vmatprep.subr.bf16.mxu0 0
        %3109 = vmatpush1.bf16.msra.mxu0 0
        %3110 = vmatprep.subr.bf16.mxu0 0
        %3111 = vmatpush1.bf16.msra.mxu0 0
        %3112 = vmatprep.subr.bf16.mxu0 0
        %3113 = vmatpush1.bf16.msra.mxu0 0
        %3114 = vmatprep.subr.bf16.mxu0 0
        %3115 = vmatpush1.bf16.msra.mxu0 0
        %3116 = vmatprep.mubr.bf16.mxu0 0
        %3117 = vmatmul.mubr.bf16.gmra.mrb[0].mxu0 %v2976
        %v3118 = vpop.f32.mrb[0].mxu0
        %v3119 = vadd.f32 0.0, %v3118
        %v3120 = vpop.f32.mrb[0].mxu0
        %v3121 = vadd.f32 0.0, %v3120
        %v3122 = vpop.f32.mrb[0].mxu0
        %v3123 = vpop.f32.mrb[0].mxu0
        %3124 = vdwg.mxu0
        %3125 = vmatprep.subr.bf16.mxu0 %v3000
        %3126 = vmatpush1.bf16.msra.mxu0 %v2997
        %3127 = vmatprep.subr.bf16.mxu0 0
        %3128 = vmatpush1.bf16.msra.mxu0 0
        %3129 = vmatprep.subr.bf16.mxu0 0
        %3130 = vmatpush1.bf16.msra.mxu0 0
        %3131 = vmatprep.subr.bf16.mxu0 0
        %3132 = vmatpush1.bf16.msra.mxu0 0
        %3133 = vmatprep.subr.bf16.mxu0 0
        %3134 = vmatpush1.bf16.msra.mxu0 0
        %3135 = vmatprep.subr.bf16.mxu0 0
        %3136 = vmatpush1.bf16.msra.mxu0 0
        %3137 = vmatprep.subr.bf16.mxu0 0
        %3138 = vmatpush1.bf16.msra.mxu0 0
        %3139 = vmatprep.subr.bf16.mxu0 0
        %3140 = vmatpush1.bf16.msra.mxu0 0
        %3141 = vmatprep.subr.bf16.mxu0 0
        %3142 = vmatpush1.bf16.msra.mxu0 0
        %3143 = vmatprep.subr.bf16.mxu0 0
        %3144 = vmatpush1.bf16.msra.mxu0 0
        %3145 = vmatprep.subr.bf16.mxu0 0
        %3146 = vmatpush1.bf16.msra.mxu0 0
        %3147 = vmatprep.subr.bf16.mxu0 0
        %3148 = vmatpush1.bf16.msra.mxu0 0
        %3149 = vmatprep.subr.bf16.mxu0 0
        %3150 = vmatpush1.bf16.msra.mxu0 0
        %3151 = vmatprep.subr.bf16.mxu0 0
        %3152 = vmatpush1.bf16.msra.mxu0 0
        %3153 = vmatprep.subr.bf16.mxu0 0
        %3154 = vmatpush1.bf16.msra.mxu0 0
        %3155 = vmatprep.subr.bf16.mxu0 0
        %3156 = vmatpush1.bf16.msra.mxu0 0
        %3157 = vmatprep.mubr.bf16.mxu0 0
        %3158 = vmatmul.mubr.bf16.gmra.mrb[0].mxu0 %v2976
        %v3159 = vpop.f32.mrb[0].mxu0
        %v3160 = vadd.f32 0.0, %v3159
        %v3161 = vpop.f32.mrb[0].mxu0
        %v3162 = vadd.f32 0.0, %v3161
        %v3163 = vpop.f32.mrb[0].mxu0
        %v3164 = vpop.f32.mrb[0].mxu0
        %3165 = vdwg.mxu0
        %v3166 = vadd.f32 %v2932, %v3037
        %v3167 = vadd.f32 %v2933, %v3039
        %v3168 = vadd.f32 %v2934, %v3078
        %v3169 = vadd.f32 %v2935, %v3080
        %v3170 = vadd.f32 %v2936, %v3119
        %v3171 = vadd.f32 %v2937, %v3121
        %v3172 = vadd.f32 %v2938, %v3160
        %v3173 = vadd.f32 %v2939, %v3162
        %3174 = vrot.lane.b32.xlu0 %v385, 62
        %v3175 = vpop.permute.xlu0 %3174
        %3176 = vrot.lane.b32.xlu0 %v393, 62
        %v3177 = vpop.permute.xlu0 %3176
        %3178 = vrot.lane.b32.xlu0 %v386, 62
        %v3179 = vpop.permute.xlu0 %3178
        %3180 = vrot.lane.b32.xlu0 %v394, 62
        %v3181 = vpop.permute.xlu0 %3180
        %3182 = vrot.lane.b32.xlu0 %v387, 62
        %v3183 = vpop.permute.xlu0 %3182
        %3184 = vrot.lane.b32.xlu0 %v395, 62
        %v3185 = vpop.permute.xlu0 %3184
        %3186 = vrot.lane.b32.xlu0 %v388, 62
        %v3187 = vpop.permute.xlu0 %3186
        %3188 = vrot.lane.b32.xlu0 %v396, 62
        %v3189 = vpop.permute.xlu0 %3188
        %vm3190 = vcmp.lt.s32.totalorder %v427, 62
        %v3191 = vsel %vm3190, %v3187, %v3189
        %v3192 = vsel %vm3190, %v3185, %v3187
        %v3193 = vsel %vm3190, %v3183, %v3185
        %v3194 = vsel %vm3190, %v3181, %v3183
        %v3195 = vsel %vm3190, %v3179, %v3181
        %v3196 = vsel %vm3190, %v3177, %v3179
        %v3197 = vsel %vm3190, %v3175, %v3177
        %v3198 = vsel %vm3190, %v3189, %v3175
        %v3199 = vpack.c.bf16 %v3197, %v3197
        %v3200 = vpack.c.bf16 %v3196, %v3196
        %v3201 = vpack.c.bf16 %v3195, %v3195
        %v3202 = vpack.c.bf16 %v3194, %v3194
        %v3203 = vpack.c.bf16 %v3193, %v3193
        %v3204 = vpack.c.bf16 %v3192, %v3192
        %v3205 = vpack.c.bf16 %v3191, %v3191
        %v3206 = vpack.c.bf16 %v3198, %v3198
        %s3207 = scalar_lea.vmem %s1, 48
        %v3208 = vld [vmem:[%s3207] sm:$0x7]
        %v3210 = vsel %vm447, %v3208, 0
        %v3213 = vand.u32 %v3199, %v454
        %v3216 = vand.u32 %v3200, %v454
        %v3219 = vand.u32 %v3201, %v454
        %v3222 = vand.u32 %v3202, %v454
        %v3225 = vand.u32 %v3203, %v454
        %v3228 = vand.u32 %v3204, %v454
        %v3231 = vand.u32 %v3205, %v454
        %v3234 = vand.u32 %v3206, %v454
        %3236 = vmatprep.subr.bf16.mxu0 %v3216
        %3237 = vmatpush1.bf16.msra.mxu0 %v3213
        %3238 = vmatprep.subr.bf16.mxu0 0
        %3239 = vmatpush1.bf16.msra.mxu0 0
        %3240 = vmatprep.subr.bf16.mxu0 0
        %3241 = vmatpush1.bf16.msra.mxu0 0
        %3242 = vmatprep.subr.bf16.mxu0 0
        %3243 = vmatpush1.bf16.msra.mxu0 0
        %3244 = vmatprep.subr.bf16.mxu0 0
        %3245 = vmatpush1.bf16.msra.mxu0 0
        %3246 = vmatprep.subr.bf16.mxu0 0
        %3247 = vmatpush1.bf16.msra.mxu0 0
        %3248 = vmatprep.subr.bf16.mxu0 0
        %3249 = vmatpush1.bf16.msra.mxu0 0
        %3250 = vmatprep.subr.bf16.mxu0 0
        %3251 = vmatpush1.bf16.msra.mxu0 0
        %3252 = vmatprep.subr.bf16.mxu0 0
        %3253 = vmatpush1.bf16.msra.mxu0 0
        %3254 = vmatprep.subr.bf16.mxu0 0
        %3255 = vmatpush1.bf16.msra.mxu0 0
        %3256 = vmatprep.subr.bf16.mxu0 0
        %3257 = vmatpush1.bf16.msra.mxu0 0
        %3258 = vmatprep.subr.bf16.mxu0 0
        %3259 = vmatpush1.bf16.msra.mxu0 0
        %3260 = vmatprep.subr.bf16.mxu0 0
        %3261 = vmatpush1.bf16.msra.mxu0 0
        %3262 = vmatprep.subr.bf16.mxu0 0
        %3263 = vmatpush1.bf16.msra.mxu0 0
        %3264 = vmatprep.subr.bf16.mxu0 0
        %3265 = vmatpush1.bf16.msra.mxu0 0
        %3266 = vmatprep.subr.bf16.mxu0 0
        %3267 = vmatpush1.bf16.msra.mxu0 0
        %3268 = vmatprep.mubr.bf16.mxu0 0
        %3269 = vmatmul.mubr.bf16.gmra.mrb[0].mxu0 %v3210
        %v3270 = vpop.f32.mrb[0].mxu0
        %v3271 = vadd.f32 0.0, %v3270
        %v3272 = vpop.f32.mrb[0].mxu0
        %v3273 = vadd.f32 0.0, %v3272
        %v3274 = vpop.f32.mrb[0].mxu0
        %v3275 = vpop.f32.mrb[0].mxu0
        %3276 = vdwg.mxu0
        %3277 = vmatprep.subr.bf16.mxu0 %v3222
        %3278 = vmatpush1.bf16.msra.mxu0 %v3219
        %3279 = vmatprep.subr.bf16.mxu0 0
        %3280 = vmatpush1.bf16.msra.mxu0 0
        %3281 = vmatprep.subr.bf16.mxu0 0
        %3282 = vmatpush1.bf16.msra.mxu0 0
        %3283 = vmatprep.subr.bf16.mxu0 0
        %3284 = vmatpush1.bf16.msra.mxu0 0
        %3285 = vmatprep.subr.bf16.mxu0 0
        %3286 = vmatpush1.bf16.msra.mxu0 0
        %3287 = vmatprep.subr.bf16.mxu0 0
        %3288 = vmatpush1.bf16.msra.mxu0 0
        %3289 = vmatprep.subr.bf16.mxu0 0
        %3290 = vmatpush1.bf16.msra.mxu0 0
        %3291 = vmatprep.subr.bf16.mxu0 0
        %3292 = vmatpush1.bf16.msra.mxu0 0
        %3293 = vmatprep.subr.bf16.mxu0 0
        %3294 = vmatpush1.bf16.msra.mxu0 0
        %3295 = vmatprep.subr.bf16.mxu0 0
        %3296 = vmatpush1.bf16.msra.mxu0 0
        %3297 = vmatprep.subr.bf16.mxu0 0
        %3298 = vmatpush1.bf16.msra.mxu0 0
        %3299 = vmatprep.subr.bf16.mxu0 0
        %3300 = vmatpush1.bf16.msra.mxu0 0
        %3301 = vmatprep.subr.bf16.mxu0 0
        %3302 = vmatpush1.bf16.msra.mxu0 0
        %3303 = vmatprep.subr.bf16.mxu0 0
        %3304 = vmatpush1.bf16.msra.mxu0 0
        %3305 = vmatprep.subr.bf16.mxu0 0
        %3306 = vmatpush1.bf16.msra.mxu0 0
        %3307 = vmatprep.subr.bf16.mxu0 0
        %3308 = vmatpush1.bf16.msra.mxu0 0
        %3309 = vmatprep.mubr.bf16.mxu0 0
        %3310 = vmatmul.mubr.bf16.gmra.mrb[0].mxu0 %v3210
        %v3311 = vpop.f32.mrb[0].mxu0
        %v3312 = vadd.f32 0.0, %v3311
        %v3313 = vpop.f32.mrb[0].mxu0
        %v3314 = vadd.f32 0.0, %v3313
        %v3315 = vpop.f32.mrb[0].mxu0
        %v3316 = vpop.f32.mrb[0].mxu0
        %3317 = vdwg.mxu0
        %3318 = vmatprep.subr.bf16.mxu0 %v3228
        %3319 = vmatpush1.bf16.msra.mxu0 %v3225
        %3320 = vmatprep.subr.bf16.mxu0 0
        %3321 = vmatpush1.bf16.msra.mxu0 0
        %3322 = vmatprep.subr.bf16.mxu0 0
        %3323 = vmatpush1.bf16.msra.mxu0 0
        %3324 = vmatprep.subr.bf16.mxu0 0
        %3325 = vmatpush1.bf16.msra.mxu0 0
        %3326 = vmatprep.subr.bf16.mxu0 0
        %3327 = vmatpush1.bf16.msra.mxu0 0
        %3328 = vmatprep.subr.bf16.mxu0 0
        %3329 = vmatpush1.bf16.msra.mxu0 0
        %3330 = vmatprep.subr.bf16.mxu0 0
        %3331 = vmatpush1.bf16.msra.mxu0 0
        %3332 = vmatprep.subr.bf16.mxu0 0
        %3333 = vmatpush1.bf16.msra.mxu0 0
        %3334 = vmatprep.subr.bf16.mxu0 0
        %3335 = vmatpush1.bf16.msra.mxu0 0
        %3336 = vmatprep.subr.bf16.mxu0 0
        %3337 = vmatpush1.bf16.msra.mxu0 0
        %3338 = vmatprep.subr.bf16.mxu0 0
        %3339 = vmatpush1.bf16.msra.mxu0 0
        %3340 = vmatprep.subr.bf16.mxu0 0
        %3341 = vmatpush1.bf16.msra.mxu0 0
        %3342 = vmatprep.subr.bf16.mxu0 0
        %3343 = vmatpush1.bf16.msra.mxu0 0
        %3344 = vmatprep.subr.bf16.mxu0 0
        %3345 = vmatpush1.bf16.msra.mxu0 0
        %3346 = vmatprep.subr.bf16.mxu0 0
        %3347 = vmatpush1.bf16.msra.mxu0 0
        %3348 = vmatprep.subr.bf16.mxu0 0
        %3349 = vmatpush1.bf16.msra.mxu0 0
        %3350 = vmatprep.mubr.bf16.mxu0 0
        %3351 = vmatmul.mubr.bf16.gmra.mrb[0].mxu0 %v3210
        %v3352 = vpop.f32.mrb[0].mxu0
        %v3353 = vadd.f32 0.0, %v3352
        %v3354 = vpop.f32.mrb[0].mxu0
        %v3355 = vadd.f32 0.0, %v3354
        %v3356 = vpop.f32.mrb[0].mxu0
        %v3357 = vpop.f32.mrb[0].mxu0
        %3358 = vdwg.mxu0
        %3359 = vmatprep.subr.bf16.mxu0 %v3234
        %3360 = vmatpush1.bf16.msra.mxu0 %v3231
        %3361 = vmatprep.subr.bf16.mxu0 0
        %3362 = vmatpush1.bf16.msra.mxu0 0
        %3363 = vmatprep.subr.bf16.mxu0 0
        %3364 = vmatpush1.bf16.msra.mxu0 0
        %3365 = vmatprep.subr.bf16.mxu0 0
        %3366 = vmatpush1.bf16.msra.mxu0 0
        %3367 = vmatprep.subr.bf16.mxu0 0
        %3368 = vmatpush1.bf16.msra.mxu0 0
        %3369 = vmatprep.subr.bf16.mxu0 0
        %3370 = vmatpush1.bf16.msra.mxu0 0
        %3371 = vmatprep.subr.bf16.mxu0 0
        %3372 = vmatpush1.bf16.msra.mxu0 0
        %3373 = vmatprep.subr.bf16.mxu0 0
        %3374 = vmatpush1.bf16.msra.mxu0 0
        %3375 = vmatprep.subr.bf16.mxu0 0
        %3376 = vmatpush1.bf16.msra.mxu0 0
        %3377 = vmatprep.subr.bf16.mxu0 0
        %3378 = vmatpush1.bf16.msra.mxu0 0
        %3379 = vmatprep.subr.bf16.mxu0 0
        %3380 = vmatpush1.bf16.msra.mxu0 0
        %3381 = vmatprep.subr.bf16.mxu0 0
        %3382 = vmatpush1.bf16.msra.mxu0 0
        %3383 = vmatprep.subr.bf16.mxu0 0
        %3384 = vmatpush1.bf16.msra.mxu0 0
        %3385 = vmatprep.subr.bf16.mxu0 0
        %3386 = vmatpush1.bf16.msra.mxu0 0
        %3387 = vmatprep.subr.bf16.mxu0 0
        %3388 = vmatpush1.bf16.msra.mxu0 0
        %3389 = vmatprep.subr.bf16.mxu0 0
        %3390 = vmatpush1.bf16.msra.mxu0 0
        %3391 = vmatprep.mubr.bf16.mxu0 0
        %3392 = vmatmul.mubr.bf16.gmra.mrb[0].mxu0 %v3210
        %v3393 = vpop.f32.mrb[0].mxu0
        %v3394 = vadd.f32 0.0, %v3393
        %v3395 = vpop.f32.mrb[0].mxu0
        %v3396 = vadd.f32 0.0, %v3395
        %v3397 = vpop.f32.mrb[0].mxu0
        %v3398 = vpop.f32.mrb[0].mxu0
        %3399 = vdwg.mxu0
        %v3400 = vadd.f32 %v3166, %v3271
        %v3401 = vadd.f32 %v3167, %v3273
        %v3402 = vadd.f32 %v3168, %v3312
        %v3403 = vadd.f32 %v3169, %v3314
        %v3404 = vadd.f32 %v3170, %v3353
        %v3405 = vadd.f32 %v3171, %v3355
        %v3406 = vadd.f32 %v3172, %v3394
        %v3407 = vadd.f32 %v3173, %v3396
        %3408 = vrot.lane.b32.xlu0 %v385, 61
        %v3409 = vpop.permute.xlu0 %3408
        %3410 = vrot.lane.b32.xlu0 %v393, 61
        %v3411 = vpop.permute.xlu0 %3410
        %3412 = vrot.lane.b32.xlu0 %v386, 61
        %v3413 = vpop.permute.xlu0 %3412
        %3414 = vrot.lane.b32.xlu0 %v394, 61
        %v3415 = vpop.permute.xlu0 %3414
        %3416 = vrot.lane.b32.xlu0 %v387, 61
        %v3417 = vpop.permute.xlu0 %3416
        %3418 = vrot.lane.b32.xlu0 %v395, 61
        %v3419 = vpop.permute.xlu0 %3418
        %3420 = vrot.lane.b32.xlu0 %v388, 61
        %v3421 = vpop.permute.xlu0 %3420
        %3422 = vrot.lane.b32.xlu0 %v396, 61
        %v3423 = vpop.permute.xlu0 %3422
        %vm3424 = vcmp.lt.s32.totalorder %v427, 61
        %v3425 = vsel %vm3424, %v3421, %v3423
        %v3426 = vsel %vm3424, %v3419, %v3421
        %v3427 = vsel %vm3424, %v3417, %v3419
        %v3428 = vsel %vm3424, %v3415, %v3417
        %v3429 = vsel %vm3424, %v3413, %v3415
        %v3430 = vsel %vm3424, %v3411, %v3413
        %v3431 = vsel %vm3424, %v3409, %v3411
        %v3432 = vsel %vm3424, %v3423, %v3409
        %v3433 = vpack.c.bf16 %v3431, %v3431
        %v3434 = vpack.c.bf16 %v3430, %v3430
        %v3435 = vpack.c.bf16 %v3429, %v3429
        %v3436 = vpack.c.bf16 %v3428, %v3428
        %v3437 = vpack.c.bf16 %v3427, %v3427
        %v3438 = vpack.c.bf16 %v3426, %v3426
        %v3439 = vpack.c.bf16 %v3425, %v3425
        %v3440 = vpack.c.bf16 %v3432, %v3432
        %s3441 = scalar_lea.vmem %s1, 52
        %v3442 = vld [vmem:[%s3441] sm:$0x7]
        %v3444 = vsel %vm447, %v3442, 0
        %v3447 = vand.u32 %v3433, %v454
        %v3450 = vand.u32 %v3434, %v454
        %v3453 = vand.u32 %v3435, %v454
        %v3456 = vand.u32 %v3436, %v454
        %v3459 = vand.u32 %v3437, %v454
        %v3462 = vand.u32 %v3438, %v454
        %v3465 = vand.u32 %v3439, %v454
        %v3468 = vand.u32 %v3440, %v454
        %3470 = vmatprep.subr.bf16.mxu0 %v3450
        %3471 = vmatpush1.bf16.msra.mxu0 %v3447
        %3472 = vmatprep.subr.bf16.mxu0 0
        %3473 = vmatpush1.bf16.msra.mxu0 0
        %3474 = vmatprep.subr.bf16.mxu0 0
        %3475 = vmatpush1.bf16.msra.mxu0 0
        %3476 = vmatprep.subr.bf16.mxu0 0
        %3477 = vmatpush1.bf16.msra.mxu0 0
        %3478 = vmatprep.subr.bf16.mxu0 0
        %3479 = vmatpush1.bf16.msra.mxu0 0
        %3480 = vmatprep.subr.bf16.mxu0 0
        %3481 = vmatpush1.bf16.msra.mxu0 0
        %3482 = vmatprep.subr.bf16.mxu0 0
        %3483 = vmatpush1.bf16.msra.mxu0 0
        %3484 = vmatprep.subr.bf16.mxu0 0
        %3485 = vmatpush1.bf16.msra.mxu0 0
        %3486 = vmatprep.subr.bf16.mxu0 0
        %3487 = vmatpush1.bf16.msra.mxu0 0
        %3488 = vmatprep.subr.bf16.mxu0 0
        %3489 = vmatpush1.bf16.msra.mxu0 0
        %3490 = vmatprep.subr.bf16.mxu0 0
        %3491 = vmatpush1.bf16.msra.mxu0 0
        %3492 = vmatprep.subr.bf16.mxu0 0
        %3493 = vmatpush1.bf16.msra.mxu0 0
        %3494 = vmatprep.subr.bf16.mxu0 0
        %3495 = vmatpush1.bf16.msra.mxu0 0
        %3496 = vmatprep.subr.bf16.mxu0 0
        %3497 = vmatpush1.bf16.msra.mxu0 0
        %3498 = vmatprep.subr.bf16.mxu0 0
        %3499 = vmatpush1.bf16.msra.mxu0 0
        %3500 = vmatprep.subr.bf16.mxu0 0
        %3501 = vmatpush1.bf16.msra.mxu0 0
        %3502 = vmatprep.mubr.bf16.mxu0 0
        %3503 = vmatmul.mubr.bf16.gmra.mrb[0].mxu0 %v3444
        %v3504 = vpop.f32.mrb[0].mxu0
        %v3505 = vadd.f32 0.0, %v3504
        %v3506 = vpop.f32.mrb[0].mxu0
        %v3507 = vadd.f32 0.0, %v3506
        %v3508 = vpop.f32.mrb[0].mxu0
        %v3509 = vpop.f32.mrb[0].mxu0
        %3510 = vdwg.mxu0
        %3511 = vmatprep.subr.bf16.mxu0 %v3456
        %3512 = vmatpush1.bf16.msra.mxu0 %v3453
        %3513 = vmatprep.subr.bf16.mxu0 0
        %3514 = vmatpush1.bf16.msra.mxu0 0
        %3515 = vmatprep.subr.bf16.mxu0 0
        %3516 = vmatpush1.bf16.msra.mxu0 0
        %3517 = vmatprep.subr.bf16.mxu0 0
        %3518 = vmatpush1.bf16.msra.mxu0 0
        %3519 = vmatprep.subr.bf16.mxu0 0
        %3520 = vmatpush1.bf16.msra.mxu0 0
        %3521 = vmatprep.subr.bf16.mxu0 0
        %3522 = vmatpush1.bf16.msra.mxu0 0
        %3523 = vmatprep.subr.bf16.mxu0 0
        %3524 = vmatpush1.bf16.msra.mxu0 0
        %3525 = vmatprep.subr.bf16.mxu0 0
        %3526 = vmatpush1.bf16.msra.mxu0 0
        %3527 = vmatprep.subr.bf16.mxu0 0
        %3528 = vmatpush1.bf16.msra.mxu0 0
        %3529 = vmatprep.subr.bf16.mxu0 0
        %3530 = vmatpush1.bf16.msra.mxu0 0
        %3531 = vmatprep.subr.bf16.mxu0 0
        %3532 = vmatpush1.bf16.msra.mxu0 0
        %3533 = vmatprep.subr.bf16.mxu0 0
        %3534 = vmatpush1.bf16.msra.mxu0 0
        %3535 = vmatprep.subr.bf16.mxu0 0
        %3536 = vmatpush1.bf16.msra.mxu0 0
        %3537 = vmatprep.subr.bf16.mxu0 0
        %3538 = vmatpush1.bf16.msra.mxu0 0
        %3539 = vmatprep.subr.bf16.mxu0 0
        %3540 = vmatpush1.bf16.msra.mxu0 0
        %3541 = vmatprep.subr.bf16.mxu0 0
        %3542 = vmatpush1.bf16.msra.mxu0 0
        %3543 = vmatprep.mubr.bf16.mxu0 0
        %3544 = vmatmul.mubr.bf16.gmra.mrb[0].mxu0 %v3444
        %v3545 = vpop.f32.mrb[0].mxu0
        %v3546 = vadd.f32 0.0, %v3545
        %v3547 = vpop.f32.mrb[0].mxu0
        %v3548 = vadd.f32 0.0, %v3547
        %v3549 = vpop.f32.mrb[0].mxu0
        %v3550 = vpop.f32.mrb[0].mxu0
        %3551 = vdwg.mxu0
        %3552 = vmatprep.subr.bf16.mxu0 %v3462
        %3553 = vmatpush1.bf16.msra.mxu0 %v3459
        %3554 = vmatprep.subr.bf16.mxu0 0
        %3555 = vmatpush1.bf16.msra.mxu0 0
        %3556 = vmatprep.subr.bf16.mxu0 0
        %3557 = vmatpush1.bf16.msra.mxu0 0
        %3558 = vmatprep.subr.bf16.mxu0 0
        %3559 = vmatpush1.bf16.msra.mxu0 0
        %3560 = vmatprep.subr.bf16.mxu0 0
        %3561 = vmatpush1.bf16.msra.mxu0 0
        %3562 = vmatprep.subr.bf16.mxu0 0
        %3563 = vmatpush1.bf16.msra.mxu0 0
        %3564 = vmatprep.subr.bf16.mxu0 0
        %3565 = vmatpush1.bf16.msra.mxu0 0
        %3566 = vmatprep.subr.bf16.mxu0 0
        %3567 = vmatpush1.bf16.msra.mxu0 0
        %3568 = vmatprep.subr.bf16.mxu0 0
        %3569 = vmatpush1.bf16.msra.mxu0 0
        %3570 = vmatprep.subr.bf16.mxu0 0
        %3571 = vmatpush1.bf16.msra.mxu0 0
        %3572 = vmatprep.subr.bf16.mxu0 0
        %3573 = vmatpush1.bf16.msra.mxu0 0
        %3574 = vmatprep.subr.bf16.mxu0 0
        %3575 = vmatpush1.bf16.msra.mxu0 0
        %3576 = vmatprep.subr.bf16.mxu0 0
        %3577 = vmatpush1.bf16.msra.mxu0 0
        %3578 = vmatprep.subr.bf16.mxu0 0
        %3579 = vmatpush1.bf16.msra.mxu0 0
        %3580 = vmatprep.subr.bf16.mxu0 0
        %3581 = vmatpush1.bf16.msra.mxu0 0
        %3582 = vmatprep.subr.bf16.mxu0 0
        %3583 = vmatpush1.bf16.msra.mxu0 0
        %3584 = vmatprep.mubr.bf16.mxu0 0
        %3585 = vmatmul.mubr.bf16.gmra.mrb[0].mxu0 %v3444
        %v3586 = vpop.f32.mrb[0].mxu0
        %v3587 = vadd.f32 0.0, %v3586
        %v3588 = vpop.f32.mrb[0].mxu0
        %v3589 = vadd.f32 0.0, %v3588
        %v3590 = vpop.f32.mrb[0].mxu0
        %v3591 = vpop.f32.mrb[0].mxu0
        %3592 = vdwg.mxu0
        %3593 = vmatprep.subr.bf16.mxu0 %v3468
        %3594 = vmatpush1.bf16.msra.mxu0 %v3465
        %3595 = vmatprep.subr.bf16.mxu0 0
        %3596 = vmatpush1.bf16.msra.mxu0 0
        %3597 = vmatprep.subr.bf16.mxu0 0
        %3598 = vmatpush1.bf16.msra.mxu0 0
        %3599 = vmatprep.subr.bf16.mxu0 0
        %3600 = vmatpush1.bf16.msra.mxu0 0
        %3601 = vmatprep.subr.bf16.mxu0 0
        %3602 = vmatpush1.bf16.msra.mxu0 0
        %3603 = vmatprep.subr.bf16.mxu0 0
        %3604 = vmatpush1.bf16.msra.mxu0 0
        %3605 = vmatprep.subr.bf16.mxu0 0
        %3606 = vmatpush1.bf16.msra.mxu0 0
        %3607 = vmatprep.subr.bf16.mxu0 0
        %3608 = vmatpush1.bf16.msra.mxu0 0
        %3609 = vmatprep.subr.bf16.mxu0 0
        %3610 = vmatpush1.bf16.msra.mxu0 0
        %3611 = vmatprep.subr.bf16.mxu0 0
        %3612 = vmatpush1.bf16.msra.mxu0 0
        %3613 = vmatprep.subr.bf16.mxu0 0
        %3614 = vmatpush1.bf16.msra.mxu0 0
        %3615 = vmatprep.subr.bf16.mxu0 0
        %3616 = vmatpush1.bf16.msra.mxu0 0
        %3617 = vmatprep.subr.bf16.mxu0 0
        %3618 = vmatpush1.bf16.msra.mxu0 0
        %3619 = vmatprep.subr.bf16.mxu0 0
        %3620 = vmatpush1.bf16.msra.mxu0 0
        %3621 = vmatprep.subr.bf16.mxu0 0
        %3622 = vmatpush1.bf16.msra.mxu0 0
        %3623 = vmatprep.subr.bf16.mxu0 0
        %3624 = vmatpush1.bf16.msra.mxu0 0
        %3625 = vmatprep.mubr.bf16.mxu0 0
        %3626 = vmatmul.mubr.bf16.gmra.mrb[0].mxu0 %v3444
        %v3627 = vpop.f32.mrb[0].mxu0
        %v3628 = vadd.f32 0.0, %v3627
        %v3629 = vpop.f32.mrb[0].mxu0
        %v3630 = vadd.f32 0.0, %v3629
        %v3631 = vpop.f32.mrb[0].mxu0
        %v3632 = vpop.f32.mrb[0].mxu0
        %3633 = vdwg.mxu0
        %v3634 = vadd.f32 %v3400, %v3505
        %v3635 = vadd.f32 %v3401, %v3507
        %v3636 = vadd.f32 %v3402, %v3546
        %v3637 = vadd.f32 %v3403, %v3548
        %v3638 = vadd.f32 %v3404, %v3587
        %v3639 = vadd.f32 %v3405, %v3589
        %v3640 = vadd.f32 %v3406, %v3628
        %v3641 = vadd.f32 %v3407, %v3630
        %3642 = vrot.lane.b32.xlu0 %v385, 60
        %v3643 = vpop.permute.xlu0 %3642
        %3644 = vrot.lane.b32.xlu0 %v393, 60
        %v3645 = vpop.permute.xlu0 %3644
        %3646 = vrot.lane.b32.xlu0 %v386, 60
        %v3647 = vpop.permute.xlu0 %3646
        %3648 = vrot.lane.b32.xlu0 %v394, 60
        %v3649 = vpop.permute.xlu0 %3648
        %3650 = vrot.lane.b32.xlu0 %v387, 60
        %v3651 = vpop.permute.xlu0 %3650
        %3652 = vrot.lane.b32.xlu0 %v395, 60
        %v3653 = vpop.permute.xlu0 %3652
        %3654 = vrot.lane.b32.xlu0 %v388, 60
        %v3655 = vpop.permute.xlu0 %3654
        %3656 = vrot.lane.b32.xlu0 %v396, 60
        %v3657 = vpop.permute.xlu0 %3656
        %vm3658 = vcmp.lt.s32.totalorder %v427, 60
        %v3659 = vsel %vm3658, %v3655, %v3657
        %v3660 = vsel %vm3658, %v3653, %v3655
        %v3661 = vsel %vm3658, %v3651, %v3653
        %v3662 = vsel %vm3658, %v3649, %v3651
        %v3663 = vsel %vm3658, %v3647, %v3649
        %v3664 = vsel %vm3658, %v3645, %v3647
        %v3665 = vsel %vm3658, %v3643, %v3645
        %v3666 = vsel %vm3658, %v3657, %v3643
        %v3667 = vpack.c.bf16 %v3665, %v3665
        %v3668 = vpack.c.bf16 %v3664, %v3664
        %v3669 = vpack.c.bf16 %v3663, %v3663
        %v3670 = vpack.c.bf16 %v3662, %v3662
        %v3671 = vpack.c.bf16 %v3661, %v3661
        %v3672 = vpack.c.bf16 %v3660, %v3660
        %v3673 = vpack.c.bf16 %v3659, %v3659
        %v3674 = vpack.c.bf16 %v3666, %v3666
        %s3675 = scalar_lea.vmem %s1, 56
        %v3676 = vld [vmem:[%s3675] sm:$0x7]
        %v3678 = vsel %vm447, %v3676, 0
        %v3681 = vand.u32 %v3667, %v454
        %v3684 = vand.u32 %v3668, %v454
        %v3687 = vand.u32 %v3669, %v454
        %v3690 = vand.u32 %v3670, %v454
        %v3693 = vand.u32 %v3671, %v454
        %v3696 = vand.u32 %v3672, %v454
        %v3699 = vand.u32 %v3673, %v454
        %v3702 = vand.u32 %v3674, %v454
        %3704 = vmatprep.subr.bf16.mxu0 %v3684
        %3705 = vmatpush1.bf16.msra.mxu0 %v3681
        %3706 = vmatprep.subr.bf16.mxu0 0
        %3707 = vmatpush1.bf16.msra.mxu0 0
        %3708 = vmatprep.subr.bf16.mxu0 0
        %3709 = vmatpush1.bf16.msra.mxu0 0
        %3710 = vmatprep.subr.bf16.mxu0 0
        %3711 = vmatpush1.bf16.msra.mxu0 0
        %3712 = vmatprep.subr.bf16.mxu0 0
        %3713 = vmatpush1.bf16.msra.mxu0 0
        %3714 = vmatprep.subr.bf16.mxu0 0
        %3715 = vmatpush1.bf16.msra.mxu0 0
        %3716 = vmatprep.subr.bf16.mxu0 0
        %3717 = vmatpush1.bf16.msra.mxu0 0
        %3718 = vmatprep.subr.bf16.mxu0 0
        %3719 = vmatpush1.bf16.msra.mxu0 0
        %3720 = vmatprep.subr.bf16.mxu0 0
        %3721 = vmatpush1.bf16.msra.mxu0 0
        %3722 = vmatprep.subr.bf16.mxu0 0
        %3723 = vmatpush1.bf16.msra.mxu0 0
        %3724 = vmatprep.subr.bf16.mxu0 0
        %3725 = vmatpush1.bf16.msra.mxu0 0
        %3726 = vmatprep.subr.bf16.mxu0 0
        %3727 = vmatpush1.bf16.msra.mxu0 0
        %3728 = vmatprep.subr.bf16.mxu0 0
        %3729 = vmatpush1.bf16.msra.mxu0 0
        %3730 = vmatprep.subr.bf16.mxu0 0
        %3731 = vmatpush1.bf16.msra.mxu0 0
        %3732 = vmatprep.subr.bf16.mxu0 0
        %3733 = vmatpush1.bf16.msra.mxu0 0
        %3734 = vmatprep.subr.bf16.mxu0 0
        %3735 = vmatpush1.bf16.msra.mxu0 0
        %3736 = vmatprep.mubr.bf16.mxu0 0
        %3737 = vmatmul.mubr.bf16.gmra.mrb[0].mxu0 %v3678
        %v3738 = vpop.f32.mrb[0].mxu0
        %v3739 = vadd.f32 0.0, %v3738
        %v3740 = vpop.f32.mrb[0].mxu0
        %v3741 = vadd.f32 0.0, %v3740
        %v3742 = vpop.f32.mrb[0].mxu0
        %v3743 = vpop.f32.mrb[0].mxu0
        %3744 = vdwg.mxu0
        %3745 = vmatprep.subr.bf16.mxu0 %v3690
        %3746 = vmatpush1.bf16.msra.mxu0 %v3687
        %3747 = vmatprep.subr.bf16.mxu0 0
        %3748 = vmatpush1.bf16.msra.mxu0 0
        %3749 = vmatprep.subr.bf16.mxu0 0
        %3750 = vmatpush1.bf16.msra.mxu0 0
        %3751 = vmatprep.subr.bf16.mxu0 0
        %3752 = vmatpush1.bf16.msra.mxu0 0
        %3753 = vmatprep.subr.bf16.mxu0 0
        %3754 = vmatpush1.bf16.msra.mxu0 0
        %3755 = vmatprep.subr.bf16.mxu0 0
        %3756 = vmatpush1.bf16.msra.mxu0 0
        %3757 = vmatprep.subr.bf16.mxu0 0
        %3758 = vmatpush1.bf16.msra.mxu0 0
        %3759 = vmatprep.subr.bf16.mxu0 0
        %3760 = vmatpush1.bf16.msra.mxu0 0
        %3761 = vmatprep.subr.bf16.mxu0 0
        %3762 = vmatpush1.bf16.msra.mxu0 0
        %3763 = vmatprep.subr.bf16.mxu0 0
        %3764 = vmatpush1.bf16.msra.mxu0 0
        %3765 = vmatprep.subr.bf16.mxu0 0
        %3766 = vmatpush1.bf16.msra.mxu0 0
        %3767 = vmatprep.subr.bf16.mxu0 0
        %3768 = vmatpush1.bf16.msra.mxu0 0
        %3769 = vmatprep.subr.bf16.mxu0 0
        %3770 = vmatpush1.bf16.msra.mxu0 0
        %3771 = vmatprep.subr.bf16.mxu0 0
        %3772 = vmatpush1.bf16.msra.mxu0 0
        %3773 = vmatprep.subr.bf16.mxu0 0
        %3774 = vmatpush1.bf16.msra.mxu0 0
        %3775 = vmatprep.subr.bf16.mxu0 0
        %3776 = vmatpush1.bf16.msra.mxu0 0
        %3777 = vmatprep.mubr.bf16.mxu0 0
        %3778 = vmatmul.mubr.bf16.gmra.mrb[0].mxu0 %v3678
        %v3779 = vpop.f32.mrb[0].mxu0
        %v3780 = vadd.f32 0.0, %v3779
        %v3781 = vpop.f32.mrb[0].mxu0
        %v3782 = vadd.f32 0.0, %v3781
        %v3783 = vpop.f32.mrb[0].mxu0
        %v3784 = vpop.f32.mrb[0].mxu0
        %3785 = vdwg.mxu0
        %3786 = vmatprep.subr.bf16.mxu0 %v3696
        %3787 = vmatpush1.bf16.msra.mxu0 %v3693
        %3788 = vmatprep.subr.bf16.mxu0 0
        %3789 = vmatpush1.bf16.msra.mxu0 0
        %3790 = vmatprep.subr.bf16.mxu0 0
        %3791 = vmatpush1.bf16.msra.mxu0 0
        %3792 = vmatprep.subr.bf16.mxu0 0
        %3793 = vmatpush1.bf16.msra.mxu0 0
        %3794 = vmatprep.subr.bf16.mxu0 0
        %3795 = vmatpush1.bf16.msra.mxu0 0
        %3796 = vmatprep.subr.bf16.mxu0 0
        %3797 = vmatpush1.bf16.msra.mxu0 0
        %3798 = vmatprep.subr.bf16.mxu0 0
        %3799 = vmatpush1.bf16.msra.mxu0 0
        %3800 = vmatprep.subr.bf16.mxu0 0
        %3801 = vmatpush1.bf16.msra.mxu0 0
        %3802 = vmatprep.subr.bf16.mxu0 0
        %3803 = vmatpush1.bf16.msra.mxu0 0
        %3804 = vmatprep.subr.bf16.mxu0 0
        %3805 = vmatpush1.bf16.msra.mxu0 0
        %3806 = vmatprep.subr.bf16.mxu0 0
        %3807 = vmatpush1.bf16.msra.mxu0 0
        %3808 = vmatprep.subr.bf16.mxu0 0
        %3809 = vmatpush1.bf16.msra.mxu0 0
        %3810 = vmatprep.subr.bf16.mxu0 0
        %3811 = vmatpush1.bf16.msra.mxu0 0
        %3812 = vmatprep.subr.bf16.mxu0 0
        %3813 = vmatpush1.bf16.msra.mxu0 0
        %3814 = vmatprep.subr.bf16.mxu0 0
        %3815 = vmatpush1.bf16.msra.mxu0 0
        %3816 = vmatprep.subr.bf16.mxu0 0
        %3817 = vmatpush1.bf16.msra.mxu0 0
        %3818 = vmatprep.mubr.bf16.mxu0 0
        %3819 = vmatmul.mubr.bf16.gmra.mrb[0].mxu0 %v3678
        %v3820 = vpop.f32.mrb[0].mxu0
        %v3821 = vadd.f32 0.0, %v3820
        %v3822 = vpop.f32.mrb[0].mxu0
        %v3823 = vadd.f32 0.0, %v3822
        %v3824 = vpop.f32.mrb[0].mxu0
        %v3825 = vpop.f32.mrb[0].mxu0
        %3826 = vdwg.mxu0
        %3827 = vmatprep.subr.bf16.mxu0 %v3702
        %3828 = vmatpush1.bf16.msra.mxu0 %v3699
        %3829 = vmatprep.subr.bf16.mxu0 0
        %3830 = vmatpush1.bf16.msra.mxu0 0
        %3831 = vmatprep.subr.bf16.mxu0 0
        %3832 = vmatpush1.bf16.msra.mxu0 0
        %3833 = vmatprep.subr.bf16.mxu0 0
        %3834 = vmatpush1.bf16.msra.mxu0 0
        %3835 = vmatprep.subr.bf16.mxu0 0
        %3836 = vmatpush1.bf16.msra.mxu0 0
        %3837 = vmatprep.subr.bf16.mxu0 0
        %3838 = vmatpush1.bf16.msra.mxu0 0
        %3839 = vmatprep.subr.bf16.mxu0 0
        %3840 = vmatpush1.bf16.msra.mxu0 0
        %3841 = vmatprep.subr.bf16.mxu0 0
        %3842 = vmatpush1.bf16.msra.mxu0 0
        %3843 = vmatprep.subr.bf16.mxu0 0
        %3844 = vmatpush1.bf16.msra.mxu0 0
        %3845 = vmatprep.subr.bf16.mxu0 0
        %3846 = vmatpush1.bf16.msra.mxu0 0
        %3847 = vmatprep.subr.bf16.mxu0 0
        %3848 = vmatpush1.bf16.msra.mxu0 0
        %3849 = vmatprep.subr.bf16.mxu0 0
        %3850 = vmatpush1.bf16.msra.mxu0 0
        %3851 = vmatprep.subr.bf16.mxu0 0
        %3852 = vmatpush1.bf16.msra.mxu0 0
        %3853 = vmatprep.subr.bf16.mxu0 0
        %3854 = vmatpush1.bf16.msra.mxu0 0
        %3855 = vmatprep.subr.bf16.mxu0 0
        %3856 = vmatpush1.bf16.msra.mxu0 0
        %3857 = vmatprep.subr.bf16.mxu0 0
        %3858 = vmatpush1.bf16.msra.mxu0 0
        %3859 = vmatprep.mubr.bf16.mxu0 0
        %3860 = vmatmul.mubr.bf16.gmra.mrb[0].mxu0 %v3678
        %v3861 = vpop.f32.mrb[0].mxu0
        %v3862 = vadd.f32 0.0, %v3861
        %v3863 = vpop.f32.mrb[0].mxu0
        %v3864 = vadd.f32 0.0, %v3863
        %v3865 = vpop.f32.mrb[0].mxu0
        %v3866 = vpop.f32.mrb[0].mxu0
        %3867 = vdwg.mxu0
        %v3868 = vadd.f32 %v3634, %v3739
        %v3869 = vadd.f32 %v3635, %v3741
        %v3870 = vadd.f32 %v3636, %v3780
        %v3871 = vadd.f32 %v3637, %v3782
        %v3872 = vadd.f32 %v3638, %v3821
        %v3873 = vadd.f32 %v3639, %v3823
        %v3874 = vadd.f32 %v3640, %v3862
        %v3875 = vadd.f32 %v3641, %v3864
        %3876 = vrot.lane.b32.xlu0 %v385, 32
        %v3877 = vpop.permute.xlu0 %3876
        %3878 = vrot.lane.b32.xlu0 %v393, 32
        %v3879 = vpop.permute.xlu0 %3878
        %3880 = vrot.lane.b32.xlu0 %v386, 32
        %v3881 = vpop.permute.xlu0 %3880
        %3882 = vrot.lane.b32.xlu0 %v394, 32
        %v3883 = vpop.permute.xlu0 %3882
        %3884 = vrot.lane.b32.xlu0 %v387, 32
        %v3885 = vpop.permute.xlu0 %3884
        %3886 = vrot.lane.b32.xlu0 %v395, 32
        %v3887 = vpop.permute.xlu0 %3886
        %3888 = vrot.lane.b32.xlu0 %v388, 32
        %v3889 = vpop.permute.xlu0 %3888
        %3890 = vrot.lane.b32.xlu0 %v396, 32
        %v3891 = vpop.permute.xlu0 %3890
        %vm3892 = vcmp.lt.s32.totalorder %v427, 32
        %v3893 = vsel %vm3892, %v3889, %v3891
        %v3894 = vsel %vm3892, %v3887, %v3889
        %v3895 = vsel %vm3892, %v3885, %v3887
        %v3896 = vsel %vm3892, %v3883, %v3885
        %v3897 = vsel %vm3892, %v3881, %v3883
        %v3898 = vsel %vm3892, %v3879, %v3881
        %v3899 = vsel %vm3892, %v3877, %v3879
        %v3900 = vsel %vm3892, %v3891, %v3877
        %v3901 = vpack.c.bf16 %v3899, %v3899
        %v3902 = vpack.c.bf16 %v3898, %v3898
        %v3903 = vpack.c.bf16 %v3897, %v3897
        %v3904 = vpack.c.bf16 %v3896, %v3896
        %v3905 = vpack.c.bf16 %v3895, %v3895
        %v3906 = vpack.c.bf16 %v3894, %v3894
        %v3907 = vpack.c.bf16 %v3893, %v3893
        %v3908 = vpack.c.bf16 %v3900, %v3900
        %s3909 = scalar_lea.vmem %s1, 60
        %v3910 = vld [vmem:[%s3909] sm:$0x7]
        %v3912 = vsel %vm447, %v3910, 0
        %v3915 = vand.u32 %v3901, %v454
        %v3918 = vand.u32 %v3902, %v454
        %v3921 = vand.u32 %v3903, %v454
        %v3924 = vand.u32 %v3904, %v454
        %v3927 = vand.u32 %v3905, %v454
        %v3930 = vand.u32 %v3906, %v454
        %v3933 = vand.u32 %v3907, %v454
        %v3936 = vand.u32 %v3908, %v454
        %3938 = vmatprep.subr.bf16.mxu0 %v3918
        %3939 = vmatpush1.bf16.msra.mxu0 %v3915
        %3940 = vmatprep.subr.bf16.mxu0 0
        %3941 = vmatpush1.bf16.msra.mxu0 0
        %3942 = vmatprep.subr.bf16.mxu0 0
        %3943 = vmatpush1.bf16.msra.mxu0 0
        %3944 = vmatprep.subr.bf16.mxu0 0
        %3945 = vmatpush1.bf16.msra.mxu0 0
        %3946 = vmatprep.subr.bf16.mxu0 0
        %3947 = vmatpush1.bf16.msra.mxu0 0
        %3948 = vmatprep.subr.bf16.mxu0 0
        %3949 = vmatpush1.bf16.msra.mxu0 0
        %3950 = vmatprep.subr.bf16.mxu0 0
        %3951 = vmatpush1.bf16.msra.mxu0 0
        %3952 = vmatprep.subr.bf16.mxu0 0
        %3953 = vmatpush1.bf16.msra.mxu0 0
        %3954 = vmatprep.subr.bf16.mxu0 0
        %3955 = vmatpush1.bf16.msra.mxu0 0
        %3956 = vmatprep.subr.bf16.mxu0 0
        %3957 = vmatpush1.bf16.msra.mxu0 0
        %3958 = vmatprep.subr.bf16.mxu0 0
        %3959 = vmatpush1.bf16.msra.mxu0 0
        %3960 = vmatprep.subr.bf16.mxu0 0
        %3961 = vmatpush1.bf16.msra.mxu0 0
        %3962 = vmatprep.subr.bf16.mxu0 0
        %3963 = vmatpush1.bf16.msra.mxu0 0
        %3964 = vmatprep.subr.bf16.mxu0 0
        %3965 = vmatpush1.bf16.msra.mxu0 0
        %3966 = vmatprep.subr.bf16.mxu0 0
        %3967 = vmatpush1.bf16.msra.mxu0 0
        %3968 = vmatprep.subr.bf16.mxu0 0
        %3969 = vmatpush1.bf16.msra.mxu0 0
        %3970 = vmatprep.mubr.bf16.mxu0 0
        %3971 = vmatmul.mubr.bf16.gmra.mrb[0].mxu0 %v3912
        %v3972 = vpop.f32.mrb[0].mxu0
        %v3973 = vadd.f32 0.0, %v3972
        %v3974 = vpop.f32.mrb[0].mxu0
        %v3975 = vadd.f32 0.0, %v3974
        %v3976 = vpop.f32.mrb[0].mxu0
        %v3977 = vpop.f32.mrb[0].mxu0
        %3978 = vdwg.mxu0
        %3979 = vmatprep.subr.bf16.mxu0 %v3924
        %3980 = vmatpush1.bf16.msra.mxu0 %v3921
        %3981 = vmatprep.subr.bf16.mxu0 0
        %3982 = vmatpush1.bf16.msra.mxu0 0
        %3983 = vmatprep.subr.bf16.mxu0 0
        %3984 = vmatpush1.bf16.msra.mxu0 0
        %3985 = vmatprep.subr.bf16.mxu0 0
        %3986 = vmatpush1.bf16.msra.mxu0 0
        %3987 = vmatprep.subr.bf16.mxu0 0
        %3988 = vmatpush1.bf16.msra.mxu0 0
        %3989 = vmatprep.subr.bf16.mxu0 0
        %3990 = vmatpush1.bf16.msra.mxu0 0
        %3991 = vmatprep.subr.bf16.mxu0 0
        %3992 = vmatpush1.bf16.msra.mxu0 0
        %3993 = vmatprep.subr.bf16.mxu0 0
        %3994 = vmatpush1.bf16.msra.mxu0 0
        %3995 = vmatprep.subr.bf16.mxu0 0
        %3996 = vmatpush1.bf16.msra.mxu0 0
        %3997 = vmatprep.subr.bf16.mxu0 0
        %3998 = vmatpush1.bf16.msra.mxu0 0
        %3999 = vmatprep.subr.bf16.mxu0 0
        %4000 = vmatpush1.bf16.msra.mxu0 0
        %4001 = vmatprep.subr.bf16.mxu0 0
        %4002 = vmatpush1.bf16.msra.mxu0 0
        %4003 = vmatprep.subr.bf16.mxu0 0
        %4004 = vmatpush1.bf16.msra.mxu0 0
        %4005 = vmatprep.subr.bf16.mxu0 0
        %4006 = vmatpush1.bf16.msra.mxu0 0
        %4007 = vmatprep.subr.bf16.mxu0 0
        %4008 = vmatpush1.bf16.msra.mxu0 0
        %4009 = vmatprep.subr.bf16.mxu0 0
        %4010 = vmatpush1.bf16.msra.mxu0 0
        %4011 = vmatprep.mubr.bf16.mxu0 0
        %4012 = vmatmul.mubr.bf16.gmra.mrb[0].mxu0 %v3912
        %v4013 = vpop.f32.mrb[0].mxu0
        %v4014 = vadd.f32 0.0, %v4013
        %v4015 = vpop.f32.mrb[0].mxu0
        %v4016 = vadd.f32 0.0, %v4015
        %v4017 = vpop.f32.mrb[0].mxu0
        %v4018 = vpop.f32.mrb[0].mxu0
        %4019 = vdwg.mxu0
        %4020 = vmatprep.subr.bf16.mxu0 %v3930
        %4021 = vmatpush1.bf16.msra.mxu0 %v3927
        %4022 = vmatprep.subr.bf16.mxu0 0
        %4023 = vmatpush1.bf16.msra.mxu0 0
        %4024 = vmatprep.subr.bf16.mxu0 0
        %4025 = vmatpush1.bf16.msra.mxu0 0
        %4026 = vmatprep.subr.bf16.mxu0 0
        %4027 = vmatpush1.bf16.msra.mxu0 0
        %4028 = vmatprep.subr.bf16.mxu0 0
        %4029 = vmatpush1.bf16.msra.mxu0 0
        %4030 = vmatprep.subr.bf16.mxu0 0
        %4031 = vmatpush1.bf16.msra.mxu0 0
        %4032 = vmatprep.subr.bf16.mxu0 0
        %4033 = vmatpush1.bf16.msra.mxu0 0
        %4034 = vmatprep.subr.bf16.mxu0 0
        %4035 = vmatpush1.bf16.msra.mxu0 0
        %4036 = vmatprep.subr.bf16.mxu0 0
        %4037 = vmatpush1.bf16.msra.mxu0 0
        %4038 = vmatprep.subr.bf16.mxu0 0
        %4039 = vmatpush1.bf16.msra.mxu0 0
        %4040 = vmatprep.subr.bf16.mxu0 0
        %4041 = vmatpush1.bf16.msra.mxu0 0
        %4042 = vmatprep.subr.bf16.mxu0 0
        %4043 = vmatpush1.bf16.msra.mxu0 0
        %4044 = vmatprep.subr.bf16.mxu0 0
        %4045 = vmatpush1.bf16.msra.mxu0 0
        %4046 = vmatprep.subr.bf16.mxu0 0
        %4047 = vmatpush1.bf16.msra.mxu0 0
        %4048 = vmatprep.subr.bf16.mxu0 0
        %4049 = vmatpush1.bf16.msra.mxu0 0
        %4050 = vmatprep.subr.bf16.mxu0 0
        %4051 = vmatpush1.bf16.msra.mxu0 0
        %4052 = vmatprep.mubr.bf16.mxu0 0
        %4053 = vmatmul.mubr.bf16.gmra.mrb[0].mxu0 %v3912
        %v4054 = vpop.f32.mrb[0].mxu0
        %v4055 = vadd.f32 0.0, %v4054
        %v4056 = vpop.f32.mrb[0].mxu0
        %v4057 = vadd.f32 0.0, %v4056
        %v4058 = vpop.f32.mrb[0].mxu0
        %v4059 = vpop.f32.mrb[0].mxu0
        %4060 = vdwg.mxu0
        %4061 = vmatprep.subr.bf16.mxu0 %v3936
        %4062 = vmatpush1.bf16.msra.mxu0 %v3933
        %4063 = vmatprep.subr.bf16.mxu0 0
        %4064 = vmatpush1.bf16.msra.mxu0 0
        %4065 = vmatprep.subr.bf16.mxu0 0
        %4066 = vmatpush1.bf16.msra.mxu0 0
        %4067 = vmatprep.subr.bf16.mxu0 0
        %4068 = vmatpush1.bf16.msra.mxu0 0
        %4069 = vmatprep.subr.bf16.mxu0 0
        %4070 = vmatpush1.bf16.msra.mxu0 0
        %4071 = vmatprep.subr.bf16.mxu0 0
        %4072 = vmatpush1.bf16.msra.mxu0 0
        %4073 = vmatprep.subr.bf16.mxu0 0
        %4074 = vmatpush1.bf16.msra.mxu0 0
        %4075 = vmatprep.subr.bf16.mxu0 0
        %4076 = vmatpush1.bf16.msra.mxu0 0
        %4077 = vmatprep.subr.bf16.mxu0 0
        %4078 = vmatpush1.bf16.msra.mxu0 0
        %4079 = vmatprep.subr.bf16.mxu0 0
        %4080 = vmatpush1.bf16.msra.mxu0 0
        %4081 = vmatprep.subr.bf16.mxu0 0
        %4082 = vmatpush1.bf16.msra.mxu0 0
        %4083 = vmatprep.subr.bf16.mxu0 0
        %4084 = vmatpush1.bf16.msra.mxu0 0
        %4085 = vmatprep.subr.bf16.mxu0 0
        %4086 = vmatpush1.bf16.msra.mxu0 0
        %4087 = vmatprep.subr.bf16.mxu0 0
        %4088 = vmatpush1.bf16.msra.mxu0 0
        %4089 = vmatprep.subr.bf16.mxu0 0
        %4090 = vmatpush1.bf16.msra.mxu0 0
        %4091 = vmatprep.subr.bf16.mxu0 0
        %4092 = vmatpush1.bf16.msra.mxu0 0
        %4093 = vmatprep.mubr.bf16.mxu0 0
        %4094 = vmatmul.mubr.bf16.gmra.mrb[0].mxu0 %v3912
        %v4095 = vpop.f32.mrb[0].mxu0
        %v4096 = vadd.f32 0.0, %v4095
        %v4097 = vpop.f32.mrb[0].mxu0
        %v4098 = vadd.f32 0.0, %v4097
        %v4099 = vpop.f32.mrb[0].mxu0
        %v4100 = vpop.f32.mrb[0].mxu0
        %4101 = vdwg.mxu0
        %v4102 = vadd.f32 %v3868, %v3973
        %v4103 = vadd.f32 %v3869, %v3975
        %v4104 = vadd.f32 %v3870, %v4014
        %v4105 = vadd.f32 %v3871, %v4016
        %v4106 = vadd.f32 %v3872, %v4055
        %v4107 = vadd.f32 %v3873, %v4057
        %v4108 = vadd.f32 %v3874, %v4096
        %v4109 = vadd.f32 %v3875, %v4098
        %4110 = vrot.lane.b32.xlu0 %v385, 31
        %v4111 = vpop.permute.xlu0 %4110
        %4112 = vrot.lane.b32.xlu0 %v393, 31
        %v4113 = vpop.permute.xlu0 %4112
        %4114 = vrot.lane.b32.xlu0 %v386, 31
        %v4115 = vpop.permute.xlu0 %4114
        %4116 = vrot.lane.b32.xlu0 %v394, 31
        %v4117 = vpop.permute.xlu0 %4116
        %4118 = vrot.lane.b32.xlu0 %v387, 31
        %v4119 = vpop.permute.xlu0 %4118
        %4120 = vrot.lane.b32.xlu0 %v395, 31
        %v4121 = vpop.permute.xlu0 %4120
        %4122 = vrot.lane.b32.xlu0 %v388, 31
        %v4123 = vpop.permute.xlu0 %4122
        %4124 = vrot.lane.b32.xlu0 %v396, 31
        %v4125 = vpop.permute.xlu0 %4124
        %vm4126 = vcmp.lt.s32.totalorder %v427, 31
        %v4127 = vsel %vm4126, %v4123, %v4125
        %v4128 = vsel %vm4126, %v4121, %v4123
        %v4129 = vsel %vm4126, %v4119, %v4121
        %v4130 = vsel %vm4126, %v4117, %v4119
        %v4131 = vsel %vm4126, %v4115, %v4117
        %v4132 = vsel %vm4126, %v4113, %v4115
        %v4133 = vsel %vm4126, %v4111, %v4113
        %v4134 = vsel %vm4126, %v4125, %v4111
        %v4135 = vpack.c.bf16 %v4133, %v4133
        %v4136 = vpack.c.bf16 %v4132, %v4132
        %v4137 = vpack.c.bf16 %v4131, %v4131
        %v4138 = vpack.c.bf16 %v4130, %v4130
        %v4139 = vpack.c.bf16 %v4129, %v4129
        %v4140 = vpack.c.bf16 %v4128, %v4128
        %v4141 = vpack.c.bf16 %v4127, %v4127
        %v4142 = vpack.c.bf16 %v4134, %v4134
        %s4143 = scalar_lea.vmem %s1, 64
        %v4144 = vld [vmem:[%s4143] sm:$0x7]
        %v4146 = vsel %vm447, %v4144, 0
        %v4149 = vand.u32 %v4135, %v454
        %v4152 = vand.u32 %v4136, %v454
        %v4155 = vand.u32 %v4137, %v454
        %v4158 = vand.u32 %v4138, %v454
        %v4161 = vand.u32 %v4139, %v454
        %v4164 = vand.u32 %v4140, %v454
        %v4167 = vand.u32 %v4141, %v454
        %v4170 = vand.u32 %v4142, %v454
        %4172 = vmatprep.subr.bf16.mxu0 %v4152
        %4173 = vmatpush1.bf16.msra.mxu0 %v4149
        %4174 = vmatprep.subr.bf16.mxu0 0
        %4175 = vmatpush1.bf16.msra.mxu0 0
        %4176 = vmatprep.subr.bf16.mxu0 0
        %4177 = vmatpush1.bf16.msra.mxu0 0
        %4178 = vmatprep.subr.bf16.mxu0 0
        %4179 = vmatpush1.bf16.msra.mxu0 0
        %4180 = vmatprep.subr.bf16.mxu0 0
        %4181 = vmatpush1.bf16.msra.mxu0 0
        %4182 = vmatprep.subr.bf16.mxu0 0
        %4183 = vmatpush1.bf16.msra.mxu0 0
        %4184 = vmatprep.subr.bf16.mxu0 0
        %4185 = vmatpush1.bf16.msra.mxu0 0
        %4186 = vmatprep.subr.bf16.mxu0 0
        %4187 = vmatpush1.bf16.msra.mxu0 0
        %4188 = vmatprep.subr.bf16.mxu0 0
        %4189 = vmatpush1.bf16.msra.mxu0 0
        %4190 = vmatprep.subr.bf16.mxu0 0
        %4191 = vmatpush1.bf16.msra.mxu0 0
        %4192 = vmatprep.subr.bf16.mxu0 0
        %4193 = vmatpush1.bf16.msra.mxu0 0
        %4194 = vmatprep.subr.bf16.mxu0 0
        %4195 = vmatpush1.bf16.msra.mxu0 0
        %4196 = vmatprep.subr.bf16.mxu0 0
        %4197 = vmatpush1.bf16.msra.mxu0 0
        %4198 = vmatprep.subr.bf16.mxu0 0
        %4199 = vmatpush1.bf16.msra.mxu0 0
        %4200 = vmatprep.subr.bf16.mxu0 0
        %4201 = vmatpush1.bf16.msra.mxu0 0
        %4202 = vmatprep.subr.bf16.mxu0 0
        %4203 = vmatpush1.bf16.msra.mxu0 0
        %4204 = vmatprep.mubr.bf16.mxu0 0
        %4205 = vmatmul.mubr.bf16.gmra.mrb[0].mxu0 %v4146
        %v4206 = vpop.f32.mrb[0].mxu0
        %v4207 = vadd.f32 0.0, %v4206
        %v4208 = vpop.f32.mrb[0].mxu0
        %v4209 = vadd.f32 0.0, %v4208
        %v4210 = vpop.f32.mrb[0].mxu0
        %v4211 = vpop.f32.mrb[0].mxu0
        %4212 = vdwg.mxu0
        %4213 = vmatprep.subr.bf16.mxu0 %v4158
        %4214 = vmatpush1.bf16.msra.mxu0 %v4155
        %4215 = vmatprep.subr.bf16.mxu0 0
        %4216 = vmatpush1.bf16.msra.mxu0 0
        %4217 = vmatprep.subr.bf16.mxu0 0
        %4218 = vmatpush1.bf16.msra.mxu0 0
        %4219 = vmatprep.subr.bf16.mxu0 0
        %4220 = vmatpush1.bf16.msra.mxu0 0
        %4221 = vmatprep.subr.bf16.mxu0 0
        %4222 = vmatpush1.bf16.msra.mxu0 0
        %4223 = vmatprep.subr.bf16.mxu0 0
        %4224 = vmatpush1.bf16.msra.mxu0 0
        %4225 = vmatprep.subr.bf16.mxu0 0
        %4226 = vmatpush1.bf16.msra.mxu0 0
        %4227 = vmatprep.subr.bf16.mxu0 0
        %4228 = vmatpush1.bf16.msra.mxu0 0
        %4229 = vmatprep.subr.bf16.mxu0 0
        %4230 = vmatpush1.bf16.msra.mxu0 0
        %4231 = vmatprep.subr.bf16.mxu0 0
        %4232 = vmatpush1.bf16.msra.mxu0 0
        %4233 = vmatprep.subr.bf16.mxu0 0
        %4234 = vmatpush1.bf16.msra.mxu0 0
        %4235 = vmatprep.subr.bf16.mxu0 0
        %4236 = vmatpush1.bf16.msra.mxu0 0
        %4237 = vmatprep.subr.bf16.mxu0 0
        %4238 = vmatpush1.bf16.msra.mxu0 0
        %4239 = vmatprep.subr.bf16.mxu0 0
        %4240 = vmatpush1.bf16.msra.mxu0 0
        %4241 = vmatprep.subr.bf16.mxu0 0
        %4242 = vmatpush1.bf16.msra.mxu0 0
        %4243 = vmatprep.subr.bf16.mxu0 0
        %4244 = vmatpush1.bf16.msra.mxu0 0
        %4245 = vmatprep.mubr.bf16.mxu0 0
        %4246 = vmatmul.mubr.bf16.gmra.mrb[0].mxu0 %v4146
        %v4247 = vpop.f32.mrb[0].mxu0
        %v4248 = vadd.f32 0.0, %v4247
        %v4249 = vpop.f32.mrb[0].mxu0
        %v4250 = vadd.f32 0.0, %v4249
        %v4251 = vpop.f32.mrb[0].mxu0
        %v4252 = vpop.f32.mrb[0].mxu0
        %4253 = vdwg.mxu0
        %4254 = vmatprep.subr.bf16.mxu0 %v4164
        %4255 = vmatpush1.bf16.msra.mxu0 %v4161
        %4256 = vmatprep.subr.bf16.mxu0 0
        %4257 = vmatpush1.bf16.msra.mxu0 0
        %4258 = vmatprep.subr.bf16.mxu0 0
        %4259 = vmatpush1.bf16.msra.mxu0 0
        %4260 = vmatprep.subr.bf16.mxu0 0
        %4261 = vmatpush1.bf16.msra.mxu0 0
        %4262 = vmatprep.subr.bf16.mxu0 0
        %4263 = vmatpush1.bf16.msra.mxu0 0
        %4264 = vmatprep.subr.bf16.mxu0 0
        %4265 = vmatpush1.bf16.msra.mxu0 0
        %4266 = vmatprep.subr.bf16.mxu0 0
        %4267 = vmatpush1.bf16.msra.mxu0 0
        %4268 = vmatprep.subr.bf16.mxu0 0
        %4269 = vmatpush1.bf16.msra.mxu0 0
        %4270 = vmatprep.subr.bf16.mxu0 0
        %4271 = vmatpush1.bf16.msra.mxu0 0
        %4272 = vmatprep.subr.bf16.mxu0 0
        %4273 = vmatpush1.bf16.msra.mxu0 0
        %4274 = vmatprep.subr.bf16.mxu0 0
        %4275 = vmatpush1.bf16.msra.mxu0 0
        %4276 = vmatprep.subr.bf16.mxu0 0
        %4277 = vmatpush1.bf16.msra.mxu0 0
        %4278 = vmatprep.subr.bf16.mxu0 0
        %4279 = vmatpush1.bf16.msra.mxu0 0
        %4280 = vmatprep.subr.bf16.mxu0 0
        %4281 = vmatpush1.bf16.msra.mxu0 0
        %4282 = vmatprep.subr.bf16.mxu0 0
        %4283 = vmatpush1.bf16.msra.mxu0 0
        %4284 = vmatprep.subr.bf16.mxu0 0
        %4285 = vmatpush1.bf16.msra.mxu0 0
        %4286 = vmatprep.mubr.bf16.mxu0 0
        %4287 = vmatmul.mubr.bf16.gmra.mrb[0].mxu0 %v4146
        %v4288 = vpop.f32.mrb[0].mxu0
        %v4289 = vadd.f32 0.0, %v4288
        %v4290 = vpop.f32.mrb[0].mxu0
        %v4291 = vadd.f32 0.0, %v4290
        %v4292 = vpop.f32.mrb[0].mxu0
        %v4293 = vpop.f32.mrb[0].mxu0
        %4294 = vdwg.mxu0
        %4295 = vmatprep.subr.bf16.mxu0 %v4170
        %4296 = vmatpush1.bf16.msra.mxu0 %v4167
        %4297 = vmatprep.subr.bf16.mxu0 0
        %4298 = vmatpush1.bf16.msra.mxu0 0
        %4299 = vmatprep.subr.bf16.mxu0 0
        %4300 = vmatpush1.bf16.msra.mxu0 0
        %4301 = vmatprep.subr.bf16.mxu0 0
        %4302 = vmatpush1.bf16.msra.mxu0 0
        %4303 = vmatprep.subr.bf16.mxu0 0
        %4304 = vmatpush1.bf16.msra.mxu0 0
        %4305 = vmatprep.subr.bf16.mxu0 0
        %4306 = vmatpush1.bf16.msra.mxu0 0
        %4307 = vmatprep.subr.bf16.mxu0 0
        %4308 = vmatpush1.bf16.msra.mxu0 0
        %4309 = vmatprep.subr.bf16.mxu0 0
        %4310 = vmatpush1.bf16.msra.mxu0 0
        %4311 = vmatprep.subr.bf16.mxu0 0
        %4312 = vmatpush1.bf16.msra.mxu0 0
        %4313 = vmatprep.subr.bf16.mxu0 0
        %4314 = vmatpush1.bf16.msra.mxu0 0
        %4315 = vmatprep.subr.bf16.mxu0 0
        %4316 = vmatpush1.bf16.msra.mxu0 0
        %4317 = vmatprep.subr.bf16.mxu0 0
        %4318 = vmatpush1.bf16.msra.mxu0 0
        %4319 = vmatprep.subr.bf16.mxu0 0
        %4320 = vmatpush1.bf16.msra.mxu0 0
        %4321 = vmatprep.subr.bf16.mxu0 0
        %4322 = vmatpush1.bf16.msra.mxu0 0
        %4323 = vmatprep.subr.bf16.mxu0 0
        %4324 = vmatpush1.bf16.msra.mxu0 0
        %4325 = vmatprep.subr.bf16.mxu0 0
        %4326 = vmatpush1.bf16.msra.mxu0 0
        %4327 = vmatprep.mubr.bf16.mxu0 0
        %4328 = vmatmul.mubr.bf16.gmra.mrb[0].mxu0 %v4146
        %v4329 = vpop.f32.mrb[0].mxu0
        %v4330 = vadd.f32 0.0, %v4329
        %v4331 = vpop.f32.mrb[0].mxu0
        %v4332 = vadd.f32 0.0, %v4331
        %v4333 = vpop.f32.mrb[0].mxu0
        %v4334 = vpop.f32.mrb[0].mxu0
        %4335 = vdwg.mxu0
        %v4336 = vadd.f32 %v4102, %v4207
        %v4337 = vadd.f32 %v4103, %v4209
        %v4338 = vadd.f32 %v4104, %v4248
        %v4339 = vadd.f32 %v4105, %v4250
        %v4340 = vadd.f32 %v4106, %v4289
        %v4341 = vadd.f32 %v4107, %v4291
        %v4342 = vadd.f32 %v4108, %v4330
        %v4343 = vadd.f32 %v4109, %v4332
        %4344 = vrot.lane.b32.xlu0 %v385, 30
        %v4345 = vpop.permute.xlu0 %4344
        %4346 = vrot.lane.b32.xlu0 %v393, 30
        %v4347 = vpop.permute.xlu0 %4346
        %4348 = vrot.lane.b32.xlu0 %v386, 30
        %v4349 = vpop.permute.xlu0 %4348
        %4350 = vrot.lane.b32.xlu0 %v394, 30
        %v4351 = vpop.permute.xlu0 %4350
        %4352 = vrot.lane.b32.xlu0 %v387, 30
        %v4353 = vpop.permute.xlu0 %4352
        %4354 = vrot.lane.b32.xlu0 %v395, 30
        %v4355 = vpop.permute.xlu0 %4354
        %4356 = vrot.lane.b32.xlu0 %v388, 30
        %v4357 = vpop.permute.xlu0 %4356
        %4358 = vrot.lane.b32.xlu0 %v396, 30
        %v4359 = vpop.permute.xlu0 %4358
        %vm4360 = vcmp.lt.s32.totalorder %v427, 30
        %v4361 = vsel %vm4360, %v4357, %v4359
        %v4362 = vsel %vm4360, %v4355, %v4357
        %v4363 = vsel %vm4360, %v4353, %v4355
        %v4364 = vsel %vm4360, %v4351, %v4353
        %v4365 = vsel %vm4360, %v4349, %v4351
        %v4366 = vsel %vm4360, %v4347, %v4349
        %v4367 = vsel %vm4360, %v4345, %v4347
        %v4368 = vsel %vm4360, %v4359, %v4345
        %v4369 = vpack.c.bf16 %v4367, %v4367
        %v4370 = vpack.c.bf16 %v4366, %v4366
        %v4371 = vpack.c.bf16 %v4365, %v4365
        %v4372 = vpack.c.bf16 %v4364, %v4364
        %v4373 = vpack.c.bf16 %v4363, %v4363
        %v4374 = vpack.c.bf16 %v4362, %v4362
        %v4375 = vpack.c.bf16 %v4361, %v4361
        %v4376 = vpack.c.bf16 %v4368, %v4368
        %s4377 = scalar_lea.vmem %s1, 68
        %v4378 = vld [vmem:[%s4377] sm:$0x7]
        %v4380 = vsel %vm447, %v4378, 0
        %v4383 = vand.u32 %v4369, %v454
        %v4386 = vand.u32 %v4370, %v454
        %v4389 = vand.u32 %v4371, %v454
        %v4392 = vand.u32 %v4372, %v454
        %v4395 = vand.u32 %v4373, %v454
        %v4398 = vand.u32 %v4374, %v454
        %v4401 = vand.u32 %v4375, %v454
        %v4404 = vand.u32 %v4376, %v454
        %4406 = vmatprep.subr.bf16.mxu0 %v4386
        %4407 = vmatpush1.bf16.msra.mxu0 %v4383
        %4408 = vmatprep.subr.bf16.mxu0 0
        %4409 = vmatpush1.bf16.msra.mxu0 0
        %4410 = vmatprep.subr.bf16.mxu0 0
        %4411 = vmatpush1.bf16.msra.mxu0 0
        %4412 = vmatprep.subr.bf16.mxu0 0
        %4413 = vmatpush1.bf16.msra.mxu0 0
        %4414 = vmatprep.subr.bf16.mxu0 0
        %4415 = vmatpush1.bf16.msra.mxu0 0
        %4416 = vmatprep.subr.bf16.mxu0 0
        %4417 = vmatpush1.bf16.msra.mxu0 0
        %4418 = vmatprep.subr.bf16.mxu0 0
        %4419 = vmatpush1.bf16.msra.mxu0 0
        %4420 = vmatprep.subr.bf16.mxu0 0
        %4421 = vmatpush1.bf16.msra.mxu0 0
        %4422 = vmatprep.subr.bf16.mxu0 0
        %4423 = vmatpush1.bf16.msra.mxu0 0
        %4424 = vmatprep.subr.bf16.mxu0 0
        %4425 = vmatpush1.bf16.msra.mxu0 0
        %4426 = vmatprep.subr.bf16.mxu0 0
        %4427 = vmatpush1.bf16.msra.mxu0 0
        %4428 = vmatprep.subr.bf16.mxu0 0
        %4429 = vmatpush1.bf16.msra.mxu0 0
        %4430 = vmatprep.subr.bf16.mxu0 0
        %4431 = vmatpush1.bf16.msra.mxu0 0
        %4432 = vmatprep.subr.bf16.mxu0 0
        %4433 = vmatpush1.bf16.msra.mxu0 0
        %4434 = vmatprep.subr.bf16.mxu0 0
        %4435 = vmatpush1.bf16.msra.mxu0 0
        %4436 = vmatprep.subr.bf16.mxu0 0
        %4437 = vmatpush1.bf16.msra.mxu0 0
        %4438 = vmatprep.mubr.bf16.mxu0 0
        %4439 = vmatmul.mubr.bf16.gmra.mrb[0].mxu0 %v4380
        %v4440 = vpop.f32.mrb[0].mxu0
        %v4441 = vadd.f32 0.0, %v4440
        %v4442 = vpop.f32.mrb[0].mxu0
        %v4443 = vadd.f32 0.0, %v4442
        %v4444 = vpop.f32.mrb[0].mxu0
        %v4445 = vpop.f32.mrb[0].mxu0
        %4446 = vdwg.mxu0
        %4447 = vmatprep.subr.bf16.mxu0 %v4392
        %4448 = vmatpush1.bf16.msra.mxu0 %v4389
        %4449 = vmatprep.subr.bf16.mxu0 0
        %4450 = vmatpush1.bf16.msra.mxu0 0
        %4451 = vmatprep.subr.bf16.mxu0 0
        %4452 = vmatpush1.bf16.msra.mxu0 0
        %4453 = vmatprep.subr.bf16.mxu0 0
        %4454 = vmatpush1.bf16.msra.mxu0 0
        %4455 = vmatprep.subr.bf16.mxu0 0
        %4456 = vmatpush1.bf16.msra.mxu0 0
        %4457 = vmatprep.subr.bf16.mxu0 0
        %4458 = vmatpush1.bf16.msra.mxu0 0
        %4459 = vmatprep.subr.bf16.mxu0 0
        %4460 = vmatpush1.bf16.msra.mxu0 0
        %4461 = vmatprep.subr.bf16.mxu0 0
        %4462 = vmatpush1.bf16.msra.mxu0 0
        %4463 = vmatprep.subr.bf16.mxu0 0
        %4464 = vmatpush1.bf16.msra.mxu0 0
        %4465 = vmatprep.subr.bf16.mxu0 0
        %4466 = vmatpush1.bf16.msra.mxu0 0
        %4467 = vmatprep.subr.bf16.mxu0 0
        %4468 = vmatpush1.bf16.msra.mxu0 0
        %4469 = vmatprep.subr.bf16.mxu0 0
        %4470 = vmatpush1.bf16.msra.mxu0 0
        %4471 = vmatprep.subr.bf16.mxu0 0
        %4472 = vmatpush1.bf16.msra.mxu0 0
        %4473 = vmatprep.subr.bf16.mxu0 0
        %4474 = vmatpush1.bf16.msra.mxu0 0
        %4475 = vmatprep.subr.bf16.mxu0 0
        %4476 = vmatpush1.bf16.msra.mxu0 0
        %4477 = vmatprep.subr.bf16.mxu0 0
        %4478 = vmatpush1.bf16.msra.mxu0 0
        %4479 = vmatprep.mubr.bf16.mxu0 0
        %4480 = vmatmul.mubr.bf16.gmra.mrb[0].mxu0 %v4380
        %v4481 = vpop.f32.mrb[0].mxu0
        %v4482 = vadd.f32 0.0, %v4481
        %v4483 = vpop.f32.mrb[0].mxu0
        %v4484 = vadd.f32 0.0, %v4483
        %v4485 = vpop.f32.mrb[0].mxu0
        %v4486 = vpop.f32.mrb[0].mxu0
        %4487 = vdwg.mxu0
        %4488 = vmatprep.subr.bf16.mxu0 %v4398
        %4489 = vmatpush1.bf16.msra.mxu0 %v4395
        %4490 = vmatprep.subr.bf16.mxu0 0
        %4491 = vmatpush1.bf16.msra.mxu0 0
        %4492 = vmatprep.subr.bf16.mxu0 0
        %4493 = vmatpush1.bf16.msra.mxu0 0
        %4494 = vmatprep.subr.bf16.mxu0 0
        %4495 = vmatpush1.bf16.msra.mxu0 0
        %4496 = vmatprep.subr.bf16.mxu0 0
        %4497 = vmatpush1.bf16.msra.mxu0 0
        %4498 = vmatprep.subr.bf16.mxu0 0
        %4499 = vmatpush1.bf16.msra.mxu0 0
        %4500 = vmatprep.subr.bf16.mxu0 0
        %4501 = vmatpush1.bf16.msra.mxu0 0
        %4502 = vmatprep.subr.bf16.mxu0 0
        %4503 = vmatpush1.bf16.msra.mxu0 0
        %4504 = vmatprep.subr.bf16.mxu0 0
        %4505 = vmatpush1.bf16.msra.mxu0 0
        %4506 = vmatprep.subr.bf16.mxu0 0
        %4507 = vmatpush1.bf16.msra.mxu0 0
        %4508 = vmatprep.subr.bf16.mxu0 0
        %4509 = vmatpush1.bf16.msra.mxu0 0
        %4510 = vmatprep.subr.bf16.mxu0 0
        %4511 = vmatpush1.bf16.msra.mxu0 0
        %4512 = vmatprep.subr.bf16.mxu0 0
        %4513 = vmatpush1.bf16.msra.mxu0 0
        %4514 = vmatprep.subr.bf16.mxu0 0
        %4515 = vmatpush1.bf16.msra.mxu0 0
        %4516 = vmatprep.subr.bf16.mxu0 0
        %4517 = vmatpush1.bf16.msra.mxu0 0
        %4518 = vmatprep.subr.bf16.mxu0 0
        %4519 = vmatpush1.bf16.msra.mxu0 0
        %4520 = vmatprep.mubr.bf16.mxu0 0
        %4521 = vmatmul.mubr.bf16.gmra.mrb[0].mxu0 %v4380
        %v4522 = vpop.f32.mrb[0].mxu0
        %v4523 = vadd.f32 0.0, %v4522
        %v4524 = vpop.f32.mrb[0].mxu0
        %v4525 = vadd.f32 0.0, %v4524
        %v4526 = vpop.f32.mrb[0].mxu0
        %v4527 = vpop.f32.mrb[0].mxu0
        %4528 = vdwg.mxu0
        %4529 = vmatprep.subr.bf16.mxu0 %v4404
        %4530 = vmatpush1.bf16.msra.mxu0 %v4401
        %4531 = vmatprep.subr.bf16.mxu0 0
        %4532 = vmatpush1.bf16.msra.mxu0 0
        %4533 = vmatprep.subr.bf16.mxu0 0
        %4534 = vmatpush1.bf16.msra.mxu0 0
        %4535 = vmatprep.subr.bf16.mxu0 0
        %4536 = vmatpush1.bf16.msra.mxu0 0
        %4537 = vmatprep.subr.bf16.mxu0 0
        %4538 = vmatpush1.bf16.msra.mxu0 0
        %4539 = vmatprep.subr.bf16.mxu0 0
        %4540 = vmatpush1.bf16.msra.mxu0 0
        %4541 = vmatprep.subr.bf16.mxu0 0
        %4542 = vmatpush1.bf16.msra.mxu0 0
        %4543 = vmatprep.subr.bf16.mxu0 0
        %4544 = vmatpush1.bf16.msra.mxu0 0
        %4545 = vmatprep.subr.bf16.mxu0 0
        %4546 = vmatpush1.bf16.msra.mxu0 0
        %4547 = vmatprep.subr.bf16.mxu0 0
        %4548 = vmatpush1.bf16.msra.mxu0 0
        %4549 = vmatprep.subr.bf16.mxu0 0
        %4550 = vmatpush1.bf16.msra.mxu0 0
        %4551 = vmatprep.subr.bf16.mxu0 0
        %4552 = vmatpush1.bf16.msra.mxu0 0
        %4553 = vmatprep.subr.bf16.mxu0 0
        %4554 = vmatpush1.bf16.msra.mxu0 0
        %4555 = vmatprep.subr.bf16.mxu0 0
        %4556 = vmatpush1.bf16.msra.mxu0 0
        %4557 = vmatprep.subr.bf16.mxu0 0
        %4558 = vmatpush1.bf16.msra.mxu0 0
        %4559 = vmatprep.subr.bf16.mxu0 0
        %4560 = vmatpush1.bf16.msra.mxu0 0
        %4561 = vmatprep.mubr.bf16.mxu0 0
        %4562 = vmatmul.mubr.bf16.gmra.mrb[0].mxu0 %v4380
        %v4563 = vpop.f32.mrb[0].mxu0
        %v4564 = vadd.f32 0.0, %v4563
        %v4565 = vpop.f32.mrb[0].mxu0
        %v4566 = vadd.f32 0.0, %v4565
        %v4567 = vpop.f32.mrb[0].mxu0
        %v4568 = vpop.f32.mrb[0].mxu0
        %4569 = vdwg.mxu0
        %v4570 = vadd.f32 %v4336, %v4441
        %v4571 = vadd.f32 %v4337, %v4443
        %v4572 = vadd.f32 %v4338, %v4482
        %v4573 = vadd.f32 %v4339, %v4484
        %v4574 = vadd.f32 %v4340, %v4523
        %v4575 = vadd.f32 %v4341, %v4525
        %v4576 = vadd.f32 %v4342, %v4564
        %v4577 = vadd.f32 %v4343, %v4566
        %4578 = vrot.lane.b32.xlu0 %v385, 29
        %v4579 = vpop.permute.xlu0 %4578
        %4580 = vrot.lane.b32.xlu0 %v393, 29
        %v4581 = vpop.permute.xlu0 %4580
        %4582 = vrot.lane.b32.xlu0 %v386, 29
        %v4583 = vpop.permute.xlu0 %4582
        %4584 = vrot.lane.b32.xlu0 %v394, 29
        %v4585 = vpop.permute.xlu0 %4584
        %4586 = vrot.lane.b32.xlu0 %v387, 29
        %v4587 = vpop.permute.xlu0 %4586
        %4588 = vrot.lane.b32.xlu0 %v395, 29
        %v4589 = vpop.permute.xlu0 %4588
        %4590 = vrot.lane.b32.xlu0 %v388, 29
        %v4591 = vpop.permute.xlu0 %4590
        %4592 = vrot.lane.b32.xlu0 %v396, 29
        %v4593 = vpop.permute.xlu0 %4592
        %vm4594 = vcmp.lt.s32.totalorder %v427, 29
        %v4595 = vsel %vm4594, %v4591, %v4593
        %v4596 = vsel %vm4594, %v4589, %v4591
        %v4597 = vsel %vm4594, %v4587, %v4589
        %v4598 = vsel %vm4594, %v4585, %v4587
        %v4599 = vsel %vm4594, %v4583, %v4585
        %v4600 = vsel %vm4594, %v4581, %v4583
        %v4601 = vsel %vm4594, %v4579, %v4581
        %v4602 = vsel %vm4594, %v4593, %v4579
        %v4603 = vpack.c.bf16 %v4601, %v4601
        %v4604 = vpack.c.bf16 %v4600, %v4600
        %v4605 = vpack.c.bf16 %v4599, %v4599
        %v4606 = vpack.c.bf16 %v4598, %v4598
        %v4607 = vpack.c.bf16 %v4597, %v4597
        %v4608 = vpack.c.bf16 %v4596, %v4596
        %v4609 = vpack.c.bf16 %v4595, %v4595
        %v4610 = vpack.c.bf16 %v4602, %v4602
        %s4611 = scalar_lea.vmem %s1, 72
        %v4612 = vld [vmem:[%s4611] sm:$0x7]
        %v4614 = vsel %vm447, %v4612, 0
        %v4617 = vand.u32 %v4603, %v454
        %v4620 = vand.u32 %v4604, %v454
        %v4623 = vand.u32 %v4605, %v454
        %v4626 = vand.u32 %v4606, %v454
        %v4629 = vand.u32 %v4607, %v454
        %v4632 = vand.u32 %v4608, %v454
        %v4635 = vand.u32 %v4609, %v454
        %v4638 = vand.u32 %v4610, %v454
        %4640 = vmatprep.subr.bf16.mxu0 %v4620
        %4641 = vmatpush1.bf16.msra.mxu0 %v4617
        %4642 = vmatprep.subr.bf16.mxu0 0
        %4643 = vmatpush1.bf16.msra.mxu0 0
        %4644 = vmatprep.subr.bf16.mxu0 0
        %4645 = vmatpush1.bf16.msra.mxu0 0
        %4646 = vmatprep.subr.bf16.mxu0 0
        %4647 = vmatpush1.bf16.msra.mxu0 0
        %4648 = vmatprep.subr.bf16.mxu0 0
        %4649 = vmatpush1.bf16.msra.mxu0 0
        %4650 = vmatprep.subr.bf16.mxu0 0
        %4651 = vmatpush1.bf16.msra.mxu0 0
        %4652 = vmatprep.subr.bf16.mxu0 0
        %4653 = vmatpush1.bf16.msra.mxu0 0
        %4654 = vmatprep.subr.bf16.mxu0 0
        %4655 = vmatpush1.bf16.msra.mxu0 0
        %4656 = vmatprep.subr.bf16.mxu0 0
        %4657 = vmatpush1.bf16.msra.mxu0 0
        %4658 = vmatprep.subr.bf16.mxu0 0
        %4659 = vmatpush1.bf16.msra.mxu0 0
        %4660 = vmatprep.subr.bf16.mxu0 0
        %4661 = vmatpush1.bf16.msra.mxu0 0
        %4662 = vmatprep.subr.bf16.mxu0 0
        %4663 = vmatpush1.bf16.msra.mxu0 0
        %4664 = vmatprep.subr.bf16.mxu0 0
        %4665 = vmatpush1.bf16.msra.mxu0 0
        %4666 = vmatprep.subr.bf16.mxu0 0
        %4667 = vmatpush1.bf16.msra.mxu0 0
        %4668 = vmatprep.subr.bf16.mxu0 0
        %4669 = vmatpush1.bf16.msra.mxu0 0
        %4670 = vmatprep.subr.bf16.mxu0 0
        %4671 = vmatpush1.bf16.msra.mxu0 0
        %4672 = vmatprep.mubr.bf16.mxu0 0
        %4673 = vmatmul.mubr.bf16.gmra.mrb[0].mxu0 %v4614
        %v4674 = vpop.f32.mrb[0].mxu0
        %v4675 = vadd.f32 0.0, %v4674
        %v4676 = vpop.f32.mrb[0].mxu0
        %v4677 = vadd.f32 0.0, %v4676
        %v4678 = vpop.f32.mrb[0].mxu0
        %v4679 = vpop.f32.mrb[0].mxu0
        %4680 = vdwg.mxu0
        %4681 = vmatprep.subr.bf16.mxu0 %v4626
        %4682 = vmatpush1.bf16.msra.mxu0 %v4623
        %4683 = vmatprep.subr.bf16.mxu0 0
        %4684 = vmatpush1.bf16.msra.mxu0 0
        %4685 = vmatprep.subr.bf16.mxu0 0
        %4686 = vmatpush1.bf16.msra.mxu0 0
        %4687 = vmatprep.subr.bf16.mxu0 0
        %4688 = vmatpush1.bf16.msra.mxu0 0
        %4689 = vmatprep.subr.bf16.mxu0 0
        %4690 = vmatpush1.bf16.msra.mxu0 0
        %4691 = vmatprep.subr.bf16.mxu0 0
        %4692 = vmatpush1.bf16.msra.mxu0 0
        %4693 = vmatprep.subr.bf16.mxu0 0
        %4694 = vmatpush1.bf16.msra.mxu0 0
        %4695 = vmatprep.subr.bf16.mxu0 0
        %4696 = vmatpush1.bf16.msra.mxu0 0
        %4697 = vmatprep.subr.bf16.mxu0 0
        %4698 = vmatpush1.bf16.msra.mxu0 0
        %4699 = vmatprep.subr.bf16.mxu0 0
        %4700 = vmatpush1.bf16.msra.mxu0 0
        %4701 = vmatprep.subr.bf16.mxu0 0
        %4702 = vmatpush1.bf16.msra.mxu0 0
        %4703 = vmatprep.subr.bf16.mxu0 0
        %4704 = vmatpush1.bf16.msra.mxu0 0
        %4705 = vmatprep.subr.bf16.mxu0 0
        %4706 = vmatpush1.bf16.msra.mxu0 0
        %4707 = vmatprep.subr.bf16.mxu0 0
        %4708 = vmatpush1.bf16.msra.mxu0 0
        %4709 = vmatprep.subr.bf16.mxu0 0
        %4710 = vmatpush1.bf16.msra.mxu0 0
        %4711 = vmatprep.subr.bf16.mxu0 0
        %4712 = vmatpush1.bf16.msra.mxu0 0
        %4713 = vmatprep.mubr.bf16.mxu0 0
        %4714 = vmatmul.mubr.bf16.gmra.mrb[0].mxu0 %v4614
        %v4715 = vpop.f32.mrb[0].mxu0
        %v4716 = vadd.f32 0.0, %v4715
        %v4717 = vpop.f32.mrb[0].mxu0
        %v4718 = vadd.f32 0.0, %v4717
        %v4719 = vpop.f32.mrb[0].mxu0
        %v4720 = vpop.f32.mrb[0].mxu0
        %4721 = vdwg.mxu0
        %4722 = vmatprep.subr.bf16.mxu0 %v4632
        %4723 = vmatpush1.bf16.msra.mxu0 %v4629
        %4724 = vmatprep.subr.bf16.mxu0 0
        %4725 = vmatpush1.bf16.msra.mxu0 0
        %4726 = vmatprep.subr.bf16.mxu0 0
        %4727 = vmatpush1.bf16.msra.mxu0 0
        %4728 = vmatprep.subr.bf16.mxu0 0
        %4729 = vmatpush1.bf16.msra.mxu0 0
        %4730 = vmatprep.subr.bf16.mxu0 0
        %4731 = vmatpush1.bf16.msra.mxu0 0
        %4732 = vmatprep.subr.bf16.mxu0 0
        %4733 = vmatpush1.bf16.msra.mxu0 0
        %4734 = vmatprep.subr.bf16.mxu0 0
        %4735 = vmatpush1.bf16.msra.mxu0 0
        %4736 = vmatprep.subr.bf16.mxu0 0
        %4737 = vmatpush1.bf16.msra.mxu0 0
        %4738 = vmatprep.subr.bf16.mxu0 0
        %4739 = vmatpush1.bf16.msra.mxu0 0
        %4740 = vmatprep.subr.bf16.mxu0 0
        %4741 = vmatpush1.bf16.msra.mxu0 0
        %4742 = vmatprep.subr.bf16.mxu0 0
        %4743 = vmatpush1.bf16.msra.mxu0 0
        %4744 = vmatprep.subr.bf16.mxu0 0
        %4745 = vmatpush1.bf16.msra.mxu0 0
        %4746 = vmatprep.subr.bf16.mxu0 0
        %4747 = vmatpush1.bf16.msra.mxu0 0
        %4748 = vmatprep.subr.bf16.mxu0 0
        %4749 = vmatpush1.bf16.msra.mxu0 0
        %4750 = vmatprep.subr.bf16.mxu0 0
        %4751 = vmatpush1.bf16.msra.mxu0 0
        %4752 = vmatprep.subr.bf16.mxu0 0
        %4753 = vmatpush1.bf16.msra.mxu0 0
        %4754 = vmatprep.mubr.bf16.mxu0 0
        %4755 = vmatmul.mubr.bf16.gmra.mrb[0].mxu0 %v4614
        %v4756 = vpop.f32.mrb[0].mxu0
        %v4757 = vadd.f32 0.0, %v4756
        %v4758 = vpop.f32.mrb[0].mxu0
        %v4759 = vadd.f32 0.0, %v4758
        %v4760 = vpop.f32.mrb[0].mxu0
        %v4761 = vpop.f32.mrb[0].mxu0
        %4762 = vdwg.mxu0
        %4763 = vmatprep.subr.bf16.mxu0 %v4638
        %4764 = vmatpush1.bf16.msra.mxu0 %v4635
        %4765 = vmatprep.subr.bf16.mxu0 0
        %4766 = vmatpush1.bf16.msra.mxu0 0
        %4767 = vmatprep.subr.bf16.mxu0 0
        %4768 = vmatpush1.bf16.msra.mxu0 0
        %4769 = vmatprep.subr.bf16.mxu0 0
        %4770 = vmatpush1.bf16.msra.mxu0 0
        %4771 = vmatprep.subr.bf16.mxu0 0
        %4772 = vmatpush1.bf16.msra.mxu0 0
        %4773 = vmatprep.subr.bf16.mxu0 0
        %4774 = vmatpush1.bf16.msra.mxu0 0
        %4775 = vmatprep.subr.bf16.mxu0 0
        %4776 = vmatpush1.bf16.msra.mxu0 0
        %4777 = vmatprep.subr.bf16.mxu0 0
        %4778 = vmatpush1.bf16.msra.mxu0 0
        %4779 = vmatprep.subr.bf16.mxu0 0
        %4780 = vmatpush1.bf16.msra.mxu0 0
        %4781 = vmatprep.subr.bf16.mxu0 0
        %4782 = vmatpush1.bf16.msra.mxu0 0
        %4783 = vmatprep.subr.bf16.mxu0 0
        %4784 = vmatpush1.bf16.msra.mxu0 0
        %4785 = vmatprep.subr.bf16.mxu0 0
        %4786 = vmatpush1.bf16.msra.mxu0 0
        %4787 = vmatprep.subr.bf16.mxu0 0
        %4788 = vmatpush1.bf16.msra.mxu0 0
        %4789 = vmatprep.subr.bf16.mxu0 0
        %4790 = vmatpush1.bf16.msra.mxu0 0
        %4791 = vmatprep.subr.bf16.mxu0 0
        %4792 = vmatpush1.bf16.msra.mxu0 0
        %4793 = vmatprep.subr.bf16.mxu0 0
        %4794 = vmatpush1.bf16.msra.mxu0 0
        %4795 = vmatprep.mubr.bf16.mxu0 0
        %4796 = vmatmul.mubr.bf16.gmra.mrb[0].mxu0 %v4614
        %v4797 = vpop.f32.mrb[0].mxu0
        %v4798 = vadd.f32 0.0, %v4797
        %v4799 = vpop.f32.mrb[0].mxu0
        %v4800 = vadd.f32 0.0, %v4799
        %v4801 = vpop.f32.mrb[0].mxu0
        %v4802 = vpop.f32.mrb[0].mxu0
        %4803 = vdwg.mxu0
        %v4804 = vadd.f32 %v4570, %v4675
        %v4805 = vadd.f32 %v4571, %v4677
        %v4806 = vadd.f32 %v4572, %v4716
        %v4807 = vadd.f32 %v4573, %v4718
        %v4808 = vadd.f32 %v4574, %v4757
        %v4809 = vadd.f32 %v4575, %v4759
        %v4810 = vadd.f32 %v4576, %v4798
        %v4811 = vadd.f32 %v4577, %v4800
        %4812 = vrot.lane.b32.xlu0 %v385, 28
        %v4813 = vpop.permute.xlu0 %4812
        %4814 = vrot.lane.b32.xlu0 %v393, 28
        %v4815 = vpop.permute.xlu0 %4814
        %4816 = vrot.lane.b32.xlu0 %v386, 28
        %v4817 = vpop.permute.xlu0 %4816
        %4818 = vrot.lane.b32.xlu0 %v394, 28
        %v4819 = vpop.permute.xlu0 %4818
        %4820 = vrot.lane.b32.xlu0 %v387, 28
        %v4821 = vpop.permute.xlu0 %4820
        %4822 = vrot.lane.b32.xlu0 %v395, 28
        %v4823 = vpop.permute.xlu0 %4822
        %4824 = vrot.lane.b32.xlu0 %v388, 28
        %v4825 = vpop.permute.xlu0 %4824
        %4826 = vrot.lane.b32.xlu0 %v396, 28
        %v4827 = vpop.permute.xlu0 %4826
        %vm4828 = vcmp.lt.s32.totalorder %v427, 28
        %v4829 = vsel %vm4828, %v4825, %v4827
        %v4830 = vsel %vm4828, %v4823, %v4825
        %v4831 = vsel %vm4828, %v4821, %v4823
        %v4832 = vsel %vm4828, %v4819, %v4821
        %v4833 = vsel %vm4828, %v4817, %v4819
        %v4834 = vsel %vm4828, %v4815, %v4817
        %v4835 = vsel %vm4828, %v4813, %v4815
        %v4836 = vsel %vm4828, %v4827, %v4813
        %v4837 = vpack.c.bf16 %v4835, %v4835
        %v4838 = vpack.c.bf16 %v4834, %v4834
        %v4839 = vpack.c.bf16 %v4833, %v4833
        %v4840 = vpack.c.bf16 %v4832, %v4832
        %v4841 = vpack.c.bf16 %v4831, %v4831
        %v4842 = vpack.c.bf16 %v4830, %v4830
        %v4843 = vpack.c.bf16 %v4829, %v4829
        %v4844 = vpack.c.bf16 %v4836, %v4836
        %s4845 = scalar_lea.vmem %s1, 76
        %v4846 = vld [vmem:[%s4845] sm:$0x7]
        %v4848 = vsel %vm447, %v4846, 0
        %v4851 = vand.u32 %v4837, %v454
        %v4854 = vand.u32 %v4838, %v454
        %v4857 = vand.u32 %v4839, %v454
        %v4860 = vand.u32 %v4840, %v454
        %v4863 = vand.u32 %v4841, %v454
        %v4866 = vand.u32 %v4842, %v454
        %v4869 = vand.u32 %v4843, %v454
        %v4872 = vand.u32 %v4844, %v454
        %4874 = vmatprep.subr.bf16.mxu0 %v4854
        %4875 = vmatpush1.bf16.msra.mxu0 %v4851
        %4876 = vmatprep.subr.bf16.mxu0 0
        %4877 = vmatpush1.bf16.msra.mxu0 0
        %4878 = vmatprep.subr.bf16.mxu0 0
        %4879 = vmatpush1.bf16.msra.mxu0 0
        %4880 = vmatprep.subr.bf16.mxu0 0
        %4881 = vmatpush1.bf16.msra.mxu0 0
        %4882 = vmatprep.subr.bf16.mxu0 0
        %4883 = vmatpush1.bf16.msra.mxu0 0
        %4884 = vmatprep.subr.bf16.mxu0 0
        %4885 = vmatpush1.bf16.msra.mxu0 0
        %4886 = vmatprep.subr.bf16.mxu0 0
        %4887 = vmatpush1.bf16.msra.mxu0 0
        %4888 = vmatprep.subr.bf16.mxu0 0
        %4889 = vmatpush1.bf16.msra.mxu0 0
        %4890 = vmatprep.subr.bf16.mxu0 0
        %4891 = vmatpush1.bf16.msra.mxu0 0
        %4892 = vmatprep.subr.bf16.mxu0 0
        %4893 = vmatpush1.bf16.msra.mxu0 0
        %4894 = vmatprep.subr.bf16.mxu0 0
        %4895 = vmatpush1.bf16.msra.mxu0 0
        %4896 = vmatprep.subr.bf16.mxu0 0
        %4897 = vmatpush1.bf16.msra.mxu0 0
        %4898 = vmatprep.subr.bf16.mxu0 0
        %4899 = vmatpush1.bf16.msra.mxu0 0
        %4900 = vmatprep.subr.bf16.mxu0 0
        %4901 = vmatpush1.bf16.msra.mxu0 0
        %4902 = vmatprep.subr.bf16.mxu0 0
        %4903 = vmatpush1.bf16.msra.mxu0 0
        %4904 = vmatprep.subr.bf16.mxu0 0
        %4905 = vmatpush1.bf16.msra.mxu0 0
        %4906 = vmatprep.mubr.bf16.mxu0 0
        %4907 = vmatmul.mubr.bf16.gmra.mrb[0].mxu0 %v4848
        %v4908 = vpop.f32.mrb[0].mxu0
        %v4909 = vadd.f32 0.0, %v4908
        %v4910 = vpop.f32.mrb[0].mxu0
        %v4911 = vadd.f32 0.0, %v4910
        %v4912 = vpop.f32.mrb[0].mxu0
        %v4913 = vpop.f32.mrb[0].mxu0
        %4914 = vdwg.mxu0
        %4915 = vmatprep.subr.bf16.mxu0 %v4860
        %4916 = vmatpush1.bf16.msra.mxu0 %v4857
        %4917 = vmatprep.subr.bf16.mxu0 0
        %4918 = vmatpush1.bf16.msra.mxu0 0
        %4919 = vmatprep.subr.bf16.mxu0 0
        %4920 = vmatpush1.bf16.msra.mxu0 0
        %4921 = vmatprep.subr.bf16.mxu0 0
        %4922 = vmatpush1.bf16.msra.mxu0 0
        %4923 = vmatprep.subr.bf16.mxu0 0
        %4924 = vmatpush1.bf16.msra.mxu0 0
        %4925 = vmatprep.subr.bf16.mxu0 0
        %4926 = vmatpush1.bf16.msra.mxu0 0
        %4927 = vmatprep.subr.bf16.mxu0 0
        %4928 = vmatpush1.bf16.msra.mxu0 0
        %4929 = vmatprep.subr.bf16.mxu0 0
        %4930 = vmatpush1.bf16.msra.mxu0 0
        %4931 = vmatprep.subr.bf16.mxu0 0
        %4932 = vmatpush1.bf16.msra.mxu0 0
        %4933 = vmatprep.subr.bf16.mxu0 0
        %4934 = vmatpush1.bf16.msra.mxu0 0
        %4935 = vmatprep.subr.bf16.mxu0 0
        %4936 = vmatpush1.bf16.msra.mxu0 0
        %4937 = vmatprep.subr.bf16.mxu0 0
        %4938 = vmatpush1.bf16.msra.mxu0 0
        %4939 = vmatprep.subr.bf16.mxu0 0
        %4940 = vmatpush1.bf16.msra.mxu0 0
        %4941 = vmatprep.subr.bf16.mxu0 0
        %4942 = vmatpush1.bf16.msra.mxu0 0
        %4943 = vmatprep.subr.bf16.mxu0 0
        %4944 = vmatpush1.bf16.msra.mxu0 0
        %4945 = vmatprep.subr.bf16.mxu0 0
        %4946 = vmatpush1.bf16.msra.mxu0 0
        %4947 = vmatprep.mubr.bf16.mxu0 0
        %4948 = vmatmul.mubr.bf16.gmra.mrb[0].mxu0 %v4848
        %v4949 = vpop.f32.mrb[0].mxu0
        %v4950 = vadd.f32 0.0, %v4949
        %v4951 = vpop.f32.mrb[0].mxu0
        %v4952 = vadd.f32 0.0, %v4951
        %v4953 = vpop.f32.mrb[0].mxu0
        %v4954 = vpop.f32.mrb[0].mxu0
        %4955 = vdwg.mxu0
        %4956 = vmatprep.subr.bf16.mxu0 %v4866
        %4957 = vmatpush1.bf16.msra.mxu0 %v4863
        %4958 = vmatprep.subr.bf16.mxu0 0
        %4959 = vmatpush1.bf16.msra.mxu0 0
        %4960 = vmatprep.subr.bf16.mxu0 0
        %4961 = vmatpush1.bf16.msra.mxu0 0
        %4962 = vmatprep.subr.bf16.mxu0 0
        %4963 = vmatpush1.bf16.msra.mxu0 0
        %4964 = vmatprep.subr.bf16.mxu0 0
        %4965 = vmatpush1.bf16.msra.mxu0 0
        %4966 = vmatprep.subr.bf16.mxu0 0
        %4967 = vmatpush1.bf16.msra.mxu0 0
        %4968 = vmatprep.subr.bf16.mxu0 0
        %4969 = vmatpush1.bf16.msra.mxu0 0
        %4970 = vmatprep.subr.bf16.mxu0 0
        %4971 = vmatpush1.bf16.msra.mxu0 0
        %4972 = vmatprep.subr.bf16.mxu0 0
        %4973 = vmatpush1.bf16.msra.mxu0 0
        %4974 = vmatprep.subr.bf16.mxu0 0
        %4975 = vmatpush1.bf16.msra.mxu0 0
        %4976 = vmatprep.subr.bf16.mxu0 0
        %4977 = vmatpush1.bf16.msra.mxu0 0
        %4978 = vmatprep.subr.bf16.mxu0 0
        %4979 = vmatpush1.bf16.msra.mxu0 0
        %4980 = vmatprep.subr.bf16.mxu0 0
        %4981 = vmatpush1.bf16.msra.mxu0 0
        %4982 = vmatprep.subr.bf16.mxu0 0
        %4983 = vmatpush1.bf16.msra.mxu0 0
        %4984 = vmatprep.subr.bf16.mxu0 0
        %4985 = vmatpush1.bf16.msra.mxu0 0
        %4986 = vmatprep.subr.bf16.mxu0 0
        %4987 = vmatpush1.bf16.msra.mxu0 0
        %4988 = vmatprep.mubr.bf16.mxu0 0
        %4989 = vmatmul.mubr.bf16.gmra.mrb[0].mxu0 %v4848
        %v4990 = vpop.f32.mrb[0].mxu0
        %v4991 = vadd.f32 0.0, %v4990
        %v4992 = vpop.f32.mrb[0].mxu0
        %v4993 = vadd.f32 0.0, %v4992
        %v4994 = vpop.f32.mrb[0].mxu0
        %v4995 = vpop.f32.mrb[0].mxu0
        %4996 = vdwg.mxu0
        %4997 = vmatprep.subr.bf16.mxu0 %v4872
        %4998 = vmatpush1.bf16.msra.mxu0 %v4869
        %4999 = vmatprep.subr.bf16.mxu0 0
        %5000 = vmatpush1.bf16.msra.mxu0 0
        %5001 = vmatprep.subr.bf16.mxu0 0
        %5002 = vmatpush1.bf16.msra.mxu0 0
        %5003 = vmatprep.subr.bf16.mxu0 0
        %5004 = vmatpush1.bf16.msra.mxu0 0
        %5005 = vmatprep.subr.bf16.mxu0 0
        %5006 = vmatpush1.bf16.msra.mxu0 0
        %5007 = vmatprep.subr.bf16.mxu0 0
        %5008 = vmatpush1.bf16.msra.mxu0 0
        %5009 = vmatprep.subr.bf16.mxu0 0
        %5010 = vmatpush1.bf16.msra.mxu0 0
        %5011 = vmatprep.subr.bf16.mxu0 0
        %5012 = vmatpush1.bf16.msra.mxu0 0
        %5013 = vmatprep.subr.bf16.mxu0 0
        %5014 = vmatpush1.bf16.msra.mxu0 0
        %5015 = vmatprep.subr.bf16.mxu0 0
        %5016 = vmatpush1.bf16.msra.mxu0 0
        %5017 = vmatprep.subr.bf16.mxu0 0
        %5018 = vmatpush1.bf16.msra.mxu0 0
        %5019 = vmatprep.subr.bf16.mxu0 0
        %5020 = vmatpush1.bf16.msra.mxu0 0
        %5021 = vmatprep.subr.bf16.mxu0 0
        %5022 = vmatpush1.bf16.msra.mxu0 0
        %5023 = vmatprep.subr.bf16.mxu0 0
        %5024 = vmatpush1.bf16.msra.mxu0 0
        %5025 = vmatprep.subr.bf16.mxu0 0
        %5026 = vmatpush1.bf16.msra.mxu0 0
        %5027 = vmatprep.subr.bf16.mxu0 0
        %5028 = vmatpush1.bf16.msra.mxu0 0
        %5029 = vmatprep.mubr.bf16.mxu0 0
        %5030 = vmatmul.mubr.bf16.gmra.mrb[0].mxu0 %v4848
        %v5031 = vpop.f32.mrb[0].mxu0
        %v5032 = vadd.f32 0.0, %v5031
        %v5033 = vpop.f32.mrb[0].mxu0
        %v5034 = vadd.f32 0.0, %v5033
        %v5035 = vpop.f32.mrb[0].mxu0
        %v5036 = vpop.f32.mrb[0].mxu0
        %5037 = vdwg.mxu0
        %v5038 = vadd.f32 %v4804, %v4909
        %v5039 = vadd.f32 %v4805, %v4911
        %v5040 = vadd.f32 %v4806, %v4950
        %v5041 = vadd.f32 %v4807, %v4952
        %v5042 = vadd.f32 %v4808, %v4991
        %v5043 = vadd.f32 %v4809, %v4993
        %v5044 = vadd.f32 %v4810, %v5032
        %v5045 = vadd.f32 %v4811, %v5034
        %s5046 = scalar_lea.vmem %s1, 80
        %v5047 = vld [vmem:[%s5046] sm:$0x7]
        %v5049 = vsel %vm447, %v5047, 0
        %5051 = vmatprep.subr.bf16.mxu0 %v653
        %5052 = vmatpush1.bf16.msra.mxu0 %v650
        %5053 = vmatprep.subr.bf16.mxu0 0
        %5054 = vmatpush1.bf16.msra.mxu0 0
        %5055 = vmatprep.subr.bf16.mxu0 0
        %5056 = vmatpush1.bf16.msra.mxu0 0
        %5057 = vmatprep.subr.bf16.mxu0 0
        %5058 = vmatpush1.bf16.msra.mxu0 0
        %5059 = vmatprep.subr.bf16.mxu0 0
        %5060 = vmatpush1.bf16.msra.mxu0 0
        %5061 = vmatprep.subr.bf16.mxu0 0
        %5062 = vmatpush1.bf16.msra.mxu0 0
        %5063 = vmatprep.subr.bf16.mxu0 0
        %5064 = vmatpush1.bf16.msra.mxu0 0
        %5065 = vmatprep.subr.bf16.mxu0 0
        %5066 = vmatpush1.bf16.msra.mxu0 0
        %5067 = vmatprep.subr.bf16.mxu0 0
        %5068 = vmatpush1.bf16.msra.mxu0 0
        %5069 = vmatprep.subr.bf16.mxu0 0
        %5070 = vmatpush1.bf16.msra.mxu0 0
        %5071 = vmatprep.subr.bf16.mxu0 0
        %5072 = vmatpush1.bf16.msra.mxu0 0
        %5073 = vmatprep.subr.bf16.mxu0 0
        %5074 = vmatpush1.bf16.msra.mxu0 0
        %5075 = vmatprep.subr.bf16.mxu0 0
        %5076 = vmatpush1.bf16.msra.mxu0 0
        %5077 = vmatprep.subr.bf16.mxu0 0
        %5078 = vmatpush1.bf16.msra.mxu0 0
        %5079 = vmatprep.subr.bf16.mxu0 0
        %5080 = vmatpush1.bf16.msra.mxu0 0
        %5081 = vmatprep.subr.bf16.mxu0 0
        %5082 = vmatpush1.bf16.msra.mxu0 0
        %5083 = vmatprep.mubr.bf16.mxu0 0
        %5084 = vmatmul.mubr.bf16.gmra.mrb[0].mxu0 %v5049
        %v5085 = vpop.f32.mrb[0].mxu0
        %v5086 = vadd.f32 0.0, %v5085
        %v5087 = vpop.f32.mrb[0].mxu0
        %v5088 = vadd.f32 0.0, %v5087
        %v5089 = vpop.f32.mrb[0].mxu0
        %v5090 = vpop.f32.mrb[0].mxu0
        %5091 = vdwg.mxu0
        %5092 = vmatprep.subr.bf16.mxu0 %v659
        %5093 = vmatpush1.bf16.msra.mxu0 %v656
        %5094 = vmatprep.subr.bf16.mxu0 0
        %5095 = vmatpush1.bf16.msra.mxu0 0
        %5096 = vmatprep.subr.bf16.mxu0 0
        %5097 = vmatpush1.bf16.msra.mxu0 0
        %5098 = vmatprep.subr.bf16.mxu0 0
        %5099 = vmatpush1.bf16.msra.mxu0 0
        %5100 = vmatprep.subr.bf16.mxu0 0
        %5101 = vmatpush1.bf16.msra.mxu0 0
        %5102 = vmatprep.subr.bf16.mxu0 0
        %5103 = vmatpush1.bf16.msra.mxu0 0
        %5104 = vmatprep.subr.bf16.mxu0 0
        %5105 = vmatpush1.bf16.msra.mxu0 0
        %5106 = vmatprep.subr.bf16.mxu0 0
        %5107 = vmatpush1.bf16.msra.mxu0 0
        %5108 = vmatprep.subr.bf16.mxu0 0
        %5109 = vmatpush1.bf16.msra.mxu0 0
        %5110 = vmatprep.subr.bf16.mxu0 0
        %5111 = vmatpush1.bf16.msra.mxu0 0
        %5112 = vmatprep.subr.bf16.mxu0 0
        %5113 = vmatpush1.bf16.msra.mxu0 0
        %5114 = vmatprep.subr.bf16.mxu0 0
        %5115 = vmatpush1.bf16.msra.mxu0 0
        %5116 = vmatprep.subr.bf16.mxu0 0
        %5117 = vmatpush1.bf16.msra.mxu0 0
        %5118 = vmatprep.subr.bf16.mxu0 0
        %5119 = vmatpush1.bf16.msra.mxu0 0
        %5120 = vmatprep.subr.bf16.mxu0 0
        %5121 = vmatpush1.bf16.msra.mxu0 0
        %5122 = vmatprep.subr.bf16.mxu0 0
        %5123 = vmatpush1.bf16.msra.mxu0 0
        %5124 = vmatprep.mubr.bf16.mxu0 0
        %5125 = vmatmul.mubr.bf16.gmra.mrb[0].mxu0 %v5049
        %v5126 = vpop.f32.mrb[0].mxu0
        %v5127 = vadd.f32 0.0, %v5126
        %v5128 = vpop.f32.mrb[0].mxu0
        %v5129 = vadd.f32 0.0, %v5128
        %v5130 = vpop.f32.mrb[0].mxu0
        %v5131 = vpop.f32.mrb[0].mxu0
        %5132 = vdwg.mxu0
        %5133 = vmatprep.subr.bf16.mxu0 %v665
        %5134 = vmatpush1.bf16.msra.mxu0 %v662
        %5135 = vmatprep.subr.bf16.mxu0 0
        %5136 = vmatpush1.bf16.msra.mxu0 0
        %5137 = vmatprep.subr.bf16.mxu0 0
        %5138 = vmatpush1.bf16.msra.mxu0 0
        %5139 = vmatprep.subr.bf16.mxu0 0
        %5140 = vmatpush1.bf16.msra.mxu0 0
        %5141 = vmatprep.subr.bf16.mxu0 0
        %5142 = vmatpush1.bf16.msra.mxu0 0
        %5143 = vmatprep.subr.bf16.mxu0 0
        %5144 = vmatpush1.bf16.msra.mxu0 0
        %5145 = vmatprep.subr.bf16.mxu0 0
        %5146 = vmatpush1.bf16.msra.mxu0 0
        %5147 = vmatprep.subr.bf16.mxu0 0
        %5148 = vmatpush1.bf16.msra.mxu0 0
        %5149 = vmatprep.subr.bf16.mxu0 0
        %5150 = vmatpush1.bf16.msra.mxu0 0
        %5151 = vmatprep.subr.bf16.mxu0 0
        %5152 = vmatpush1.bf16.msra.mxu0 0
        %5153 = vmatprep.subr.bf16.mxu0 0
        %5154 = vmatpush1.bf16.msra.mxu0 0
        %5155 = vmatprep.subr.bf16.mxu0 0
        %5156 = vmatpush1.bf16.msra.mxu0 0
        %5157 = vmatprep.subr.bf16.mxu0 0
        %5158 = vmatpush1.bf16.msra.mxu0 0
        %5159 = vmatprep.subr.bf16.mxu0 0
        %5160 = vmatpush1.bf16.msra.mxu0 0
        %5161 = vmatprep.subr.bf16.mxu0 0
        %5162 = vmatpush1.bf16.msra.mxu0 0
        %5163 = vmatprep.subr.bf16.mxu0 0
        %5164 = vmatpush1.bf16.msra.mxu0 0
        %5165 = vmatprep.mubr.bf16.mxu0 0
        %5166 = vmatmul.mubr.bf16.gmra.mrb[0].mxu0 %v5049
        %v5167 = vpop.f32.mrb[0].mxu0
        %v5168 = vadd.f32 0.0, %v5167
        %v5169 = vpop.f32.mrb[0].mxu0
        %v5170 = vadd.f32 0.0, %v5169
        %v5171 = vpop.f32.mrb[0].mxu0
        %v5172 = vpop.f32.mrb[0].mxu0
        %5173 = vdwg.mxu0
        %5174 = vmatprep.subr.bf16.mxu0 %v647
        %5175 = vmatpush1.bf16.msra.mxu0 %v668
        %5176 = vmatprep.subr.bf16.mxu0 0
        %5177 = vmatpush1.bf16.msra.mxu0 0
        %5178 = vmatprep.subr.bf16.mxu0 0
        %5179 = vmatpush1.bf16.msra.mxu0 0
        %5180 = vmatprep.subr.bf16.mxu0 0
        %5181 = vmatpush1.bf16.msra.mxu0 0
        %5182 = vmatprep.subr.bf16.mxu0 0
        %5183 = vmatpush1.bf16.msra.mxu0 0
        %5184 = vmatprep.subr.bf16.mxu0 0
        %5185 = vmatpush1.bf16.msra.mxu0 0
        %5186 = vmatprep.subr.bf16.mxu0 0
        %5187 = vmatpush1.bf16.msra.mxu0 0
        %5188 = vmatprep.subr.bf16.mxu0 0
        %5189 = vmatpush1.bf16.msra.mxu0 0
        %5190 = vmatprep.subr.bf16.mxu0 0
        %5191 = vmatpush1.bf16.msra.mxu0 0
        %5192 = vmatprep.subr.bf16.mxu0 0
        %5193 = vmatpush1.bf16.msra.mxu0 0
        %5194 = vmatprep.subr.bf16.mxu0 0
        %5195 = vmatpush1.bf16.msra.mxu0 0
        %5196 = vmatprep.subr.bf16.mxu0 0
        %5197 = vmatpush1.bf16.msra.mxu0 0
        %5198 = vmatprep.subr.bf16.mxu0 0
        %5199 = vmatpush1.bf16.msra.mxu0 0
        %5200 = vmatprep.subr.bf16.mxu0 0
        %5201 = vmatpush1.bf16.msra.mxu0 0
        %5202 = vmatprep.subr.bf16.mxu0 0
        %5203 = vmatpush1.bf16.msra.mxu0 0
        %5204 = vmatprep.subr.bf16.mxu0 0
        %5205 = vmatpush1.bf16.msra.mxu0 0
        %5206 = vmatprep.mubr.bf16.mxu0 0
        %5207 = vmatmul.mubr.bf16.gmra.mrb[0].mxu0 %v5049
        %v5208 = vpop.f32.mrb[0].mxu0
        %v5209 = vadd.f32 0.0, %v5208
        %v5210 = vpop.f32.mrb[0].mxu0
        %v5211 = vadd.f32 0.0, %v5210
        %v5212 = vpop.f32.mrb[0].mxu0
        %v5213 = vpop.f32.mrb[0].mxu0
        %5214 = vdwg.mxu0
        %v5215 = vadd.f32 %v5038, %v5086
        %v5216 = vadd.f32 %v5039, %v5088
        %v5217 = vadd.f32 %v5040, %v5127
        %v5218 = vadd.f32 %v5041, %v5129
        %v5219 = vadd.f32 %v5042, %v5168
        %v5220 = vadd.f32 %v5043, %v5170
        %v5221 = vadd.f32 %v5044, %v5209
        %v5222 = vadd.f32 %v5045, %v5211
        %s5223 = scalar_lea.vmem %s1, 84
        %v5224 = vld [vmem:[%s5223] sm:$0x7]
        %v5226 = vsel %vm447, %v5224, 0
        %5228 = vmatprep.subr.bf16.mxu0 %v462
        %5229 = vmatpush1.bf16.msra.mxu0 %v459
        %5230 = vmatprep.subr.bf16.mxu0 0
        %5231 = vmatpush1.bf16.msra.mxu0 0
        %5232 = vmatprep.subr.bf16.mxu0 0
        %5233 = vmatpush1.bf16.msra.mxu0 0
        %5234 = vmatprep.subr.bf16.mxu0 0
        %5235 = vmatpush1.bf16.msra.mxu0 0
        %5236 = vmatprep.subr.bf16.mxu0 0
        %5237 = vmatpush1.bf16.msra.mxu0 0
        %5238 = vmatprep.subr.bf16.mxu0 0
        %5239 = vmatpush1.bf16.msra.mxu0 0
        %5240 = vmatprep.subr.bf16.mxu0 0
        %5241 = vmatpush1.bf16.msra.mxu0 0
        %5242 = vmatprep.subr.bf16.mxu0 0
        %5243 = vmatpush1.bf16.msra.mxu0 0
        %5244 = vmatprep.subr.bf16.mxu0 0
        %5245 = vmatpush1.bf16.msra.mxu0 0
        %5246 = vmatprep.subr.bf16.mxu0 0
        %5247 = vmatpush1.bf16.msra.mxu0 0
        %5248 = vmatprep.subr.bf16.mxu0 0
        %5249 = vmatpush1.bf16.msra.mxu0 0
        %5250 = vmatprep.subr.bf16.mxu0 0
        %5251 = vmatpush1.bf16.msra.mxu0 0
        %5252 = vmatprep.subr.bf16.mxu0 0
        %5253 = vmatpush1.bf16.msra.mxu0 0
        %5254 = vmatprep.subr.bf16.mxu0 0
        %5255 = vmatpush1.bf16.msra.mxu0 0
        %5256 = vmatprep.subr.bf16.mxu0 0
        %5257 = vmatpush1.bf16.msra.mxu0 0
        %5258 = vmatprep.subr.bf16.mxu0 0
        %5259 = vmatpush1.bf16.msra.mxu0 0
        %5260 = vmatprep.mubr.bf16.mxu0 0
        %5261 = vmatmul.mubr.bf16.gmra.mrb[0].mxu0 %v5226
        %v5262 = vpop.f32.mrb[0].mxu0
        %v5263 = vadd.f32 0.0, %v5262
        %v5264 = vpop.f32.mrb[0].mxu0
        %v5265 = vadd.f32 0.0, %v5264
        %v5266 = vpop.f32.mrb[0].mxu0
        %v5267 = vpop.f32.mrb[0].mxu0
        %5268 = vdwg.mxu0
        %5269 = vmatprep.subr.bf16.mxu0 %v468
        %5270 = vmatpush1.bf16.msra.mxu0 %v465
        %5271 = vmatprep.subr.bf16.mxu0 0
        %5272 = vmatpush1.bf16.msra.mxu0 0
        %5273 = vmatprep.subr.bf16.mxu0 0
        %5274 = vmatpush1.bf16.msra.mxu0 0
        %5275 = vmatprep.subr.bf16.mxu0 0
        %5276 = vmatpush1.bf16.msra.mxu0 0
        %5277 = vmatprep.subr.bf16.mxu0 0
        %5278 = vmatpush1.bf16.msra.mxu0 0
        %5279 = vmatprep.subr.bf16.mxu0 0
        %5280 = vmatpush1.bf16.msra.mxu0 0
        %5281 = vmatprep.subr.bf16.mxu0 0
        %5282 = vmatpush1.bf16.msra.mxu0 0
        %5283 = vmatprep.subr.bf16.mxu0 0
        %5284 = vmatpush1.bf16.msra.mxu0 0
        %5285 = vmatprep.subr.bf16.mxu0 0
        %5286 = vmatpush1.bf16.msra.mxu0 0
        %5287 = vmatprep.subr.bf16.mxu0 0
        %5288 = vmatpush1.bf16.msra.mxu0 0
        %5289 = vmatprep.subr.bf16.mxu0 0
        %5290 = vmatpush1.bf16.msra.mxu0 0
        %5291 = vmatprep.subr.bf16.mxu0 0
        %5292 = vmatpush1.bf16.msra.mxu0 0
        %5293 = vmatprep.subr.bf16.mxu0 0
        %5294 = vmatpush1.bf16.msra.mxu0 0
        %5295 = vmatprep.subr.bf16.mxu0 0
        %5296 = vmatpush1.bf16.msra.mxu0 0
        %5297 = vmatprep.subr.bf16.mxu0 0
        %5298 = vmatpush1.bf16.msra.mxu0 0
        %5299 = vmatprep.subr.bf16.mxu0 0
        %5300 = vmatpush1.bf16.msra.mxu0 0
        %5301 = vmatprep.mubr.bf16.mxu0 0
        %5302 = vmatmul.mubr.bf16.gmra.mrb[0].mxu0 %v5226
        %v5303 = vpop.f32.mrb[0].mxu0
        %v5304 = vadd.f32 0.0, %v5303
        %v5305 = vpop.f32.mrb[0].mxu0
        %v5306 = vadd.f32 0.0, %v5305
        %v5307 = vpop.f32.mrb[0].mxu0
        %v5308 = vpop.f32.mrb[0].mxu0
        %5309 = vdwg.mxu0
        %5310 = vmatprep.subr.bf16.mxu0 %v474
        %5311 = vmatpush1.bf16.msra.mxu0 %v471
        %5312 = vmatprep.subr.bf16.mxu0 0
        %5313 = vmatpush1.bf16.msra.mxu0 0
        %5314 = vmatprep.subr.bf16.mxu0 0
        %5315 = vmatpush1.bf16.msra.mxu0 0
        %5316 = vmatprep.subr.bf16.mxu0 0
        %5317 = vmatpush1.bf16.msra.mxu0 0
        %5318 = vmatprep.subr.bf16.mxu0 0
        %5319 = vmatpush1.bf16.msra.mxu0 0
        %5320 = vmatprep.subr.bf16.mxu0 0
        %5321 = vmatpush1.bf16.msra.mxu0 0
        %5322 = vmatprep.subr.bf16.mxu0 0
        %5323 = vmatpush1.bf16.msra.mxu0 0
        %5324 = vmatprep.subr.bf16.mxu0 0
        %5325 = vmatpush1.bf16.msra.mxu0 0
        %5326 = vmatprep.subr.bf16.mxu0 0
        %5327 = vmatpush1.bf16.msra.mxu0 0
        %5328 = vmatprep.subr.bf16.mxu0 0
        %5329 = vmatpush1.bf16.msra.mxu0 0
        %5330 = vmatprep.subr.bf16.mxu0 0
        %5331 = vmatpush1.bf16.msra.mxu0 0
        %5332 = vmatprep.subr.bf16.mxu0 0
        %5333 = vmatpush1.bf16.msra.mxu0 0
        %5334 = vmatprep.subr.bf16.mxu0 0
        %5335 = vmatpush1.bf16.msra.mxu0 0
        %5336 = vmatprep.subr.bf16.mxu0 0
        %5337 = vmatpush1.bf16.msra.mxu0 0
        %5338 = vmatprep.subr.bf16.mxu0 0
        %5339 = vmatpush1.bf16.msra.mxu0 0
        %5340 = vmatprep.subr.bf16.mxu0 0
        %5341 = vmatpush1.bf16.msra.mxu0 0
        %5342 = vmatprep.mubr.bf16.mxu0 0
        %5343 = vmatmul.mubr.bf16.gmra.mrb[0].mxu0 %v5226
        %v5344 = vpop.f32.mrb[0].mxu0
        %v5345 = vadd.f32 0.0, %v5344
        %v5346 = vpop.f32.mrb[0].mxu0
        %v5347 = vadd.f32 0.0, %v5346
        %v5348 = vpop.f32.mrb[0].mxu0
        %v5349 = vpop.f32.mrb[0].mxu0
        %5350 = vdwg.mxu0
        %5351 = vmatprep.subr.bf16.mxu0 %v456
        %5352 = vmatpush1.bf16.msra.mxu0 %v477
        %5353 = vmatprep.subr.bf16.mxu0 0
        %5354 = vmatpush1.bf16.msra.mxu0 0
        %5355 = vmatprep.subr.bf16.mxu0 0
        %5356 = vmatpush1.bf16.msra.mxu0 0
        %5357 = vmatprep.subr.bf16.mxu0 0
        %5358 = vmatpush1.bf16.msra.mxu0 0
        %5359 = vmatprep.subr.bf16.mxu0 0
        %5360 = vmatpush1.bf16.msra.mxu0 0
        %5361 = vmatprep.subr.bf16.mxu0 0
        %5362 = vmatpush1.bf16.msra.mxu0 0
        %5363 = vmatprep.subr.bf16.mxu0 0
        %5364 = vmatpush1.bf16.msra.mxu0 0
        %5365 = vmatprep.subr.bf16.mxu0 0
        %5366 = vmatpush1.bf16.msra.mxu0 0
        %5367 = vmatprep.subr.bf16.mxu0 0
        %5368 = vmatpush1.bf16.msra.mxu0 0
        %5369 = vmatprep.subr.bf16.mxu0 0
        %5370 = vmatpush1.bf16.msra.mxu0 0
        %5371 = vmatprep.subr.bf16.mxu0 0
        %5372 = vmatpush1.bf16.msra.mxu0 0
        %5373 = vmatprep.subr.bf16.mxu0 0
        %5374 = vmatpush1.bf16.msra.mxu0 0
        %5375 = vmatprep.subr.bf16.mxu0 0
        %5376 = vmatpush1.bf16.msra.mxu0 0
        %5377 = vmatprep.subr.bf16.mxu0 0
        %5378 = vmatpush1.bf16.msra.mxu0 0
        %5379 = vmatprep.subr.bf16.mxu0 0
        %5380 = vmatpush1.bf16.msra.mxu0 0
        %5381 = vmatprep.subr.bf16.mxu0 0
        %5382 = vmatpush1.bf16.msra.mxu0 0
        %5383 = vmatprep.mubr.bf16.mxu0 0
        %5384 = vmatmul.mubr.bf16.gmra.mrb[0].mxu0 %v5226
        %v5385 = vpop.f32.mrb[0].mxu0
        %v5386 = vadd.f32 0.0, %v5385
        %v5387 = vpop.f32.mrb[0].mxu0
        %v5388 = vadd.f32 0.0, %v5387
        %v5389 = vpop.f32.mrb[0].mxu0
        %v5390 = vpop.f32.mrb[0].mxu0
        %5391 = vdwg.mxu0
        %v5392 = vadd.f32 %v5215, %v5263
        %v5393 = vadd.f32 %v5216, %v5265
        %v5394 = vadd.f32 %v5217, %v5304
        %v5395 = vadd.f32 %v5218, %v5306
        %v5396 = vadd.f32 %v5219, %v5345
        %v5397 = vadd.f32 %v5220, %v5347
        %v5398 = vadd.f32 %v5221, %v5386
        %v5399 = vadd.f32 %v5222, %v5388
        %s5400 = scalar_lea.vmem %s1, 88
        %v5401 = vld [vmem:[%s5400] sm:$0x7]
        %v5403 = vsel %vm447, %v5401, 0
        %5405 = vmatprep.subr.bf16.mxu0 %v879
        %5406 = vmatpush1.bf16.msra.mxu0 %v876
        %5407 = vmatprep.subr.bf16.mxu0 0
        %5408 = vmatpush1.bf16.msra.mxu0 0
        %5409 = vmatprep.subr.bf16.mxu0 0
        %5410 = vmatpush1.bf16.msra.mxu0 0
        %5411 = vmatprep.subr.bf16.mxu0 0
        %5412 = vmatpush1.bf16.msra.mxu0 0
        %5413 = vmatprep.subr.bf16.mxu0 0
        %5414 = vmatpush1.bf16.msra.mxu0 0
        %5415 = vmatprep.subr.bf16.mxu0 0
        %5416 = vmatpush1.bf16.msra.mxu0 0
        %5417 = vmatprep.subr.bf16.mxu0 0
        %5418 = vmatpush1.bf16.msra.mxu0 0
        %5419 = vmatprep.subr.bf16.mxu0 0
        %5420 = vmatpush1.bf16.msra.mxu0 0
        %5421 = vmatprep.subr.bf16.mxu0 0
        %5422 = vmatpush1.bf16.msra.mxu0 0
        %5423 = vmatprep.subr.bf16.mxu0 0
        %5424 = vmatpush1.bf16.msra.mxu0 0
        %5425 = vmatprep.subr.bf16.mxu0 0
        %5426 = vmatpush1.bf16.msra.mxu0 0
        %5427 = vmatprep.subr.bf16.mxu0 0
        %5428 = vmatpush1.bf16.msra.mxu0 0
        %5429 = vmatprep.subr.bf16.mxu0 0
        %5430 = vmatpush1.bf16.msra.mxu0 0
        %5431 = vmatprep.subr.bf16.mxu0 0
        %5432 = vmatpush1.bf16.msra.mxu0 0
        %5433 = vmatprep.subr.bf16.mxu0 0
        %5434 = vmatpush1.bf16.msra.mxu0 0
        %5435 = vmatprep.subr.bf16.mxu0 0
        %5436 = vmatpush1.bf16.msra.mxu0 0
        %5437 = vmatprep.mubr.bf16.mxu0 0
        %5438 = vmatmul.mubr.bf16.gmra.mrb[0].mxu0 %v5403
        %v5439 = vpop.f32.mrb[0].mxu0
        %v5440 = vadd.f32 0.0, %v5439
        %v5441 = vpop.f32.mrb[0].mxu0
        %v5442 = vadd.f32 0.0, %v5441
        %v5443 = vpop.f32.mrb[0].mxu0
        %v5444 = vpop.f32.mrb[0].mxu0
        %5445 = vdwg.mxu0
        %5446 = vmatprep.subr.bf16.mxu0 %v885
        %5447 = vmatpush1.bf16.msra.mxu0 %v882
        %5448 = vmatprep.subr.bf16.mxu0 0
        %5449 = vmatpush1.bf16.msra.mxu0 0
        %5450 = vmatprep.subr.bf16.mxu0 0
        %5451 = vmatpush1.bf16.msra.mxu0 0
        %5452 = vmatprep.subr.bf16.mxu0 0
        %5453 = vmatpush1.bf16.msra.mxu0 0
        %5454 = vmatprep.subr.bf16.mxu0 0
        %5455 = vmatpush1.bf16.msra.mxu0 0
        %5456 = vmatprep.subr.bf16.mxu0 0
        %5457 = vmatpush1.bf16.msra.mxu0 0
        %5458 = vmatprep.subr.bf16.mxu0 0
        %5459 = vmatpush1.bf16.msra.mxu0 0
        %5460 = vmatprep.subr.bf16.mxu0 0
        %5461 = vmatpush1.bf16.msra.mxu0 0
        %5462 = vmatprep.subr.bf16.mxu0 0
        %5463 = vmatpush1.bf16.msra.mxu0 0
        %5464 = vmatprep.subr.bf16.mxu0 0
        %5465 = vmatpush1.bf16.msra.mxu0 0
        %5466 = vmatprep.subr.bf16.mxu0 0
        %5467 = vmatpush1.bf16.msra.mxu0 0
        %5468 = vmatprep.subr.bf16.mxu0 0
        %5469 = vmatpush1.bf16.msra.mxu0 0
        %5470 = vmatprep.subr.bf16.mxu0 0
        %5471 = vmatpush1.bf16.msra.mxu0 0
        %5472 = vmatprep.subr.bf16.mxu0 0
        %5473 = vmatpush1.bf16.msra.mxu0 0
        %5474 = vmatprep.subr.bf16.mxu0 0
        %5475 = vmatpush1.bf16.msra.mxu0 0
        %5476 = vmatprep.subr.bf16.mxu0 0
        %5477 = vmatpush1.bf16.msra.mxu0 0
        %5478 = vmatprep.mubr.bf16.mxu0 0
        %5479 = vmatmul.mubr.bf16.gmra.mrb[0].mxu0 %v5403
        %v5480 = vpop.f32.mrb[0].mxu0
        %v5481 = vadd.f32 0.0, %v5480
        %v5482 = vpop.f32.mrb[0].mxu0
        %v5483 = vadd.f32 0.0, %v5482
        %v5484 = vpop.f32.mrb[0].mxu0
        %v5485 = vpop.f32.mrb[0].mxu0
        %5486 = vdwg.mxu0
        %5487 = vmatprep.subr.bf16.mxu0 %v891
        %5488 = vmatpush1.bf16.msra.mxu0 %v888
        %5489 = vmatprep.subr.bf16.mxu0 0
        %5490 = vmatpush1.bf16.msra.mxu0 0
        %5491 = vmatprep.subr.bf16.mxu0 0
        %5492 = vmatpush1.bf16.msra.mxu0 0
        %5493 = vmatprep.subr.bf16.mxu0 0
        %5494 = vmatpush1.bf16.msra.mxu0 0
        %5495 = vmatprep.subr.bf16.mxu0 0
        %5496 = vmatpush1.bf16.msra.mxu0 0
        %5497 = vmatprep.subr.bf16.mxu0 0
        %5498 = vmatpush1.bf16.msra.mxu0 0
        %5499 = vmatprep.subr.bf16.mxu0 0
        %5500 = vmatpush1.bf16.msra.mxu0 0
        %5501 = vmatprep.subr.bf16.mxu0 0
        %5502 = vmatpush1.bf16.msra.mxu0 0
        %5503 = vmatprep.subr.bf16.mxu0 0
        %5504 = vmatpush1.bf16.msra.mxu0 0
        %5505 = vmatprep.subr.bf16.mxu0 0
        %5506 = vmatpush1.bf16.msra.mxu0 0
        %5507 = vmatprep.subr.bf16.mxu0 0
        %5508 = vmatpush1.bf16.msra.mxu0 0
        %5509 = vmatprep.subr.bf16.mxu0 0
        %5510 = vmatpush1.bf16.msra.mxu0 0
        %5511 = vmatprep.subr.bf16.mxu0 0
        %5512 = vmatpush1.bf16.msra.mxu0 0
        %5513 = vmatprep.subr.bf16.mxu0 0
        %5514 = vmatpush1.bf16.msra.mxu0 0
        %5515 = vmatprep.subr.bf16.mxu0 0
        %5516 = vmatpush1.bf16.msra.mxu0 0
        %5517 = vmatprep.subr.bf16.mxu0 0
        %5518 = vmatpush1.bf16.msra.mxu0 0
        %5519 = vmatprep.mubr.bf16.mxu0 0
        %5520 = vmatmul.mubr.bf16.gmra.mrb[0].mxu0 %v5403
        %v5521 = vpop.f32.mrb[0].mxu0
        %v5522 = vadd.f32 0.0, %v5521
        %v5523 = vpop.f32.mrb[0].mxu0
        %v5524 = vadd.f32 0.0, %v5523
        %v5525 = vpop.f32.mrb[0].mxu0
        %v5526 = vpop.f32.mrb[0].mxu0
        %5527 = vdwg.mxu0
        %5528 = vmatprep.subr.bf16.mxu0 %v873
        %5529 = vmatpush1.bf16.msra.mxu0 %v894
        %5530 = vmatprep.subr.bf16.mxu0 0
        %5531 = vmatpush1.bf16.msra.mxu0 0
        %5532 = vmatprep.subr.bf16.mxu0 0
        %5533 = vmatpush1.bf16.msra.mxu0 0
        %5534 = vmatprep.subr.bf16.mxu0 0
        %5535 = vmatpush1.bf16.msra.mxu0 0
        %5536 = vmatprep.subr.bf16.mxu0 0
        %5537 = vmatpush1.bf16.msra.mxu0 0
        %5538 = vmatprep.subr.bf16.mxu0 0
        %5539 = vmatpush1.bf16.msra.mxu0 0
        %5540 = vmatprep.subr.bf16.mxu0 0
        %5541 = vmatpush1.bf16.msra.mxu0 0
        %5542 = vmatprep.subr.bf16.mxu0 0
        %5543 = vmatpush1.bf16.msra.mxu0 0
        %5544 = vmatprep.subr.bf16.mxu0 0
        %5545 = vmatpush1.bf16.msra.mxu0 0
        %5546 = vmatprep.subr.bf16.mxu0 0
        %5547 = vmatpush1.bf16.msra.mxu0 0
        %5548 = vmatprep.subr.bf16.mxu0 0
        %5549 = vmatpush1.bf16.msra.mxu0 0
        %5550 = vmatprep.subr.bf16.mxu0 0
        %5551 = vmatpush1.bf16.msra.mxu0 0
        %5552 = vmatprep.subr.bf16.mxu0 0
        %5553 = vmatpush1.bf16.msra.mxu0 0
        %5554 = vmatprep.subr.bf16.mxu0 0
        %5555 = vmatpush1.bf16.msra.mxu0 0
        %5556 = vmatprep.subr.bf16.mxu0 0
        %5557 = vmatpush1.bf16.msra.mxu0 0
        %5558 = vmatprep.subr.bf16.mxu0 0
        %5559 = vmatpush1.bf16.msra.mxu0 0
        %5560 = vmatprep.mubr.bf16.mxu0 0
        %5561 = vmatmul.mubr.bf16.gmra.mrb[0].mxu0 %v5403
        %v5562 = vpop.f32.mrb[0].mxu0
        %v5563 = vadd.f32 0.0, %v5562
        %v5564 = vpop.f32.mrb[0].mxu0
        %v5565 = vadd.f32 0.0, %v5564
        %v5566 = vpop.f32.mrb[0].mxu0
        %v5567 = vpop.f32.mrb[0].mxu0
        %5568 = vdwg.mxu0
        %v5569 = vadd.f32 %v5392, %v5440
        %v5570 = vadd.f32 %v5393, %v5442
        %v5571 = vadd.f32 %v5394, %v5481
        %v5572 = vadd.f32 %v5395, %v5483
        %v5573 = vadd.f32 %v5396, %v5522
        %v5574 = vadd.f32 %v5397, %v5524
        %v5575 = vadd.f32 %v5398, %v5563
        %v5576 = vadd.f32 %v5399, %v5565
        %s5577 = scalar_lea.vmem %s1, 92
        %v5578 = vld [vmem:[%s5577] sm:$0x7]
        %v5580 = vsel %vm447, %v5578, 0
        %5582 = vmatprep.subr.bf16.mxu0 %v1113
        %5583 = vmatpush1.bf16.msra.mxu0 %v1110
        %5584 = vmatprep.subr.bf16.mxu0 0
        %5585 = vmatpush1.bf16.msra.mxu0 0
        %5586 = vmatprep.subr.bf16.mxu0 0
        %5587 = vmatpush1.bf16.msra.mxu0 0
        %5588 = vmatprep.subr.bf16.mxu0 0
        %5589 = vmatpush1.bf16.msra.mxu0 0
        %5590 = vmatprep.subr.bf16.mxu0 0
        %5591 = vmatpush1.bf16.msra.mxu0 0
        %5592 = vmatprep.subr.bf16.mxu0 0
        %5593 = vmatpush1.bf16.msra.mxu0 0
        %5594 = vmatprep.subr.bf16.mxu0 0
        %5595 = vmatpush1.bf16.msra.mxu0 0
        %5596 = vmatprep.subr.bf16.mxu0 0
        %5597 = vmatpush1.bf16.msra.mxu0 0
        %5598 = vmatprep.subr.bf16.mxu0 0
        %5599 = vmatpush1.bf16.msra.mxu0 0
        %5600 = vmatprep.subr.bf16.mxu0 0
        %5601 = vmatpush1.bf16.msra.mxu0 0
        %5602 = vmatprep.subr.bf16.mxu0 0
        %5603 = vmatpush1.bf16.msra.mxu0 0
        %5604 = vmatprep.subr.bf16.mxu0 0
        %5605 = vmatpush1.bf16.msra.mxu0 0
        %5606 = vmatprep.subr.bf16.mxu0 0
        %5607 = vmatpush1.bf16.msra.mxu0 0
        %5608 = vmatprep.subr.bf16.mxu0 0
        %5609 = vmatpush1.bf16.msra.mxu0 0
        %5610 = vmatprep.subr.bf16.mxu0 0
        %5611 = vmatpush1.bf16.msra.mxu0 0
        %5612 = vmatprep.subr.bf16.mxu0 0
        %5613 = vmatpush1.bf16.msra.mxu0 0
        %5614 = vmatprep.mubr.bf16.mxu0 0
        %5615 = vmatmul.mubr.bf16.gmra.mrb[0].mxu0 %v5580
        %v5616 = vpop.f32.mrb[0].mxu0
        %v5617 = vadd.f32 0.0, %v5616
        %v5618 = vpop.f32.mrb[0].mxu0
        %v5619 = vadd.f32 0.0, %v5618
        %v5620 = vpop.f32.mrb[0].mxu0
        %v5621 = vpop.f32.mrb[0].mxu0
        %5622 = vdwg.mxu0
        %5623 = vmatprep.subr.bf16.mxu0 %v1119
        %5624 = vmatpush1.bf16.msra.mxu0 %v1116
        %5625 = vmatprep.subr.bf16.mxu0 0
        %5626 = vmatpush1.bf16.msra.mxu0 0
        %5627 = vmatprep.subr.bf16.mxu0 0
        %5628 = vmatpush1.bf16.msra.mxu0 0
        %5629 = vmatprep.subr.bf16.mxu0 0
        %5630 = vmatpush1.bf16.msra.mxu0 0
        %5631 = vmatprep.subr.bf16.mxu0 0
        %5632 = vmatpush1.bf16.msra.mxu0 0
        %5633 = vmatprep.subr.bf16.mxu0 0
        %5634 = vmatpush1.bf16.msra.mxu0 0
        %5635 = vmatprep.subr.bf16.mxu0 0
        %5636 = vmatpush1.bf16.msra.mxu0 0
        %5637 = vmatprep.subr.bf16.mxu0 0
        %5638 = vmatpush1.bf16.msra.mxu0 0
        %5639 = vmatprep.subr.bf16.mxu0 0
        %5640 = vmatpush1.bf16.msra.mxu0 0
        %5641 = vmatprep.subr.bf16.mxu0 0
        %5642 = vmatpush1.bf16.msra.mxu0 0
        %5643 = vmatprep.subr.bf16.mxu0 0
        %5644 = vmatpush1.bf16.msra.mxu0 0
        %5645 = vmatprep.subr.bf16.mxu0 0
        %5646 = vmatpush1.bf16.msra.mxu0 0
        %5647 = vmatprep.subr.bf16.mxu0 0
        %5648 = vmatpush1.bf16.msra.mxu0 0
        %5649 = vmatprep.subr.bf16.mxu0 0
        %5650 = vmatpush1.bf16.msra.mxu0 0
        %5651 = vmatprep.subr.bf16.mxu0 0
        %5652 = vmatpush1.bf16.msra.mxu0 0
        %5653 = vmatprep.subr.bf16.mxu0 0
        %5654 = vmatpush1.bf16.msra.mxu0 0
        %5655 = vmatprep.mubr.bf16.mxu0 0
        %5656 = vmatmul.mubr.bf16.gmra.mrb[0].mxu0 %v5580
        %v5657 = vpop.f32.mrb[0].mxu0
        %v5658 = vadd.f32 0.0, %v5657
        %v5659 = vpop.f32.mrb[0].mxu0
        %v5660 = vadd.f32 0.0, %v5659
        %v5661 = vpop.f32.mrb[0].mxu0
        %v5662 = vpop.f32.mrb[0].mxu0
        %5663 = vdwg.mxu0
        %5664 = vmatprep.subr.bf16.mxu0 %v1125
        %5665 = vmatpush1.bf16.msra.mxu0 %v1122
        %5666 = vmatprep.subr.bf16.mxu0 0
        %5667 = vmatpush1.bf16.msra.mxu0 0
        %5668 = vmatprep.subr.bf16.mxu0 0
        %5669 = vmatpush1.bf16.msra.mxu0 0
        %5670 = vmatprep.subr.bf16.mxu0 0
        %5671 = vmatpush1.bf16.msra.mxu0 0
        %5672 = vmatprep.subr.bf16.mxu0 0
        %5673 = vmatpush1.bf16.msra.mxu0 0
        %5674 = vmatprep.subr.bf16.mxu0 0
        %5675 = vmatpush1.bf16.msra.mxu0 0
        %5676 = vmatprep.subr.bf16.mxu0 0
        %5677 = vmatpush1.bf16.msra.mxu0 0
        %5678 = vmatprep.subr.bf16.mxu0 0
        %5679 = vmatpush1.bf16.msra.mxu0 0
        %5680 = vmatprep.subr.bf16.mxu0 0
        %5681 = vmatpush1.bf16.msra.mxu0 0
        %5682 = vmatprep.subr.bf16.mxu0 0
        %5683 = vmatpush1.bf16.msra.mxu0 0
        %5684 = vmatprep.subr.bf16.mxu0 0
        %5685 = vmatpush1.bf16.msra.mxu0 0
        %5686 = vmatprep.subr.bf16.mxu0 0
        %5687 = vmatpush1.bf16.msra.mxu0 0
        %5688 = vmatprep.subr.bf16.mxu0 0
        %5689 = vmatpush1.bf16.msra.mxu0 0
        %5690 = vmatprep.subr.bf16.mxu0 0
        %5691 = vmatpush1.bf16.msra.mxu0 0
        %5692 = vmatprep.subr.bf16.mxu0 0
        %5693 = vmatpush1.bf16.msra.mxu0 0
        %5694 = vmatprep.subr.bf16.mxu0 0
        %5695 = vmatpush1.bf16.msra.mxu0 0
        %5696 = vmatprep.mubr.bf16.mxu0 0
        %5697 = vmatmul.mubr.bf16.gmra.mrb[0].mxu0 %v5580
        %v5698 = vpop.f32.mrb[0].mxu0
        %v5699 = vadd.f32 0.0, %v5698
        %v5700 = vpop.f32.mrb[0].mxu0
        %v5701 = vadd.f32 0.0, %v5700
        %v5702 = vpop.f32.mrb[0].mxu0
        %v5703 = vpop.f32.mrb[0].mxu0
        %5704 = vdwg.mxu0
        %5705 = vmatprep.subr.bf16.mxu0 %v1107
        %5706 = vmatpush1.bf16.msra.mxu0 %v1128
        %5707 = vmatprep.subr.bf16.mxu0 0
        %5708 = vmatpush1.bf16.msra.mxu0 0
        %5709 = vmatprep.subr.bf16.mxu0 0
        %5710 = vmatpush1.bf16.msra.mxu0 0
        %5711 = vmatprep.subr.bf16.mxu0 0
        %5712 = vmatpush1.bf16.msra.mxu0 0
        %5713 = vmatprep.subr.bf16.mxu0 0
        %5714 = vmatpush1.bf16.msra.mxu0 0
        %5715 = vmatprep.subr.bf16.mxu0 0
        %5716 = vmatpush1.bf16.msra.mxu0 0
        %5717 = vmatprep.subr.bf16.mxu0 0
        %5718 = vmatpush1.bf16.msra.mxu0 0
        %5719 = vmatprep.subr.bf16.mxu0 0
        %5720 = vmatpush1.bf16.msra.mxu0 0
        %5721 = vmatprep.subr.bf16.mxu0 0
        %5722 = vmatpush1.bf16.msra.mxu0 0
        %5723 = vmatprep.subr.bf16.mxu0 0
        %5724 = vmatpush1.bf16.msra.mxu0 0
        %5725 = vmatprep.subr.bf16.mxu0 0
        %5726 = vmatpush1.bf16.msra.mxu0 0
        %5727 = vmatprep.subr.bf16.mxu0 0
        %5728 = vmatpush1.bf16.msra.mxu0 0
        %5729 = vmatprep.subr.bf16.mxu0 0
        %5730 = vmatpush1.bf16.msra.mxu0 0
        %5731 = vmatprep.subr.bf16.mxu0 0
        %5732 = vmatpush1.bf16.msra.mxu0 0
        %5733 = vmatprep.subr.bf16.mxu0 0
        %5734 = vmatpush1.bf16.msra.mxu0 0
        %5735 = vmatprep.subr.bf16.mxu0 0
        %5736 = vmatpush1.bf16.msra.mxu0 0
        %5737 = vmatprep.mubr.bf16.mxu0 0
        %5738 = vmatmul.mubr.bf16.gmra.mrb[0].mxu0 %v5580
        %v5739 = vpop.f32.mrb[0].mxu0
        %v5740 = vadd.f32 0.0, %v5739
        %v5741 = vpop.f32.mrb[0].mxu0
        %v5742 = vadd.f32 0.0, %v5741
        %v5743 = vpop.f32.mrb[0].mxu0
        %v5744 = vpop.f32.mrb[0].mxu0
        %5745 = vdwg.mxu0
        %v5746 = vadd.f32 %v5569, %v5617
        %v5747 = vadd.f32 %v5570, %v5619
        %v5748 = vadd.f32 %v5571, %v5658
        %v5749 = vadd.f32 %v5572, %v5660
        %v5750 = vadd.f32 %v5573, %v5699
        %v5751 = vadd.f32 %v5574, %v5701
        %v5752 = vadd.f32 %v5575, %v5740
        %v5753 = vadd.f32 %v5576, %v5742
        %s5754 = scalar_lea.vmem %s1, 96
        %v5755 = vld [vmem:[%s5754] sm:$0x7]
        %v5757 = vsel %vm447, %v5755, 0
        %5759 = vmatprep.subr.bf16.mxu0 %v1347
        %5760 = vmatpush1.bf16.msra.mxu0 %v1344
        %5761 = vmatprep.subr.bf16.mxu0 0
        %5762 = vmatpush1.bf16.msra.mxu0 0
        %5763 = vmatprep.subr.bf16.mxu0 0
        %5764 = vmatpush1.bf16.msra.mxu0 0
        %5765 = vmatprep.subr.bf16.mxu0 0
        %5766 = vmatpush1.bf16.msra.mxu0 0
        %5767 = vmatprep.subr.bf16.mxu0 0
        %5768 = vmatpush1.bf16.msra.mxu0 0
        %5769 = vmatprep.subr.bf16.mxu0 0
        %5770 = vmatpush1.bf16.msra.mxu0 0
        %5771 = vmatprep.subr.bf16.mxu0 0
        %5772 = vmatpush1.bf16.msra.mxu0 0
        %5773 = vmatprep.subr.bf16.mxu0 0
        %5774 = vmatpush1.bf16.msra.mxu0 0
        %5775 = vmatprep.subr.bf16.mxu0 0
        %5776 = vmatpush1.bf16.msra.mxu0 0
        %5777 = vmatprep.subr.bf16.mxu0 0
        %5778 = vmatpush1.bf16.msra.mxu0 0
        %5779 = vmatprep.subr.bf16.mxu0 0
        %5780 = vmatpush1.bf16.msra.mxu0 0
        %5781 = vmatprep.subr.bf16.mxu0 0
        %5782 = vmatpush1.bf16.msra.mxu0 0
        %5783 = vmatprep.subr.bf16.mxu0 0
        %5784 = vmatpush1.bf16.msra.mxu0 0
        %5785 = vmatprep.subr.bf16.mxu0 0
        %5786 = vmatpush1.bf16.msra.mxu0 0
        %5787 = vmatprep.subr.bf16.mxu0 0
        %5788 = vmatpush1.bf16.msra.mxu0 0
        %5789 = vmatprep.subr.bf16.mxu0 0
        %5790 = vmatpush1.bf16.msra.mxu0 0
        %5791 = vmatprep.mubr.bf16.mxu0 0
        %5792 = vmatmul.mubr.bf16.gmra.mrb[0].mxu0 %v5757
        %v5793 = vpop.f32.mrb[0].mxu0
        %v5794 = vadd.f32 0.0, %v5793
        %v5795 = vpop.f32.mrb[0].mxu0
        %v5796 = vadd.f32 0.0, %v5795
        %v5797 = vpop.f32.mrb[0].mxu0
        %v5798 = vpop.f32.mrb[0].mxu0
        %5799 = vdwg.mxu0
        %5800 = vmatprep.subr.bf16.mxu0 %v1353
        %5801 = vmatpush1.bf16.msra.mxu0 %v1350
        %5802 = vmatprep.subr.bf16.mxu0 0
        %5803 = vmatpush1.bf16.msra.mxu0 0
        %5804 = vmatprep.subr.bf16.mxu0 0
        %5805 = vmatpush1.bf16.msra.mxu0 0
        %5806 = vmatprep.subr.bf16.mxu0 0
        %5807 = vmatpush1.bf16.msra.mxu0 0
        %5808 = vmatprep.subr.bf16.mxu0 0
        %5809 = vmatpush1.bf16.msra.mxu0 0
        %5810 = vmatprep.subr.bf16.mxu0 0
        %5811 = vmatpush1.bf16.msra.mxu0 0
        %5812 = vmatprep.subr.bf16.mxu0 0
        %5813 = vmatpush1.bf16.msra.mxu0 0
        %5814 = vmatprep.subr.bf16.mxu0 0
        %5815 = vmatpush1.bf16.msra.mxu0 0
        %5816 = vmatprep.subr.bf16.mxu0 0
        %5817 = vmatpush1.bf16.msra.mxu0 0
        %5818 = vmatprep.subr.bf16.mxu0 0
        %5819 = vmatpush1.bf16.msra.mxu0 0
        %5820 = vmatprep.subr.bf16.mxu0 0
        %5821 = vmatpush1.bf16.msra.mxu0 0
        %5822 = vmatprep.subr.bf16.mxu0 0
        %5823 = vmatpush1.bf16.msra.mxu0 0
        %5824 = vmatprep.subr.bf16.mxu0 0
        %5825 = vmatpush1.bf16.msra.mxu0 0
        %5826 = vmatprep.subr.bf16.mxu0 0
        %5827 = vmatpush1.bf16.msra.mxu0 0
        %5828 = vmatprep.subr.bf16.mxu0 0
        %5829 = vmatpush1.bf16.msra.mxu0 0
        %5830 = vmatprep.subr.bf16.mxu0 0
        %5831 = vmatpush1.bf16.msra.mxu0 0
        %5832 = vmatprep.mubr.bf16.mxu0 0
        %5833 = vmatmul.mubr.bf16.gmra.mrb[0].mxu0 %v5757
        %v5834 = vpop.f32.mrb[0].mxu0
        %v5835 = vadd.f32 0.0, %v5834
        %v5836 = vpop.f32.mrb[0].mxu0
        %v5837 = vadd.f32 0.0, %v5836
        %v5838 = vpop.f32.mrb[0].mxu0
        %v5839 = vpop.f32.mrb[0].mxu0
        %5840 = vdwg.mxu0
        %5841 = vmatprep.subr.bf16.mxu0 %v1359
        %5842 = vmatpush1.bf16.msra.mxu0 %v1356
        %5843 = vmatprep.subr.bf16.mxu0 0
        %5844 = vmatpush1.bf16.msra.mxu0 0
        %5845 = vmatprep.subr.bf16.mxu0 0
        %5846 = vmatpush1.bf16.msra.mxu0 0
        %5847 = vmatprep.subr.bf16.mxu0 0
        %5848 = vmatpush1.bf16.msra.mxu0 0
        %5849 = vmatprep.subr.bf16.mxu0 0
        %5850 = vmatpush1.bf16.msra.mxu0 0
        %5851 = vmatprep.subr.bf16.mxu0 0
        %5852 = vmatpush1.bf16.msra.mxu0 0
        %5853 = vmatprep.subr.bf16.mxu0 0
        %5854 = vmatpush1.bf16.msra.mxu0 0
        %5855 = vmatprep.subr.bf16.mxu0 0
        %5856 = vmatpush1.bf16.msra.mxu0 0
        %5857 = vmatprep.subr.bf16.mxu0 0
        %5858 = vmatpush1.bf16.msra.mxu0 0
        %5859 = vmatprep.subr.bf16.mxu0 0
        %5860 = vmatpush1.bf16.msra.mxu0 0
        %5861 = vmatprep.subr.bf16.mxu0 0
        %5862 = vmatpush1.bf16.msra.mxu0 0
        %5863 = vmatprep.subr.bf16.mxu0 0
        %5864 = vmatpush1.bf16.msra.mxu0 0
        %5865 = vmatprep.subr.bf16.mxu0 0
        %5866 = vmatpush1.bf16.msra.mxu0 0
        %5867 = vmatprep.subr.bf16.mxu0 0
        %5868 = vmatpush1.bf16.msra.mxu0 0
        %5869 = vmatprep.subr.bf16.mxu0 0
        %5870 = vmatpush1.bf16.msra.mxu0 0
        %5871 = vmatprep.subr.bf16.mxu0 0
        %5872 = vmatpush1.bf16.msra.mxu0 0
        %5873 = vmatprep.mubr.bf16.mxu0 0
        %5874 = vmatmul.mubr.bf16.gmra.mrb[0].mxu0 %v5757
        %v5875 = vpop.f32.mrb[0].mxu0
        %v5876 = vadd.f32 0.0, %v5875
        %v5877 = vpop.f32.mrb[0].mxu0
        %v5878 = vadd.f32 0.0, %v5877
        %v5879 = vpop.f32.mrb[0].mxu0
        %v5880 = vpop.f32.mrb[0].mxu0
        %5881 = vdwg.mxu0
        %5882 = vmatprep.subr.bf16.mxu0 %v1341
        %5883 = vmatpush1.bf16.msra.mxu0 %v1362
        %5884 = vmatprep.subr.bf16.mxu0 0
        %5885 = vmatpush1.bf16.msra.mxu0 0
        %5886 = vmatprep.subr.bf16.mxu0 0
        %5887 = vmatpush1.bf16.msra.mxu0 0
        %5888 = vmatprep.subr.bf16.mxu0 0
        %5889 = vmatpush1.bf16.msra.mxu0 0
        %5890 = vmatprep.subr.bf16.mxu0 0
        %5891 = vmatpush1.bf16.msra.mxu0 0
        %5892 = vmatprep.subr.bf16.mxu0 0
        %5893 = vmatpush1.bf16.msra.mxu0 0
        %5894 = vmatprep.subr.bf16.mxu0 0
        %5895 = vmatpush1.bf16.msra.mxu0 0
        %5896 = vmatprep.subr.bf16.mxu0 0
        %5897 = vmatpush1.bf16.msra.mxu0 0
        %5898 = vmatprep.subr.bf16.mxu0 0
        %5899 = vmatpush1.bf16.msra.mxu0 0
        %5900 = vmatprep.subr.bf16.mxu0 0
        %5901 = vmatpush1.bf16.msra.mxu0 0
        %5902 = vmatprep.subr.bf16.mxu0 0
        %5903 = vmatpush1.bf16.msra.mxu0 0
        %5904 = vmatprep.subr.bf16.mxu0 0
        %5905 = vmatpush1.bf16.msra.mxu0 0
        %5906 = vmatprep.subr.bf16.mxu0 0
        %5907 = vmatpush1.bf16.msra.mxu0 0
        %5908 = vmatprep.subr.bf16.mxu0 0
        %5909 = vmatpush1.bf16.msra.mxu0 0
        %5910 = vmatprep.subr.bf16.mxu0 0
        %5911 = vmatpush1.bf16.msra.mxu0 0
        %5912 = vmatprep.subr.bf16.mxu0 0
        %5913 = vmatpush1.bf16.msra.mxu0 0
        %5914 = vmatprep.mubr.bf16.mxu0 0
        %5915 = vmatmul.mubr.bf16.gmra.mrb[0].mxu0 %v5757
        %v5916 = vpop.f32.mrb[0].mxu0
        %v5917 = vadd.f32 0.0, %v5916
        %v5918 = vpop.f32.mrb[0].mxu0
        %v5919 = vadd.f32 0.0, %v5918
        %v5920 = vpop.f32.mrb[0].mxu0
        %v5921 = vpop.f32.mrb[0].mxu0
        %5922 = vdwg.mxu0
        %v5923 = vadd.f32 %v5746, %v5794
        %v5924 = vadd.f32 %v5747, %v5796
        %v5925 = vadd.f32 %v5748, %v5835
        %v5926 = vadd.f32 %v5749, %v5837
        %v5927 = vadd.f32 %v5750, %v5876
        %v5928 = vadd.f32 %v5751, %v5878
        %v5929 = vadd.f32 %v5752, %v5917
        %v5930 = vadd.f32 %v5753, %v5919
        %v5931 = vld [vmem:[%s2] sm:$0x3f]
        %5933 = vset.pattern.permute.xlu0 0
        %5934 = vperm.xlu0 %5933, %v5931
        %v5935 = vpop.permute.xlu0 %5934
        %v5937 = vadd.f32 %v5923, %v5935
        %v5938 = vadd.f32 %v5924, %v5935
        %v5939 = vadd.f32 %v5925, %v5935
        %v5940 = vadd.f32 %v5926, %v5935
        %v5941 = vadd.f32 %v5927, %v5935
        %v5942 = vadd.f32 %v5928, %v5935
        %v5943 = vadd.f32 %v5929, %v5935
        %v5944 = vadd.f32 %v5930, %v5935
        %v5945 = vmax.f32 %v5937, 0.0
        %v5946 = vmax.f32 %v5938, 0.0
        %v5947 = vmax.f32 %v5939, 0.0
        %v5948 = vmax.f32 %v5940, 0.0
        %v5949 = vmax.f32 %v5941, 0.0
        %v5950 = vmax.f32 %v5942, 0.0
        %v5951 = vmax.f32 %v5943, 0.0
        %v5952 = vmax.f32 %v5944, 0.0
        %5953 = vrot.lane.b32.xlu0 %v5945, 127
        %v5954 = vpop.permute.xlu0 %5953
        %5955 = vrot.lane.b32.xlu0 %v5946, 127
        %v5956 = vpop.permute.xlu0 %5955
        %5957 = vrot.lane.b32.xlu0 %v5947, 127
        %v5958 = vpop.permute.xlu0 %5957
        %5959 = vrot.lane.b32.xlu0 %v5948, 127
        %v5960 = vpop.permute.xlu0 %5959
        %5961 = vrot.lane.b32.xlu0 %v5949, 127
        %v5962 = vpop.permute.xlu0 %5961
        %5963 = vrot.lane.b32.xlu0 %v5950, 127
        %v5964 = vpop.permute.xlu0 %5963
        %5965 = vrot.lane.b32.xlu0 %v5951, 127
        %v5966 = vpop.permute.xlu0 %5965
        %5967 = vrot.lane.b32.xlu0 %v5952, 127
        %v5968 = vpop.permute.xlu0 %5967
        %v5969 = vsel %vm428, %v5966, %v5968
        %v5970 = vsel %vm428, %v5964, %v5966
        %v5971 = vsel %vm428, %v5962, %v5964
        %v5972 = vsel %vm428, %v5960, %v5962
        %v5973 = vsel %vm428, %v5958, %v5960
        %v5974 = vsel %vm428, %v5956, %v5958
        %v5975 = vsel %vm428, %v5954, %v5956
        %v5976 = vsel %vm428, %v5968, %v5954
        %v5977 = vmax.f32 %v5945, %v5975
        %v5978 = vmax.f32 %v5946, %v5974
        %v5979 = vmax.f32 %v5947, %v5973
        %v5980 = vmax.f32 %v5948, %v5972
        %v5981 = vmax.f32 %v5949, %v5971
        %v5982 = vmax.f32 %v5950, %v5970
        %v5983 = vmax.f32 %v5951, %v5969
        %v5984 = vmax.f32 %v5952, %v5976
        %5985 = vrot.lane.b32.xlu0 %v5945, 96
        %v5986 = vpop.permute.xlu0 %5985
        %5987 = vrot.lane.b32.xlu0 %v5946, 96
        %v5988 = vpop.permute.xlu0 %5987
        %5989 = vrot.lane.b32.xlu0 %v5947, 96
        %v5990 = vpop.permute.xlu0 %5989
        %5991 = vrot.lane.b32.xlu0 %v5948, 96
        %v5992 = vpop.permute.xlu0 %5991
        %5993 = vrot.lane.b32.xlu0 %v5949, 96
        %v5994 = vpop.permute.xlu0 %5993
        %5995 = vrot.lane.b32.xlu0 %v5950, 96
        %v5996 = vpop.permute.xlu0 %5995
        %5997 = vrot.lane.b32.xlu0 %v5951, 96
        %v5998 = vpop.permute.xlu0 %5997
        %5999 = vrot.lane.b32.xlu0 %v5952, 96
        %v6000 = vpop.permute.xlu0 %5999
        %v6001 = vsel %vm1552, %v5998, %v6000
        %v6002 = vsel %vm1552, %v5996, %v5998
        %v6003 = vsel %vm1552, %v5994, %v5996
        %v6004 = vsel %vm1552, %v5992, %v5994
        %v6005 = vsel %vm1552, %v5990, %v5992
        %v6006 = vsel %vm1552, %v5988, %v5990
        %v6007 = vsel %vm1552, %v5986, %v5988
        %v6008 = vsel %vm1552, %v6000, %v5986
        %v6009 = vmax.f32 %v5977, %v6007
        %v6010 = vmax.f32 %v5978, %v6006
        %v6011 = vmax.f32 %v5979, %v6005
        %v6012 = vmax.f32 %v5980, %v6004
        %v6013 = vmax.f32 %v5981, %v6003
        %v6014 = vmax.f32 %v5982, %v6002
        %v6015 = vmax.f32 %v5983, %v6001
        %v6016 = vmax.f32 %v5984, %v6008
        %6017 = vrot.lane.b32.xlu0 %v5945, 95
        %v6018 = vpop.permute.xlu0 %6017
        %6019 = vrot.lane.b32.xlu0 %v5946, 95
        %v6020 = vpop.permute.xlu0 %6019
        %6021 = vrot.lane.b32.xlu0 %v5947, 95
        %v6022 = vpop.permute.xlu0 %6021
        %6023 = vrot.lane.b32.xlu0 %v5948, 95
        %v6024 = vpop.permute.xlu0 %6023
        %6025 = vrot.lane.b32.xlu0 %v5949, 95
        %v6026 = vpop.permute.xlu0 %6025
        %6027 = vrot.lane.b32.xlu0 %v5950, 95
        %v6028 = vpop.permute.xlu0 %6027
        %6029 = vrot.lane.b32.xlu0 %v5951, 95
        %v6030 = vpop.permute.xlu0 %6029
        %6031 = vrot.lane.b32.xlu0 %v5952, 95
        %v6032 = vpop.permute.xlu0 %6031
        %v6033 = vsel %vm1786, %v6030, %v6032
        %v6034 = vsel %vm1786, %v6028, %v6030
        %v6035 = vsel %vm1786, %v6026, %v6028
        %v6036 = vsel %vm1786, %v6024, %v6026
        %v6037 = vsel %vm1786, %v6022, %v6024
        %v6038 = vsel %vm1786, %v6020, %v6022
        %v6039 = vsel %vm1786, %v6018, %v6020
        %v6040 = vsel %vm1786, %v6032, %v6018
        %v6041 = vmax.f32 %v6009, %v6039
        %v6042 = vmax.f32 %v6010, %v6038
        %v6043 = vmax.f32 %v6011, %v6037
        %v6044 = vmax.f32 %v6012, %v6036
        %v6045 = vmax.f32 %v6013, %v6035
        %v6046 = vmax.f32 %v6014, %v6034
        %v6047 = vmax.f32 %v6015, %v6033
        %v6048 = vmax.f32 %v6016, %v6040
        %v6049 = vpack.c.bf16 %v6041, %v6041
        %v6050 = vpack.c.bf16 %v6042, %v6042
        %v6051 = vpack.c.bf16 %v6043, %v6043
        %v6052 = vpack.c.bf16 %v6044, %v6044
        %v6053 = vpack.c.bf16 %v6045, %v6045
        %v6054 = vpack.c.bf16 %v6046, %v6046
        %v6055 = vpack.c.bf16 %v6047, %v6047
        %v6056 = vpack.c.bf16 %v6048, %v6048
        %v6057 = vld [vmem:[%s3] sm:$0xff]
        %v6058 = vld [vmem:[%s3 + $0x8] sm:$0xff]
        %v6059 = vld [vmem:[%s3 + $0x10] sm:$0xff]
        %v6060 = vld [vmem:[%s3 + $0x18] sm:$0xff]
        %v6061 = vld [vmem:[%s3 + $0x20] sm:$0xff]
        %v6062 = vld [vmem:[%s3 + $0x28] sm:$0xff]
        %v6063 = vld [vmem:[%s3 + $0x30] sm:$0xff]
        %v6064 = vld [vmem:[%s3 + $0x38] sm:$0xff]
        %v6065 = vld [vmem:[%s3 + $0x40] sm:$0xff]
        %v6066 = vld [vmem:[%s3 + $0x48] sm:$0xff]
        %v6067 = vld [vmem:[%s3 + $0x50] sm:$0xff]
        %v6068 = vld [vmem:[%s3 + $0x58] sm:$0xff]
        %v6069 = vld [vmem:[%s3 + $0x60] sm:$0xff]
        %v6070 = vld [vmem:[%s3 + $0x68] sm:$0xff]
        %v6071 = vld [vmem:[%s3 + $0x70] sm:$0xff]
        %v6072 = vld [vmem:[%s3 + $0x78] sm:$0xff]
        %v6073 = vld [vmem:[%s3 + $0x80] sm:$0xff]
        %v6074 = vld [vmem:[%s3 + $0x88] sm:$0xff]
        %v6075 = vld [vmem:[%s3 + $0x90] sm:$0xff]
        %v6076 = vld [vmem:[%s3 + $0x98] sm:$0xff]
        %v6077 = vld [vmem:[%s3 + $0xa0] sm:$0xff]
        %v6078 = vld [vmem:[%s3 + $0xa8] sm:$0xff]
        %v6079 = vld [vmem:[%s3 + $0xb0] sm:$0xff]
        %v6080 = vld [vmem:[%s3 + $0xb8] sm:$0xff]
        %v6081 = vld [vmem:[%s3 + $0xc0] sm:$0xff]
        %v6082 = vld [vmem:[%s3 + $0xc8] sm:$0xff]
        %v6083 = vld [vmem:[%s3 + $0xd0] sm:$0xff]
        %v6084 = vld [vmem:[%s3 + $0xd8] sm:$0xff]
        %v6085 = vld [vmem:[%s3 + $0xe0] sm:$0xff]
        %v6086 = vld [vmem:[%s3 + $0xe8] sm:$0xff]
        %v6087 = vld [vmem:[%s3 + $0xf0] sm:$0xff]
        %v6088 = vld [vmem:[%s3 + $0xf8] sm:$0xff]
        %v6089 = vld [vmem:[%s3 + $0x100] sm:$0xff]
        %v6090 = vld [vmem:[%s3 + $0x108] sm:$0xff]
        %v6091 = vld [vmem:[%s3 + $0x110] sm:$0xff]
        %v6092 = vld [vmem:[%s3 + $0x118] sm:$0xff]
        %v6093 = vld [vmem:[%s3 + $0x120] sm:$0xff]
        %v6094 = vld [vmem:[%s3 + $0x128] sm:$0xff]
        %v6095 = vld [vmem:[%s3 + $0x130] sm:$0xff]
        %v6096 = vld [vmem:[%s3 + $0x138] sm:$0xff]
        %v6097 = vld [vmem:[%s3 + $0x140] sm:$0xff]
        %v6098 = vld [vmem:[%s3 + $0x148] sm:$0xff]
        %v6099 = vld [vmem:[%s3 + $0x150] sm:$0xff]
        %v6100 = vld [vmem:[%s3 + $0x158] sm:$0xff]
        %v6101 = vld [vmem:[%s3 + $0x160] sm:$0xff]
        %v6102 = vld [vmem:[%s3 + $0x168] sm:$0xff]
        %v6103 = vld [vmem:[%s3 + $0x170] sm:$0xff]
        %v6104 = vld [vmem:[%s3 + $0x178] sm:$0xff]
        %v6105 = vld [vmem:[%s3 + $0x180] sm:$0xff]
        %v6106 = vld [vmem:[%s3 + $0x188] sm:$0xff]
        %v6107 = vld [vmem:[%s3 + $0x190] sm:$0xff]
        %v6108 = vld [vmem:[%s3 + $0x198] sm:$0xff]
        %v6109 = vld [vmem:[%s3 + $0x1a0] sm:$0xff]
        %v6110 = vld [vmem:[%s3 + $0x1a8] sm:$0xff]
        %v6111 = vld [vmem:[%s3 + $0x1b0] sm:$0xff]
        %v6112 = vld [vmem:[%s3 + $0x1b8] sm:$0xff]
        %v6113 = vld [vmem:[%s3 + $0x1c0] sm:$0xff]
        %v6114 = vld [vmem:[%s3 + $0x1c8] sm:$0xff]
        %v6115 = vld [vmem:[%s3 + $0x1d0] sm:$0xff]
        %v6116 = vld [vmem:[%s3 + $0x1d8] sm:$0xff]
        %v6117 = vld [vmem:[%s3 + $0x1e0] sm:$0xff]
        %v6118 = vld [vmem:[%s3 + $0x1e8] sm:$0xff]
        %v6119 = vld [vmem:[%s3 + $0x1f0] sm:$0xff]
        %v6120 = vld [vmem:[%s3 + $0x1f8] sm:$0xff]
        %v6121 = vld [vmem:[%s3 + $0x200] sm:$0xff]
        %v6122 = vld [vmem:[%s3 + $0x208] sm:$0xff]
        %v6123 = vld [vmem:[%s3 + $0x210] sm:$0xff]
        %v6124 = vld [vmem:[%s3 + $0x218] sm:$0xff]
        %v6125 = vld [vmem:[%s3 + $0x220] sm:$0xff]
        %v6126 = vld [vmem:[%s3 + $0x228] sm:$0xff]
        %v6127 = vld [vmem:[%s3 + $0x230] sm:$0xff]
        %v6128 = vld [vmem:[%s3 + $0x238] sm:$0xff]
        %v6129 = vld [vmem:[%s3 + $0x240] sm:$0xff]
        %v6130 = vld [vmem:[%s3 + $0x248] sm:$0xff]
        %v6131 = vld [vmem:[%s3 + $0x250] sm:$0xff]
        %v6132 = vld [vmem:[%s3 + $0x258] sm:$0xff]
        %v6133 = vld [vmem:[%s3 + $0x260] sm:$0xff]
        %v6134 = vld [vmem:[%s3 + $0x268] sm:$0xff]
        %v6135 = vld [vmem:[%s3 + $0x270] sm:$0xff]
        %v6136 = vld [vmem:[%s3 + $0x278] sm:$0xff]
        %v6137 = vld [vmem:[%s3 + $0x280] sm:$0xff]
        %v6138 = vld [vmem:[%s3 + $0x288] sm:$0xff]
        %v6139 = vld [vmem:[%s3 + $0x290] sm:$0xff]
        %v6140 = vld [vmem:[%s3 + $0x298] sm:$0xff]
        %v6141 = vld [vmem:[%s3 + $0x2a0] sm:$0xff]
        %v6142 = vld [vmem:[%s3 + $0x2a8] sm:$0xff]
        %v6143 = vld [vmem:[%s3 + $0x2b0] sm:$0xff]
        %v6144 = vld [vmem:[%s3 + $0x2b8] sm:$0xff]
        %v6145 = vld [vmem:[%s3 + $0x2c0] sm:$0xff]
        %v6146 = vld [vmem:[%s3 + $0x2c8] sm:$0xff]
        %v6147 = vld [vmem:[%s3 + $0x2d0] sm:$0xff]
        %v6148 = vld [vmem:[%s3 + $0x2d8] sm:$0xff]
        %v6149 = vld [vmem:[%s3 + $0x2e0] sm:$0xff]
        %v6150 = vld [vmem:[%s3 + $0x2e8] sm:$0xff]
        %v6151 = vld [vmem:[%s3 + $0x2f0] sm:$0xff]
        %v6152 = vld [vmem:[%s3 + $0x2f8] sm:$0xff]
        %v6153 = vld [vmem:[%s3 + $0x300] sm:$0xff]
        %v6154 = vld [vmem:[%s3 + $0x308] sm:$0xff]
        %v6155 = vld [vmem:[%s3 + $0x310] sm:$0xff]
        %v6156 = vld [vmem:[%s3 + $0x318] sm:$0xff]
        %v6157 = vld [vmem:[%s3 + $0x320] sm:$0xff]
        %v6158 = vld [vmem:[%s3 + $0x328] sm:$0xff]
        %v6159 = vld [vmem:[%s3 + $0x330] sm:$0xff]
        %v6160 = vld [vmem:[%s3 + $0x338] sm:$0xff]
        %v6161 = vld [vmem:[%s3 + $0x340] sm:$0xff]
        %v6162 = vld [vmem:[%s3 + $0x348] sm:$0xff]
        %v6163 = vld [vmem:[%s3 + $0x350] sm:$0xff]
        %v6164 = vld [vmem:[%s3 + $0x358] sm:$0xff]
        %v6165 = vld [vmem:[%s3 + $0x360] sm:$0xff]
        %v6166 = vld [vmem:[%s3 + $0x368] sm:$0xff]
        %v6167 = vld [vmem:[%s3 + $0x370] sm:$0xff]
        %v6168 = vld [vmem:[%s3 + $0x378] sm:$0xff]
        %v6169 = vld [vmem:[%s3 + $0x380] sm:$0xff]
        %v6170 = vld [vmem:[%s3 + $0x388] sm:$0xff]
        %v6171 = vld [vmem:[%s3 + $0x390] sm:$0xff]
        %v6172 = vld [vmem:[%s3 + $0x398] sm:$0xff]
        %v6173 = vld [vmem:[%s3 + $0x3a0] sm:$0xff]
        %v6174 = vld [vmem:[%s3 + $0x3a8] sm:$0xff]
        %v6175 = vld [vmem:[%s3 + $0x3b0] sm:$0xff]
        %v6176 = vld [vmem:[%s3 + $0x3b8] sm:$0xff]
        %v6177 = vld [vmem:[%s3 + $0x3c0] sm:$0xff]
        %v6178 = vld [vmem:[%s3 + $0x3c8] sm:$0xff]
        %v6179 = vld [vmem:[%s3 + $0x3d0] sm:$0xff]
        %v6180 = vld [vmem:[%s3 + $0x3d8] sm:$0xff]
        %v6181 = vld [vmem:[%s3 + $0x3e0] sm:$0xff]
        %v6182 = vld [vmem:[%s3 + $0x3e8] sm:$0xff]
        %v6183 = vld [vmem:[%s3 + $0x3f0] sm:$0xff]
        %v6184 = vld [vmem:[%s3 + $0x3f8] sm:$0xff]
        %v6313 = vunpack.c.l.b16 %v6057
        %v6314 = vunpack.c.h.b16 %v6057
        %v6315 = vunpack.c.l.b16 %v6058
        %v6316 = vunpack.c.h.b16 %v6058
        %v6317 = vunpack.c.l.b16 %v6059
        %v6318 = vunpack.c.h.b16 %v6059
        %v6319 = vunpack.c.l.b16 %v6060
        %v6320 = vunpack.c.h.b16 %v6060
        %v6321 = vunpack.c.l.b16 %v6061
        %v6322 = vunpack.c.h.b16 %v6061
        %v6323 = vunpack.c.l.b16 %v6062
        %v6324 = vunpack.c.h.b16 %v6062
        %v6325 = vunpack.c.l.b16 %v6063
        %v6326 = vunpack.c.h.b16 %v6063
        %v6327 = vunpack.c.l.b16 %v6064
        %v6328 = vunpack.c.h.b16 %v6064
        %v6329 = vunpack.c.l.b16 %v6065
        %v6330 = vunpack.c.h.b16 %v6065
        %v6331 = vunpack.c.l.b16 %v6066
        %v6332 = vunpack.c.h.b16 %v6066
        %v6333 = vunpack.c.l.b16 %v6067
        %v6334 = vunpack.c.h.b16 %v6067
        %v6335 = vunpack.c.l.b16 %v6068
        %v6336 = vunpack.c.h.b16 %v6068
        %v6337 = vunpack.c.l.b16 %v6069
        %v6338 = vunpack.c.h.b16 %v6069
        %v6339 = vunpack.c.l.b16 %v6070
        %v6340 = vunpack.c.h.b16 %v6070
        %v6341 = vunpack.c.l.b16 %v6071
        %v6342 = vunpack.c.h.b16 %v6071
        %v6343 = vunpack.c.l.b16 %v6072
        %v6344 = vunpack.c.h.b16 %v6072
        %v6345 = vunpack.c.l.b16 %v6073
        %v6346 = vunpack.c.h.b16 %v6073
        %v6347 = vunpack.c.l.b16 %v6074
        %v6348 = vunpack.c.h.b16 %v6074
        %v6349 = vunpack.c.l.b16 %v6075
        %v6350 = vunpack.c.h.b16 %v6075
        %v6351 = vunpack.c.l.b16 %v6076
        %v6352 = vunpack.c.h.b16 %v6076
        %v6353 = vunpack.c.l.b16 %v6077
        %v6354 = vunpack.c.h.b16 %v6077
        %v6355 = vunpack.c.l.b16 %v6078
        %v6356 = vunpack.c.h.b16 %v6078
        %v6357 = vunpack.c.l.b16 %v6079
        %v6358 = vunpack.c.h.b16 %v6079
        %v6359 = vunpack.c.l.b16 %v6080
        %v6360 = vunpack.c.h.b16 %v6080
        %v6361 = vunpack.c.l.b16 %v6081
        %v6362 = vunpack.c.h.b16 %v6081
        %v6363 = vunpack.c.l.b16 %v6082
        %v6364 = vunpack.c.h.b16 %v6082
        %v6365 = vunpack.c.l.b16 %v6083
        %v6366 = vunpack.c.h.b16 %v6083
        %v6367 = vunpack.c.l.b16 %v6084
        %v6368 = vunpack.c.h.b16 %v6084
        %v6369 = vunpack.c.l.b16 %v6085
        %v6370 = vunpack.c.h.b16 %v6085
        %v6371 = vunpack.c.l.b16 %v6086
        %v6372 = vunpack.c.h.b16 %v6086
        %v6373 = vunpack.c.l.b16 %v6087
        %v6374 = vunpack.c.h.b16 %v6087
        %v6375 = vunpack.c.l.b16 %v6088
        %v6376 = vunpack.c.h.b16 %v6088
        %v6377 = vunpack.c.l.b16 %v6089
        %v6378 = vunpack.c.h.b16 %v6089
        %v6379 = vunpack.c.l.b16 %v6090
        %v6380 = vunpack.c.h.b16 %v6090
        %v6381 = vunpack.c.l.b16 %v6091
        %v6382 = vunpack.c.h.b16 %v6091
        %v6383 = vunpack.c.l.b16 %v6092
        %v6384 = vunpack.c.h.b16 %v6092
        %v6385 = vunpack.c.l.b16 %v6093
        %v6386 = vunpack.c.h.b16 %v6093
        %v6387 = vunpack.c.l.b16 %v6094
        %v6388 = vunpack.c.h.b16 %v6094
        %v6389 = vunpack.c.l.b16 %v6095
        %v6390 = vunpack.c.h.b16 %v6095
        %v6391 = vunpack.c.l.b16 %v6096
        %v6392 = vunpack.c.h.b16 %v6096
        %v6393 = vunpack.c.l.b16 %v6097
        %v6394 = vunpack.c.h.b16 %v6097
        %v6395 = vunpack.c.l.b16 %v6098
        %v6396 = vunpack.c.h.b16 %v6098
        %v6397 = vunpack.c.l.b16 %v6099
        %v6398 = vunpack.c.h.b16 %v6099
        %v6399 = vunpack.c.l.b16 %v6100
        %v6400 = vunpack.c.h.b16 %v6100
        %v6401 = vunpack.c.l.b16 %v6101
        %v6402 = vunpack.c.h.b16 %v6101
        %v6403 = vunpack.c.l.b16 %v6102
        %v6404 = vunpack.c.h.b16 %v6102
        %v6405 = vunpack.c.l.b16 %v6103
        %v6406 = vunpack.c.h.b16 %v6103
        %v6407 = vunpack.c.l.b16 %v6104
        %v6408 = vunpack.c.h.b16 %v6104
        %v6409 = vunpack.c.l.b16 %v6105
        %v6410 = vunpack.c.h.b16 %v6105
        %v6411 = vunpack.c.l.b16 %v6106
        %v6412 = vunpack.c.h.b16 %v6106
        %v6413 = vunpack.c.l.b16 %v6107
        %v6414 = vunpack.c.h.b16 %v6107
        %v6415 = vunpack.c.l.b16 %v6108
        %v6416 = vunpack.c.h.b16 %v6108
        %v6417 = vunpack.c.l.b16 %v6109
        %v6418 = vunpack.c.h.b16 %v6109
        %v6419 = vunpack.c.l.b16 %v6110
        %v6420 = vunpack.c.h.b16 %v6110
        %v6421 = vunpack.c.l.b16 %v6111
        %v6422 = vunpack.c.h.b16 %v6111
        %v6423 = vunpack.c.l.b16 %v6112
        %v6424 = vunpack.c.h.b16 %v6112
        %v6425 = vunpack.c.l.b16 %v6113
        %v6426 = vunpack.c.h.b16 %v6113
        %v6427 = vunpack.c.l.b16 %v6114
        %v6428 = vunpack.c.h.b16 %v6114
        %v6429 = vunpack.c.l.b16 %v6115
        %v6430 = vunpack.c.h.b16 %v6115
        %v6431 = vunpack.c.l.b16 %v6116
        %v6432 = vunpack.c.h.b16 %v6116
        %v6433 = vunpack.c.l.b16 %v6117
        %v6434 = vunpack.c.h.b16 %v6117
        %v6435 = vunpack.c.l.b16 %v6118
        %v6436 = vunpack.c.h.b16 %v6118
        %v6437 = vunpack.c.l.b16 %v6119
        %v6438 = vunpack.c.h.b16 %v6119
        %v6439 = vunpack.c.l.b16 %v6120
        %v6440 = vunpack.c.h.b16 %v6120
        %v6441 = vunpack.c.l.b16 %v6121
        %v6442 = vunpack.c.h.b16 %v6121
        %v6443 = vunpack.c.l.b16 %v6122
        %v6444 = vunpack.c.h.b16 %v6122
        %v6445 = vunpack.c.l.b16 %v6123
        %v6446 = vunpack.c.h.b16 %v6123
        %v6447 = vunpack.c.l.b16 %v6124
        %v6448 = vunpack.c.h.b16 %v6124
        %v6449 = vunpack.c.l.b16 %v6125
        %v6450 = vunpack.c.h.b16 %v6125
        %v6451 = vunpack.c.l.b16 %v6126
        %v6452 = vunpack.c.h.b16 %v6126
        %v6453 = vunpack.c.l.b16 %v6127
        %v6454 = vunpack.c.h.b16 %v6127
        %v6455 = vunpack.c.l.b16 %v6128
        %v6456 = vunpack.c.h.b16 %v6128
        %v6457 = vunpack.c.l.b16 %v6129
        %v6458 = vunpack.c.h.b16 %v6129
        %v6459 = vunpack.c.l.b16 %v6130
        %v6460 = vunpack.c.h.b16 %v6130
        %v6461 = vunpack.c.l.b16 %v6131
        %v6462 = vunpack.c.h.b16 %v6131
        %v6463 = vunpack.c.l.b16 %v6132
        %v6464 = vunpack.c.h.b16 %v6132
        %v6465 = vunpack.c.l.b16 %v6133
        %v6466 = vunpack.c.h.b16 %v6133
        %v6467 = vunpack.c.l.b16 %v6134
        %v6468 = vunpack.c.h.b16 %v6134
        %v6469 = vunpack.c.l.b16 %v6135
        %v6470 = vunpack.c.h.b16 %v6135
        %v6471 = vunpack.c.l.b16 %v6136
        %v6472 = vunpack.c.h.b16 %v6136
        %v6473 = vunpack.c.l.b16 %v6137
        %v6474 = vunpack.c.h.b16 %v6137
        %v6475 = vunpack.c.l.b16 %v6138
        %v6476 = vunpack.c.h.b16 %v6138
        %v6477 = vunpack.c.l.b16 %v6139
        %v6478 = vunpack.c.h.b16 %v6139
        %v6479 = vunpack.c.l.b16 %v6140
        %v6480 = vunpack.c.h.b16 %v6140
        %v6481 = vunpack.c.l.b16 %v6141
        %v6482 = vunpack.c.h.b16 %v6141
        %v6483 = vunpack.c.l.b16 %v6142
        %v6484 = vunpack.c.h.b16 %v6142
        %v6485 = vunpack.c.l.b16 %v6143
        %v6486 = vunpack.c.h.b16 %v6143
        %v6487 = vunpack.c.l.b16 %v6144
        %v6488 = vunpack.c.h.b16 %v6144
        %v6489 = vunpack.c.l.b16 %v6145
        %v6490 = vunpack.c.h.b16 %v6145
        %v6491 = vunpack.c.l.b16 %v6146
        %v6492 = vunpack.c.h.b16 %v6146
        %v6493 = vunpack.c.l.b16 %v6147
        %v6494 = vunpack.c.h.b16 %v6147
        %v6495 = vunpack.c.l.b16 %v6148
        %v6496 = vunpack.c.h.b16 %v6148
        %v6497 = vunpack.c.l.b16 %v6149
        %v6498 = vunpack.c.h.b16 %v6149
        %v6499 = vunpack.c.l.b16 %v6150
        %v6500 = vunpack.c.h.b16 %v6150
        %v6501 = vunpack.c.l.b16 %v6151
        %v6502 = vunpack.c.h.b16 %v6151
        %v6503 = vunpack.c.l.b16 %v6152
        %v6504 = vunpack.c.h.b16 %v6152
        %v6505 = vunpack.c.l.b16 %v6153
        %v6506 = vunpack.c.h.b16 %v6153
        %v6507 = vunpack.c.l.b16 %v6154
        %v6508 = vunpack.c.h.b16 %v6154
        %v6509 = vunpack.c.l.b16 %v6155
        %v6510 = vunpack.c.h.b16 %v6155
        %v6511 = vunpack.c.l.b16 %v6156
        %v6512 = vunpack.c.h.b16 %v6156
        %v6513 = vunpack.c.l.b16 %v6157
        %v6514 = vunpack.c.h.b16 %v6157
        %v6515 = vunpack.c.l.b16 %v6158
        %v6516 = vunpack.c.h.b16 %v6158
        %v6517 = vunpack.c.l.b16 %v6159
        %v6518 = vunpack.c.h.b16 %v6159
        %v6519 = vunpack.c.l.b16 %v6160
        %v6520 = vunpack.c.h.b16 %v6160
        %v6521 = vunpack.c.l.b16 %v6161
        %v6522 = vunpack.c.h.b16 %v6161
        %v6523 = vunpack.c.l.b16 %v6162
        %v6524 = vunpack.c.h.b16 %v6162
        %v6525 = vunpack.c.l.b16 %v6163
        %v6526 = vunpack.c.h.b16 %v6163
        %v6527 = vunpack.c.l.b16 %v6164
        %v6528 = vunpack.c.h.b16 %v6164
        %v6529 = vunpack.c.l.b16 %v6165
        %v6530 = vunpack.c.h.b16 %v6165
        %v6531 = vunpack.c.l.b16 %v6166
        %v6532 = vunpack.c.h.b16 %v6166
        %v6533 = vunpack.c.l.b16 %v6167
        %v6534 = vunpack.c.h.b16 %v6167
        %v6535 = vunpack.c.l.b16 %v6168
        %v6536 = vunpack.c.h.b16 %v6168
        %v6537 = vunpack.c.l.b16 %v6169
        %v6538 = vunpack.c.h.b16 %v6169
        %v6539 = vunpack.c.l.b16 %v6170
        %v6540 = vunpack.c.h.b16 %v6170
        %v6541 = vunpack.c.l.b16 %v6171
        %v6542 = vunpack.c.h.b16 %v6171
        %v6543 = vunpack.c.l.b16 %v6172
        %v6544 = vunpack.c.h.b16 %v6172
        %v6545 = vunpack.c.l.b16 %v6173
        %v6546 = vunpack.c.h.b16 %v6173
        %v6547 = vunpack.c.l.b16 %v6174
        %v6548 = vunpack.c.h.b16 %v6174
        %v6549 = vunpack.c.l.b16 %v6175
        %v6550 = vunpack.c.h.b16 %v6175
        %v6551 = vunpack.c.l.b16 %v6176
        %v6552 = vunpack.c.h.b16 %v6176
        %v6553 = vunpack.c.l.b16 %v6177
        %v6554 = vunpack.c.h.b16 %v6177
        %v6555 = vunpack.c.l.b16 %v6178
        %v6556 = vunpack.c.h.b16 %v6178
        %v6557 = vunpack.c.l.b16 %v6179
        %v6558 = vunpack.c.h.b16 %v6179
        %v6559 = vunpack.c.l.b16 %v6180
        %v6560 = vunpack.c.h.b16 %v6180
        %v6561 = vunpack.c.l.b16 %v6181
        %v6562 = vunpack.c.h.b16 %v6181
        %v6563 = vunpack.c.l.b16 %v6182
        %v6564 = vunpack.c.h.b16 %v6182
        %v6565 = vunpack.c.l.b16 %v6183
        %v6566 = vunpack.c.h.b16 %v6183
        %v6567 = vunpack.c.l.b16 %v6184
        %v6568 = vunpack.c.h.b16 %v6184
        %v6569 = vpack.c.b16 %v6315, %v6313
        %v6570 = vpack.c.b16 %v6316, %v6314
        %v6571 = vpack.c.b16 %v6319, %v6317
        %v6572 = vpack.c.b16 %v6320, %v6318
        %v6573 = vpack.c.b16 %v6323, %v6321
        %v6574 = vpack.c.b16 %v6324, %v6322
        %v6575 = vpack.c.b16 %v6327, %v6325
        %v6576 = vpack.c.b16 %v6328, %v6326
        %v6577 = vpack.c.b16 %v6331, %v6329
        %v6578 = vpack.c.b16 %v6332, %v6330
        %v6579 = vpack.c.b16 %v6335, %v6333
        %v6580 = vpack.c.b16 %v6336, %v6334
        %v6581 = vpack.c.b16 %v6339, %v6337
        %v6582 = vpack.c.b16 %v6340, %v6338
        %v6583 = vpack.c.b16 %v6343, %v6341
        %v6584 = vpack.c.b16 %v6344, %v6342
        %v6585 = vpack.c.b16 %v6347, %v6345
        %v6586 = vpack.c.b16 %v6348, %v6346
        %v6587 = vpack.c.b16 %v6351, %v6349
        %v6588 = vpack.c.b16 %v6352, %v6350
        %v6589 = vpack.c.b16 %v6355, %v6353
        %v6590 = vpack.c.b16 %v6356, %v6354
        %v6591 = vpack.c.b16 %v6359, %v6357
        %v6592 = vpack.c.b16 %v6360, %v6358
        %v6593 = vpack.c.b16 %v6363, %v6361
        %v6594 = vpack.c.b16 %v6364, %v6362
        %v6595 = vpack.c.b16 %v6367, %v6365
        %v6596 = vpack.c.b16 %v6368, %v6366
        %v6597 = vpack.c.b16 %v6371, %v6369
        %v6598 = vpack.c.b16 %v6372, %v6370
        %v6599 = vpack.c.b16 %v6375, %v6373
        %v6600 = vpack.c.b16 %v6376, %v6374
        %v6601 = vpack.c.b16 %v6379, %v6377
        %v6602 = vpack.c.b16 %v6380, %v6378
        %v6603 = vpack.c.b16 %v6383, %v6381
        %v6604 = vpack.c.b16 %v6384, %v6382
        %v6605 = vpack.c.b16 %v6387, %v6385
        %v6606 = vpack.c.b16 %v6388, %v6386
        %v6607 = vpack.c.b16 %v6391, %v6389
        %v6608 = vpack.c.b16 %v6392, %v6390
        %v6609 = vpack.c.b16 %v6395, %v6393
        %v6610 = vpack.c.b16 %v6396, %v6394
        %v6611 = vpack.c.b16 %v6399, %v6397
        %v6612 = vpack.c.b16 %v6400, %v6398
        %v6613 = vpack.c.b16 %v6403, %v6401
        %v6614 = vpack.c.b16 %v6404, %v6402
        %v6615 = vpack.c.b16 %v6407, %v6405
        %v6616 = vpack.c.b16 %v6408, %v6406
        %v6617 = vpack.c.b16 %v6411, %v6409
        %v6618 = vpack.c.b16 %v6412, %v6410
        %v6619 = vpack.c.b16 %v6415, %v6413
        %v6620 = vpack.c.b16 %v6416, %v6414
        %v6621 = vpack.c.b16 %v6419, %v6417
        %v6622 = vpack.c.b16 %v6420, %v6418
        %v6623 = vpack.c.b16 %v6423, %v6421
        %v6624 = vpack.c.b16 %v6424, %v6422
        %v6625 = vpack.c.b16 %v6427, %v6425
        %v6626 = vpack.c.b16 %v6428, %v6426
        %v6627 = vpack.c.b16 %v6431, %v6429
        %v6628 = vpack.c.b16 %v6432, %v6430
        %v6629 = vpack.c.b16 %v6435, %v6433
        %v6630 = vpack.c.b16 %v6436, %v6434
        %v6631 = vpack.c.b16 %v6439, %v6437
        %v6632 = vpack.c.b16 %v6440, %v6438
        %v6633 = vpack.c.b16 %v6443, %v6441
        %v6634 = vpack.c.b16 %v6444, %v6442
        %v6635 = vpack.c.b16 %v6447, %v6445
        %v6636 = vpack.c.b16 %v6448, %v6446
        %v6637 = vpack.c.b16 %v6451, %v6449
        %v6638 = vpack.c.b16 %v6452, %v6450
        %v6639 = vpack.c.b16 %v6455, %v6453
        %v6640 = vpack.c.b16 %v6456, %v6454
        %v6641 = vpack.c.b16 %v6459, %v6457
        %v6642 = vpack.c.b16 %v6460, %v6458
        %v6643 = vpack.c.b16 %v6463, %v6461
        %v6644 = vpack.c.b16 %v6464, %v6462
        %v6645 = vpack.c.b16 %v6467, %v6465
        %v6646 = vpack.c.b16 %v6468, %v6466
        %v6647 = vpack.c.b16 %v6471, %v6469
        %v6648 = vpack.c.b16 %v6472, %v6470
        %v6649 = vpack.c.b16 %v6475, %v6473
        %v6650 = vpack.c.b16 %v6476, %v6474
        %v6651 = vpack.c.b16 %v6479, %v6477
        %v6652 = vpack.c.b16 %v6480, %v6478
        %v6653 = vpack.c.b16 %v6483, %v6481
        %v6654 = vpack.c.b16 %v6484, %v6482
        %v6655 = vpack.c.b16 %v6487, %v6485
        %v6656 = vpack.c.b16 %v6488, %v6486
        %v6657 = vpack.c.b16 %v6491, %v6489
        %v6658 = vpack.c.b16 %v6492, %v6490
        %v6659 = vpack.c.b16 %v6495, %v6493
        %v6660 = vpack.c.b16 %v6496, %v6494
        %v6661 = vpack.c.b16 %v6499, %v6497
        %v6662 = vpack.c.b16 %v6500, %v6498
        %v6663 = vpack.c.b16 %v6503, %v6501
        %v6664 = vpack.c.b16 %v6504, %v6502
        %v6665 = vpack.c.b16 %v6507, %v6505
        %v6666 = vpack.c.b16 %v6508, %v6506
        %v6667 = vpack.c.b16 %v6511, %v6509
        %v6668 = vpack.c.b16 %v6512, %v6510
        %v6669 = vpack.c.b16 %v6515, %v6513
        %v6670 = vpack.c.b16 %v6516, %v6514
        %v6671 = vpack.c.b16 %v6519, %v6517
        %v6672 = vpack.c.b16 %v6520, %v6518
        %v6673 = vpack.c.b16 %v6523, %v6521
        %v6674 = vpack.c.b16 %v6524, %v6522
        %v6675 = vpack.c.b16 %v6527, %v6525
        %v6676 = vpack.c.b16 %v6528, %v6526
        %v6677 = vpack.c.b16 %v6531, %v6529
        %v6678 = vpack.c.b16 %v6532, %v6530
        %v6679 = vpack.c.b16 %v6535, %v6533
        %v6680 = vpack.c.b16 %v6536, %v6534
        %v6681 = vpack.c.b16 %v6539, %v6537
        %v6682 = vpack.c.b16 %v6540, %v6538
        %v6683 = vpack.c.b16 %v6543, %v6541
        %v6684 = vpack.c.b16 %v6544, %v6542
        %v6685 = vpack.c.b16 %v6547, %v6545
        %v6686 = vpack.c.b16 %v6548, %v6546
        %v6687 = vpack.c.b16 %v6551, %v6549
        %v6688 = vpack.c.b16 %v6552, %v6550
        %v6689 = vpack.c.b16 %v6555, %v6553
        %v6690 = vpack.c.b16 %v6556, %v6554
        %v6691 = vpack.c.b16 %v6559, %v6557
        %v6692 = vpack.c.b16 %v6560, %v6558
        %v6693 = vpack.c.b16 %v6563, %v6561
        %v6694 = vpack.c.b16 %v6564, %v6562
        %v6695 = vpack.c.b16 %v6567, %v6565
        %v6696 = vpack.c.b16 %v6568, %v6566
        %6825 = vmatprep.subr.bf16.mxu0 %v6570
        %6826 = vmatpush1.bf16.msra.mxu0 %v6569
        %6827 = vmatprep.subr.bf16.mxu0 %v6572
        %6828 = vmatpush1.bf16.msra.mxu0 %v6571
        %6829 = vmatprep.subr.bf16.mxu0 %v6574
        %6830 = vmatpush1.bf16.msra.mxu0 %v6573
        %6831 = vmatprep.subr.bf16.mxu0 %v6576
        %6832 = vmatpush1.bf16.msra.mxu0 %v6575
        %6833 = vmatprep.subr.bf16.mxu0 %v6578
        %6834 = vmatpush1.bf16.msra.mxu0 %v6577
        %6835 = vmatprep.subr.bf16.mxu0 %v6580
        %6836 = vmatpush1.bf16.msra.mxu0 %v6579
        %6837 = vmatprep.subr.bf16.mxu0 %v6582
        %6838 = vmatpush1.bf16.msra.mxu0 %v6581
        %6839 = vmatprep.subr.bf16.mxu0 %v6584
        %6840 = vmatpush1.bf16.msra.mxu0 %v6583
        %6841 = vmatprep.subr.bf16.mxu0 %v6586
        %6842 = vmatpush1.bf16.msra.mxu0 %v6585
        %6843 = vmatprep.subr.bf16.mxu0 %v6588
        %6844 = vmatpush1.bf16.msra.mxu0 %v6587
        %6845 = vmatprep.subr.bf16.mxu0 %v6590
        %6846 = vmatpush1.bf16.msra.mxu0 %v6589
        %6847 = vmatprep.subr.bf16.mxu0 %v6592
        %6848 = vmatpush1.bf16.msra.mxu0 %v6591
        %6849 = vmatprep.subr.bf16.mxu0 %v6594
        %6850 = vmatpush1.bf16.msra.mxu0 %v6593
        %6851 = vmatprep.subr.bf16.mxu0 %v6596
        %6852 = vmatpush1.bf16.msra.mxu0 %v6595
        %6853 = vmatprep.subr.bf16.mxu0 %v6598
        %6854 = vmatpush1.bf16.msra.mxu0 %v6597
        %6855 = vmatprep.subr.bf16.mxu0 %v6600
        %6856 = vmatpush1.bf16.msra.mxu0 %v6599
        %6857 = vmatprep.mubr.bf16.mxu0 %v6050
        %6858 = vmatmul.mubr.bf16.gmra.mrb[0].mxu0 %v6049
        %v6859 = vpop.f32.mrb[0].mxu0
        %v6860 = vadd.f32 0.0, %v6859
        %v6861 = vpop.f32.mrb[0].mxu0
        %v6862 = vadd.f32 0.0, %v6861
        %v6863 = vpop.f32.mrb[0].mxu0
        %v6864 = vpop.f32.mrb[0].mxu0
        %6865 = vdwg.mxu0
        %6866 = vmatprep.subr.bf16.mxu0 %v6602
        %6867 = vmatpush1.bf16.msra.mxu0 %v6601
        %6868 = vmatprep.subr.bf16.mxu0 %v6604
        %6869 = vmatpush1.bf16.msra.mxu0 %v6603
        %6870 = vmatprep.subr.bf16.mxu0 %v6606
        %6871 = vmatpush1.bf16.msra.mxu0 %v6605
        %6872 = vmatprep.subr.bf16.mxu0 %v6608
        %6873 = vmatpush1.bf16.msra.mxu0 %v6607
        %6874 = vmatprep.subr.bf16.mxu0 %v6610
        %6875 = vmatpush1.bf16.msra.mxu0 %v6609
        %6876 = vmatprep.subr.bf16.mxu0 %v6612
        %6877 = vmatpush1.bf16.msra.mxu0 %v6611
        %6878 = vmatprep.subr.bf16.mxu0 %v6614
        %6879 = vmatpush1.bf16.msra.mxu0 %v6613
        %6880 = vmatprep.subr.bf16.mxu0 %v6616
        %6881 = vmatpush1.bf16.msra.mxu0 %v6615
        %6882 = vmatprep.subr.bf16.mxu0 %v6618
        %6883 = vmatpush1.bf16.msra.mxu0 %v6617
        %6884 = vmatprep.subr.bf16.mxu0 %v6620
        %6885 = vmatpush1.bf16.msra.mxu0 %v6619
        %6886 = vmatprep.subr.bf16.mxu0 %v6622
        %6887 = vmatpush1.bf16.msra.mxu0 %v6621
        %6888 = vmatprep.subr.bf16.mxu0 %v6624
        %6889 = vmatpush1.bf16.msra.mxu0 %v6623
        %6890 = vmatprep.subr.bf16.mxu0 %v6626
        %6891 = vmatpush1.bf16.msra.mxu0 %v6625
        %6892 = vmatprep.subr.bf16.mxu0 %v6628
        %6893 = vmatpush1.bf16.msra.mxu0 %v6627
        %6894 = vmatprep.subr.bf16.mxu0 %v6630
        %6895 = vmatpush1.bf16.msra.mxu0 %v6629
        %6896 = vmatprep.subr.bf16.mxu0 %v6632
        %6897 = vmatpush1.bf16.msra.mxu0 %v6631
        %6898 = vmatprep.mubr.bf16.mxu0 %v6052
        %6899 = vmatmul.mubr.bf16.gmra.mrb[0].mxu0 %v6051
        %v6900 = vpop.f32.mrb[0].mxu0
        %v6901 = vadd.f32 %v6860, %v6900
        %v6902 = vpop.f32.mrb[0].mxu0
        %v6903 = vadd.f32 %v6862, %v6902
        %v6904 = vpop.f32.mrb[0].mxu0
        %v6905 = vpop.f32.mrb[0].mxu0
        %6906 = vdwg.mxu0
        %6907 = vmatprep.subr.bf16.mxu0 %v6634
        %6908 = vmatpush1.bf16.msra.mxu0 %v6633
        %6909 = vmatprep.subr.bf16.mxu0 %v6636
        %6910 = vmatpush1.bf16.msra.mxu0 %v6635
        %6911 = vmatprep.subr.bf16.mxu0 %v6638
        %6912 = vmatpush1.bf16.msra.mxu0 %v6637
        %6913 = vmatprep.subr.bf16.mxu0 %v6640
        %6914 = vmatpush1.bf16.msra.mxu0 %v6639
        %6915 = vmatprep.subr.bf16.mxu0 %v6642
        %6916 = vmatpush1.bf16.msra.mxu0 %v6641
        %6917 = vmatprep.subr.bf16.mxu0 %v6644
        %6918 = vmatpush1.bf16.msra.mxu0 %v6643
        %6919 = vmatprep.subr.bf16.mxu0 %v6646
        %6920 = vmatpush1.bf16.msra.mxu0 %v6645
        %6921 = vmatprep.subr.bf16.mxu0 %v6648
        %6922 = vmatpush1.bf16.msra.mxu0 %v6647
        %6923 = vmatprep.subr.bf16.mxu0 %v6650
        %6924 = vmatpush1.bf16.msra.mxu0 %v6649
        %6925 = vmatprep.subr.bf16.mxu0 %v6652
        %6926 = vmatpush1.bf16.msra.mxu0 %v6651
        %6927 = vmatprep.subr.bf16.mxu0 %v6654
        %6928 = vmatpush1.bf16.msra.mxu0 %v6653
        %6929 = vmatprep.subr.bf16.mxu0 %v6656
        %6930 = vmatpush1.bf16.msra.mxu0 %v6655
        %6931 = vmatprep.subr.bf16.mxu0 %v6658
        %6932 = vmatpush1.bf16.msra.mxu0 %v6657
        %6933 = vmatprep.subr.bf16.mxu0 %v6660
        %6934 = vmatpush1.bf16.msra.mxu0 %v6659
        %6935 = vmatprep.subr.bf16.mxu0 %v6662
        %6936 = vmatpush1.bf16.msra.mxu0 %v6661
        %6937 = vmatprep.subr.bf16.mxu0 %v6664
        %6938 = vmatpush1.bf16.msra.mxu0 %v6663
        %6939 = vmatprep.mubr.bf16.mxu0 %v6054
        %6940 = vmatmul.mubr.bf16.gmra.mrb[0].mxu0 %v6053
        %v6941 = vpop.f32.mrb[0].mxu0
        %v6942 = vadd.f32 %v6901, %v6941
        %v6943 = vpop.f32.mrb[0].mxu0
        %v6944 = vadd.f32 %v6903, %v6943
        %v6945 = vpop.f32.mrb[0].mxu0
        %v6946 = vpop.f32.mrb[0].mxu0
        %6947 = vdwg.mxu0
        %6948 = vmatprep.subr.bf16.mxu0 %v6666
        %6949 = vmatpush1.bf16.msra.mxu0 %v6665
        %6950 = vmatprep.subr.bf16.mxu0 %v6668
        %6951 = vmatpush1.bf16.msra.mxu0 %v6667
        %6952 = vmatprep.subr.bf16.mxu0 %v6670
        %6953 = vmatpush1.bf16.msra.mxu0 %v6669
        %6954 = vmatprep.subr.bf16.mxu0 %v6672
        %6955 = vmatpush1.bf16.msra.mxu0 %v6671
        %6956 = vmatprep.subr.bf16.mxu0 %v6674
        %6957 = vmatpush1.bf16.msra.mxu0 %v6673
        %6958 = vmatprep.subr.bf16.mxu0 %v6676
        %6959 = vmatpush1.bf16.msra.mxu0 %v6675
        %6960 = vmatprep.subr.bf16.mxu0 %v6678
        %6961 = vmatpush1.bf16.msra.mxu0 %v6677
        %6962 = vmatprep.subr.bf16.mxu0 %v6680
        %6963 = vmatpush1.bf16.msra.mxu0 %v6679
        %6964 = vmatprep.subr.bf16.mxu0 %v6682
        %6965 = vmatpush1.bf16.msra.mxu0 %v6681
        %6966 = vmatprep.subr.bf16.mxu0 %v6684
        %6967 = vmatpush1.bf16.msra.mxu0 %v6683
        %6968 = vmatprep.subr.bf16.mxu0 %v6686
        %6969 = vmatpush1.bf16.msra.mxu0 %v6685
        %6970 = vmatprep.subr.bf16.mxu0 %v6688
        %6971 = vmatpush1.bf16.msra.mxu0 %v6687
        %6972 = vmatprep.subr.bf16.mxu0 %v6690
        %6973 = vmatpush1.bf16.msra.mxu0 %v6689
        %6974 = vmatprep.subr.bf16.mxu0 %v6692
        %6975 = vmatpush1.bf16.msra.mxu0 %v6691
        %6976 = vmatprep.subr.bf16.mxu0 %v6694
        %6977 = vmatpush1.bf16.msra.mxu0 %v6693
        %6978 = vmatprep.subr.bf16.mxu0 %v6696
        %6979 = vmatpush1.bf16.msra.mxu0 %v6695
        %6980 = vmatprep.mubr.bf16.mxu0 %v6056
        %6981 = vmatmul.mubr.bf16.gmra.mrb[0].mxu0 %v6055
        %v6982 = vpop.f32.mrb[0].mxu0
        %v6983 = vadd.f32 %v6942, %v6982
        %v6984 = vpop.f32.mrb[0].mxu0
        %v6985 = vadd.f32 %v6944, %v6984
        %v6986 = vpop.f32.mrb[0].mxu0
        %v6987 = vpop.f32.mrb[0].mxu0
        %6988 = vdwg.mxu0
        %v6989 = vpack.c.bf16 %v6983, %v6983
        %v6990 = vpack.c.bf16 %v6985, %v6985
        %v6991 = vld [vmem:[%s4] sm:$0xf]
        %v6992 = vld [vmem:[%s4 + $0x4] sm:$0xf]
        %6993 = vrot.lane.b32.xlu0 %v6983, 127
        %v6994 = vpop.permute.xlu0 %6993
        %6995 = vrot.lane.b32.xlu0 %v6985, 127
        %v6996 = vpop.permute.xlu0 %6995
        %v6997 = vsel %vm428, %v6994, %v6996
        %v6998 = vsel %vm428, %v6996, %v6994
        %v6999 = vpack.c.bf16 %v6997, %v6997
        %v7000 = vpack.c.bf16 %v6998, %v6998
        %s7001 = scalar_lea.vmem %s4, 8
        %v7002 = vld [vmem:[%s7001] sm:$0xf]
        %v7003 = vld [vmem:[%s7001 + $0x4] sm:$0xf]
        %v7006 = vunpack.c.l.b16 %v7002
        %v7007 = vunpack.c.l.b16 %v7003
        %v7008 = vpack.c.b16 %v7007, %v7006
        %vm7009 = vcmask 48128
        %v7011 = vsel %vm7009, %v7008, 0
        %vm7013 = vcmask 1042432
        %v7015 = vsel %vm7013, %v6999, 0
        %v7018 = vsel %vm7013, %v7000, 0
        %7020 = vmatprep.subr.bf16.mxu0 %v7018
        %7021 = vmatpush1.bf16.msra.mxu0 %v7015
        %7022 = vmatprep.subr.bf16.mxu0 0
        %7023 = vmatpush1.bf16.msra.mxu0 0
        %7024 = vmatprep.subr.bf16.mxu0 0
        %7025 = vmatpush1.bf16.msra.mxu0 0
        %7026 = vmatprep.subr.bf16.mxu0 0
        %7027 = vmatpush1.bf16.msra.mxu0 0
        %7028 = vmatprep.subr.bf16.mxu0 0
        %7029 = vmatpush1.bf16.msra.mxu0 0
        %7030 = vmatprep.subr.bf16.mxu0 0
        %7031 = vmatpush1.bf16.msra.mxu0 0
        %7032 = vmatprep.subr.bf16.mxu0 0
        %7033 = vmatpush1.bf16.msra.mxu0 0
        %7034 = vmatprep.subr.bf16.mxu0 0
        %7035 = vmatpush1.bf16.msra.mxu0 0
        %7036 = vmatprep.subr.bf16.mxu0 0
        %7037 = vmatpush1.bf16.msra.mxu0 0
        %7038 = vmatprep.subr.bf16.mxu0 0
        %7039 = vmatpush1.bf16.msra.mxu0 0
        %7040 = vmatprep.subr.bf16.mxu0 0
        %7041 = vmatpush1.bf16.msra.mxu0 0
        %7042 = vmatprep.subr.bf16.mxu0 0
        %7043 = vmatpush1.bf16.msra.mxu0 0
        %7044 = vmatprep.subr.bf16.mxu0 0
        %7045 = vmatpush1.bf16.msra.mxu0 0
        %7046 = vmatprep.subr.bf16.mxu0 0
        %7047 = vmatpush1.bf16.msra.mxu0 0
        %7048 = vmatprep.subr.bf16.mxu0 0
        %7049 = vmatpush1.bf16.msra.mxu0 0
        %7050 = vmatprep.subr.bf16.mxu0 0
        %7051 = vmatpush1.bf16.msra.mxu0 0
        %7052 = vmatprep.mubr.bf16.mxu0 0
        %7053 = vmatmul.mubr.bf16.gmra.mrb[0].mxu0 %v7011
        %v7054 = vpop.f32.mrb[0].mxu0
        %v7055 = vadd.f32 0.0, %v7054
        %v7056 = vpop.f32.mrb[0].mxu0
        %v7057 = vadd.f32 0.0, %v7056
        %v7058 = vpop.f32.mrb[0].mxu0
        %v7059 = vadd.f32 0.0, %v7058
        %v7060 = vpop.f32.mrb[0].mxu0
        %v7061 = vadd.f32 0.0, %v7060
        %7062 = vdwg.mxu0
        %v7065 = vunpack.c.l.b16 %v6991
        %v7066 = vunpack.c.l.b16 %v6992
        %v7067 = vpack.c.b16 %v7066, %v7065
        %v7069 = vsel %vm7009, %v7067, 0
        %v7072 = vsel %vm7013, %v6989, 0
        %v7075 = vsel %vm7013, %v6990, 0
        %7077 = vmatprep.subr.bf16.mxu0 %v7075
        %7078 = vmatpush1.bf16.msra.mxu0 %v7072
        %7079 = vmatprep.subr.bf16.mxu0 0
        %7080 = vmatpush1.bf16.msra.mxu0 0
        %7081 = vmatprep.subr.bf16.mxu0 0
        %7082 = vmatpush1.bf16.msra.mxu0 0
        %7083 = vmatprep.subr.bf16.mxu0 0
        %7084 = vmatpush1.bf16.msra.mxu0 0
        %7085 = vmatprep.subr.bf16.mxu0 0
        %7086 = vmatpush1.bf16.msra.mxu0 0
        %7087 = vmatprep.subr.bf16.mxu0 0
        %7088 = vmatpush1.bf16.msra.mxu0 0
        %7089 = vmatprep.subr.bf16.mxu0 0
        %7090 = vmatpush1.bf16.msra.mxu0 0
        %7091 = vmatprep.subr.bf16.mxu0 0
        %7092 = vmatpush1.bf16.msra.mxu0 0
        %7093 = vmatprep.subr.bf16.mxu0 0
        %7094 = vmatpush1.bf16.msra.mxu0 0
        %7095 = vmatprep.subr.bf16.mxu0 0
        %7096 = vmatpush1.bf16.msra.mxu0 0
        %7097 = vmatprep.subr.bf16.mxu0 0
        %7098 = vmatpush1.bf16.msra.mxu0 0
        %7099 = vmatprep.subr.bf16.mxu0 0
        %7100 = vmatpush1.bf16.msra.mxu0 0
        %7101 = vmatprep.subr.bf16.mxu0 0
        %7102 = vmatpush1.bf16.msra.mxu0 0
        %7103 = vmatprep.subr.bf16.mxu0 0
        %7104 = vmatpush1.bf16.msra.mxu0 0
        %7105 = vmatprep.subr.bf16.mxu0 0
        %7106 = vmatpush1.bf16.msra.mxu0 0
        %7107 = vmatprep.subr.bf16.mxu0 0
        %7108 = vmatpush1.bf16.msra.mxu0 0
        %7109 = vmatprep.mubr.bf16.mxu0 0
        %7110 = vmatmul.mubr.bf16.gmra.mrb[0].mxu0 %v7069
        %v7111 = vpop.f32.mrb[0].mxu0
        %v7112 = vadd.f32 %v7055, %v7111
        %v7113 = vpop.f32.mrb[0].mxu0
        %v7114 = vadd.f32 %v7057, %v7113
        %v7115 = vpop.f32.mrb[0].mxu0
        %v7116 = vadd.f32 %v7059, %v7115
        %v7117 = vpop.f32.mrb[0].mxu0
        %v7118 = vadd.f32 %v7061, %v7117
        %7119 = vdwg.mxu0
        %7120 = vrot.lane.b32.xlu0 %v6983, 126
        %v7121 = vpop.permute.xlu0 %7120
        %7122 = vrot.lane.b32.xlu0 %v6985, 126
        %v7123 = vpop.permute.xlu0 %7122
        %v7124 = vsel %vm850, %v7121, %v7123
        %v7125 = vsel %vm850, %v7123, %v7121
        %v7126 = vpack.c.bf16 %v7124, %v7124
        %v7127 = vpack.c.bf16 %v7125, %v7125
        %s7128 = scalar_lea.vmem %s4, 16
        %v7129 = vld [vmem:[%s7128] sm:$0xf]
        %v7130 = vld [vmem:[%s7128 + $0x4] sm:$0xf]
        %v7133 = vunpack.c.l.b16 %v7129
        %v7134 = vunpack.c.l.b16 %v7130
        %v7135 = vpack.c.b16 %v7134, %v7133
        %v7137 = vsel %vm7009, %v7135, 0
        %v7140 = vsel %vm7013, %v7126, 0
        %v7143 = vsel %vm7013, %v7127, 0
        %7145 = vmatprep.subr.bf16.mxu0 %v7143
        %7146 = vmatpush1.bf16.msra.mxu0 %v7140
        %7147 = vmatprep.subr.bf16.mxu0 0
        %7148 = vmatpush1.bf16.msra.mxu0 0
        %7149 = vmatprep.subr.bf16.mxu0 0
        %7150 = vmatpush1.bf16.msra.mxu0 0
        %7151 = vmatprep.subr.bf16.mxu0 0
        %7152 = vmatpush1.bf16.msra.mxu0 0
        %7153 = vmatprep.subr.bf16.mxu0 0
        %7154 = vmatpush1.bf16.msra.mxu0 0
        %7155 = vmatprep.subr.bf16.mxu0 0
        %7156 = vmatpush1.bf16.msra.mxu0 0
        %7157 = vmatprep.subr.bf16.mxu0 0
        %7158 = vmatpush1.bf16.msra.mxu0 0
        %7159 = vmatprep.subr.bf16.mxu0 0
        %7160 = vmatpush1.bf16.msra.mxu0 0
        %7161 = vmatprep.subr.bf16.mxu0 0
        %7162 = vmatpush1.bf16.msra.mxu0 0
        %7163 = vmatprep.subr.bf16.mxu0 0
        %7164 = vmatpush1.bf16.msra.mxu0 0
        %7165 = vmatprep.subr.bf16.mxu0 0
        %7166 = vmatpush1.bf16.msra.mxu0 0
        %7167 = vmatprep.subr.bf16.mxu0 0
        %7168 = vmatpush1.bf16.msra.mxu0 0
        %7169 = vmatprep.subr.bf16.mxu0 0
        %7170 = vmatpush1.bf16.msra.mxu0 0
        %7171 = vmatprep.subr.bf16.mxu0 0
        %7172 = vmatpush1.bf16.msra.mxu0 0
        %7173 = vmatprep.subr.bf16.mxu0 0
        %7174 = vmatpush1.bf16.msra.mxu0 0
        %7175 = vmatprep.subr.bf16.mxu0 0
        %7176 = vmatpush1.bf16.msra.mxu0 0
        %7177 = vmatprep.mubr.bf16.mxu0 0
        %7178 = vmatmul.mubr.bf16.gmra.mrb[0].mxu0 %v7137
        %v7179 = vpop.f32.mrb[0].mxu0
        %v7180 = vadd.f32 0.0, %v7179
        %v7181 = vpop.f32.mrb[0].mxu0
        %v7182 = vadd.f32 0.0, %v7181
        %v7183 = vpop.f32.mrb[0].mxu0
        %v7184 = vadd.f32 0.0, %v7183
        %v7185 = vpop.f32.mrb[0].mxu0
        %v7186 = vadd.f32 0.0, %v7185
        %7187 = vdwg.mxu0
        %v7188 = vadd.f32 %v7112, %v7180
        %v7189 = vadd.f32 %v7114, %v7182
        %v7190 = vadd.f32 %v7116, %v7184
        %v7191 = vadd.f32 %v7118, %v7186
        %7192 = vrot.lane.b32.xlu0 %v6983, 125
        %v7193 = vpop.permute.xlu0 %7192
        %7194 = vrot.lane.b32.xlu0 %v6985, 125
        %v7195 = vpop.permute.xlu0 %7194
        %v7196 = vsel %vm1084, %v7193, %v7195
        %v7197 = vsel %vm1084, %v7195, %v7193
        %v7198 = vpack.c.bf16 %v7196, %v7196
        %v7199 = vpack.c.bf16 %v7197, %v7197
        %s7200 = scalar_lea.vmem %s4, 24
        %v7201 = vld [vmem:[%s7200] sm:$0xf]
        %v7202 = vld [vmem:[%s7200 + $0x4] sm:$0xf]
        %v7205 = vunpack.c.l.b16 %v7201
        %v7206 = vunpack.c.l.b16 %v7202
        %v7207 = vpack.c.b16 %v7206, %v7205
        %v7209 = vsel %vm7009, %v7207, 0
        %v7212 = vsel %vm7013, %v7198, 0
        %v7215 = vsel %vm7013, %v7199, 0
        %7217 = vmatprep.subr.bf16.mxu0 %v7215
        %7218 = vmatpush1.bf16.msra.mxu0 %v7212
        %7219 = vmatprep.subr.bf16.mxu0 0
        %7220 = vmatpush1.bf16.msra.mxu0 0
        %7221 = vmatprep.subr.bf16.mxu0 0
        %7222 = vmatpush1.bf16.msra.mxu0 0
        %7223 = vmatprep.subr.bf16.mxu0 0
        %7224 = vmatpush1.bf16.msra.mxu0 0
        %7225 = vmatprep.subr.bf16.mxu0 0
        %7226 = vmatpush1.bf16.msra.mxu0 0
        %7227 = vmatprep.subr.bf16.mxu0 0
        %7228 = vmatpush1.bf16.msra.mxu0 0
        %7229 = vmatprep.subr.bf16.mxu0 0
        %7230 = vmatpush1.bf16.msra.mxu0 0
        %7231 = vmatprep.subr.bf16.mxu0 0
        %7232 = vmatpush1.bf16.msra.mxu0 0
        %7233 = vmatprep.subr.bf16.mxu0 0
        %7234 = vmatpush1.bf16.msra.mxu0 0
        %7235 = vmatprep.subr.bf16.mxu0 0
        %7236 = vmatpush1.bf16.msra.mxu0 0
        %7237 = vmatprep.subr.bf16.mxu0 0
        %7238 = vmatpush1.bf16.msra.mxu0 0
        %7239 = vmatprep.subr.bf16.mxu0 0
        %7240 = vmatpush1.bf16.msra.mxu0 0
        %7241 = vmatprep.subr.bf16.mxu0 0
        %7242 = vmatpush1.bf16.msra.mxu0 0
        %7243 = vmatprep.subr.bf16.mxu0 0
        %7244 = vmatpush1.bf16.msra.mxu0 0
        %7245 = vmatprep.subr.bf16.mxu0 0
        %7246 = vmatpush1.bf16.msra.mxu0 0
        %7247 = vmatprep.subr.bf16.mxu0 0
        %7248 = vmatpush1.bf16.msra.mxu0 0
        %7249 = vmatprep.mubr.bf16.mxu0 0
        %7250 = vmatmul.mubr.bf16.gmra.mrb[0].mxu0 %v7209
        %v7251 = vpop.f32.mrb[0].mxu0
        %v7252 = vadd.f32 0.0, %v7251
        %v7253 = vpop.f32.mrb[0].mxu0
        %v7254 = vadd.f32 0.0, %v7253
        %v7255 = vpop.f32.mrb[0].mxu0
        %v7256 = vadd.f32 0.0, %v7255
        %v7257 = vpop.f32.mrb[0].mxu0
        %v7258 = vadd.f32 0.0, %v7257
        %7259 = vdwg.mxu0
        %v7260 = vadd.f32 %v7188, %v7252
        %v7261 = vadd.f32 %v7189, %v7254
        %v7262 = vadd.f32 %v7190, %v7256
        %v7263 = vadd.f32 %v7191, %v7258
        %7264 = vrot.lane.b32.xlu0 %v6983, 124
        %v7265 = vpop.permute.xlu0 %7264
        %7266 = vrot.lane.b32.xlu0 %v6985, 124
        %v7267 = vpop.permute.xlu0 %7266
        %v7268 = vsel %vm1318, %v7265, %v7267
        %v7269 = vsel %vm1318, %v7267, %v7265
        %v7270 = vpack.c.bf16 %v7268, %v7268
        %v7271 = vpack.c.bf16 %v7269, %v7269
        %s7272 = scalar_lea.vmem %s4, 32
        %v7273 = vld [vmem:[%s7272] sm:$0xf]
        %v7274 = vld [vmem:[%s7272 + $0x4] sm:$0xf]
        %v7277 = vunpack.c.l.b16 %v7273
        %v7278 = vunpack.c.l.b16 %v7274
        %v7279 = vpack.c.b16 %v7278, %v7277
        %v7281 = vsel %vm7009, %v7279, 0
        %v7284 = vsel %vm7013, %v7270, 0
        %v7287 = vsel %vm7013, %v7271, 0
        %7289 = vmatprep.subr.bf16.mxu0 %v7287
        %7290 = vmatpush1.bf16.msra.mxu0 %v7284
        %7291 = vmatprep.subr.bf16.mxu0 0
        %7292 = vmatpush1.bf16.msra.mxu0 0
        %7293 = vmatprep.subr.bf16.mxu0 0
        %7294 = vmatpush1.bf16.msra.mxu0 0
        %7295 = vmatprep.subr.bf16.mxu0 0
        %7296 = vmatpush1.bf16.msra.mxu0 0
        %7297 = vmatprep.subr.bf16.mxu0 0
        %7298 = vmatpush1.bf16.msra.mxu0 0
        %7299 = vmatprep.subr.bf16.mxu0 0
        %7300 = vmatpush1.bf16.msra.mxu0 0
        %7301 = vmatprep.subr.bf16.mxu0 0
        %7302 = vmatpush1.bf16.msra.mxu0 0
        %7303 = vmatprep.subr.bf16.mxu0 0
        %7304 = vmatpush1.bf16.msra.mxu0 0
        %7305 = vmatprep.subr.bf16.mxu0 0
        %7306 = vmatpush1.bf16.msra.mxu0 0
        %7307 = vmatprep.subr.bf16.mxu0 0
        %7308 = vmatpush1.bf16.msra.mxu0 0
        %7309 = vmatprep.subr.bf16.mxu0 0
        %7310 = vmatpush1.bf16.msra.mxu0 0
        %7311 = vmatprep.subr.bf16.mxu0 0
        %7312 = vmatpush1.bf16.msra.mxu0 0
        %7313 = vmatprep.subr.bf16.mxu0 0
        %7314 = vmatpush1.bf16.msra.mxu0 0
        %7315 = vmatprep.subr.bf16.mxu0 0
        %7316 = vmatpush1.bf16.msra.mxu0 0
        %7317 = vmatprep.subr.bf16.mxu0 0
        %7318 = vmatpush1.bf16.msra.mxu0 0
        %7319 = vmatprep.subr.bf16.mxu0 0
        %7320 = vmatpush1.bf16.msra.mxu0 0
        %7321 = vmatprep.mubr.bf16.mxu0 0
        %7322 = vmatmul.mubr.bf16.gmra.mrb[0].mxu0 %v7281
        %v7323 = vpop.f32.mrb[0].mxu0
        %v7324 = vadd.f32 0.0, %v7323
        %v7325 = vpop.f32.mrb[0].mxu0
        %v7326 = vadd.f32 0.0, %v7325
        %v7327 = vpop.f32.mrb[0].mxu0
        %v7328 = vadd.f32 0.0, %v7327
        %v7329 = vpop.f32.mrb[0].mxu0
        %v7330 = vadd.f32 0.0, %v7329
        %7331 = vdwg.mxu0
        %v7332 = vadd.f32 %v7260, %v7324
        %v7333 = vadd.f32 %v7261, %v7326
        %v7334 = vadd.f32 %v7262, %v7328
        %v7335 = vadd.f32 %v7263, %v7330
        %7336 = vrot.lane.b32.xlu0 %v6983, 112
        %v7337 = vpop.permute.xlu0 %7336
        %7338 = vrot.lane.b32.xlu0 %v6985, 112
        %v7339 = vpop.permute.xlu0 %7338
        %vm7340 = vcmp.lt.s32.totalorder %v427, 112
        %v7341 = vsel %vm7340, %v7337, %v7339
        %v7342 = vsel %vm7340, %v7339, %v7337
        %v7343 = vpack.c.bf16 %v7341, %v7341
        %v7344 = vpack.c.bf16 %v7342, %v7342
        %s7345 = scalar_lea.vmem %s4, 40
        %v7346 = vld [vmem:[%s7345] sm:$0xf]
        %v7347 = vld [vmem:[%s7345 + $0x4] sm:$0xf]
        %v7350 = vunpack.c.l.b16 %v7346
        %v7351 = vunpack.c.l.b16 %v7347
        %v7352 = vpack.c.b16 %v7351, %v7350
        %v7354 = vsel %vm7009, %v7352, 0
        %v7357 = vsel %vm7013, %v7343, 0
        %v7360 = vsel %vm7013, %v7344, 0
        %7362 = vmatprep.subr.bf16.mxu0 %v7360
        %7363 = vmatpush1.bf16.msra.mxu0 %v7357
        %7364 = vmatprep.subr.bf16.mxu0 0
        %7365 = vmatpush1.bf16.msra.mxu0 0
        %7366 = vmatprep.subr.bf16.mxu0 0
        %7367 = vmatpush1.bf16.msra.mxu0 0
        %7368 = vmatprep.subr.bf16.mxu0 0
        %7369 = vmatpush1.bf16.msra.mxu0 0
        %7370 = vmatprep.subr.bf16.mxu0 0
        %7371 = vmatpush1.bf16.msra.mxu0 0
        %7372 = vmatprep.subr.bf16.mxu0 0
        %7373 = vmatpush1.bf16.msra.mxu0 0
        %7374 = vmatprep.subr.bf16.mxu0 0
        %7375 = vmatpush1.bf16.msra.mxu0 0
        %7376 = vmatprep.subr.bf16.mxu0 0
        %7377 = vmatpush1.bf16.msra.mxu0 0
        %7378 = vmatprep.subr.bf16.mxu0 0
        %7379 = vmatpush1.bf16.msra.mxu0 0
        %7380 = vmatprep.subr.bf16.mxu0 0
        %7381 = vmatpush1.bf16.msra.mxu0 0
        %7382 = vmatprep.subr.bf16.mxu0 0
        %7383 = vmatpush1.bf16.msra.mxu0 0
        %7384 = vmatprep.subr.bf16.mxu0 0
        %7385 = vmatpush1.bf16.msra.mxu0 0
        %7386 = vmatprep.subr.bf16.mxu0 0
        %7387 = vmatpush1.bf16.msra.mxu0 0
        %7388 = vmatprep.subr.bf16.mxu0 0
        %7389 = vmatpush1.bf16.msra.mxu0 0
        %7390 = vmatprep.subr.bf16.mxu0 0
        %7391 = vmatpush1.bf16.msra.mxu0 0
        %7392 = vmatprep.subr.bf16.mxu0 0
        %7393 = vmatpush1.bf16.msra.mxu0 0
        %7394 = vmatprep.mubr.bf16.mxu0 0
        %7395 = vmatmul.mubr.bf16.gmra.mrb[0].mxu0 %v7354
        %v7396 = vpop.f32.mrb[0].mxu0
        %v7397 = vadd.f32 0.0, %v7396
        %v7398 = vpop.f32.mrb[0].mxu0
        %v7399 = vadd.f32 0.0, %v7398
        %v7400 = vpop.f32.mrb[0].mxu0
        %v7401 = vadd.f32 0.0, %v7400
        %v7402 = vpop.f32.mrb[0].mxu0
        %v7403 = vadd.f32 0.0, %v7402
        %7404 = vdwg.mxu0
        %v7405 = vadd.f32 %v7332, %v7397
        %v7406 = vadd.f32 %v7333, %v7399
        %v7407 = vadd.f32 %v7334, %v7401
        %v7408 = vadd.f32 %v7335, %v7403
        %7409 = vrot.lane.b32.xlu0 %v6983, 111
        %v7410 = vpop.permute.xlu0 %7409
        %7411 = vrot.lane.b32.xlu0 %v6985, 111
        %v7412 = vpop.permute.xlu0 %7411
        %vm7413 = vcmp.lt.s32.totalorder %v427, 111
        %v7414 = vsel %vm7413, %v7410, %v7412
        %v7415 = vsel %vm7413, %v7412, %v7410
        %v7416 = vpack.c.bf16 %v7414, %v7414
        %v7417 = vpack.c.bf16 %v7415, %v7415
        %s7418 = scalar_lea.vmem %s4, 48
        %v7419 = vld [vmem:[%s7418] sm:$0xf]
        %v7420 = vld [vmem:[%s7418 + $0x4] sm:$0xf]
        %v7423 = vunpack.c.l.b16 %v7419
        %v7424 = vunpack.c.l.b16 %v7420
        %v7425 = vpack.c.b16 %v7424, %v7423
        %v7427 = vsel %vm7009, %v7425, 0
        %v7430 = vsel %vm7013, %v7416, 0
        %v7433 = vsel %vm7013, %v7417, 0
        %7435 = vmatprep.subr.bf16.mxu0 %v7433
        %7436 = vmatpush1.bf16.msra.mxu0 %v7430
        %7437 = vmatprep.subr.bf16.mxu0 0
        %7438 = vmatpush1.bf16.msra.mxu0 0
        %7439 = vmatprep.subr.bf16.mxu0 0
        %7440 = vmatpush1.bf16.msra.mxu0 0
        %7441 = vmatprep.subr.bf16.mxu0 0
        %7442 = vmatpush1.bf16.msra.mxu0 0
        %7443 = vmatprep.subr.bf16.mxu0 0
        %7444 = vmatpush1.bf16.msra.mxu0 0
        %7445 = vmatprep.subr.bf16.mxu0 0
        %7446 = vmatpush1.bf16.msra.mxu0 0
        %7447 = vmatprep.subr.bf16.mxu0 0
        %7448 = vmatpush1.bf16.msra.mxu0 0
        %7449 = vmatprep.subr.bf16.mxu0 0
        %7450 = vmatpush1.bf16.msra.mxu0 0
        %7451 = vmatprep.subr.bf16.mxu0 0
        %7452 = vmatpush1.bf16.msra.mxu0 0
        %7453 = vmatprep.subr.bf16.mxu0 0
        %7454 = vmatpush1.bf16.msra.mxu0 0
        %7455 = vmatprep.subr.bf16.mxu0 0
        %7456 = vmatpush1.bf16.msra.mxu0 0
        %7457 = vmatprep.subr.bf16.mxu0 0
        %7458 = vmatpush1.bf16.msra.mxu0 0
        %7459 = vmatprep.subr.bf16.mxu0 0
        %7460 = vmatpush1.bf16.msra.mxu0 0
        %7461 = vmatprep.subr.bf16.mxu0 0
        %7462 = vmatpush1.bf16.msra.mxu0 0
        %7463 = vmatprep.subr.bf16.mxu0 0
        %7464 = vmatpush1.bf16.msra.mxu0 0
        %7465 = vmatprep.subr.bf16.mxu0 0
        %7466 = vmatpush1.bf16.msra.mxu0 0
        %7467 = vmatprep.mubr.bf16.mxu0 0
        %7468 = vmatmul.mubr.bf16.gmra.mrb[0].mxu0 %v7427
        %v7469 = vpop.f32.mrb[0].mxu0
        %v7470 = vadd.f32 0.0, %v7469
        %v7471 = vpop.f32.mrb[0].mxu0
        %v7472 = vadd.f32 0.0, %v7471
        %v7473 = vpop.f32.mrb[0].mxu0
        %v7474 = vadd.f32 0.0, %v7473
        %v7475 = vpop.f32.mrb[0].mxu0
        %v7476 = vadd.f32 0.0, %v7475
        %7477 = vdwg.mxu0
        %v7478 = vadd.f32 %v7405, %v7470
        %v7479 = vadd.f32 %v7406, %v7472
        %v7480 = vadd.f32 %v7407, %v7474
        %v7481 = vadd.f32 %v7408, %v7476
        %7482 = vrot.lane.b32.xlu0 %v6983, 110
        %v7483 = vpop.permute.xlu0 %7482
        %7484 = vrot.lane.b32.xlu0 %v6985, 110
        %v7485 = vpop.permute.xlu0 %7484
        %vm7486 = vcmp.lt.s32.totalorder %v427, 110
        %v7487 = vsel %vm7486, %v7483, %v7485
        %v7488 = vsel %vm7486, %v7485, %v7483
        %v7489 = vpack.c.bf16 %v7487, %v7487
        %v7490 = vpack.c.bf16 %v7488, %v7488
        %s7491 = scalar_lea.vmem %s4, 56
        %v7492 = vld [vmem:[%s7491] sm:$0xf]
        %v7493 = vld [vmem:[%s7491 + $0x4] sm:$0xf]
        %v7496 = vunpack.c.l.b16 %v7492
        %v7497 = vunpack.c.l.b16 %v7493
        %v7498 = vpack.c.b16 %v7497, %v7496
        %v7500 = vsel %vm7009, %v7498, 0
        %v7503 = vsel %vm7013, %v7489, 0
        %v7506 = vsel %vm7013, %v7490, 0
        %7508 = vmatprep.subr.bf16.mxu0 %v7506
        %7509 = vmatpush1.bf16.msra.mxu0 %v7503
        %7510 = vmatprep.subr.bf16.mxu0 0
        %7511 = vmatpush1.bf16.msra.mxu0 0
        %7512 = vmatprep.subr.bf16.mxu0 0
        %7513 = vmatpush1.bf16.msra.mxu0 0
        %7514 = vmatprep.subr.bf16.mxu0 0
        %7515 = vmatpush1.bf16.msra.mxu0 0
        %7516 = vmatprep.subr.bf16.mxu0 0
        %7517 = vmatpush1.bf16.msra.mxu0 0
        %7518 = vmatprep.subr.bf16.mxu0 0
        %7519 = vmatpush1.bf16.msra.mxu0 0
        %7520 = vmatprep.subr.bf16.mxu0 0
        %7521 = vmatpush1.bf16.msra.mxu0 0
        %7522 = vmatprep.subr.bf16.mxu0 0
        %7523 = vmatpush1.bf16.msra.mxu0 0
        %7524 = vmatprep.subr.bf16.mxu0 0
        %7525 = vmatpush1.bf16.msra.mxu0 0
        %7526 = vmatprep.subr.bf16.mxu0 0
        %7527 = vmatpush1.bf16.msra.mxu0 0
        %7528 = vmatprep.subr.bf16.mxu0 0
        %7529 = vmatpush1.bf16.msra.mxu0 0
        %7530 = vmatprep.subr.bf16.mxu0 0
        %7531 = vmatpush1.bf16.msra.mxu0 0
        %7532 = vmatprep.subr.bf16.mxu0 0
        %7533 = vmatpush1.bf16.msra.mxu0 0
        %7534 = vmatprep.subr.bf16.mxu0 0
        %7535 = vmatpush1.bf16.msra.mxu0 0
        %7536 = vmatprep.subr.bf16.mxu0 0
        %7537 = vmatpush1.bf16.msra.mxu0 0
        %7538 = vmatprep.subr.bf16.mxu0 0
        %7539 = vmatpush1.bf16.msra.mxu0 0
        %7540 = vmatprep.mubr.bf16.mxu0 0
        %7541 = vmatmul.mubr.bf16.gmra.mrb[0].mxu0 %v7500
        %v7542 = vpop.f32.mrb[0].mxu0
        %v7543 = vadd.f32 0.0, %v7542
        %v7544 = vpop.f32.mrb[0].mxu0
        %v7545 = vadd.f32 0.0, %v7544
        %v7546 = vpop.f32.mrb[0].mxu0
        %v7547 = vadd.f32 0.0, %v7546
        %v7548 = vpop.f32.mrb[0].mxu0
        %v7549 = vadd.f32 0.0, %v7548
        %7550 = vdwg.mxu0
        %v7551 = vadd.f32 %v7478, %v7543
        %v7552 = vadd.f32 %v7479, %v7545
        %v7553 = vadd.f32 %v7480, %v7547
        %v7554 = vadd.f32 %v7481, %v7549
        %7555 = vrot.lane.b32.xlu0 %v6983, 109
        %v7556 = vpop.permute.xlu0 %7555
        %7557 = vrot.lane.b32.xlu0 %v6985, 109
        %v7558 = vpop.permute.xlu0 %7557
        %vm7559 = vcmp.lt.s32.totalorder %v427, 109
        %v7560 = vsel %vm7559, %v7556, %v7558
        %v7561 = vsel %vm7559, %v7558, %v7556
        %v7562 = vpack.c.bf16 %v7560, %v7560
        %v7563 = vpack.c.bf16 %v7561, %v7561
        %s7564 = scalar_lea.vmem %s4, 64
        %v7565 = vld [vmem:[%s7564] sm:$0xf]
        %v7566 = vld [vmem:[%s7564 + $0x4] sm:$0xf]
        %v7569 = vunpack.c.l.b16 %v7565
        %v7570 = vunpack.c.l.b16 %v7566
        %v7571 = vpack.c.b16 %v7570, %v7569
        %v7573 = vsel %vm7009, %v7571, 0
        %v7576 = vsel %vm7013, %v7562, 0
        %v7579 = vsel %vm7013, %v7563, 0
        %7581 = vmatprep.subr.bf16.mxu0 %v7579
        %7582 = vmatpush1.bf16.msra.mxu0 %v7576
        %7583 = vmatprep.subr.bf16.mxu0 0
        %7584 = vmatpush1.bf16.msra.mxu0 0
        %7585 = vmatprep.subr.bf16.mxu0 0
        %7586 = vmatpush1.bf16.msra.mxu0 0
        %7587 = vmatprep.subr.bf16.mxu0 0
        %7588 = vmatpush1.bf16.msra.mxu0 0
        %7589 = vmatprep.subr.bf16.mxu0 0
        %7590 = vmatpush1.bf16.msra.mxu0 0
        %7591 = vmatprep.subr.bf16.mxu0 0
        %7592 = vmatpush1.bf16.msra.mxu0 0
        %7593 = vmatprep.subr.bf16.mxu0 0
        %7594 = vmatpush1.bf16.msra.mxu0 0
        %7595 = vmatprep.subr.bf16.mxu0 0
        %7596 = vmatpush1.bf16.msra.mxu0 0
        %7597 = vmatprep.subr.bf16.mxu0 0
        %7598 = vmatpush1.bf16.msra.mxu0 0
        %7599 = vmatprep.subr.bf16.mxu0 0
        %7600 = vmatpush1.bf16.msra.mxu0 0
        %7601 = vmatprep.subr.bf16.mxu0 0
        %7602 = vmatpush1.bf16.msra.mxu0 0
        %7603 = vmatprep.subr.bf16.mxu0 0
        %7604 = vmatpush1.bf16.msra.mxu0 0
        %7605 = vmatprep.subr.bf16.mxu0 0
        %7606 = vmatpush1.bf16.msra.mxu0 0
        %7607 = vmatprep.subr.bf16.mxu0 0
        %7608 = vmatpush1.bf16.msra.mxu0 0
        %7609 = vmatprep.subr.bf16.mxu0 0
        %7610 = vmatpush1.bf16.msra.mxu0 0
        %7611 = vmatprep.subr.bf16.mxu0 0
        %7612 = vmatpush1.bf16.msra.mxu0 0
        %7613 = vmatprep.mubr.bf16.mxu0 0
        %7614 = vmatmul.mubr.bf16.gmra.mrb[0].mxu0 %v7573
        %v7615 = vpop.f32.mrb[0].mxu0
        %v7616 = vadd.f32 0.0, %v7615
        %v7617 = vpop.f32.mrb[0].mxu0
        %v7618 = vadd.f32 0.0, %v7617
        %v7619 = vpop.f32.mrb[0].mxu0
        %v7620 = vadd.f32 0.0, %v7619
        %v7621 = vpop.f32.mrb[0].mxu0
        %v7622 = vadd.f32 0.0, %v7621
        %7623 = vdwg.mxu0
        %v7624 = vadd.f32 %v7551, %v7616
        %v7625 = vadd.f32 %v7552, %v7618
        %v7626 = vadd.f32 %v7553, %v7620
        %v7627 = vadd.f32 %v7554, %v7622
        %7628 = vrot.lane.b32.xlu0 %v6983, 108
        %v7629 = vpop.permute.xlu0 %7628
        %7630 = vrot.lane.b32.xlu0 %v6985, 108
        %v7631 = vpop.permute.xlu0 %7630
        %vm7632 = vcmp.lt.s32.totalorder %v427, 108
        %v7633 = vsel %vm7632, %v7629, %v7631
        %v7634 = vsel %vm7632, %v7631, %v7629
        %v7635 = vpack.c.bf16 %v7633, %v7633
        %v7636 = vpack.c.bf16 %v7634, %v7634
        %s7637 = scalar_lea.vmem %s4, 72
        %v7638 = vld [vmem:[%s7637] sm:$0xf]
        %v7639 = vld [vmem:[%s7637 + $0x4] sm:$0xf]
        %v7642 = vunpack.c.l.b16 %v7638
        %v7643 = vunpack.c.l.b16 %v7639
        %v7644 = vpack.c.b16 %v7643, %v7642
        %v7646 = vsel %vm7009, %v7644, 0
        %v7649 = vsel %vm7013, %v7635, 0
        %v7652 = vsel %vm7013, %v7636, 0
        %7654 = vmatprep.subr.bf16.mxu0 %v7652
        %7655 = vmatpush1.bf16.msra.mxu0 %v7649
        %7656 = vmatprep.subr.bf16.mxu0 0
        %7657 = vmatpush1.bf16.msra.mxu0 0
        %7658 = vmatprep.subr.bf16.mxu0 0
        %7659 = vmatpush1.bf16.msra.mxu0 0
        %7660 = vmatprep.subr.bf16.mxu0 0
        %7661 = vmatpush1.bf16.msra.mxu0 0
        %7662 = vmatprep.subr.bf16.mxu0 0
        %7663 = vmatpush1.bf16.msra.mxu0 0
        %7664 = vmatprep.subr.bf16.mxu0 0
        %7665 = vmatpush1.bf16.msra.mxu0 0
        %7666 = vmatprep.subr.bf16.mxu0 0
        %7667 = vmatpush1.bf16.msra.mxu0 0
        %7668 = vmatprep.subr.bf16.mxu0 0
        %7669 = vmatpush1.bf16.msra.mxu0 0
        %7670 = vmatprep.subr.bf16.mxu0 0
        %7671 = vmatpush1.bf16.msra.mxu0 0
        %7672 = vmatprep.subr.bf16.mxu0 0
        %7673 = vmatpush1.bf16.msra.mxu0 0
        %7674 = vmatprep.subr.bf16.mxu0 0
        %7675 = vmatpush1.bf16.msra.mxu0 0
        %7676 = vmatprep.subr.bf16.mxu0 0
        %7677 = vmatpush1.bf16.msra.mxu0 0
        %7678 = vmatprep.subr.bf16.mxu0 0
        %7679 = vmatpush1.bf16.msra.mxu0 0
        %7680 = vmatprep.subr.bf16.mxu0 0
        %7681 = vmatpush1.bf16.msra.mxu0 0
        %7682 = vmatprep.subr.bf16.mxu0 0
        %7683 = vmatpush1.bf16.msra.mxu0 0
        %7684 = vmatprep.subr.bf16.mxu0 0
        %7685 = vmatpush1.bf16.msra.mxu0 0
        %7686 = vmatprep.mubr.bf16.mxu0 0
        %7687 = vmatmul.mubr.bf16.gmra.mrb[0].mxu0 %v7646
        %v7688 = vpop.f32.mrb[0].mxu0
        %v7689 = vadd.f32 0.0, %v7688
        %v7690 = vpop.f32.mrb[0].mxu0
        %v7691 = vadd.f32 0.0, %v7690
        %v7692 = vpop.f32.mrb[0].mxu0
        %v7693 = vadd.f32 0.0, %v7692
        %v7694 = vpop.f32.mrb[0].mxu0
        %v7695 = vadd.f32 0.0, %v7694
        %7696 = vdwg.mxu0
        %v7697 = vadd.f32 %v7624, %v7689
        %v7698 = vadd.f32 %v7625, %v7691
        %v7699 = vadd.f32 %v7626, %v7693
        %v7700 = vadd.f32 %v7627, %v7695
        %7701 = vrot.lane.b32.xlu0 %v6983, 96
        %v7702 = vpop.permute.xlu0 %7701
        %7703 = vrot.lane.b32.xlu0 %v6985, 96
        %v7704 = vpop.permute.xlu0 %7703
        %v7705 = vsel %vm1552, %v7702, %v7704
        %v7706 = vsel %vm1552, %v7704, %v7702
        %v7707 = vpack.c.bf16 %v7705, %v7705
        %v7708 = vpack.c.bf16 %v7706, %v7706
        %s7709 = scalar_lea.vmem %s4, 80
        %v7710 = vld [vmem:[%s7709] sm:$0xf]
        %v7711 = vld [vmem:[%s7709 + $0x4] sm:$0xf]
        %v7714 = vunpack.c.l.b16 %v7710
        %v7715 = vunpack.c.l.b16 %v7711
        %v7716 = vpack.c.b16 %v7715, %v7714
        %v7718 = vsel %vm7009, %v7716, 0
        %v7721 = vsel %vm7013, %v7707, 0
        %v7724 = vsel %vm7013, %v7708, 0
        %7726 = vmatprep.subr.bf16.mxu0 %v7724
        %7727 = vmatpush1.bf16.msra.mxu0 %v7721
        %7728 = vmatprep.subr.bf16.mxu0 0
        %7729 = vmatpush1.bf16.msra.mxu0 0
        %7730 = vmatprep.subr.bf16.mxu0 0
        %7731 = vmatpush1.bf16.msra.mxu0 0
        %7732 = vmatprep.subr.bf16.mxu0 0
        %7733 = vmatpush1.bf16.msra.mxu0 0
        %7734 = vmatprep.subr.bf16.mxu0 0
        %7735 = vmatpush1.bf16.msra.mxu0 0
        %7736 = vmatprep.subr.bf16.mxu0 0
        %7737 = vmatpush1.bf16.msra.mxu0 0
        %7738 = vmatprep.subr.bf16.mxu0 0
        %7739 = vmatpush1.bf16.msra.mxu0 0
        %7740 = vmatprep.subr.bf16.mxu0 0
        %7741 = vmatpush1.bf16.msra.mxu0 0
        %7742 = vmatprep.subr.bf16.mxu0 0
        %7743 = vmatpush1.bf16.msra.mxu0 0
        %7744 = vmatprep.subr.bf16.mxu0 0
        %7745 = vmatpush1.bf16.msra.mxu0 0
        %7746 = vmatprep.subr.bf16.mxu0 0
        %7747 = vmatpush1.bf16.msra.mxu0 0
        %7748 = vmatprep.subr.bf16.mxu0 0
        %7749 = vmatpush1.bf16.msra.mxu0 0
        %7750 = vmatprep.subr.bf16.mxu0 0
        %7751 = vmatpush1.bf16.msra.mxu0 0
        %7752 = vmatprep.subr.bf16.mxu0 0
        %7753 = vmatpush1.bf16.msra.mxu0 0
        %7754 = vmatprep.subr.bf16.mxu0 0
        %7755 = vmatpush1.bf16.msra.mxu0 0
        %7756 = vmatprep.subr.bf16.mxu0 0
        %7757 = vmatpush1.bf16.msra.mxu0 0
        %7758 = vmatprep.mubr.bf16.mxu0 0
        %7759 = vmatmul.mubr.bf16.gmra.mrb[0].mxu0 %v7718
        %v7760 = vpop.f32.mrb[0].mxu0
        %v7761 = vadd.f32 0.0, %v7760
        %v7762 = vpop.f32.mrb[0].mxu0
        %v7763 = vadd.f32 0.0, %v7762
        %v7764 = vpop.f32.mrb[0].mxu0
        %v7765 = vadd.f32 0.0, %v7764
        %v7766 = vpop.f32.mrb[0].mxu0
        %v7767 = vadd.f32 0.0, %v7766
        %7768 = vdwg.mxu0
        %v7769 = vadd.f32 %v7697, %v7761
        %v7770 = vadd.f32 %v7698, %v7763
        %v7771 = vadd.f32 %v7699, %v7765
        %v7772 = vadd.f32 %v7700, %v7767
        %7773 = vrot.lane.b32.xlu0 %v6983, 95
        %v7774 = vpop.permute.xlu0 %7773
        %7775 = vrot.lane.b32.xlu0 %v6985, 95
        %v7776 = vpop.permute.xlu0 %7775
        %v7777 = vsel %vm1786, %v7774, %v7776
        %v7778 = vsel %vm1786, %v7776, %v7774
        %v7779 = vpack.c.bf16 %v7777, %v7777
        %v7780 = vpack.c.bf16 %v7778, %v7778
        %s7781 = scalar_lea.vmem %s4, 88
        %v7782 = vld [vmem:[%s7781] sm:$0xf]
        %v7783 = vld [vmem:[%s7781 + $0x4] sm:$0xf]
        %v7786 = vunpack.c.l.b16 %v7782
        %v7787 = vunpack.c.l.b16 %v7783
        %v7788 = vpack.c.b16 %v7787, %v7786
        %v7790 = vsel %vm7009, %v7788, 0
        %v7793 = vsel %vm7013, %v7779, 0
        %v7796 = vsel %vm7013, %v7780, 0
        %7798 = vmatprep.subr.bf16.mxu0 %v7796
        %7799 = vmatpush1.bf16.msra.mxu0 %v7793
        %7800 = vmatprep.subr.bf16.mxu0 0
        %7801 = vmatpush1.bf16.msra.mxu0 0
        %7802 = vmatprep.subr.bf16.mxu0 0
        %7803 = vmatpush1.bf16.msra.mxu0 0
        %7804 = vmatprep.subr.bf16.mxu0 0
        %7805 = vmatpush1.bf16.msra.mxu0 0
        %7806 = vmatprep.subr.bf16.mxu0 0
        %7807 = vmatpush1.bf16.msra.mxu0 0
        %7808 = vmatprep.subr.bf16.mxu0 0
        %7809 = vmatpush1.bf16.msra.mxu0 0
        %7810 = vmatprep.subr.bf16.mxu0 0
        %7811 = vmatpush1.bf16.msra.mxu0 0
        %7812 = vmatprep.subr.bf16.mxu0 0
        %7813 = vmatpush1.bf16.msra.mxu0 0
        %7814 = vmatprep.subr.bf16.mxu0 0
        %7815 = vmatpush1.bf16.msra.mxu0 0
        %7816 = vmatprep.subr.bf16.mxu0 0
        %7817 = vmatpush1.bf16.msra.mxu0 0
        %7818 = vmatprep.subr.bf16.mxu0 0
        %7819 = vmatpush1.bf16.msra.mxu0 0
        %7820 = vmatprep.subr.bf16.mxu0 0
        %7821 = vmatpush1.bf16.msra.mxu0 0
        %7822 = vmatprep.subr.bf16.mxu0 0
        %7823 = vmatpush1.bf16.msra.mxu0 0
        %7824 = vmatprep.subr.bf16.mxu0 0
        %7825 = vmatpush1.bf16.msra.mxu0 0
        %7826 = vmatprep.subr.bf16.mxu0 0
        %7827 = vmatpush1.bf16.msra.mxu0 0
        %7828 = vmatprep.subr.bf16.mxu0 0
        %7829 = vmatpush1.bf16.msra.mxu0 0
        %7830 = vmatprep.mubr.bf16.mxu0 0
        %7831 = vmatmul.mubr.bf16.gmra.mrb[0].mxu0 %v7790
        %v7832 = vpop.f32.mrb[0].mxu0
        %v7833 = vadd.f32 0.0, %v7832
        %v7834 = vpop.f32.mrb[0].mxu0
        %v7835 = vadd.f32 0.0, %v7834
        %v7836 = vpop.f32.mrb[0].mxu0
        %v7837 = vadd.f32 0.0, %v7836
        %v7838 = vpop.f32.mrb[0].mxu0
        %v7839 = vadd.f32 0.0, %v7838
        %7840 = vdwg.mxu0
        %v7841 = vadd.f32 %v7769, %v7833
        %v7842 = vadd.f32 %v7770, %v7835
        %v7843 = vadd.f32 %v7771, %v7837
        %v7844 = vadd.f32 %v7772, %v7839
        %7845 = vrot.lane.b32.xlu0 %v6983, 94
        %v7846 = vpop.permute.xlu0 %7845
        %7847 = vrot.lane.b32.xlu0 %v6985, 94
        %v7848 = vpop.permute.xlu0 %7847
        %v7849 = vsel %vm2020, %v7846, %v7848
        %v7850 = vsel %vm2020, %v7848, %v7846
        %v7851 = vpack.c.bf16 %v7849, %v7849
        %v7852 = vpack.c.bf16 %v7850, %v7850
        %s7853 = scalar_lea.vmem %s4, 96
        %v7854 = vld [vmem:[%s7853] sm:$0xf]
        %v7855 = vld [vmem:[%s7853 + $0x4] sm:$0xf]
        %v7858 = vunpack.c.l.b16 %v7854
        %v7859 = vunpack.c.l.b16 %v7855
        %v7860 = vpack.c.b16 %v7859, %v7858
        %v7862 = vsel %vm7009, %v7860, 0
        %v7865 = vsel %vm7013, %v7851, 0
        %v7868 = vsel %vm7013, %v7852, 0
        %7870 = vmatprep.subr.bf16.mxu0 %v7868
        %7871 = vmatpush1.bf16.msra.mxu0 %v7865
        %7872 = vmatprep.subr.bf16.mxu0 0
        %7873 = vmatpush1.bf16.msra.mxu0 0
        %7874 = vmatprep.subr.bf16.mxu0 0
        %7875 = vmatpush1.bf16.msra.mxu0 0
        %7876 = vmatprep.subr.bf16.mxu0 0
        %7877 = vmatpush1.bf16.msra.mxu0 0
        %7878 = vmatprep.subr.bf16.mxu0 0
        %7879 = vmatpush1.bf16.msra.mxu0 0
        %7880 = vmatprep.subr.bf16.mxu0 0
        %7881 = vmatpush1.bf16.msra.mxu0 0
        %7882 = vmatprep.subr.bf16.mxu0 0
        %7883 = vmatpush1.bf16.msra.mxu0 0
        %7884 = vmatprep.subr.bf16.mxu0 0
        %7885 = vmatpush1.bf16.msra.mxu0 0
        %7886 = vmatprep.subr.bf16.mxu0 0
        %7887 = vmatpush1.bf16.msra.mxu0 0
        %7888 = vmatprep.subr.bf16.mxu0 0
        %7889 = vmatpush1.bf16.msra.mxu0 0
        %7890 = vmatprep.subr.bf16.mxu0 0
        %7891 = vmatpush1.bf16.msra.mxu0 0
        %7892 = vmatprep.subr.bf16.mxu0 0
        %7893 = vmatpush1.bf16.msra.mxu0 0
        %7894 = vmatprep.subr.bf16.mxu0 0
        %7895 = vmatpush1.bf16.msra.mxu0 0
        %7896 = vmatprep.subr.bf16.mxu0 0
        %7897 = vmatpush1.bf16.msra.mxu0 0
        %7898 = vmatprep.subr.bf16.mxu0 0
        %7899 = vmatpush1.bf16.msra.mxu0 0
        %7900 = vmatprep.subr.bf16.mxu0 0
        %7901 = vmatpush1.bf16.msra.mxu0 0
        %7902 = vmatprep.mubr.bf16.mxu0 0
        %7903 = vmatmul.mubr.bf16.gmra.mrb[0].mxu0 %v7862
        %v7904 = vpop.f32.mrb[0].mxu0
        %v7905 = vadd.f32 0.0, %v7904
        %v7906 = vpop.f32.mrb[0].mxu0
        %v7907 = vadd.f32 0.0, %v7906
        %v7908 = vpop.f32.mrb[0].mxu0
        %v7909 = vadd.f32 0.0, %v7908
        %v7910 = vpop.f32.mrb[0].mxu0
        %v7911 = vadd.f32 0.0, %v7910
        %7912 = vdwg.mxu0
        %v7913 = vadd.f32 %v7841, %v7905
        %v7914 = vadd.f32 %v7842, %v7907
        %v7915 = vadd.f32 %v7843, %v7909
        %v7916 = vadd.f32 %v7844, %v7911
        %7917 = vrot.lane.b32.xlu0 %v6983, 93
        %v7918 = vpop.permute.xlu0 %7917
        %7919 = vrot.lane.b32.xlu0 %v6985, 93
        %v7920 = vpop.permute.xlu0 %7919
        %v7921 = vsel %vm2254, %v7918, %v7920
        %v7922 = vsel %vm2254, %v7920, %v7918
        %v7923 = vpack.c.bf16 %v7921, %v7921
        %v7924 = vpack.c.bf16 %v7922, %v7922
        %s7925 = scalar_lea.vmem %s4, 104
        %v7926 = vld [vmem:[%s7925] sm:$0xf]
        %v7927 = vld [vmem:[%s7925 + $0x4] sm:$0xf]
        %v7930 = vunpack.c.l.b16 %v7926
        %v7931 = vunpack.c.l.b16 %v7927
        %v7932 = vpack.c.b16 %v7931, %v7930
        %v7934 = vsel %vm7009, %v7932, 0
        %v7937 = vsel %vm7013, %v7923, 0
        %v7940 = vsel %vm7013, %v7924, 0
        %7942 = vmatprep.subr.bf16.mxu0 %v7940
        %7943 = vmatpush1.bf16.msra.mxu0 %v7937
        %7944 = vmatprep.subr.bf16.mxu0 0
        %7945 = vmatpush1.bf16.msra.mxu0 0
        %7946 = vmatprep.subr.bf16.mxu0 0
        %7947 = vmatpush1.bf16.msra.mxu0 0
        %7948 = vmatprep.subr.bf16.mxu0 0
        %7949 = vmatpush1.bf16.msra.mxu0 0
        %7950 = vmatprep.subr.bf16.mxu0 0
        %7951 = vmatpush1.bf16.msra.mxu0 0
        %7952 = vmatprep.subr.bf16.mxu0 0
        %7953 = vmatpush1.bf16.msra.mxu0 0
        %7954 = vmatprep.subr.bf16.mxu0 0
        %7955 = vmatpush1.bf16.msra.mxu0 0
        %7956 = vmatprep.subr.bf16.mxu0 0
        %7957 = vmatpush1.bf16.msra.mxu0 0
        %7958 = vmatprep.subr.bf16.mxu0 0
        %7959 = vmatpush1.bf16.msra.mxu0 0
        %7960 = vmatprep.subr.bf16.mxu0 0
        %7961 = vmatpush1.bf16.msra.mxu0 0
        %7962 = vmatprep.subr.bf16.mxu0 0
        %7963 = vmatpush1.bf16.msra.mxu0 0
        %7964 = vmatprep.subr.bf16.mxu0 0
        %7965 = vmatpush1.bf16.msra.mxu0 0
        %7966 = vmatprep.subr.bf16.mxu0 0
        %7967 = vmatpush1.bf16.msra.mxu0 0
        %7968 = vmatprep.subr.bf16.mxu0 0
        %7969 = vmatpush1.bf16.msra.mxu0 0
        %7970 = vmatprep.subr.bf16.mxu0 0
        %7971 = vmatpush1.bf16.msra.mxu0 0
        %7972 = vmatprep.subr.bf16.mxu0 0
        %7973 = vmatpush1.bf16.msra.mxu0 0
        %7974 = vmatprep.mubr.bf16.mxu0 0
        %7975 = vmatmul.mubr.bf16.gmra.mrb[0].mxu0 %v7934
        %v7976 = vpop.f32.mrb[0].mxu0
        %v7977 = vadd.f32 0.0, %v7976
        %v7978 = vpop.f32.mrb[0].mxu0
        %v7979 = vadd.f32 0.0, %v7978
        %v7980 = vpop.f32.mrb[0].mxu0
        %v7981 = vadd.f32 0.0, %v7980
        %v7982 = vpop.f32.mrb[0].mxu0
        %v7983 = vadd.f32 0.0, %v7982
        %7984 = vdwg.mxu0
        %v7985 = vadd.f32 %v7913, %v7977
        %v7986 = vadd.f32 %v7914, %v7979
        %v7987 = vadd.f32 %v7915, %v7981
        %v7988 = vadd.f32 %v7916, %v7983
        %7989 = vrot.lane.b32.xlu0 %v6983, 92
        %v7990 = vpop.permute.xlu0 %7989
        %7991 = vrot.lane.b32.xlu0 %v6985, 92
        %v7992 = vpop.permute.xlu0 %7991
        %v7993 = vsel %vm2488, %v7990, %v7992
        %v7994 = vsel %vm2488, %v7992, %v7990
        %v7995 = vpack.c.bf16 %v7993, %v7993
        %v7996 = vpack.c.bf16 %v7994, %v7994
        %s7997 = scalar_lea.vmem %s4, 112
        %v7998 = vld [vmem:[%s7997] sm:$0xf]
        %v7999 = vld [vmem:[%s7997 + $0x4] sm:$0xf]
        %v8002 = vunpack.c.l.b16 %v7998
        %v8003 = vunpack.c.l.b16 %v7999
        %v8004 = vpack.c.b16 %v8003, %v8002
        %v8006 = vsel %vm7009, %v8004, 0
        %v8009 = vsel %vm7013, %v7995, 0
        %v8012 = vsel %vm7013, %v7996, 0
        %8014 = vmatprep.subr.bf16.mxu0 %v8012
        %8015 = vmatpush1.bf16.msra.mxu0 %v8009
        %8016 = vmatprep.subr.bf16.mxu0 0
        %8017 = vmatpush1.bf16.msra.mxu0 0
        %8018 = vmatprep.subr.bf16.mxu0 0
        %8019 = vmatpush1.bf16.msra.mxu0 0
        %8020 = vmatprep.subr.bf16.mxu0 0
        %8021 = vmatpush1.bf16.msra.mxu0 0
        %8022 = vmatprep.subr.bf16.mxu0 0
        %8023 = vmatpush1.bf16.msra.mxu0 0
        %8024 = vmatprep.subr.bf16.mxu0 0
        %8025 = vmatpush1.bf16.msra.mxu0 0
        %8026 = vmatprep.subr.bf16.mxu0 0
        %8027 = vmatpush1.bf16.msra.mxu0 0
        %8028 = vmatprep.subr.bf16.mxu0 0
        %8029 = vmatpush1.bf16.msra.mxu0 0
        %8030 = vmatprep.subr.bf16.mxu0 0
        %8031 = vmatpush1.bf16.msra.mxu0 0
        %8032 = vmatprep.subr.bf16.mxu0 0
        %8033 = vmatpush1.bf16.msra.mxu0 0
        %8034 = vmatprep.subr.bf16.mxu0 0
        %8035 = vmatpush1.bf16.msra.mxu0 0
        %8036 = vmatprep.subr.bf16.mxu0 0
        %8037 = vmatpush1.bf16.msra.mxu0 0
        %8038 = vmatprep.subr.bf16.mxu0 0
        %8039 = vmatpush1.bf16.msra.mxu0 0
        %8040 = vmatprep.subr.bf16.mxu0 0
        %8041 = vmatpush1.bf16.msra.mxu0 0
        %8042 = vmatprep.subr.bf16.mxu0 0
        %8043 = vmatpush1.bf16.msra.mxu0 0
        %8044 = vmatprep.subr.bf16.mxu0 0
        %8045 = vmatpush1.bf16.msra.mxu0 0
        %8046 = vmatprep.mubr.bf16.mxu0 0
        %8047 = vmatmul.mubr.bf16.gmra.mrb[0].mxu0 %v8006
        %v8048 = vpop.f32.mrb[0].mxu0
        %v8049 = vadd.f32 0.0, %v8048
        %v8050 = vpop.f32.mrb[0].mxu0
        %v8051 = vadd.f32 0.0, %v8050
        %v8052 = vpop.f32.mrb[0].mxu0
        %v8053 = vadd.f32 0.0, %v8052
        %v8054 = vpop.f32.mrb[0].mxu0
        %v8055 = vadd.f32 0.0, %v8054
        %8056 = vdwg.mxu0
        %v8057 = vadd.f32 %v7985, %v8049
        %v8058 = vadd.f32 %v7986, %v8051
        %v8059 = vadd.f32 %v7987, %v8053
        %v8060 = vadd.f32 %v7988, %v8055
        %8061 = vrot.lane.b32.xlu0 %v6983, 80
        %v8062 = vpop.permute.xlu0 %8061
        %8063 = vrot.lane.b32.xlu0 %v6985, 80
        %v8064 = vpop.permute.xlu0 %8063
        %vm8065 = vcmp.lt.s32.totalorder %v427, 80
        %v8066 = vsel %vm8065, %v8062, %v8064
        %v8067 = vsel %vm8065, %v8064, %v8062
        %v8068 = vpack.c.bf16 %v8066, %v8066
        %v8069 = vpack.c.bf16 %v8067, %v8067
        %s8070 = scalar_lea.vmem %s4, 120
        %v8071 = vld [vmem:[%s8070] sm:$0xf]
        %v8072 = vld [vmem:[%s8070 + $0x4] sm:$0xf]
        %v8075 = vunpack.c.l.b16 %v8071
        %v8076 = vunpack.c.l.b16 %v8072
        %v8077 = vpack.c.b16 %v8076, %v8075
        %v8079 = vsel %vm7009, %v8077, 0
        %v8082 = vsel %vm7013, %v8068, 0
        %v8085 = vsel %vm7013, %v8069, 0
        %8087 = vmatprep.subr.bf16.mxu0 %v8085
        %8088 = vmatpush1.bf16.msra.mxu0 %v8082
        %8089 = vmatprep.subr.bf16.mxu0 0
        %8090 = vmatpush1.bf16.msra.mxu0 0
        %8091 = vmatprep.subr.bf16.mxu0 0
        %8092 = vmatpush1.bf16.msra.mxu0 0
        %8093 = vmatprep.subr.bf16.mxu0 0
        %8094 = vmatpush1.bf16.msra.mxu0 0
        %8095 = vmatprep.subr.bf16.mxu0 0
        %8096 = vmatpush1.bf16.msra.mxu0 0
        %8097 = vmatprep.subr.bf16.mxu0 0
        %8098 = vmatpush1.bf16.msra.mxu0 0
        %8099 = vmatprep.subr.bf16.mxu0 0
        %8100 = vmatpush1.bf16.msra.mxu0 0
        %8101 = vmatprep.subr.bf16.mxu0 0
        %8102 = vmatpush1.bf16.msra.mxu0 0
        %8103 = vmatprep.subr.bf16.mxu0 0
        %8104 = vmatpush1.bf16.msra.mxu0 0
        %8105 = vmatprep.subr.bf16.mxu0 0
        %8106 = vmatpush1.bf16.msra.mxu0 0
        %8107 = vmatprep.subr.bf16.mxu0 0
        %8108 = vmatpush1.bf16.msra.mxu0 0
        %8109 = vmatprep.subr.bf16.mxu0 0
        %8110 = vmatpush1.bf16.msra.mxu0 0
        %8111 = vmatprep.subr.bf16.mxu0 0
        %8112 = vmatpush1.bf16.msra.mxu0 0
        %8113 = vmatprep.subr.bf16.mxu0 0
        %8114 = vmatpush1.bf16.msra.mxu0 0
        %8115 = vmatprep.subr.bf16.mxu0 0
        %8116 = vmatpush1.bf16.msra.mxu0 0
        %8117 = vmatprep.subr.bf16.mxu0 0
        %8118 = vmatpush1.bf16.msra.mxu0 0
        %8119 = vmatprep.mubr.bf16.mxu0 0
        %8120 = vmatmul.mubr.bf16.gmra.mrb[0].mxu0 %v8079
        %v8121 = vpop.f32.mrb[0].mxu0
        %v8122 = vadd.f32 0.0, %v8121
        %v8123 = vpop.f32.mrb[0].mxu0
        %v8124 = vadd.f32 0.0, %v8123
        %v8125 = vpop.f32.mrb[0].mxu0
        %v8126 = vadd.f32 0.0, %v8125
        %v8127 = vpop.f32.mrb[0].mxu0
        %v8128 = vadd.f32 0.0, %v8127
        %8129 = vdwg.mxu0
        %v8130 = vadd.f32 %v8057, %v8122
        %v8131 = vadd.f32 %v8058, %v8124
        %v8132 = vadd.f32 %v8059, %v8126
        %v8133 = vadd.f32 %v8060, %v8128
        %8134 = vrot.lane.b32.xlu0 %v6983, 79
        %v8135 = vpop.permute.xlu0 %8134
        %8136 = vrot.lane.b32.xlu0 %v6985, 79
        %v8137 = vpop.permute.xlu0 %8136
        %vm8138 = vcmp.lt.s32.totalorder %v427, 79
        %v8139 = vsel %vm8138, %v8135, %v8137
        %v8140 = vsel %vm8138, %v8137, %v8135
        %v8141 = vpack.c.bf16 %v8139, %v8139
        %v8142 = vpack.c.bf16 %v8140, %v8140
        %s8143 = scalar_lea.vmem %s4, 128
        %v8144 = vld [vmem:[%s8143] sm:$0xf]
        %v8145 = vld [vmem:[%s8143 + $0x4] sm:$0xf]
        %v8148 = vunpack.c.l.b16 %v8144
        %v8149 = vunpack.c.l.b16 %v8145
        %v8150 = vpack.c.b16 %v8149, %v8148
        %v8152 = vsel %vm7009, %v8150, 0
        %v8155 = vsel %vm7013, %v8141, 0
        %v8158 = vsel %vm7013, %v8142, 0
        %8160 = vmatprep.subr.bf16.mxu0 %v8158
        %8161 = vmatpush1.bf16.msra.mxu0 %v8155
        %8162 = vmatprep.subr.bf16.mxu0 0
        %8163 = vmatpush1.bf16.msra.mxu0 0
        %8164 = vmatprep.subr.bf16.mxu0 0
        %8165 = vmatpush1.bf16.msra.mxu0 0
        %8166 = vmatprep.subr.bf16.mxu0 0
        %8167 = vmatpush1.bf16.msra.mxu0 0
        %8168 = vmatprep.subr.bf16.mxu0 0
        %8169 = vmatpush1.bf16.msra.mxu0 0
        %8170 = vmatprep.subr.bf16.mxu0 0
        %8171 = vmatpush1.bf16.msra.mxu0 0
        %8172 = vmatprep.subr.bf16.mxu0 0
        %8173 = vmatpush1.bf16.msra.mxu0 0
        %8174 = vmatprep.subr.bf16.mxu0 0
        %8175 = vmatpush1.bf16.msra.mxu0 0
        %8176 = vmatprep.subr.bf16.mxu0 0
        %8177 = vmatpush1.bf16.msra.mxu0 0
        %8178 = vmatprep.subr.bf16.mxu0 0
        %8179 = vmatpush1.bf16.msra.mxu0 0
        %8180 = vmatprep.subr.bf16.mxu0 0
        %8181 = vmatpush1.bf16.msra.mxu0 0
        %8182 = vmatprep.subr.bf16.mxu0 0
        %8183 = vmatpush1.bf16.msra.mxu0 0
        %8184 = vmatprep.subr.bf16.mxu0 0
        %8185 = vmatpush1.bf16.msra.mxu0 0
        %8186 = vmatprep.subr.bf16.mxu0 0
        %8187 = vmatpush1.bf16.msra.mxu0 0
        %8188 = vmatprep.subr.bf16.mxu0 0
        %8189 = vmatpush1.bf16.msra.mxu0 0
        %8190 = vmatprep.subr.bf16.mxu0 0
        %8191 = vmatpush1.bf16.msra.mxu0 0
        %8192 = vmatprep.mubr.bf16.mxu0 0
        %8193 = vmatmul.mubr.bf16.gmra.mrb[0].mxu0 %v8152
        %v8194 = vpop.f32.mrb[0].mxu0
        %v8195 = vadd.f32 0.0, %v8194
        %v8196 = vpop.f32.mrb[0].mxu0
        %v8197 = vadd.f32 0.0, %v8196
        %v8198 = vpop.f32.mrb[0].mxu0
        %v8199 = vadd.f32 0.0, %v8198
        %v8200 = vpop.f32.mrb[0].mxu0
        %v8201 = vadd.f32 0.0, %v8200
        %8202 = vdwg.mxu0
        %v8203 = vadd.f32 %v8130, %v8195
        %v8204 = vadd.f32 %v8131, %v8197
        %v8205 = vadd.f32 %v8132, %v8199
        %v8206 = vadd.f32 %v8133, %v8201
        %8207 = vrot.lane.b32.xlu0 %v6983, 78
        %v8208 = vpop.permute.xlu0 %8207
        %8209 = vrot.lane.b32.xlu0 %v6985, 78
        %v8210 = vpop.permute.xlu0 %8209
        %vm8211 = vcmp.lt.s32.totalorder %v427, 78
        %v8212 = vsel %vm8211, %v8208, %v8210
        %v8213 = vsel %vm8211, %v8210, %v8208
        %v8214 = vpack.c.bf16 %v8212, %v8212
        %v8215 = vpack.c.bf16 %v8213, %v8213
        %s8216 = scalar_lea.vmem %s4, 136
        %v8217 = vld [vmem:[%s8216] sm:$0xf]
        %v8218 = vld [vmem:[%s8216 + $0x4] sm:$0xf]
        %v8221 = vunpack.c.l.b16 %v8217
        %v8222 = vunpack.c.l.b16 %v8218
        %v8223 = vpack.c.b16 %v8222, %v8221
        %v8225 = vsel %vm7009, %v8223, 0
        %v8228 = vsel %vm7013, %v8214, 0
        %v8231 = vsel %vm7013, %v8215, 0
        %8233 = vmatprep.subr.bf16.mxu0 %v8231
        %8234 = vmatpush1.bf16.msra.mxu0 %v8228
        %8235 = vmatprep.subr.bf16.mxu0 0
        %8236 = vmatpush1.bf16.msra.mxu0 0
        %8237 = vmatprep.subr.bf16.mxu0 0
        %8238 = vmatpush1.bf16.msra.mxu0 0
        %8239 = vmatprep.subr.bf16.mxu0 0
        %8240 = vmatpush1.bf16.msra.mxu0 0
        %8241 = vmatprep.subr.bf16.mxu0 0
        %8242 = vmatpush1.bf16.msra.mxu0 0
        %8243 = vmatprep.subr.bf16.mxu0 0
        %8244 = vmatpush1.bf16.msra.mxu0 0
        %8245 = vmatprep.subr.bf16.mxu0 0
        %8246 = vmatpush1.bf16.msra.mxu0 0
        %8247 = vmatprep.subr.bf16.mxu0 0
        %8248 = vmatpush1.bf16.msra.mxu0 0
        %8249 = vmatprep.subr.bf16.mxu0 0
        %8250 = vmatpush1.bf16.msra.mxu0 0
        %8251 = vmatprep.subr.bf16.mxu0 0
        %8252 = vmatpush1.bf16.msra.mxu0 0
        %8253 = vmatprep.subr.bf16.mxu0 0
        %8254 = vmatpush1.bf16.msra.mxu0 0
        %8255 = vmatprep.subr.bf16.mxu0 0
        %8256 = vmatpush1.bf16.msra.mxu0 0
        %8257 = vmatprep.subr.bf16.mxu0 0
        %8258 = vmatpush1.bf16.msra.mxu0 0
        %8259 = vmatprep.subr.bf16.mxu0 0
        %8260 = vmatpush1.bf16.msra.mxu0 0
        %8261 = vmatprep.subr.bf16.mxu0 0
        %8262 = vmatpush1.bf16.msra.mxu0 0
        %8263 = vmatprep.subr.bf16.mxu0 0
        %8264 = vmatpush1.bf16.msra.mxu0 0
        %8265 = vmatprep.mubr.bf16.mxu0 0
        %8266 = vmatmul.mubr.bf16.gmra.mrb[0].mxu0 %v8225
        %v8267 = vpop.f32.mrb[0].mxu0
        %v8268 = vadd.f32 0.0, %v8267
        %v8269 = vpop.f32.mrb[0].mxu0
        %v8270 = vadd.f32 0.0, %v8269
        %v8271 = vpop.f32.mrb[0].mxu0
        %v8272 = vadd.f32 0.0, %v8271
        %v8273 = vpop.f32.mrb[0].mxu0
        %v8274 = vadd.f32 0.0, %v8273
        %8275 = vdwg.mxu0
        %v8276 = vadd.f32 %v8203, %v8268
        %v8277 = vadd.f32 %v8204, %v8270
        %v8278 = vadd.f32 %v8205, %v8272
        %v8279 = vadd.f32 %v8206, %v8274
        %8280 = vrot.lane.b32.xlu0 %v6983, 77
        %v8281 = vpop.permute.xlu0 %8280
        %8282 = vrot.lane.b32.xlu0 %v6985, 77
        %v8283 = vpop.permute.xlu0 %8282
        %vm8284 = vcmp.lt.s32.totalorder %v427, 77
        %v8285 = vsel %vm8284, %v8281, %v8283
        %v8286 = vsel %vm8284, %v8283, %v8281
        %v8287 = vpack.c.bf16 %v8285, %v8285
        %v8288 = vpack.c.bf16 %v8286, %v8286
        %s8289 = scalar_lea.vmem %s4, 144
        %v8290 = vld [vmem:[%s8289] sm:$0xf]
        %v8291 = vld [vmem:[%s8289 + $0x4] sm:$0xf]
        %v8294 = vunpack.c.l.b16 %v8290
        %v8295 = vunpack.c.l.b16 %v8291
        %v8296 = vpack.c.b16 %v8295, %v8294
        %v8298 = vsel %vm7009, %v8296, 0
        %v8301 = vsel %vm7013, %v8287, 0
        %v8304 = vsel %vm7013, %v8288, 0
        %8306 = vmatprep.subr.bf16.mxu0 %v8304
        %8307 = vmatpush1.bf16.msra.mxu0 %v8301
        %8308 = vmatprep.subr.bf16.mxu0 0
        %8309 = vmatpush1.bf16.msra.mxu0 0
        %8310 = vmatprep.subr.bf16.mxu0 0
        %8311 = vmatpush1.bf16.msra.mxu0 0
        %8312 = vmatprep.subr.bf16.mxu0 0
        %8313 = vmatpush1.bf16.msra.mxu0 0
        %8314 = vmatprep.subr.bf16.mxu0 0
        %8315 = vmatpush1.bf16.msra.mxu0 0
        %8316 = vmatprep.subr.bf16.mxu0 0
        %8317 = vmatpush1.bf16.msra.mxu0 0
        %8318 = vmatprep.subr.bf16.mxu0 0
        %8319 = vmatpush1.bf16.msra.mxu0 0
        %8320 = vmatprep.subr.bf16.mxu0 0
        %8321 = vmatpush1.bf16.msra.mxu0 0
        %8322 = vmatprep.subr.bf16.mxu0 0
        %8323 = vmatpush1.bf16.msra.mxu0 0
        %8324 = vmatprep.subr.bf16.mxu0 0
        %8325 = vmatpush1.bf16.msra.mxu0 0
        %8326 = vmatprep.subr.bf16.mxu0 0
        %8327 = vmatpush1.bf16.msra.mxu0 0
        %8328 = vmatprep.subr.bf16.mxu0 0
        %8329 = vmatpush1.bf16.msra.mxu0 0
        %8330 = vmatprep.subr.bf16.mxu0 0
        %8331 = vmatpush1.bf16.msra.mxu0 0
        %8332 = vmatprep.subr.bf16.mxu0 0
        %8333 = vmatpush1.bf16.msra.mxu0 0
        %8334 = vmatprep.subr.bf16.mxu0 0
        %8335 = vmatpush1.bf16.msra.mxu0 0
        %8336 = vmatprep.subr.bf16.mxu0 0
        %8337 = vmatpush1.bf16.msra.mxu0 0
        %8338 = vmatprep.mubr.bf16.mxu0 0
        %8339 = vmatmul.mubr.bf16.gmra.mrb[0].mxu0 %v8298
        %v8340 = vpop.f32.mrb[0].mxu0
        %v8341 = vadd.f32 0.0, %v8340
        %v8342 = vpop.f32.mrb[0].mxu0
        %v8343 = vadd.f32 0.0, %v8342
        %v8344 = vpop.f32.mrb[0].mxu0
        %v8345 = vadd.f32 0.0, %v8344
        %v8346 = vpop.f32.mrb[0].mxu0
        %v8347 = vadd.f32 0.0, %v8346
        %8348 = vdwg.mxu0
        %v8349 = vadd.f32 %v8276, %v8341
        %v8350 = vadd.f32 %v8277, %v8343
        %v8351 = vadd.f32 %v8278, %v8345
        %v8352 = vadd.f32 %v8279, %v8347
        %8353 = vrot.lane.b32.xlu0 %v6983, 76
        %v8354 = vpop.permute.xlu0 %8353
        %8355 = vrot.lane.b32.xlu0 %v6985, 76
        %v8356 = vpop.permute.xlu0 %8355
        %vm8357 = vcmp.lt.s32.totalorder %v427, 76
        %v8358 = vsel %vm8357, %v8354, %v8356
        %v8359 = vsel %vm8357, %v8356, %v8354
        %v8360 = vpack.c.bf16 %v8358, %v8358
        %v8361 = vpack.c.bf16 %v8359, %v8359
        %s8362 = scalar_lea.vmem %s4, 152
        %v8363 = vld [vmem:[%s8362] sm:$0xf]
        %v8364 = vld [vmem:[%s8362 + $0x4] sm:$0xf]
        %v8367 = vunpack.c.l.b16 %v8363
        %v8368 = vunpack.c.l.b16 %v8364
        %v8369 = vpack.c.b16 %v8368, %v8367
        %v8371 = vsel %vm7009, %v8369, 0
        %v8374 = vsel %vm7013, %v8360, 0
        %v8377 = vsel %vm7013, %v8361, 0
        %8379 = vmatprep.subr.bf16.mxu0 %v8377
        %8380 = vmatpush1.bf16.msra.mxu0 %v8374
        %8381 = vmatprep.subr.bf16.mxu0 0
        %8382 = vmatpush1.bf16.msra.mxu0 0
        %8383 = vmatprep.subr.bf16.mxu0 0
        %8384 = vmatpush1.bf16.msra.mxu0 0
        %8385 = vmatprep.subr.bf16.mxu0 0
        %8386 = vmatpush1.bf16.msra.mxu0 0
        %8387 = vmatprep.subr.bf16.mxu0 0
        %8388 = vmatpush1.bf16.msra.mxu0 0
        %8389 = vmatprep.subr.bf16.mxu0 0
        %8390 = vmatpush1.bf16.msra.mxu0 0
        %8391 = vmatprep.subr.bf16.mxu0 0
        %8392 = vmatpush1.bf16.msra.mxu0 0
        %8393 = vmatprep.subr.bf16.mxu0 0
        %8394 = vmatpush1.bf16.msra.mxu0 0
        %8395 = vmatprep.subr.bf16.mxu0 0
        %8396 = vmatpush1.bf16.msra.mxu0 0
        %8397 = vmatprep.subr.bf16.mxu0 0
        %8398 = vmatpush1.bf16.msra.mxu0 0
        %8399 = vmatprep.subr.bf16.mxu0 0
        %8400 = vmatpush1.bf16.msra.mxu0 0
        %8401 = vmatprep.subr.bf16.mxu0 0
        %8402 = vmatpush1.bf16.msra.mxu0 0
        %8403 = vmatprep.subr.bf16.mxu0 0
        %8404 = vmatpush1.bf16.msra.mxu0 0
        %8405 = vmatprep.subr.bf16.mxu0 0
        %8406 = vmatpush1.bf16.msra.mxu0 0
        %8407 = vmatprep.subr.bf16.mxu0 0
        %8408 = vmatpush1.bf16.msra.mxu0 0
        %8409 = vmatprep.subr.bf16.mxu0 0
        %8410 = vmatpush1.bf16.msra.mxu0 0
        %8411 = vmatprep.mubr.bf16.mxu0 0
        %8412 = vmatmul.mubr.bf16.gmra.mrb[0].mxu0 %v8371
        %v8413 = vpop.f32.mrb[0].mxu0
        %v8414 = vadd.f32 0.0, %v8413
        %v8415 = vpop.f32.mrb[0].mxu0
        %v8416 = vadd.f32 0.0, %v8415
        %v8417 = vpop.f32.mrb[0].mxu0
        %v8418 = vadd.f32 0.0, %v8417
        %v8419 = vpop.f32.mrb[0].mxu0
        %v8420 = vadd.f32 0.0, %v8419
        %8421 = vdwg.mxu0
        %v8422 = vadd.f32 %v8349, %v8414
        %v8423 = vadd.f32 %v8350, %v8416
        %v8424 = vadd.f32 %v8351, %v8418
        %v8425 = vadd.f32 %v8352, %v8420
        %8426 = vrot.lane.b32.xlu0 %v6983, 64
        %v8427 = vpop.permute.xlu0 %8426
        %8428 = vrot.lane.b32.xlu0 %v6985, 64
        %v8429 = vpop.permute.xlu0 %8428
        %v8430 = vsel %vm2722, %v8427, %v8429
        %v8431 = vsel %vm2722, %v8429, %v8427
        %v8432 = vpack.c.bf16 %v8430, %v8430
        %v8433 = vpack.c.bf16 %v8431, %v8431
        %s8434 = scalar_lea.vmem %s4, 160
        %v8435 = vld [vmem:[%s8434] sm:$0xf]
        %v8436 = vld [vmem:[%s8434 + $0x4] sm:$0xf]
        %v8439 = vunpack.c.l.b16 %v8435
        %v8440 = vunpack.c.l.b16 %v8436
        %v8441 = vpack.c.b16 %v8440, %v8439
        %v8443 = vsel %vm7009, %v8441, 0
        %v8446 = vsel %vm7013, %v8432, 0
        %v8449 = vsel %vm7013, %v8433, 0
        %8451 = vmatprep.subr.bf16.mxu0 %v8449
        %8452 = vmatpush1.bf16.msra.mxu0 %v8446
        %8453 = vmatprep.subr.bf16.mxu0 0
        %8454 = vmatpush1.bf16.msra.mxu0 0
        %8455 = vmatprep.subr.bf16.mxu0 0
        %8456 = vmatpush1.bf16.msra.mxu0 0
        %8457 = vmatprep.subr.bf16.mxu0 0
        %8458 = vmatpush1.bf16.msra.mxu0 0
        %8459 = vmatprep.subr.bf16.mxu0 0
        %8460 = vmatpush1.bf16.msra.mxu0 0
        %8461 = vmatprep.subr.bf16.mxu0 0
        %8462 = vmatpush1.bf16.msra.mxu0 0
        %8463 = vmatprep.subr.bf16.mxu0 0
        %8464 = vmatpush1.bf16.msra.mxu0 0
        %8465 = vmatprep.subr.bf16.mxu0 0
        %8466 = vmatpush1.bf16.msra.mxu0 0
        %8467 = vmatprep.subr.bf16.mxu0 0
        %8468 = vmatpush1.bf16.msra.mxu0 0
        %8469 = vmatprep.subr.bf16.mxu0 0
        %8470 = vmatpush1.bf16.msra.mxu0 0
        %8471 = vmatprep.subr.bf16.mxu0 0
        %8472 = vmatpush1.bf16.msra.mxu0 0
        %8473 = vmatprep.subr.bf16.mxu0 0
        %8474 = vmatpush1.bf16.msra.mxu0 0
        %8475 = vmatprep.subr.bf16.mxu0 0
        %8476 = vmatpush1.bf16.msra.mxu0 0
        %8477 = vmatprep.subr.bf16.mxu0 0
        %8478 = vmatpush1.bf16.msra.mxu0 0
        %8479 = vmatprep.subr.bf16.mxu0 0
        %8480 = vmatpush1.bf16.msra.mxu0 0
        %8481 = vmatprep.subr.bf16.mxu0 0
        %8482 = vmatpush1.bf16.msra.mxu0 0
        %8483 = vmatprep.mubr.bf16.mxu0 0
        %8484 = vmatmul.mubr.bf16.gmra.mrb[0].mxu0 %v8443
        %v8485 = vpop.f32.mrb[0].mxu0
        %v8486 = vadd.f32 0.0, %v8485
        %v8487 = vpop.f32.mrb[0].mxu0
        %v8488 = vadd.f32 0.0, %v8487
        %v8489 = vpop.f32.mrb[0].mxu0
        %v8490 = vadd.f32 0.0, %v8489
        %v8491 = vpop.f32.mrb[0].mxu0
        %v8492 = vadd.f32 0.0, %v8491
        %8493 = vdwg.mxu0
        %v8494 = vadd.f32 %v8422, %v8486
        %v8495 = vadd.f32 %v8423, %v8488
        %v8496 = vadd.f32 %v8424, %v8490
        %v8497 = vadd.f32 %v8425, %v8492
        %8498 = vrot.lane.b32.xlu0 %v6983, 63
        %v8499 = vpop.permute.xlu0 %8498
        %8500 = vrot.lane.b32.xlu0 %v6985, 63
        %v8501 = vpop.permute.xlu0 %8500
        %v8502 = vsel %vm2956, %v8499, %v8501
        %v8503 = vsel %vm2956, %v8501, %v8499
        %v8504 = vpack.c.bf16 %v8502, %v8502
        %v8505 = vpack.c.bf16 %v8503, %v8503
        %s8506 = scalar_lea.vmem %s4, 168
        %v8507 = vld [vmem:[%s8506] sm:$0xf]
        %v8508 = vld [vmem:[%s8506 + $0x4] sm:$0xf]
        %v8511 = vunpack.c.l.b16 %v8507
        %v8512 = vunpack.c.l.b16 %v8508
        %v8513 = vpack.c.b16 %v8512, %v8511
        %v8515 = vsel %vm7009, %v8513, 0
        %v8518 = vsel %vm7013, %v8504, 0
        %v8521 = vsel %vm7013, %v8505, 0
        %8523 = vmatprep.subr.bf16.mxu0 %v8521
        %8524 = vmatpush1.bf16.msra.mxu0 %v8518
        %8525 = vmatprep.subr.bf16.mxu0 0
        %8526 = vmatpush1.bf16.msra.mxu0 0
        %8527 = vmatprep.subr.bf16.mxu0 0
        %8528 = vmatpush1.bf16.msra.mxu0 0
        %8529 = vmatprep.subr.bf16.mxu0 0
        %8530 = vmatpush1.bf16.msra.mxu0 0
        %8531 = vmatprep.subr.bf16.mxu0 0
        %8532 = vmatpush1.bf16.msra.mxu0 0
        %8533 = vmatprep.subr.bf16.mxu0 0
        %8534 = vmatpush1.bf16.msra.mxu0 0
        %8535 = vmatprep.subr.bf16.mxu0 0
        %8536 = vmatpush1.bf16.msra.mxu0 0
        %8537 = vmatprep.subr.bf16.mxu0 0
        %8538 = vmatpush1.bf16.msra.mxu0 0
        %8539 = vmatprep.subr.bf16.mxu0 0
        %8540 = vmatpush1.bf16.msra.mxu0 0
        %8541 = vmatprep.subr.bf16.mxu0 0
        %8542 = vmatpush1.bf16.msra.mxu0 0
        %8543 = vmatprep.subr.bf16.mxu0 0
        %8544 = vmatpush1.bf16.msra.mxu0 0
        %8545 = vmatprep.subr.bf16.mxu0 0
        %8546 = vmatpush1.bf16.msra.mxu0 0
        %8547 = vmatprep.subr.bf16.mxu0 0
        %8548 = vmatpush1.bf16.msra.mxu0 0
        %8549 = vmatprep.subr.bf16.mxu0 0
        %8550 = vmatpush1.bf16.msra.mxu0 0
        %8551 = vmatprep.subr.bf16.mxu0 0
        %8552 = vmatpush1.bf16.msra.mxu0 0
        %8553 = vmatprep.subr.bf16.mxu0 0
        %8554 = vmatpush1.bf16.msra.mxu0 0
        %8555 = vmatprep.mubr.bf16.mxu0 0
        %8556 = vmatmul.mubr.bf16.gmra.mrb[0].mxu0 %v8515
        %v8557 = vpop.f32.mrb[0].mxu0
        %v8558 = vadd.f32 0.0, %v8557
        %v8559 = vpop.f32.mrb[0].mxu0
        %v8560 = vadd.f32 0.0, %v8559
        %v8561 = vpop.f32.mrb[0].mxu0
        %v8562 = vadd.f32 0.0, %v8561
        %v8563 = vpop.f32.mrb[0].mxu0
        %v8564 = vadd.f32 0.0, %v8563
        %8565 = vdwg.mxu0
        %v8566 = vadd.f32 %v8494, %v8558
        %v8567 = vadd.f32 %v8495, %v8560
        %v8568 = vadd.f32 %v8496, %v8562
        %v8569 = vadd.f32 %v8497, %v8564
        %8570 = vrot.lane.b32.xlu0 %v6983, 62
        %v8571 = vpop.permute.xlu0 %8570
        %8572 = vrot.lane.b32.xlu0 %v6985, 62
        %v8573 = vpop.permute.xlu0 %8572
        %v8574 = vsel %vm3190, %v8571, %v8573
        %v8575 = vsel %vm3190, %v8573, %v8571
        %v8576 = vpack.c.bf16 %v8574, %v8574
        %v8577 = vpack.c.bf16 %v8575, %v8575
        %s8578 = scalar_lea.vmem %s4, 176
        %v8579 = vld [vmem:[%s8578] sm:$0xf]
        %v8580 = vld [vmem:[%s8578 + $0x4] sm:$0xf]
        %v8583 = vunpack.c.l.b16 %v8579
        %v8584 = vunpack.c.l.b16 %v8580
        %v8585 = vpack.c.b16 %v8584, %v8583
        %v8587 = vsel %vm7009, %v8585, 0
        %v8590 = vsel %vm7013, %v8576, 0
        %v8593 = vsel %vm7013, %v8577, 0
        %8595 = vmatprep.subr.bf16.mxu0 %v8593
        %8596 = vmatpush1.bf16.msra.mxu0 %v8590
        %8597 = vmatprep.subr.bf16.mxu0 0
        %8598 = vmatpush1.bf16.msra.mxu0 0
        %8599 = vmatprep.subr.bf16.mxu0 0
        %8600 = vmatpush1.bf16.msra.mxu0 0
        %8601 = vmatprep.subr.bf16.mxu0 0
        %8602 = vmatpush1.bf16.msra.mxu0 0
        %8603 = vmatprep.subr.bf16.mxu0 0
        %8604 = vmatpush1.bf16.msra.mxu0 0
        %8605 = vmatprep.subr.bf16.mxu0 0
        %8606 = vmatpush1.bf16.msra.mxu0 0
        %8607 = vmatprep.subr.bf16.mxu0 0
        %8608 = vmatpush1.bf16.msra.mxu0 0
        %8609 = vmatprep.subr.bf16.mxu0 0
        %8610 = vmatpush1.bf16.msra.mxu0 0
        %8611 = vmatprep.subr.bf16.mxu0 0
        %8612 = vmatpush1.bf16.msra.mxu0 0
        %8613 = vmatprep.subr.bf16.mxu0 0
        %8614 = vmatpush1.bf16.msra.mxu0 0
        %8615 = vmatprep.subr.bf16.mxu0 0
        %8616 = vmatpush1.bf16.msra.mxu0 0
        %8617 = vmatprep.subr.bf16.mxu0 0
        %8618 = vmatpush1.bf16.msra.mxu0 0
        %8619 = vmatprep.subr.bf16.mxu0 0
        %8620 = vmatpush1.bf16.msra.mxu0 0
        %8621 = vmatprep.subr.bf16.mxu0 0
        %8622 = vmatpush1.bf16.msra.mxu0 0
        %8623 = vmatprep.subr.bf16.mxu0 0
        %8624 = vmatpush1.bf16.msra.mxu0 0
        %8625 = vmatprep.subr.bf16.mxu0 0
        %8626 = vmatpush1.bf16.msra.mxu0 0
        %8627 = vmatprep.mubr.bf16.mxu0 0
        %8628 = vmatmul.mubr.bf16.gmra.mrb[0].mxu0 %v8587
        %v8629 = vpop.f32.mrb[0].mxu0
        %v8630 = vadd.f32 0.0, %v8629
        %v8631 = vpop.f32.mrb[0].mxu0
        %v8632 = vadd.f32 0.0, %v8631
        %v8633 = vpop.f32.mrb[0].mxu0
        %v8634 = vadd.f32 0.0, %v8633
        %v8635 = vpop.f32.mrb[0].mxu0
        %v8636 = vadd.f32 0.0, %v8635
        %8637 = vdwg.mxu0
        %v8638 = vadd.f32 %v8566, %v8630
        %v8639 = vadd.f32 %v8567, %v8632
        %v8640 = vadd.f32 %v8568, %v8634
        %v8641 = vadd.f32 %v8569, %v8636
        %8642 = vrot.lane.b32.xlu0 %v6983, 61
        %v8643 = vpop.permute.xlu0 %8642
        %8644 = vrot.lane.b32.xlu0 %v6985, 61
        %v8645 = vpop.permute.xlu0 %8644
        %v8646 = vsel %vm3424, %v8643, %v8645
        %v8647 = vsel %vm3424, %v8645, %v8643
        %v8648 = vpack.c.bf16 %v8646, %v8646
        %v8649 = vpack.c.bf16 %v8647, %v8647
        %s8650 = scalar_lea.vmem %s4, 184
        %v8651 = vld [vmem:[%s8650] sm:$0xf]
        %v8652 = vld [vmem:[%s8650 + $0x4] sm:$0xf]
        %v8655 = vunpack.c.l.b16 %v8651
        %v8656 = vunpack.c.l.b16 %v8652
        %v8657 = vpack.c.b16 %v8656, %v8655
        %v8659 = vsel %vm7009, %v8657, 0
        %v8662 = vsel %vm7013, %v8648, 0
        %v8665 = vsel %vm7013, %v8649, 0
        %8667 = vmatprep.subr.bf16.mxu0 %v8665
        %8668 = vmatpush1.bf16.msra.mxu0 %v8662
        %8669 = vmatprep.subr.bf16.mxu0 0
        %8670 = vmatpush1.bf16.msra.mxu0 0
        %8671 = vmatprep.subr.bf16.mxu0 0
        %8672 = vmatpush1.bf16.msra.mxu0 0
        %8673 = vmatprep.subr.bf16.mxu0 0
        %8674 = vmatpush1.bf16.msra.mxu0 0
        %8675 = vmatprep.subr.bf16.mxu0 0
        %8676 = vmatpush1.bf16.msra.mxu0 0
        %8677 = vmatprep.subr.bf16.mxu0 0
        %8678 = vmatpush1.bf16.msra.mxu0 0
        %8679 = vmatprep.subr.bf16.mxu0 0
        %8680 = vmatpush1.bf16.msra.mxu0 0
        %8681 = vmatprep.subr.bf16.mxu0 0
        %8682 = vmatpush1.bf16.msra.mxu0 0
        %8683 = vmatprep.subr.bf16.mxu0 0
        %8684 = vmatpush1.bf16.msra.mxu0 0
        %8685 = vmatprep.subr.bf16.mxu0 0
        %8686 = vmatpush1.bf16.msra.mxu0 0
        %8687 = vmatprep.subr.bf16.mxu0 0
        %8688 = vmatpush1.bf16.msra.mxu0 0
        %8689 = vmatprep.subr.bf16.mxu0 0
        %8690 = vmatpush1.bf16.msra.mxu0 0
        %8691 = vmatprep.subr.bf16.mxu0 0
        %8692 = vmatpush1.bf16.msra.mxu0 0
        %8693 = vmatprep.subr.bf16.mxu0 0
        %8694 = vmatpush1.bf16.msra.mxu0 0
        %8695 = vmatprep.subr.bf16.mxu0 0
        %8696 = vmatpush1.bf16.msra.mxu0 0
        %8697 = vmatprep.subr.bf16.mxu0 0
        %8698 = vmatpush1.bf16.msra.mxu0 0
        %8699 = vmatprep.mubr.bf16.mxu0 0
        %8700 = vmatmul.mubr.bf16.gmra.mrb[0].mxu0 %v8659
        %v8701 = vpop.f32.mrb[0].mxu0
        %v8702 = vadd.f32 0.0, %v8701
        %v8703 = vpop.f32.mrb[0].mxu0
        %v8704 = vadd.f32 0.0, %v8703
        %v8705 = vpop.f32.mrb[0].mxu0
        %v8706 = vadd.f32 0.0, %v8705
        %v8707 = vpop.f32.mrb[0].mxu0
        %v8708 = vadd.f32 0.0, %v8707
        %8709 = vdwg.mxu0
        %v8710 = vadd.f32 %v8638, %v8702
        %v8711 = vadd.f32 %v8639, %v8704
        %v8712 = vadd.f32 %v8640, %v8706
        %v8713 = vadd.f32 %v8641, %v8708
        %8714 = vrot.lane.b32.xlu0 %v6983, 60
        %v8715 = vpop.permute.xlu0 %8714
        %8716 = vrot.lane.b32.xlu0 %v6985, 60
        %v8717 = vpop.permute.xlu0 %8716
        %v8718 = vsel %vm3658, %v8715, %v8717
        %v8719 = vsel %vm3658, %v8717, %v8715
        %v8720 = vpack.c.bf16 %v8718, %v8718
        %v8721 = vpack.c.bf16 %v8719, %v8719
        %s8722 = scalar_lea.vmem %s4, 192
        %v8723 = vld [vmem:[%s8722] sm:$0xf]
        %v8724 = vld [vmem:[%s8722 + $0x4] sm:$0xf]
        %v8727 = vunpack.c.l.b16 %v8723
        %v8728 = vunpack.c.l.b16 %v8724
        %v8729 = vpack.c.b16 %v8728, %v8727
        %v8731 = vsel %vm7009, %v8729, 0
        %v8734 = vsel %vm7013, %v8720, 0
        %v8737 = vsel %vm7013, %v8721, 0
        %8739 = vmatprep.subr.bf16.mxu0 %v8737
        %8740 = vmatpush1.bf16.msra.mxu0 %v8734
        %8741 = vmatprep.subr.bf16.mxu0 0
        %8742 = vmatpush1.bf16.msra.mxu0 0
        %8743 = vmatprep.subr.bf16.mxu0 0
        %8744 = vmatpush1.bf16.msra.mxu0 0
        %8745 = vmatprep.subr.bf16.mxu0 0
        %8746 = vmatpush1.bf16.msra.mxu0 0
        %8747 = vmatprep.subr.bf16.mxu0 0
        %8748 = vmatpush1.bf16.msra.mxu0 0
        %8749 = vmatprep.subr.bf16.mxu0 0
        %8750 = vmatpush1.bf16.msra.mxu0 0
        %8751 = vmatprep.subr.bf16.mxu0 0
        %8752 = vmatpush1.bf16.msra.mxu0 0
        %8753 = vmatprep.subr.bf16.mxu0 0
        %8754 = vmatpush1.bf16.msra.mxu0 0
        %8755 = vmatprep.subr.bf16.mxu0 0
        %8756 = vmatpush1.bf16.msra.mxu0 0
        %8757 = vmatprep.subr.bf16.mxu0 0
        %8758 = vmatpush1.bf16.msra.mxu0 0
        %8759 = vmatprep.subr.bf16.mxu0 0
        %8760 = vmatpush1.bf16.msra.mxu0 0
        %8761 = vmatprep.subr.bf16.mxu0 0
        %8762 = vmatpush1.bf16.msra.mxu0 0
        %8763 = vmatprep.subr.bf16.mxu0 0
        %8764 = vmatpush1.bf16.msra.mxu0 0
        %8765 = vmatprep.subr.bf16.mxu0 0
        %8766 = vmatpush1.bf16.msra.mxu0 0
        %8767 = vmatprep.subr.bf16.mxu0 0
        %8768 = vmatpush1.bf16.msra.mxu0 0
        %8769 = vmatprep.subr.bf16.mxu0 0
        %8770 = vmatpush1.bf16.msra.mxu0 0
        %8771 = vmatprep.mubr.bf16.mxu0 0
        %8772 = vmatmul.mubr.bf16.gmra.mrb[0].mxu0 %v8731
        %v8773 = vpop.f32.mrb[0].mxu0
        %v8774 = vadd.f32 0.0, %v8773
        %v8775 = vpop.f32.mrb[0].mxu0
        %v8776 = vadd.f32 0.0, %v8775
        %v8777 = vpop.f32.mrb[0].mxu0
        %v8778 = vadd.f32 0.0, %v8777
        %v8779 = vpop.f32.mrb[0].mxu0
        %v8780 = vadd.f32 0.0, %v8779
        %8781 = vdwg.mxu0
        %v8782 = vadd.f32 %v8710, %v8774
        %v8783 = vadd.f32 %v8711, %v8776
        %v8784 = vadd.f32 %v8712, %v8778
        %v8785 = vadd.f32 %v8713, %v8780
        %v8786 = vld [vmem:[%s5] sm:$0xff]
        %v8787 = vld [vmem:[%s5 + $0x8] sm:$0xff]
        %8789 = vset.pattern.permute.xlu0 0
        %8790 = vperm.xlu0 %8789, %v8786
        %v8791 = vpop.permute.xlu0 %8790
        %8794 = vset.pattern.permute.xlu0 0
        %8795 = vperm.xlu0 %8794, %v8787
        %v8796 = vpop.permute.xlu0 %8795
        %v8798 = vadd.f32 %v8782, %v8791
        %v8799 = vadd.f32 %v8783, %v8791
        %v8800 = vadd.f32 %v8784, %v8796
        %v8801 = vadd.f32 %v8785, %v8796
        %v8802 = vmax.f32 %v8798, 0.0
        %v8803 = vmax.f32 %v8799, 0.0
        %v8804 = vmax.f32 %v8800, 0.0
        %v8805 = vmax.f32 %v8801, 0.0
        %8806 = vrot.lane.b32.xlu0 %v8802, 127
        %v8807 = vpop.permute.xlu0 %8806
        %8808 = vrot.lane.b32.xlu0 %v8804, 127
        %v8809 = vpop.permute.xlu0 %8808
        %8810 = vrot.lane.b32.xlu0 %v8803, 127
        %v8811 = vpop.permute.xlu0 %8810
        %8812 = vrot.lane.b32.xlu0 %v8805, 127
        %v8813 = vpop.permute.xlu0 %8812
        %v8814 = vsel %vm428, %v8807, %v8811
        %v8815 = vsel %vm428, %v8809, %v8813
        %v8816 = vsel %vm428, %v8811, %v8807
        %v8817 = vsel %vm428, %v8813, %v8809
        %v8818 = vmax.f32 %v8802, %v8814
        %v8819 = vmax.f32 %v8803, %v8816
        %v8820 = vmax.f32 %v8804, %v8815
        %v8821 = vmax.f32 %v8805, %v8817
        %8822 = vrot.lane.b32.xlu0 %v8802, 112
        %v8823 = vpop.permute.xlu0 %8822
        %8824 = vrot.lane.b32.xlu0 %v8804, 112
        %v8825 = vpop.permute.xlu0 %8824
        %8826 = vrot.lane.b32.xlu0 %v8803, 112
        %v8827 = vpop.permute.xlu0 %8826
        %8828 = vrot.lane.b32.xlu0 %v8805, 112
        %v8829 = vpop.permute.xlu0 %8828
        %v8830 = vsel %vm7340, %v8823, %v8827
        %v8831 = vsel %vm7340, %v8825, %v8829
        %v8832 = vsel %vm7340, %v8827, %v8823
        %v8833 = vsel %vm7340, %v8829, %v8825
        %v8834 = vmax.f32 %v8818, %v8830
        %v8835 = vmax.f32 %v8819, %v8832
        %v8836 = vmax.f32 %v8820, %v8831
        %v8837 = vmax.f32 %v8821, %v8833
        %8838 = vrot.lane.b32.xlu0 %v8802, 111
        %v8839 = vpop.permute.xlu0 %8838
        %8840 = vrot.lane.b32.xlu0 %v8804, 111
        %v8841 = vpop.permute.xlu0 %8840
        %8842 = vrot.lane.b32.xlu0 %v8803, 111
        %v8843 = vpop.permute.xlu0 %8842
        %8844 = vrot.lane.b32.xlu0 %v8805, 111
        %v8845 = vpop.permute.xlu0 %8844
        %v8846 = vsel %vm7413, %v8839, %v8843
        %v8847 = vsel %vm7413, %v8841, %v8845
        %v8848 = vsel %vm7413, %v8843, %v8839
        %v8849 = vsel %vm7413, %v8845, %v8841
        %v8850 = vmax.f32 %v8834, %v8846
        %v8851 = vmax.f32 %v8835, %v8848
        %v8852 = vmax.f32 %v8836, %v8847
        %v8853 = vmax.f32 %v8837, %v8849
        %v8854 = vpack.c.bf16 %v8852, %v8850
        %v8855 = vpack.c.bf16 %v8853, %v8851
        %v8856 = vld [vmem:[%s6] sm:$0xf]
        %v8857 = vld [vmem:[%s6 + $0x4] sm:$0xf]
        %v8858 = vld [vmem:[%s6 + $0x8] sm:$0xf]
        %v8859 = vld [vmem:[%s6 + $0xc] sm:$0xf]
        %v8860 = vld [vmem:[%s6 + $0x10] sm:$0xf]
        %v8861 = vld [vmem:[%s6 + $0x14] sm:$0xf]
        %v8862 = vld [vmem:[%s6 + $0x18] sm:$0xf]
        %v8863 = vld [vmem:[%s6 + $0x1c] sm:$0xf]
        %v8864 = vld [vmem:[%s6 + $0x20] sm:$0xf]
        %v8865 = vld [vmem:[%s6 + $0x24] sm:$0xf]
        %v8866 = vld [vmem:[%s6 + $0x28] sm:$0xf]
        %v8867 = vld [vmem:[%s6 + $0x2c] sm:$0xf]
        %v8868 = vld [vmem:[%s6 + $0x30] sm:$0xf]
        %v8869 = vld [vmem:[%s6 + $0x34] sm:$0xf]
        %v8870 = vld [vmem:[%s6 + $0x38] sm:$0xf]
        %v8871 = vld [vmem:[%s6 + $0x3c] sm:$0xf]
        %v8872 = vld [vmem:[%s6 + $0x40] sm:$0xf]
        %v8873 = vld [vmem:[%s6 + $0x44] sm:$0xf]
        %v8874 = vld [vmem:[%s6 + $0x48] sm:$0xf]
        %v8875 = vld [vmem:[%s6 + $0x4c] sm:$0xf]
        %v8876 = vld [vmem:[%s6 + $0x50] sm:$0xf]
        %v8877 = vld [vmem:[%s6 + $0x54] sm:$0xf]
        %v8878 = vld [vmem:[%s6 + $0x58] sm:$0xf]
        %v8879 = vld [vmem:[%s6 + $0x5c] sm:$0xf]
        %v8880 = vld [vmem:[%s6 + $0x60] sm:$0xf]
        %v8881 = vld [vmem:[%s6 + $0x64] sm:$0xf]
        %v8882 = vld [vmem:[%s6 + $0x68] sm:$0xf]
        %v8883 = vld [vmem:[%s6 + $0x6c] sm:$0xf]
        %v8884 = vld [vmem:[%s6 + $0x70] sm:$0xf]
        %v8885 = vld [vmem:[%s6 + $0x74] sm:$0xf]
        %v8886 = vld [vmem:[%s6 + $0x78] sm:$0xf]
        %v8887 = vld [vmem:[%s6 + $0x7c] sm:$0xf]
        %v8920 = vunpack.c.l.b16 %v8856
        %v8921 = vunpack.c.l.b16 %v8857
        %v8922 = vunpack.c.l.b16 %v8858
        %v8923 = vunpack.c.l.b16 %v8859
        %v8924 = vunpack.c.l.b16 %v8860
        %v8925 = vunpack.c.l.b16 %v8861
        %v8926 = vunpack.c.l.b16 %v8862
        %v8927 = vunpack.c.l.b16 %v8863
        %v8928 = vunpack.c.l.b16 %v8864
        %v8929 = vunpack.c.l.b16 %v8865
        %v8930 = vunpack.c.l.b16 %v8866
        %v8931 = vunpack.c.l.b16 %v8867
        %v8932 = vunpack.c.l.b16 %v8868
        %v8933 = vunpack.c.l.b16 %v8869
        %v8934 = vunpack.c.l.b16 %v8870
        %v8935 = vunpack.c.l.b16 %v8871
        %v8936 = vunpack.c.l.b16 %v8872
        %v8937 = vunpack.c.l.b16 %v8873
        %v8938 = vunpack.c.l.b16 %v8874
        %v8939 = vunpack.c.l.b16 %v8875
        %v8940 = vunpack.c.l.b16 %v8876
        %v8941 = vunpack.c.l.b16 %v8877
        %v8942 = vunpack.c.l.b16 %v8878
        %v8943 = vunpack.c.l.b16 %v8879
        %v8944 = vunpack.c.l.b16 %v8880
        %v8945 = vunpack.c.l.b16 %v8881
        %v8946 = vunpack.c.l.b16 %v8882
        %v8947 = vunpack.c.l.b16 %v8883
        %v8948 = vunpack.c.l.b16 %v8884
        %v8949 = vunpack.c.l.b16 %v8885
        %v8950 = vunpack.c.l.b16 %v8886
        %v8951 = vunpack.c.l.b16 %v8887
        %v8952 = vpack.c.b16 %v8921, %v8920
        %v8953 = vpack.c.b16 %v8923, %v8922
        %v8954 = vpack.c.b16 %v8925, %v8924
        %v8955 = vpack.c.b16 %v8927, %v8926
        %v8956 = vpack.c.b16 %v8929, %v8928
        %v8957 = vpack.c.b16 %v8931, %v8930
        %v8958 = vpack.c.b16 %v8933, %v8932
        %v8959 = vpack.c.b16 %v8935, %v8934
        %v8960 = vpack.c.b16 %v8937, %v8936
        %v8961 = vpack.c.b16 %v8939, %v8938
        %v8962 = vpack.c.b16 %v8941, %v8940
        %v8963 = vpack.c.b16 %v8943, %v8942
        %v8964 = vpack.c.b16 %v8945, %v8944
        %v8965 = vpack.c.b16 %v8947, %v8946
        %v8966 = vpack.c.b16 %v8949, %v8948
        %v8967 = vpack.c.b16 %v8951, %v8950
        %8984 = vmatprep.subr.bf16.mxu0 0
        %8985 = vmatpush1.bf16.msra.mxu0 %v8952
        %8986 = vmatprep.subr.bf16.mxu0 0
        %8987 = vmatpush1.bf16.msra.mxu0 %v8953
        %8988 = vmatprep.subr.bf16.mxu0 0
        %8989 = vmatpush1.bf16.msra.mxu0 %v8954
        %8990 = vmatprep.subr.bf16.mxu0 0
        %8991 = vmatpush1.bf16.msra.mxu0 %v8955
        %8992 = vmatprep.subr.bf16.mxu0 0
        %8993 = vmatpush1.bf16.msra.mxu0 %v8956
        %8994 = vmatprep.subr.bf16.mxu0 0
        %8995 = vmatpush1.bf16.msra.mxu0 %v8957
        %8996 = vmatprep.subr.bf16.mxu0 0
        %8997 = vmatpush1.bf16.msra.mxu0 %v8958
        %8998 = vmatprep.subr.bf16.mxu0 0
        %8999 = vmatpush1.bf16.msra.mxu0 %v8959
        %9000 = vmatprep.subr.bf16.mxu0 0
        %9001 = vmatpush1.bf16.msra.mxu0 %v8960
        %9002 = vmatprep.subr.bf16.mxu0 0
        %9003 = vmatpush1.bf16.msra.mxu0 %v8961
        %9004 = vmatprep.subr.bf16.mxu0 0
        %9005 = vmatpush1.bf16.msra.mxu0 %v8962
        %9006 = vmatprep.subr.bf16.mxu0 0
        %9007 = vmatpush1.bf16.msra.mxu0 %v8963
        %9008 = vmatprep.subr.bf16.mxu0 0
        %9009 = vmatpush1.bf16.msra.mxu0 %v8964
        %9010 = vmatprep.subr.bf16.mxu0 0
        %9011 = vmatpush1.bf16.msra.mxu0 %v8965
        %9012 = vmatprep.subr.bf16.mxu0 0
        %9013 = vmatpush1.bf16.msra.mxu0 %v8966
        %9014 = vmatprep.subr.bf16.mxu0 0
        %9015 = vmatpush1.bf16.msra.mxu0 %v8967
        %9016 = vmatprep.mubr.bf16.mxu0 %v8855
        %9017 = vmatmul.mubr.bf16.gmra.mrb[0].mxu0 %v8854
        %v9018 = vpop.f32.mrb[0].mxu0
        %v9019 = vadd.f32 0.0, %v9018
        %v9020 = vpop.f32.mrb[0].mxu0
        %v9021 = vpop.f32.mrb[0].mxu0
        %v9022 = vadd.f32 0.0, %v9021
        %v9023 = vpop.f32.mrb[0].mxu0
        %9024 = vdwg.mxu0
        %v9025 = vld [vmem:[%s8] sm:$0x1]
        %v9026 = vpack.c.bf16 %v9019, %v9019
        %v9027 = vld [vmem:[%s7] sm:$0xf]
        %v9028 = vld [vmem:[%s7 + $0x4] sm:$0xf]
        %v9029 = vld [vmem:[%s7 + $0x8] sm:$0xf]
        %v9030 = vld [vmem:[%s7 + $0xc] sm:$0x1]
        %v9035 = vunpack.c.l.b16 %v9027
        %v9036 = vunpack.c.l.b16 %v9028
        %v9037 = vunpack.c.l.b16 %v9029
        %v9038 = vunpack.c.l.b16 %v9030
        %v9039 = vpack.c.b16 %v9036, %v9035
        %v9040 = vpack.c.b16 %v9038, %v9037
        %vm9042 = vcmask 203776
        %v9044 = vsel %vm9042, %v9026, 0
        %vm9046 = vcmask 1043456
        %vm9047 = vcmask 1044480
        %v9048 = vsel %vm9046, 4294967295, 65535
        %v9049 = vsel %vm9047, %v9048, 0
        %v9051 = vand.u32 %v9040, %v9049
        %9053 = vmatprep.subr.bf16.mxu0 0
        %9054 = vmatpush1.bf16.msra.mxu0 %v9039
        %9055 = vmatprep.subr.bf16.mxu0 0
        %9056 = vmatpush1.bf16.msra.mxu0 %v9051
        %9057 = vmatprep.subr.bf16.mxu0 0
        %9058 = vmatpush1.bf16.msra.mxu0 0
        %9059 = vmatprep.subr.bf16.mxu0 0
        %9060 = vmatpush1.bf16.msra.mxu0 0
        %9061 = vmatprep.subr.bf16.mxu0 0
        %9062 = vmatpush1.bf16.msra.mxu0 0
        %9063 = vmatprep.subr.bf16.mxu0 0
        %9064 = vmatpush1.bf16.msra.mxu0 0
        %9065 = vmatprep.subr.bf16.mxu0 0
        %9066 = vmatpush1.bf16.msra.mxu0 0
        %9067 = vmatprep.subr.bf16.mxu0 0
        %9068 = vmatpush1.bf16.msra.mxu0 0
        %9069 = vmatprep.subr.bf16.mxu0 0
        %9070 = vmatpush1.bf16.msra.mxu0 0
        %9071 = vmatprep.subr.bf16.mxu0 0
        %9072 = vmatpush1.bf16.msra.mxu0 0
        %9073 = vmatprep.subr.bf16.mxu0 0
        %9074 = vmatpush1.bf16.msra.mxu0 0
        %9075 = vmatprep.subr.bf16.mxu0 0
        %9076 = vmatpush1.bf16.msra.mxu0 0
        %9077 = vmatprep.subr.bf16.mxu0 0
        %9078 = vmatpush1.bf16.msra.mxu0 0
        %9079 = vmatprep.subr.bf16.mxu0 0
        %9080 = vmatpush1.bf16.msra.mxu0 0
        %9081 = vmatprep.subr.bf16.mxu0 0
        %9082 = vmatpush1.bf16.msra.mxu0 0
        %9083 = vmatprep.subr.bf16.mxu0 0
        %9084 = vmatpush1.bf16.msra.mxu0 0
        %9085 = vmatprep.mubr.bf16.mxu0 0
        %9086 = vmatmul.mubr.bf16.gmra.mrb[0].mxu0 %v9044
        %v9087 = vpop.f32.mrb[0].mxu0
        %v9088 = vadd.f32 0.0, %v9087
        %v9089 = vpop.f32.mrb[0].mxu0
        %v9090 = vpop.f32.mrb[0].mxu0
        %v9091 = vpop.f32.mrb[0].mxu0
        %9092 = vdwg.mxu0
        %v9093 = vadd.f32 %v9025, %v9088
        %s9094 = scalar_lea.vmem %s7, 16
        %v9095 = vld [vmem:[%s9094] sm:$0xf]
        %v9096 = vld [vmem:[%s9094 + $0x4] sm:$0xf]
        %v9097 = vld [vmem:[%s9094 + $0x8] sm:$0xf]
        %v9098 = vld [vmem:[%s9094 + $0xc] sm:$0x1]
        %v9099 = vshrl.u32 %v9026, 16
        %v9105 = vunpack.c.l.b16 %v9095
        %v9106 = vunpack.c.l.b16 %v9096
        %v9107 = vunpack.c.l.b16 %v9097
        %v9108 = vunpack.c.l.b16 %v9098
        %v9109 = vpack.c.b16 %v9106, %v9105
        %v9110 = vpack.c.b16 %v9108, %v9107
        %v9113 = vsel %vm9042, %v9099, 0
        %v9116 = vand.u32 %v9110, %v9049
        %9118 = vmatprep.subr.bf16.mxu0 0
        %9119 = vmatpush1.bf16.msra.mxu0 %v9109
        %9120 = vmatprep.subr.bf16.mxu0 0
        %9121 = vmatpush1.bf16.msra.mxu0 %v9116
        %9122 = vmatprep.subr.bf16.mxu0 0
        %9123 = vmatpush1.bf16.msra.mxu0 0
        %9124 = vmatprep.subr.bf16.mxu0 0
        %9125 = vmatpush1.bf16.msra.mxu0 0
        %9126 = vmatprep.subr.bf16.mxu0 0
        %9127 = vmatpush1.bf16.msra.mxu0 0
        %9128 = vmatprep.subr.bf16.mxu0 0
        %9129 = vmatpush1.bf16.msra.mxu0 0
        %9130 = vmatprep.subr.bf16.mxu0 0
        %9131 = vmatpush1.bf16.msra.mxu0 0
        %9132 = vmatprep.subr.bf16.mxu0 0
        %9133 = vmatpush1.bf16.msra.mxu0 0
        %9134 = vmatprep.subr.bf16.mxu0 0
        %9135 = vmatpush1.bf16.msra.mxu0 0
        %9136 = vmatprep.subr.bf16.mxu0 0
        %9137 = vmatpush1.bf16.msra.mxu0 0
        %9138 = vmatprep.subr.bf16.mxu0 0
        %9139 = vmatpush1.bf16.msra.mxu0 0
        %9140 = vmatprep.subr.bf16.mxu0 0
        %9141 = vmatpush1.bf16.msra.mxu0 0
        %9142 = vmatprep.subr.bf16.mxu0 0
        %9143 = vmatpush1.bf16.msra.mxu0 0
        %9144 = vmatprep.subr.bf16.mxu0 0
        %9145 = vmatpush1.bf16.msra.mxu0 0
        %9146 = vmatprep.subr.bf16.mxu0 0
        %9147 = vmatpush1.bf16.msra.mxu0 0
        %9148 = vmatprep.subr.bf16.mxu0 0
        %9149 = vmatpush1.bf16.msra.mxu0 0
        %9150 = vmatprep.mubr.bf16.mxu0 0
        %9151 = vmatmul.mubr.bf16.gmra.mrb[0].mxu0 %v9113
        %v9152 = vpop.f32.mrb[0].mxu0
        %v9153 = vadd.f32 0.0, %v9152
        %v9154 = vpop.f32.mrb[0].mxu0
        %v9155 = vpop.f32.mrb[0].mxu0
        %v9156 = vpop.f32.mrb[0].mxu0
        %9157 = vdwg.mxu0
        %v9158 = vadd.f32 %v9093, %v9153
        %s9159 = scalar_lea.vmem %s7, 32
        %v9160 = vld [vmem:[%s9159] sm:$0xf]
        %v9161 = vld [vmem:[%s9159 + $0x4] sm:$0xf]
        %v9162 = vld [vmem:[%s9159 + $0x8] sm:$0xf]
        %v9163 = vld [vmem:[%s9159 + $0xc] sm:$0x1]
        %v9165 = vrot.slane %v9026, 1
        %v9170 = vunpack.c.l.b16 %v9160
        %v9171 = vunpack.c.l.b16 %v9161
        %v9172 = vunpack.c.l.b16 %v9162
        %v9173 = vunpack.c.l.b16 %v9163
        %v9174 = vpack.c.b16 %v9171, %v9170
        %v9175 = vpack.c.b16 %v9173, %v9172
        %v9178 = vsel %vm9042, %v9165, 0
        %v9181 = vand.u32 %v9175, %v9049
        %9183 = vmatprep.subr.bf16.mxu0 0
        %9184 = vmatpush1.bf16.msra.mxu0 %v9174
        %9185 = vmatprep.subr.bf16.mxu0 0
        %9186 = vmatpush1.bf16.msra.mxu0 %v9181
        %9187 = vmatprep.subr.bf16.mxu0 0
        %9188 = vmatpush1.bf16.msra.mxu0 0
        %9189 = vmatprep.subr.bf16.mxu0 0
        %9190 = vmatpush1.bf16.msra.mxu0 0
        %9191 = vmatprep.subr.bf16.mxu0 0
        %9192 = vmatpush1.bf16.msra.mxu0 0
        %9193 = vmatprep.subr.bf16.mxu0 0
        %9194 = vmatpush1.bf16.msra.mxu0 0
        %9195 = vmatprep.subr.bf16.mxu0 0
        %9196 = vmatpush1.bf16.msra.mxu0 0
        %9197 = vmatprep.subr.bf16.mxu0 0
        %9198 = vmatpush1.bf16.msra.mxu0 0
        %9199 = vmatprep.subr.bf16.mxu0 0
        %9200 = vmatpush1.bf16.msra.mxu0 0
        %9201 = vmatprep.subr.bf16.mxu0 0
        %9202 = vmatpush1.bf16.msra.mxu0 0
        %9203 = vmatprep.subr.bf16.mxu0 0
        %9204 = vmatpush1.bf16.msra.mxu0 0
        %9205 = vmatprep.subr.bf16.mxu0 0
        %9206 = vmatpush1.bf16.msra.mxu0 0
        %9207 = vmatprep.subr.bf16.mxu0 0
        %9208 = vmatpush1.bf16.msra.mxu0 0
        %9209 = vmatprep.subr.bf16.mxu0 0
        %9210 = vmatpush1.bf16.msra.mxu0 0
        %9211 = vmatprep.subr.bf16.mxu0 0
        %9212 = vmatpush1.bf16.msra.mxu0 0
        %9213 = vmatprep.subr.bf16.mxu0 0
        %9214 = vmatpush1.bf16.msra.mxu0 0
        %9215 = vmatprep.mubr.bf16.mxu0 0
        %9216 = vmatmul.mubr.bf16.gmra.mrb[0].mxu0 %v9178
        %v9217 = vpop.f32.mrb[0].mxu0
        %v9218 = vadd.f32 0.0, %v9217
        %v9219 = vpop.f32.mrb[0].mxu0
        %v9220 = vpop.f32.mrb[0].mxu0
        %v9221 = vpop.f32.mrb[0].mxu0
        %9222 = vdwg.mxu0
        %v9223 = vadd.f32 %v9158, %v9218
        %s9224 = scalar_lea.vmem %s7, 48
        %v9225 = vld [vmem:[%s9224] sm:$0xf]
        %v9226 = vld [vmem:[%s9224 + $0x4] sm:$0xf]
        %v9227 = vld [vmem:[%s9224 + $0x8] sm:$0xf]
        %v9228 = vld [vmem:[%s9224 + $0xc] sm:$0x1]
        %v9229 = vrot.slane %v9099, 1
        %v9234 = vunpack.c.l.b16 %v9225
        %v9235 = vunpack.c.l.b16 %v9226
        %v9236 = vunpack.c.l.b16 %v9227
        %v9237 = vunpack.c.l.b16 %v9228
        %v9238 = vpack.c.b16 %v9235, %v9234
        %v9239 = vpack.c.b16 %v9237, %v9236
        %v9242 = vsel %vm9042, %v9229, 0
        %v9245 = vand.u32 %v9239, %v9049
        %9247 = vmatprep.subr.bf16.mxu0 0
        %9248 = vmatpush1.bf16.msra.mxu0 %v9238
        %9249 = vmatprep.subr.bf16.mxu0 0
        %9250 = vmatpush1.bf16.msra.mxu0 %v9245
        %9251 = vmatprep.subr.bf16.mxu0 0
        %9252 = vmatpush1.bf16.msra.mxu0 0
        %9253 = vmatprep.subr.bf16.mxu0 0
        %9254 = vmatpush1.bf16.msra.mxu0 0
        %9255 = vmatprep.subr.bf16.mxu0 0
        %9256 = vmatpush1.bf16.msra.mxu0 0
        %9257 = vmatprep.subr.bf16.mxu0 0
        %9258 = vmatpush1.bf16.msra.mxu0 0
        %9259 = vmatprep.subr.bf16.mxu0 0
        %9260 = vmatpush1.bf16.msra.mxu0 0
        %9261 = vmatprep.subr.bf16.mxu0 0
        %9262 = vmatpush1.bf16.msra.mxu0 0
        %9263 = vmatprep.subr.bf16.mxu0 0
        %9264 = vmatpush1.bf16.msra.mxu0 0
        %9265 = vmatprep.subr.bf16.mxu0 0
        %9266 = vmatpush1.bf16.msra.mxu0 0
        %9267 = vmatprep.subr.bf16.mxu0 0
        %9268 = vmatpush1.bf16.msra.mxu0 0
        %9269 = vmatprep.subr.bf16.mxu0 0
        %9270 = vmatpush1.bf16.msra.mxu0 0
        %9271 = vmatprep.subr.bf16.mxu0 0
        %9272 = vmatpush1.bf16.msra.mxu0 0
        %9273 = vmatprep.subr.bf16.mxu0 0
        %9274 = vmatpush1.bf16.msra.mxu0 0
        %9275 = vmatprep.subr.bf16.mxu0 0
        %9276 = vmatpush1.bf16.msra.mxu0 0
        %9277 = vmatprep.subr.bf16.mxu0 0
        %9278 = vmatpush1.bf16.msra.mxu0 0
        %9279 = vmatprep.mubr.bf16.mxu0 0
        %9280 = vmatmul.mubr.bf16.gmra.mrb[0].mxu0 %v9242
        %v9281 = vpop.f32.mrb[0].mxu0
        %v9282 = vadd.f32 0.0, %v9281
        %v9283 = vpop.f32.mrb[0].mxu0
        %v9284 = vpop.f32.mrb[0].mxu0
        %v9285 = vpop.f32.mrb[0].mxu0
        %9286 = vdwg.mxu0
        %v9287 = vadd.f32 %v9223, %v9282
        %s9288 = scalar_lea.vmem %s7, 64
        %v9289 = vld [vmem:[%s9288] sm:$0xf]
        %v9290 = vld [vmem:[%s9288 + $0x4] sm:$0xf]
        %v9291 = vld [vmem:[%s9288 + $0x8] sm:$0xf]
        %v9292 = vld [vmem:[%s9288 + $0xc] sm:$0x1]
        %v9293 = vrot.slane %v9026, 2
        %v9298 = vunpack.c.l.b16 %v9289
        %v9299 = vunpack.c.l.b16 %v9290
        %v9300 = vunpack.c.l.b16 %v9291
        %v9301 = vunpack.c.l.b16 %v9292
        %v9302 = vpack.c.b16 %v9299, %v9298
        %v9303 = vpack.c.b16 %v9301, %v9300
        %v9306 = vsel %vm9042, %v9293, 0
        %v9309 = vand.u32 %v9303, %v9049
        %9311 = vmatprep.subr.bf16.mxu0 0
        %9312 = vmatpush1.bf16.msra.mxu0 %v9302
        %9313 = vmatprep.subr.bf16.mxu0 0
        %9314 = vmatpush1.bf16.msra.mxu0 %v9309
        %9315 = vmatprep.subr.bf16.mxu0 0
        %9316 = vmatpush1.bf16.msra.mxu0 0
        %9317 = vmatprep.subr.bf16.mxu0 0
        %9318 = vmatpush1.bf16.msra.mxu0 0
        %9319 = vmatprep.subr.bf16.mxu0 0
        %9320 = vmatpush1.bf16.msra.mxu0 0
        %9321 = vmatprep.subr.bf16.mxu0 0
        %9322 = vmatpush1.bf16.msra.mxu0 0
        %9323 = vmatprep.subr.bf16.mxu0 0
        %9324 = vmatpush1.bf16.msra.mxu0 0
        %9325 = vmatprep.subr.bf16.mxu0 0
        %9326 = vmatpush1.bf16.msra.mxu0 0
        %9327 = vmatprep.subr.bf16.mxu0 0
        %9328 = vmatpush1.bf16.msra.mxu0 0
        %9329 = vmatprep.subr.bf16.mxu0 0
        %9330 = vmatpush1.bf16.msra.mxu0 0
        %9331 = vmatprep.subr.bf16.mxu0 0
        %9332 = vmatpush1.bf16.msra.mxu0 0
        %9333 = vmatprep.subr.bf16.mxu0 0
        %9334 = vmatpush1.bf16.msra.mxu0 0
        %9335 = vmatprep.subr.bf16.mxu0 0
        %9336 = vmatpush1.bf16.msra.mxu0 0
        %9337 = vmatprep.subr.bf16.mxu0 0
        %9338 = vmatpush1.bf16.msra.mxu0 0
        %9339 = vmatprep.subr.bf16.mxu0 0
        %9340 = vmatpush1.bf16.msra.mxu0 0
        %9341 = vmatprep.subr.bf16.mxu0 0
        %9342 = vmatpush1.bf16.msra.mxu0 0
        %9343 = vmatprep.mubr.bf16.mxu0 0
        %9344 = vmatmul.mubr.bf16.gmra.mrb[0].mxu0 %v9306
        %v9345 = vpop.f32.mrb[0].mxu0
        %v9346 = vadd.f32 0.0, %v9345
        %v9347 = vpop.f32.mrb[0].mxu0
        %v9348 = vpop.f32.mrb[0].mxu0
        %v9349 = vpop.f32.mrb[0].mxu0
        %9350 = vdwg.mxu0
        %v9351 = vadd.f32 %v9287, %v9346
        %s9352 = scalar_lea.vmem %s7, 80
        %v9353 = vld [vmem:[%s9352] sm:$0xf]
        %v9354 = vld [vmem:[%s9352 + $0x4] sm:$0xf]
        %v9355 = vld [vmem:[%s9352 + $0x8] sm:$0xf]
        %v9356 = vld [vmem:[%s9352 + $0xc] sm:$0x1]
        %v9357 = vrot.slane %v9099, 2
        %v9362 = vunpack.c.l.b16 %v9353
        %v9363 = vunpack.c.l.b16 %v9354
        %v9364 = vunpack.c.l.b16 %v9355
        %v9365 = vunpack.c.l.b16 %v9356
        %v9366 = vpack.c.b16 %v9363, %v9362
        %v9367 = vpack.c.b16 %v9365, %v9364
        %v9370 = vsel %vm9042, %v9357, 0
        %v9373 = vand.u32 %v9367, %v9049
        %9375 = vmatprep.subr.bf16.mxu0 0
        %9376 = vmatpush1.bf16.msra.mxu0 %v9366
        %9377 = vmatprep.subr.bf16.mxu0 0
        %9378 = vmatpush1.bf16.msra.mxu0 %v9373
        %9379 = vmatprep.subr.bf16.mxu0 0
        %9380 = vmatpush1.bf16.msra.mxu0 0
        %9381 = vmatprep.subr.bf16.mxu0 0
        %9382 = vmatpush1.bf16.msra.mxu0 0
        %9383 = vmatprep.subr.bf16.mxu0 0
        %9384 = vmatpush1.bf16.msra.mxu0 0
        %9385 = vmatprep.subr.bf16.mxu0 0
        %9386 = vmatpush1.bf16.msra.mxu0 0
        %9387 = vmatprep.subr.bf16.mxu0 0
        %9388 = vmatpush1.bf16.msra.mxu0 0
        %9389 = vmatprep.subr.bf16.mxu0 0
        %9390 = vmatpush1.bf16.msra.mxu0 0
        %9391 = vmatprep.subr.bf16.mxu0 0
        %9392 = vmatpush1.bf16.msra.mxu0 0
        %9393 = vmatprep.subr.bf16.mxu0 0
        %9394 = vmatpush1.bf16.msra.mxu0 0
        %9395 = vmatprep.subr.bf16.mxu0 0
        %9396 = vmatpush1.bf16.msra.mxu0 0
        %9397 = vmatprep.subr.bf16.mxu0 0
        %9398 = vmatpush1.bf16.msra.mxu0 0
        %9399 = vmatprep.subr.bf16.mxu0 0
        %9400 = vmatpush1.bf16.msra.mxu0 0
        %9401 = vmatprep.subr.bf16.mxu0 0
        %9402 = vmatpush1.bf16.msra.mxu0 0
        %9403 = vmatprep.subr.bf16.mxu0 0
        %9404 = vmatpush1.bf16.msra.mxu0 0
        %9405 = vmatprep.subr.bf16.mxu0 0
        %9406 = vmatpush1.bf16.msra.mxu0 0
        %9407 = vmatprep.mubr.bf16.mxu0 0
        %9408 = vmatmul.mubr.bf16.gmra.mrb[0].mxu0 %v9370
        %v9409 = vpop.f32.mrb[0].mxu0
        %v9410 = vadd.f32 0.0, %v9409
        %v9411 = vpop.f32.mrb[0].mxu0
        %v9412 = vpop.f32.mrb[0].mxu0
        %v9413 = vpop.f32.mrb[0].mxu0
        %9414 = vdwg.mxu0
        %v9415 = vadd.f32 %v9351, %v9410
        %s9416 = scalar_lea.vmem %s7, 96
        %v9417 = vld [vmem:[%s9416] sm:$0xf]
        %v9418 = vld [vmem:[%s9416 + $0x4] sm:$0xf]
        %v9419 = vld [vmem:[%s9416 + $0x8] sm:$0xf]
        %v9420 = vld [vmem:[%s9416 + $0xc] sm:$0x1]
        %v9421 = vrot.slane %v9026, 3
        %v9426 = vunpack.c.l.b16 %v9417
        %v9427 = vunpack.c.l.b16 %v9418
        %v9428 = vunpack.c.l.b16 %v9419
        %v9429 = vunpack.c.l.b16 %v9420
        %v9430 = vpack.c.b16 %v9427, %v9426
        %v9431 = vpack.c.b16 %v9429, %v9428
        %v9434 = vsel %vm9042, %v9421, 0
        %v9437 = vand.u32 %v9431, %v9049
        %9439 = vmatprep.subr.bf16.mxu0 0
        %9440 = vmatpush1.bf16.msra.mxu0 %v9430
        %9441 = vmatprep.subr.bf16.mxu0 0
        %9442 = vmatpush1.bf16.msra.mxu0 %v9437
        %9443 = vmatprep.subr.bf16.mxu0 0
        %9444 = vmatpush1.bf16.msra.mxu0 0
        %9445 = vmatprep.subr.bf16.mxu0 0
        %9446 = vmatpush1.bf16.msra.mxu0 0
        %9447 = vmatprep.subr.bf16.mxu0 0
        %9448 = vmatpush1.bf16.msra.mxu0 0
        %9449 = vmatprep.subr.bf16.mxu0 0
        %9450 = vmatpush1.bf16.msra.mxu0 0
        %9451 = vmatprep.subr.bf16.mxu0 0
        %9452 = vmatpush1.bf16.msra.mxu0 0
        %9453 = vmatprep.subr.bf16.mxu0 0
        %9454 = vmatpush1.bf16.msra.mxu0 0
        %9455 = vmatprep.subr.bf16.mxu0 0
        %9456 = vmatpush1.bf16.msra.mxu0 0
        %9457 = vmatprep.subr.bf16.mxu0 0
        %9458 = vmatpush1.bf16.msra.mxu0 0
        %9459 = vmatprep.subr.bf16.mxu0 0
        %9460 = vmatpush1.bf16.msra.mxu0 0
        %9461 = vmatprep.subr.bf16.mxu0 0
        %9462 = vmatpush1.bf16.msra.mxu0 0
        %9463 = vmatprep.subr.bf16.mxu0 0
        %9464 = vmatpush1.bf16.msra.mxu0 0
        %9465 = vmatprep.subr.bf16.mxu0 0
        %9466 = vmatpush1.bf16.msra.mxu0 0
        %9467 = vmatprep.subr.bf16.mxu0 0
        %9468 = vmatpush1.bf16.msra.mxu0 0
        %9469 = vmatprep.subr.bf16.mxu0 0
        %9470 = vmatpush1.bf16.msra.mxu0 0
        %9471 = vmatprep.mubr.bf16.mxu0 0
        %9472 = vmatmul.mubr.bf16.gmra.mrb[0].mxu0 %v9434
        %v9473 = vpop.f32.mrb[0].mxu0
        %v9474 = vadd.f32 0.0, %v9473
        %v9475 = vpop.f32.mrb[0].mxu0
        %v9476 = vpop.f32.mrb[0].mxu0
        %v9477 = vpop.f32.mrb[0].mxu0
        %9478 = vdwg.mxu0
        %v9479 = vadd.f32 %v9415, %v9474
        %s9480 = scalar_lea.vmem %s7, 112
        %v9481 = vld [vmem:[%s9480] sm:$0xf]
        %v9482 = vld [vmem:[%s9480 + $0x4] sm:$0xf]
        %v9483 = vld [vmem:[%s9480 + $0x8] sm:$0xf]
        %v9484 = vld [vmem:[%s9480 + $0xc] sm:$0x1]
        %v9485 = vrot.slane %v9099, 3
        %v9490 = vunpack.c.l.b16 %v9481
        %v9491 = vunpack.c.l.b16 %v9482
        %v9492 = vunpack.c.l.b16 %v9483
        %v9493 = vunpack.c.l.b16 %v9484
        %v9494 = vpack.c.b16 %v9491, %v9490
        %v9495 = vpack.c.b16 %v9493, %v9492
        %v9498 = vsel %vm9042, %v9485, 0
        %v9501 = vand.u32 %v9495, %v9049
        %9503 = vmatprep.subr.bf16.mxu0 0
        %9504 = vmatpush1.bf16.msra.mxu0 %v9494
        %9505 = vmatprep.subr.bf16.mxu0 0
        %9506 = vmatpush1.bf16.msra.mxu0 %v9501
        %9507 = vmatprep.subr.bf16.mxu0 0
        %9508 = vmatpush1.bf16.msra.mxu0 0
        %9509 = vmatprep.subr.bf16.mxu0 0
        %9510 = vmatpush1.bf16.msra.mxu0 0
        %9511 = vmatprep.subr.bf16.mxu0 0
        %9512 = vmatpush1.bf16.msra.mxu0 0
        %9513 = vmatprep.subr.bf16.mxu0 0
        %9514 = vmatpush1.bf16.msra.mxu0 0
        %9515 = vmatprep.subr.bf16.mxu0 0
        %9516 = vmatpush1.bf16.msra.mxu0 0
        %9517 = vmatprep.subr.bf16.mxu0 0
        %9518 = vmatpush1.bf16.msra.mxu0 0
        %9519 = vmatprep.subr.bf16.mxu0 0
        %9520 = vmatpush1.bf16.msra.mxu0 0
        %9521 = vmatprep.subr.bf16.mxu0 0
        %9522 = vmatpush1.bf16.msra.mxu0 0
        %9523 = vmatprep.subr.bf16.mxu0 0
        %9524 = vmatpush1.bf16.msra.mxu0 0
        %9525 = vmatprep.subr.bf16.mxu0 0
        %9526 = vmatpush1.bf16.msra.mxu0 0
        %9527 = vmatprep.subr.bf16.mxu0 0
        %9528 = vmatpush1.bf16.msra.mxu0 0
        %9529 = vmatprep.subr.bf16.mxu0 0
        %9530 = vmatpush1.bf16.msra.mxu0 0
        %9531 = vmatprep.subr.bf16.mxu0 0
        %9532 = vmatpush1.bf16.msra.mxu0 0
        %9533 = vmatprep.subr.bf16.mxu0 0
        %9534 = vmatpush1.bf16.msra.mxu0 0
        %9535 = vmatprep.mubr.bf16.mxu0 0
        %9536 = vmatmul.mubr.bf16.gmra.mrb[0].mxu0 %v9498
        %v9537 = vpop.f32.mrb[0].mxu0
        %v9538 = vadd.f32 0.0, %v9537
        %v9539 = vpop.f32.mrb[0].mxu0
        %v9540 = vpop.f32.mrb[0].mxu0
        %v9541 = vpop.f32.mrb[0].mxu0
        %9542 = vdwg.mxu0
        %v9543 = vadd.f32 %v9479, %v9538
        %v9544 = vpack.c.bf16 %v9022, %v9022
        %s9545 = scalar_lea.vmem %s7, 128
        %v9546 = vld [vmem:[%s9545] sm:$0xf]
        %v9547 = vld [vmem:[%s9545 + $0x4] sm:$0xf]
        %v9548 = vld [vmem:[%s9545 + $0x8] sm:$0xf]
        %v9549 = vld [vmem:[%s9545 + $0xc] sm:$0x1]
        %v9554 = vunpack.c.l.b16 %v9546
        %v9555 = vunpack.c.l.b16 %v9547
        %v9556 = vunpack.c.l.b16 %v9548
        %v9557 = vunpack.c.l.b16 %v9549
        %v9558 = vpack.c.b16 %v9555, %v9554
        %v9559 = vpack.c.b16 %v9557, %v9556
        %v9562 = vsel %vm9042, %v9544, 0
        %v9565 = vand.u32 %v9559, %v9049
        %9567 = vmatprep.subr.bf16.mxu0 0
        %9568 = vmatpush1.bf16.msra.mxu0 %v9558
        %9569 = vmatprep.subr.bf16.mxu0 0
        %9570 = vmatpush1.bf16.msra.mxu0 %v9565
        %9571 = vmatprep.subr.bf16.mxu0 0
        %9572 = vmatpush1.bf16.msra.mxu0 0
        %9573 = vmatprep.subr.bf16.mxu0 0
        %9574 = vmatpush1.bf16.msra.mxu0 0
        %9575 = vmatprep.subr.bf16.mxu0 0
        %9576 = vmatpush1.bf16.msra.mxu0 0
        %9577 = vmatprep.subr.bf16.mxu0 0
        %9578 = vmatpush1.bf16.msra.mxu0 0
        %9579 = vmatprep.subr.bf16.mxu0 0
        %9580 = vmatpush1.bf16.msra.mxu0 0
        %9581 = vmatprep.subr.bf16.mxu0 0
        %9582 = vmatpush1.bf16.msra.mxu0 0
        %9583 = vmatprep.subr.bf16.mxu0 0
        %9584 = vmatpush1.bf16.msra.mxu0 0
        %9585 = vmatprep.subr.bf16.mxu0 0
        %9586 = vmatpush1.bf16.msra.mxu0 0
        %9587 = vmatprep.subr.bf16.mxu0 0
        %9588 = vmatpush1.bf16.msra.mxu0 0
        %9589 = vmatprep.subr.bf16.mxu0 0
        %9590 = vmatpush1.bf16.msra.mxu0 0
        %9591 = vmatprep.subr.bf16.mxu0 0
        %9592 = vmatpush1.bf16.msra.mxu0 0
        %9593 = vmatprep.subr.bf16.mxu0 0
        %9594 = vmatpush1.bf16.msra.mxu0 0
        %9595 = vmatprep.subr.bf16.mxu0 0
        %9596 = vmatpush1.bf16.msra.mxu0 0
        %9597 = vmatprep.subr.bf16.mxu0 0
        %9598 = vmatpush1.bf16.msra.mxu0 0
        %9599 = vmatprep.mubr.bf16.mxu0 0
        %9600 = vmatmul.mubr.bf16.gmra.mrb[0].mxu0 %v9562
        %v9601 = vpop.f32.mrb[0].mxu0
        %v9602 = vadd.f32 0.0, %v9601
        %v9603 = vpop.f32.mrb[0].mxu0
        %v9604 = vpop.f32.mrb[0].mxu0
        %v9605 = vpop.f32.mrb[0].mxu0
        %9606 = vdwg.mxu0
        %v9607 = vadd.f32 %v9543, %v9602
        %s9608 = scalar_lea.vmem %s7, 144
        %v9609 = vld [vmem:[%s9608] sm:$0xf]
        %v9610 = vld [vmem:[%s9608 + $0x4] sm:$0xf]
        %v9611 = vld [vmem:[%s9608 + $0x8] sm:$0xf]
        %v9612 = vld [vmem:[%s9608 + $0xc] sm:$0x1]
        %v9613 = vshrl.u32 %v9544, 16
        %v9619 = vunpack.c.l.b16 %v9609
        %v9620 = vunpack.c.l.b16 %v9610
        %v9621 = vunpack.c.l.b16 %v9611
        %v9622 = vunpack.c.l.b16 %v9612
        %v9623 = vpack.c.b16 %v9620, %v9619
        %v9624 = vpack.c.b16 %v9622, %v9621
        %v9627 = vsel %vm9042, %v9613, 0
        %v9630 = vand.u32 %v9624, %v9049
        %9632 = vmatprep.subr.bf16.mxu0 0
        %9633 = vmatpush1.bf16.msra.mxu0 %v9623
        %9634 = vmatprep.subr.bf16.mxu0 0
        %9635 = vmatpush1.bf16.msra.mxu0 %v9630
        %9636 = vmatprep.subr.bf16.mxu0 0
        %9637 = vmatpush1.bf16.msra.mxu0 0
        %9638 = vmatprep.subr.bf16.mxu0 0
        %9639 = vmatpush1.bf16.msra.mxu0 0
        %9640 = vmatprep.subr.bf16.mxu0 0
        %9641 = vmatpush1.bf16.msra.mxu0 0
        %9642 = vmatprep.subr.bf16.mxu0 0
        %9643 = vmatpush1.bf16.msra.mxu0 0
        %9644 = vmatprep.subr.bf16.mxu0 0
        %9645 = vmatpush1.bf16.msra.mxu0 0
        %9646 = vmatprep.subr.bf16.mxu0 0
        %9647 = vmatpush1.bf16.msra.mxu0 0
        %9648 = vmatprep.subr.bf16.mxu0 0
        %9649 = vmatpush1.bf16.msra.mxu0 0
        %9650 = vmatprep.subr.bf16.mxu0 0
        %9651 = vmatpush1.bf16.msra.mxu0 0
        %9652 = vmatprep.subr.bf16.mxu0 0
        %9653 = vmatpush1.bf16.msra.mxu0 0
        %9654 = vmatprep.subr.bf16.mxu0 0
        %9655 = vmatpush1.bf16.msra.mxu0 0
        %9656 = vmatprep.subr.bf16.mxu0 0
        %9657 = vmatpush1.bf16.msra.mxu0 0
        %9658 = vmatprep.subr.bf16.mxu0 0
        %9659 = vmatpush1.bf16.msra.mxu0 0
        %9660 = vmatprep.subr.bf16.mxu0 0
        %9661 = vmatpush1.bf16.msra.mxu0 0
        %9662 = vmatprep.subr.bf16.mxu0 0
        %9663 = vmatpush1.bf16.msra.mxu0 0
        %9664 = vmatprep.mubr.bf16.mxu0 0
        %9665 = vmatmul.mubr.bf16.gmra.mrb[0].mxu0 %v9627
        %v9666 = vpop.f32.mrb[0].mxu0
        %v9667 = vadd.f32 0.0, %v9666
        %v9668 = vpop.f32.mrb[0].mxu0
        %v9669 = vpop.f32.mrb[0].mxu0
        %v9670 = vpop.f32.mrb[0].mxu0
        %9671 = vdwg.mxu0
        %v9672 = vadd.f32 %v9607, %v9667
        %s9673 = scalar_lea.vmem %s7, 160
        %v9674 = vld [vmem:[%s9673] sm:$0xf]
        %v9675 = vld [vmem:[%s9673 + $0x4] sm:$0xf]
        %v9676 = vld [vmem:[%s9673 + $0x8] sm:$0xf]
        %v9677 = vld [vmem:[%s9673 + $0xc] sm:$0x1]
        %v9679 = vrot.slane %v9544, 1
        %v9684 = vunpack.c.l.b16 %v9674
        %v9685 = vunpack.c.l.b16 %v9675
        %v9686 = vunpack.c.l.b16 %v9676
        %v9687 = vunpack.c.l.b16 %v9677
        %v9688 = vpack.c.b16 %v9685, %v9684
        %v9689 = vpack.c.b16 %v9687, %v9686
        %v9692 = vsel %vm9042, %v9679, 0
        %v9695 = vand.u32 %v9689, %v9049
        %9697 = vmatprep.subr.bf16.mxu0 0
        %9698 = vmatpush1.bf16.msra.mxu0 %v9688
        %9699 = vmatprep.subr.bf16.mxu0 0
        %9700 = vmatpush1.bf16.msra.mxu0 %v9695
        %9701 = vmatprep.subr.bf16.mxu0 0
        %9702 = vmatpush1.bf16.msra.mxu0 0
        %9703 = vmatprep.subr.bf16.mxu0 0
        %9704 = vmatpush1.bf16.msra.mxu0 0
        %9705 = vmatprep.subr.bf16.mxu0 0
        %9706 = vmatpush1.bf16.msra.mxu0 0
        %9707 = vmatprep.subr.bf16.mxu0 0
        %9708 = vmatpush1.bf16.msra.mxu0 0
        %9709 = vmatprep.subr.bf16.mxu0 0
        %9710 = vmatpush1.bf16.msra.mxu0 0
        %9711 = vmatprep.subr.bf16.mxu0 0
        %9712 = vmatpush1.bf16.msra.mxu0 0
        %9713 = vmatprep.subr.bf16.mxu0 0
        %9714 = vmatpush1.bf16.msra.mxu0 0
        %9715 = vmatprep.subr.bf16.mxu0 0
        %9716 = vmatpush1.bf16.msra.mxu0 0
        %9717 = vmatprep.subr.bf16.mxu0 0
        %9718 = vmatpush1.bf16.msra.mxu0 0
        %9719 = vmatprep.subr.bf16.mxu0 0
        %9720 = vmatpush1.bf16.msra.mxu0 0
        %9721 = vmatprep.subr.bf16.mxu0 0
        %9722 = vmatpush1.bf16.msra.mxu0 0
        %9723 = vmatprep.subr.bf16.mxu0 0
        %9724 = vmatpush1.bf16.msra.mxu0 0
        %9725 = vmatprep.subr.bf16.mxu0 0
        %9726 = vmatpush1.bf16.msra.mxu0 0
        %9727 = vmatprep.subr.bf16.mxu0 0
        %9728 = vmatpush1.bf16.msra.mxu0 0
        %9729 = vmatprep.mubr.bf16.mxu0 0
        %9730 = vmatmul.mubr.bf16.gmra.mrb[0].mxu0 %v9692
        %v9731 = vpop.f32.mrb[0].mxu0
        %v9732 = vadd.f32 0.0, %v9731
        %v9733 = vpop.f32.mrb[0].mxu0
        %v9734 = vpop.f32.mrb[0].mxu0
        %v9735 = vpop.f32.mrb[0].mxu0
        %9736 = vdwg.mxu0
        %v9737 = vadd.f32 %v9672, %v9732
        %s9738 = scalar_lea.vmem %s7, 176
        %v9739 = vld [vmem:[%s9738] sm:$0xf]
        %v9740 = vld [vmem:[%s9738 + $0x4] sm:$0xf]
        %v9741 = vld [vmem:[%s9738 + $0x8] sm:$0xf]
        %v9742 = vld [vmem:[%s9738 + $0xc] sm:$0x1]
        %v9743 = vrot.slane %v9613, 1
        %v9748 = vunpack.c.l.b16 %v9739
        %v9749 = vunpack.c.l.b16 %v9740
        %v9750 = vunpack.c.l.b16 %v9741
        %v9751 = vunpack.c.l.b16 %v9742
        %v9752 = vpack.c.b16 %v9749, %v9748
        %v9753 = vpack.c.b16 %v9751, %v9750
        %v9756 = vsel %vm9042, %v9743, 0
        %v9759 = vand.u32 %v9753, %v9049
        %9761 = vmatprep.subr.bf16.mxu0 0
        %9762 = vmatpush1.bf16.msra.mxu0 %v9752
        %9763 = vmatprep.subr.bf16.mxu0 0
        %9764 = vmatpush1.bf16.msra.mxu0 %v9759
        %9765 = vmatprep.subr.bf16.mxu0 0
        %9766 = vmatpush1.bf16.msra.mxu0 0
        %9767 = vmatprep.subr.bf16.mxu0 0
        %9768 = vmatpush1.bf16.msra.mxu0 0
        %9769 = vmatprep.subr.bf16.mxu0 0
        %9770 = vmatpush1.bf16.msra.mxu0 0
        %9771 = vmatprep.subr.bf16.mxu0 0
        %9772 = vmatpush1.bf16.msra.mxu0 0
        %9773 = vmatprep.subr.bf16.mxu0 0
        %9774 = vmatpush1.bf16.msra.mxu0 0
        %9775 = vmatprep.subr.bf16.mxu0 0
        %9776 = vmatpush1.bf16.msra.mxu0 0
        %9777 = vmatprep.subr.bf16.mxu0 0
        %9778 = vmatpush1.bf16.msra.mxu0 0
        %9779 = vmatprep.subr.bf16.mxu0 0
        %9780 = vmatpush1.bf16.msra.mxu0 0
        %9781 = vmatprep.subr.bf16.mxu0 0
        %9782 = vmatpush1.bf16.msra.mxu0 0
        %9783 = vmatprep.subr.bf16.mxu0 0
        %9784 = vmatpush1.bf16.msra.mxu0 0
        %9785 = vmatprep.subr.bf16.mxu0 0
        %9786 = vmatpush1.bf16.msra.mxu0 0
        %9787 = vmatprep.subr.bf16.mxu0 0
        %9788 = vmatpush1.bf16.msra.mxu0 0
        %9789 = vmatprep.subr.bf16.mxu0 0
        %9790 = vmatpush1.bf16.msra.mxu0 0
        %9791 = vmatprep.subr.bf16.mxu0 0
        %9792 = vmatpush1.bf16.msra.mxu0 0
        %9793 = vmatprep.mubr.bf16.mxu0 0
        %9794 = vmatmul.mubr.bf16.gmra.mrb[0].mxu0 %v9756
        %v9795 = vpop.f32.mrb[0].mxu0
        %v9796 = vadd.f32 0.0, %v9795
        %v9797 = vpop.f32.mrb[0].mxu0
        %v9798 = vpop.f32.mrb[0].mxu0
        %v9799 = vpop.f32.mrb[0].mxu0
        %9800 = vdwg.mxu0
        %v9801 = vadd.f32 %v9737, %v9796
        %s9802 = scalar_lea.vmem %s7, 192
        %v9803 = vld [vmem:[%s9802] sm:$0xf]
        %v9804 = vld [vmem:[%s9802 + $0x4] sm:$0xf]
        %v9805 = vld [vmem:[%s9802 + $0x8] sm:$0xf]
        %v9806 = vld [vmem:[%s9802 + $0xc] sm:$0x1]
        %v9807 = vrot.slane %v9544, 2
        %v9812 = vunpack.c.l.b16 %v9803
        %v9813 = vunpack.c.l.b16 %v9804
        %v9814 = vunpack.c.l.b16 %v9805
        %v9815 = vunpack.c.l.b16 %v9806
        %v9816 = vpack.c.b16 %v9813, %v9812
        %v9817 = vpack.c.b16 %v9815, %v9814
        %v9820 = vsel %vm9042, %v9807, 0
        %v9823 = vand.u32 %v9817, %v9049
        %9825 = vmatprep.subr.bf16.mxu0 0
        %9826 = vmatpush1.bf16.msra.mxu0 %v9816
        %9827 = vmatprep.subr.bf16.mxu0 0
        %9828 = vmatpush1.bf16.msra.mxu0 %v9823
        %9829 = vmatprep.subr.bf16.mxu0 0
        %9830 = vmatpush1.bf16.msra.mxu0 0
        %9831 = vmatprep.subr.bf16.mxu0 0
        %9832 = vmatpush1.bf16.msra.mxu0 0
        %9833 = vmatprep.subr.bf16.mxu0 0
        %9834 = vmatpush1.bf16.msra.mxu0 0
        %9835 = vmatprep.subr.bf16.mxu0 0
        %9836 = vmatpush1.bf16.msra.mxu0 0
        %9837 = vmatprep.subr.bf16.mxu0 0
        %9838 = vmatpush1.bf16.msra.mxu0 0
        %9839 = vmatprep.subr.bf16.mxu0 0
        %9840 = vmatpush1.bf16.msra.mxu0 0
        %9841 = vmatprep.subr.bf16.mxu0 0
        %9842 = vmatpush1.bf16.msra.mxu0 0
        %9843 = vmatprep.subr.bf16.mxu0 0
        %9844 = vmatpush1.bf16.msra.mxu0 0
        %9845 = vmatprep.subr.bf16.mxu0 0
        %9846 = vmatpush1.bf16.msra.mxu0 0
        %9847 = vmatprep.subr.bf16.mxu0 0
        %9848 = vmatpush1.bf16.msra.mxu0 0
        %9849 = vmatprep.subr.bf16.mxu0 0
        %9850 = vmatpush1.bf16.msra.mxu0 0
        %9851 = vmatprep.subr.bf16.mxu0 0
        %9852 = vmatpush1.bf16.msra.mxu0 0
        %9853 = vmatprep.subr.bf16.mxu0 0
        %9854 = vmatpush1.bf16.msra.mxu0 0
        %9855 = vmatprep.subr.bf16.mxu0 0
        %9856 = vmatpush1.bf16.msra.mxu0 0
        %9857 = vmatprep.mubr.bf16.mxu0 0
        %9858 = vmatmul.mubr.bf16.gmra.mrb[0].mxu0 %v9820
        %v9859 = vpop.f32.mrb[0].mxu0
        %v9860 = vadd.f32 0.0, %v9859
        %v9861 = vpop.f32.mrb[0].mxu0
        %v9862 = vpop.f32.mrb[0].mxu0
        %v9863 = vpop.f32.mrb[0].mxu0
        %9864 = vdwg.mxu0
        %v9865 = vadd.f32 %v9801, %v9860
        %s9866 = scalar_lea.vmem %s7, 208
        %v9867 = vld [vmem:[%s9866] sm:$0xf]
        %v9868 = vld [vmem:[%s9866 + $0x4] sm:$0xf]
        %v9869 = vld [vmem:[%s9866 + $0x8] sm:$0xf]
        %v9870 = vld [vmem:[%s9866 + $0xc] sm:$0x1]
        %v9871 = vrot.slane %v9613, 2
        %v9876 = vunpack.c.l.b16 %v9867
        %v9877 = vunpack.c.l.b16 %v9868
        %v9878 = vunpack.c.l.b16 %v9869
        %v9879 = vunpack.c.l.b16 %v9870
        %v9880 = vpack.c.b16 %v9877, %v9876
        %v9881 = vpack.c.b16 %v9879, %v9878
        %v9884 = vsel %vm9042, %v9871, 0
        %v9887 = vand.u32 %v9881, %v9049
        %9889 = vmatprep.subr.bf16.mxu0 0
        %9890 = vmatpush1.bf16.msra.mxu0 %v9880
        %9891 = vmatprep.subr.bf16.mxu0 0
        %9892 = vmatpush1.bf16.msra.mxu0 %v9887
        %9893 = vmatprep.subr.bf16.mxu0 0
        %9894 = vmatpush1.bf16.msra.mxu0 0
        %9895 = vmatprep.subr.bf16.mxu0 0
        %9896 = vmatpush1.bf16.msra.mxu0 0
        %9897 = vmatprep.subr.bf16.mxu0 0
        %9898 = vmatpush1.bf16.msra.mxu0 0
        %9899 = vmatprep.subr.bf16.mxu0 0
        %9900 = vmatpush1.bf16.msra.mxu0 0
        %9901 = vmatprep.subr.bf16.mxu0 0
        %9902 = vmatpush1.bf16.msra.mxu0 0
        %9903 = vmatprep.subr.bf16.mxu0 0
        %9904 = vmatpush1.bf16.msra.mxu0 0
        %9905 = vmatprep.subr.bf16.mxu0 0
        %9906 = vmatpush1.bf16.msra.mxu0 0
        %9907 = vmatprep.subr.bf16.mxu0 0
        %9908 = vmatpush1.bf16.msra.mxu0 0
        %9909 = vmatprep.subr.bf16.mxu0 0
        %9910 = vmatpush1.bf16.msra.mxu0 0
        %9911 = vmatprep.subr.bf16.mxu0 0
        %9912 = vmatpush1.bf16.msra.mxu0 0
        %9913 = vmatprep.subr.bf16.mxu0 0
        %9914 = vmatpush1.bf16.msra.mxu0 0
        %9915 = vmatprep.subr.bf16.mxu0 0
        %9916 = vmatpush1.bf16.msra.mxu0 0
        %9917 = vmatprep.subr.bf16.mxu0 0
        %9918 = vmatpush1.bf16.msra.mxu0 0
        %9919 = vmatprep.subr.bf16.mxu0 0
        %9920 = vmatpush1.bf16.msra.mxu0 0
        %9921 = vmatprep.mubr.bf16.mxu0 0
        %9922 = vmatmul.mubr.bf16.gmra.mrb[0].mxu0 %v9884
        %v9923 = vpop.f32.mrb[0].mxu0
        %v9924 = vadd.f32 0.0, %v9923
        %v9925 = vpop.f32.mrb[0].mxu0
        %v9926 = vpop.f32.mrb[0].mxu0
        %v9927 = vpop.f32.mrb[0].mxu0
        %9928 = vdwg.mxu0
        %v9929 = vadd.f32 %v9865, %v9924
        %s9930 = scalar_lea.vmem %s7, 224
        %v9931 = vld [vmem:[%s9930] sm:$0xf]
        %v9932 = vld [vmem:[%s9930 + $0x4] sm:$0xf]
        %v9933 = vld [vmem:[%s9930 + $0x8] sm:$0xf]
        %v9934 = vld [vmem:[%s9930 + $0xc] sm:$0x1]
        %v9935 = vrot.slane %v9544, 3
        %v9940 = vunpack.c.l.b16 %v9931
        %v9941 = vunpack.c.l.b16 %v9932
        %v9942 = vunpack.c.l.b16 %v9933
        %v9943 = vunpack.c.l.b16 %v9934
        %v9944 = vpack.c.b16 %v9941, %v9940
        %v9945 = vpack.c.b16 %v9943, %v9942
        %v9948 = vsel %vm9042, %v9935, 0
        %v9951 = vand.u32 %v9945, %v9049
        %9953 = vmatprep.subr.bf16.mxu0 0
        %9954 = vmatpush1.bf16.msra.mxu0 %v9944
        %9955 = vmatprep.subr.bf16.mxu0 0
        %9956 = vmatpush1.bf16.msra.mxu0 %v9951
        %9957 = vmatprep.subr.bf16.mxu0 0
        %9958 = vmatpush1.bf16.msra.mxu0 0
        %9959 = vmatprep.subr.bf16.mxu0 0
        %9960 = vmatpush1.bf16.msra.mxu0 0
        %9961 = vmatprep.subr.bf16.mxu0 0
        %9962 = vmatpush1.bf16.msra.mxu0 0
        %9963 = vmatprep.subr.bf16.mxu0 0
        %9964 = vmatpush1.bf16.msra.mxu0 0
        %9965 = vmatprep.subr.bf16.mxu0 0
        %9966 = vmatpush1.bf16.msra.mxu0 0
        %9967 = vmatprep.subr.bf16.mxu0 0
        %9968 = vmatpush1.bf16.msra.mxu0 0
        %9969 = vmatprep.subr.bf16.mxu0 0
        %9970 = vmatpush1.bf16.msra.mxu0 0
        %9971 = vmatprep.subr.bf16.mxu0 0
        %9972 = vmatpush1.bf16.msra.mxu0 0
        %9973 = vmatprep.subr.bf16.mxu0 0
        %9974 = vmatpush1.bf16.msra.mxu0 0
        %9975 = vmatprep.subr.bf16.mxu0 0
        %9976 = vmatpush1.bf16.msra.mxu0 0
        %9977 = vmatprep.subr.bf16.mxu0 0
        %9978 = vmatpush1.bf16.msra.mxu0 0
        %9979 = vmatprep.subr.bf16.mxu0 0
        %9980 = vmatpush1.bf16.msra.mxu0 0
        %9981 = vmatprep.subr.bf16.mxu0 0
        %9982 = vmatpush1.bf16.msra.mxu0 0
        %9983 = vmatprep.subr.bf16.mxu0 0
        %9984 = vmatpush1.bf16.msra.mxu0 0
        %9985 = vmatprep.mubr.bf16.mxu0 0
        %9986 = vmatmul.mubr.bf16.gmra.mrb[0].mxu0 %v9948
        %v9987 = vpop.f32.mrb[0].mxu0
        %v9988 = vadd.f32 0.0, %v9987
        %v9989 = vpop.f32.mrb[0].mxu0
        %v9990 = vpop.f32.mrb[0].mxu0
        %v9991 = vpop.f32.mrb[0].mxu0
        %9992 = vdwg.mxu0
        %v9993 = vadd.f32 %v9929, %v9988
        %s9994 = scalar_lea.vmem %s7, 240
        %v9995 = vld [vmem:[%s9994] sm:$0xf]
        %v9996 = vld [vmem:[%s9994 + $0x4] sm:$0xf]
        %v9997 = vld [vmem:[%s9994 + $0x8] sm:$0xf]
        %v9998 = vld [vmem:[%s9994 + $0xc] sm:$0x1]
        %v9999 = vrot.slane %v9613, 3
        %v10004 = vunpack.c.l.b16 %v9995
        %v10005 = vunpack.c.l.b16 %v9996
        %v10006 = vunpack.c.l.b16 %v9997
        %v10007 = vunpack.c.l.b16 %v9998
        %v10008 = vpack.c.b16 %v10005, %v10004
        %v10009 = vpack.c.b16 %v10007, %v10006
        %v10012 = vsel %vm9042, %v9999, 0
        %v10015 = vand.u32 %v10009, %v9049
        %10017 = vmatprep.subr.bf16.mxu0 0
        %10018 = vmatpush1.bf16.msra.mxu0 %v10008
        %10019 = vmatprep.subr.bf16.mxu0 0
        %10020 = vmatpush1.bf16.msra.mxu0 %v10015
        %10021 = vmatprep.subr.bf16.mxu0 0
        %10022 = vmatpush1.bf16.msra.mxu0 0
        %10023 = vmatprep.subr.bf16.mxu0 0
        %10024 = vmatpush1.bf16.msra.mxu0 0
        %10025 = vmatprep.subr.bf16.mxu0 0
        %10026 = vmatpush1.bf16.msra.mxu0 0
        %10027 = vmatprep.subr.bf16.mxu0 0
        %10028 = vmatpush1.bf16.msra.mxu0 0
        %10029 = vmatprep.subr.bf16.mxu0 0
        %10030 = vmatpush1.bf16.msra.mxu0 0
        %10031 = vmatprep.subr.bf16.mxu0 0
        %10032 = vmatpush1.bf16.msra.mxu0 0
        %10033 = vmatprep.subr.bf16.mxu0 0
        %10034 = vmatpush1.bf16.msra.mxu0 0
        %10035 = vmatprep.subr.bf16.mxu0 0
        %10036 = vmatpush1.bf16.msra.mxu0 0
        %10037 = vmatprep.subr.bf16.mxu0 0
        %10038 = vmatpush1.bf16.msra.mxu0 0
        %10039 = vmatprep.subr.bf16.mxu0 0
        %10040 = vmatpush1.bf16.msra.mxu0 0
        %10041 = vmatprep.subr.bf16.mxu0 0
        %10042 = vmatpush1.bf16.msra.mxu0 0
        %10043 = vmatprep.subr.bf16.mxu0 0
        %10044 = vmatpush1.bf16.msra.mxu0 0
        %10045 = vmatprep.subr.bf16.mxu0 0
        %10046 = vmatpush1.bf16.msra.mxu0 0
        %10047 = vmatprep.subr.bf16.mxu0 0
        %10048 = vmatpush1.bf16.msra.mxu0 0
        %10049 = vmatprep.mubr.bf16.mxu0 0
        %10050 = vmatmul.mubr.bf16.gmra.mrb[0].mxu0 %v10012
        %v10051 = vpop.f32.mrb[0].mxu0
        %v10052 = vadd.f32 0.0, %v10051
        %v10053 = vpop.f32.mrb[0].mxu0
        %v10054 = vpop.f32.mrb[0].mxu0
        %v10055 = vpop.f32.mrb[0].mxu0
        %10056 = vdwg.mxu0
        %v10057 = vadd.f32 %v9993, %v10052
        %v10058 = vmax.f32 %v10057, 0.0
        %v10059 = vpack.c.bf16 %v10058, %v10058
        %v10060 = vld [vmem:[%s9] sm:$0xf]
        %v10061 = vld [vmem:[%s9 + $0x4] sm:$0xf]
        %v10062 = vld [vmem:[%s9 + $0x8] sm:$0xf]
        %v10063 = vld [vmem:[%s9 + $0xc] sm:$0xf]
        %v10064 = vld [vmem:[%s10] sm:$0x1]
        %v10069 = vunpack.c.l.b16 %v10060
        %v10070 = vunpack.c.l.b16 %v10061
        %v10071 = vunpack.c.l.b16 %v10062
        %v10072 = vunpack.c.l.b16 %v10063
        %v10073 = vpack.c.b16 %v10070, %v10069
        %v10074 = vpack.c.b16 %v10072, %v10071
        %vm10077 = vcmask 261120
        %v10079 = vsel %vm10077, %v10059, 0
        %10081 = vmatprep.subr.bf16.mxu0 0
        %10082 = vmatpush1.bf16.msra.mxu0 %v10073
        %10083 = vmatprep.subr.bf16.mxu0 0
        %10084 = vmatpush1.bf16.msra.mxu0 %v10074
        %10085 = vmatprep.subr.bf16.mxu0 0
        %10086 = vmatpush1.bf16.msra.mxu0 0
        %10087 = vmatprep.subr.bf16.mxu0 0
        %10088 = vmatpush1.bf16.msra.mxu0 0
        %10089 = vmatprep.subr.bf16.mxu0 0
        %10090 = vmatpush1.bf16.msra.mxu0 0
        %10091 = vmatprep.subr.bf16.mxu0 0
        %10092 = vmatpush1.bf16.msra.mxu0 0
        %10093 = vmatprep.subr.bf16.mxu0 0
        %10094 = vmatpush1.bf16.msra.mxu0 0
        %10095 = vmatprep.subr.bf16.mxu0 0
        %10096 = vmatpush1.bf16.msra.mxu0 0
        %10097 = vmatprep.subr.bf16.mxu0 0
        %10098 = vmatpush1.bf16.msra.mxu0 0
        %10099 = vmatprep.subr.bf16.mxu0 0
        %10100 = vmatpush1.bf16.msra.mxu0 0
        %10101 = vmatprep.subr.bf16.mxu0 0
        %10102 = vmatpush1.bf16.msra.mxu0 0
        %10103 = vmatprep.subr.bf16.mxu0 0
        %10104 = vmatpush1.bf16.msra.mxu0 0
        %10105 = vmatprep.subr.bf16.mxu0 0
        %10106 = vmatpush1.bf16.msra.mxu0 0
        %10107 = vmatprep.subr.bf16.mxu0 0
        %10108 = vmatpush1.bf16.msra.mxu0 0
        %10109 = vmatprep.subr.bf16.mxu0 0
        %10110 = vmatpush1.bf16.msra.mxu0 0
        %10111 = vmatprep.subr.bf16.mxu0 0
        %10112 = vmatpush1.bf16.msra.mxu0 0
        %10113 = vmatprep.mubr.bf16.mxu0 0
        %10114 = vmatmul.mubr.bf16.gmra.mrb[0].mxu0 %v10079
        %v10115 = vpop.f32.mrb[0].mxu0
        %v10116 = vadd.f32 %v10064, %v10115
        %v10117 = vpop.f32.mrb[0].mxu0
        %v10118 = vpop.f32.mrb[0].mxu0
        %v10119 = vpop.f32.mrb[0].mxu0
        %10120 = vdwg.mxu0
        %v10121 = vmax.f32 %v10116, 0.0
        %vm10122 = vcmask 122880
        %10123 = vst.msk [vmem:[%s378] sm:$0x1] %vm10122, %v10121
        %s10124 = sand.u32 %s269, 1
        %s10125 = scalar_lea.sflag [#allocation3], %s10124
        %s10126 = sand.u32 %s269, 1
        %s10127 = scalar_lea.vmem [#allocation2], %s10126
        // Predicated region
        $region65: #{simple_cnn_header_forward.1} parent=63 // pred_check
          %p10128 = pneg %p279
        $region66: #{simple_cnn_header_forward.1} parent=63 // pred_check_branch
          %10130 = sbr.rel (%p10128) target = $region68
        $region67: #{simple_cnn_header_forward.1} parent=63 // pred_region
          %s10132 = ssub.s32 16, 16
          %10133 = vsyncadd %s10125, %s10132
          %s10134 = smul.addr %s25, 16
          %s10135 = scalar_lea.hbm %s11, %s10134
          %s10137 = sshll.u32 %s10127, 4
          %s10138 = int_to_ptr.vmem [resolvable:$true] %s10137
          %10140 = dma.vmem_to_hbm [thread:$0]  %s10138, 16, %s10135, %s10125
        $region68: #{simple_cnn_header_forward.1} parent=63 // pred_fallthru
          _
      $region64: #{simple_cnn_header_forward.1} parent=5 // pred_fallthru
        _
      %p10141 = scmp.le.s32.totalorder 2, %s20
      // Predicated region
      $region69: #{simple_cnn_header_forward.1} parent=5 // pred_check
        %p10142 = pneg %p10141
      $region70: #{simple_cnn_header_forward.1} parent=5 // pred_check_branch
        %10144 = sbr.rel (%p10142) target = $region72
      $region71: #{simple_cnn_header_forward.1} parent=5 // pred_region
        %s10145 = ssub.s32 %s20, 2
        // Predicated region
        $region73: #{simple_cnn_header_forward.1} parent=71 // pred_check
          %p10146 = pneg %p285
        $region74: #{simple_cnn_header_forward.1} parent=71 // pred_check_branch
          %10148 = sbr.rel (%p10146) target = $region76
        $region75: #{simple_cnn_header_forward.1} parent=71 // pred_region
          %s10149 = sand.u32 %s270, 1
          %s10150 = scalar_lea.sflag [#allocation3], %s10149
          %s10151 = sand.u32 %s270, 1
          %s10152 = scalar_lea.vmem [#allocation2], %s10151
          %10153 = dma.done %s10150, 16
        $region76: #{simple_cnn_header_forward.1} parent=71 // pred_fallthru
          _
      $region72: #{simple_cnn_header_forward.1} parent=5 // pred_fallthru
        _
    $region6: #{simple_cnn_header_forward.1} parent=1 // loop_footer
      %s24 = sadd.s32 1, %s20
    $region7: #{simple_cnn_header_forward.1} parent=1 // loop_footer_branch
      %19 = sbr.rel target = $region3
    $region8: #{simple_cnn_header_forward.1} parent=1 // loop_exit
      _
    %10154 = vsyncpa [#allocation3], 1
    %s10155 = scalar_lea.sflag [#allocation3], 1
    %10156 = vsyncpa %s10155, 1

</llo_original>
